<compile_context>
chip_gen: v6e
topology: v6e:2x2x1
jax: 0.10.0
libtpu: 0.0.40
codegen_flags: <defaults>
</compile_context>

<pallas_src>
import jax
import jax.numpy as jnp
from jax import lax
from jax.experimental import pallas as pl
from jax.experimental.pallas import tpu as pltpu
import numpy as np


def _round_up(n, m):
    return ((n + m - 1) // m) * m


# ----------------------------------------------------------------------------
# Pallas kernel: one time-chunk of (lstm1 -> lstm2 -> output Linear).
# State (h1,c1,h2,c2) persists in VMEM scratch across time chunks.
# ----------------------------------------------------------------------------
def _decoder_kernel(xw1_ref,   # (P, bt, 4*H2p)  x@Wih1^T + b1, cyclic in t
                    whh1_ref,  # (H2p, 4*H2p)
                    wih2_ref,  # (H2p, 4*Hp)
                    whh2_ref,  # (Hp, 4*Hp)
                    b2_ref,    # (1, 4*Hp)
                    wout_ref,  # (Hp, Fp)
                    bout_ref,  # (1, Fp)
                    out_ref,   # (Tc, bt, Fp)
                    h1_ref, c1_ref, h2_ref, c2_ref):  # scratch state
    tc_steps, bt, fp = out_ref.shape
    period = xw1_ref.shape[0]
    h2p = whh1_ref.shape[0]
    hp = whh2_ref.shape[0]
    t_chunk = pl.program_id(1)

    # PyTorch default zero-init state, (re)set at the start of every batch
    # tile's time sweep.
    @pl.when(t_chunk == 0)
    def _():
        h1_ref[...] = jnp.zeros_like(h1_ref)
        c1_ref[...] = jnp.zeros_like(c1_ref)
        h2_ref[...] = jnp.zeros_like(h2_ref)
        c2_ref[...] = jnp.zeros_like(c2_ref)

    # Loop-invariant bias broadcasts hoisted out of the time loop
    # (JAX does not CSE broadcast_in_dim inside the loop body).
    b2b = jnp.broadcast_to(b2_ref[...], (bt, 4 * hp))
    boutb = jnp.broadcast_to(bout_ref[...], (bt, fp))

    t0 = t_chunk * tc_steps

    def gates_to_hc(g, c, n):
        # PyTorch gate order [i, f, g, o]; n is a lane multiple of 128 so all
        # slices are free lane-aligned static views.
        i_g = jax.nn.sigmoid(g[:, 0 * n:1 * n])
        f_g = jax.nn.sigmoid(g[:, 1 * n:2 * n])
        g_g = jnp.tanh(g[:, 2 * n:3 * n])
        o_g = jax.nn.sigmoid(g[:, 3 * n:4 * n])
        c_new = f_g * c + i_g * g_g
        h_new = o_g * jnp.tanh(c_new)
        return h_new, c_new

    def step(s, carry):
        h1, c1, h2, c2 = carry
        t = t0 + s
        # Layer-2 hh term only depends on t-1 state -> issue it early so the
        # MXU work hides under layer-1's EUP (sigmoid/tanh) work.
        g2_hh = jnp.dot(h2, whh2_ref[...], preferred_element_type=jnp.float32)
        # Layer 1: input-gate term is periodic in t with period = batch.
        gx1 = xw1_ref[t % period]                                  # (bt, 4*H2p)
        g1 = gx1 + jnp.dot(h1, whh1_ref[...],
                           preferred_element_type=jnp.float32)
        h1, c1 = gates_to_hc(g1, c1, h2p)
        # Layer 2: dependent dot is only K=H2p (no lane-concat copy).
        g2 = (jnp.dot(h1, wih2_ref[...], preferred_element_type=jnp.float32)
              + g2_hh + b2b)
        h2, c2 = gates_to_hc(g2, c2, hp)
        # Output Linear -> lane-dense (bt, Fp) store at local timestep s.
        y = jnp.dot(h2, wout_ref[...], preferred_element_type=jnp.float32) + boutb
        out_ref[s] = y
        return (h1, c1, h2, c2)

    carry0 = (h1_ref[...], c1_ref[...], h2_ref[...], c2_ref[...])
    unroll = tc_steps if tc_steps <= 8 else 4
    h1, c1, h2, c2 = lax.fori_loop(0, tc_steps, step, carry0, unroll=unroll)
    h1_ref[...] = h1
    c1_ref[...] = c1
    h2_ref[...] = h2
    c2_ref[...] = c2


# ----------------------------------------------------------------------------
# Wrapper: pads/transposes params, precomputes the layer-1 input gates once,
# runs the time-chunked kernel, and slices/transposes back to batch_first.
# ----------------------------------------------------------------------------
def lstm_decoder_forward(x, raw_params, *, seq_len, embedding_dim, n_features,
                         time_chunk=128):
    """x: (batch, embedding_dim) f32 latent. Returns (batch, seq_len, n_features)."""
    batch = x.shape[0]
    hid2 = 2 * embedding_dim
    hid = 2 * hid2

    bp = _round_up(batch, 8)
    ep = _round_up(embedding_dim, 128)
    h2p = _round_up(hid2, 128)
    hp = _round_up(hid, 128)
    fp = _round_up(n_features, 128)

    (w_ih1, w_hh1, b_ih1, b_hh1,
     w_ih2, w_hh2, b_ih2, b_hh2,
     w_out, b_out) = raw_params

    # --- per-gate zero padding keeps [i,f,g,o] blocks lane-aligned; padded
    #     gate units get zero weights AND zero bias, so (with zero-init state)
    #     padded h/c lanes stay exactly zero forever.
    def pad_gw(w, hn, hnp, kn, knp):
        w4 = w.reshape(4, hn, kn)
        w4 = jnp.pad(w4, ((0, 0), (0, hnp - hn), (0, knp - kn)))
        return w4.reshape(4 * hnp, knp)

    def pad_gb(b, hn, hnp):
        b4 = b.reshape(4, hn)
        b4 = jnp.pad(b4, ((0, 0), (0, hnp - hn)))
        return b4.reshape(4 * hnp)

    wih1_p = pad_gw(w_ih1, hid2, h2p, embedding_dim, ep)       # (4*H2p, Ep)
    whh1_p = pad_gw(w_hh1, hid2, h2p, hid2, h2p)               # (4*H2p, H2p)
    b1_p = pad_gb(b_ih1 + b_hh1, hid2, h2p)                    # (4*H2p,)

    wih2_p = pad_gw(w_ih2, hid, hp, hid2, h2p)                 # (4*Hp, H2p)
    whh2_p = pad_gw(w_hh2, hid, hp, hid, hp)                   # (4*Hp, Hp)
    b2_p = pad_gb(b_ih2 + b_hh2, hid, hp)                      # (4*Hp,)

    wout_p = jnp.pad(w_out, ((0, fp - n_features), (0, hp - hid)))   # (Fp, Hp)
    bout_p = jnp.pad(b_out, ((0, fp - n_features),))                 # (Fp,)

    # --- exact torch repeat+reshape semantics:
    #       seq[b', s, :] = x[(b'*seq_len + s) % batch, :]
    #     which is periodic in s with period = batch.  The layer-1 input-gate
    #     term is computed with ONE matmul and a row gather (no batch-times
    #     redundant FLOPs, no (S,B,E) array materialized).
    x_pad = jnp.pad(x, ((0, bp - batch), (0, ep - embedding_dim)))   # (Bp, Ep)
    xw1_base = (jnp.dot(x_pad, wih1_p.T, precision=lax.Precision.HIGHEST)
                + b1_p[None, :]).astype(jnp.float32)                 # (Bp, 4*H2p)
    period = batch
    s_idx = jnp.arange(period)
    b_idx = jnp.arange(bp)
    src = (b_idx[None, :] * seq_len + s_idx[:, None]) % batch        # (P, Bp)
    xw1_cyc = xw1_base[src]                                          # (P, Bp, 4*H2p)
    # TODO(synk): for very large batch, stream xw1 per step from HBM
    # (memory_space=pl.ANY + manual DMA) instead of keeping (P,Bp,4*H2p) in VMEM.

    # transposed for the x @ W form used on the MXU
    whh1_t = whh1_p.T                    # (H2p, 4*H2p)
    wih2_t = wih2_p.T                    # (H2p, 4*Hp)
    whh2_t = whh2_p.T                    # (Hp, 4*Hp)
    wout_t = wout_p.T                    # (Hp, Fp)
    b2_row = b2_p[None, :]               # (1, 4*Hp)
    bout_row = bout_p[None, :]           # (1, Fp)

    # --- grid: (batch tiles -> "parallel" (2nd TC on v7x), time chunks -> "arbitrary")
    n_btiles = 2 if (bp >= 16 and bp % 16 == 0) else 1
    bt = bp // n_btiles
    tc = min(time_chunk, seq_len)
    s_pad = _round_up(seq_len, tc)
    n_tchunks = s_pad // tc

    # Explicit VMEM budget (double-buffered inputs/output chunk + scratch),
    # with headroom, capped at v7x's 64 MiB physical VMEM.
    f32b = 4
    est = f32b * (
        2 * (period * bp * 4 * h2p
             + h2p * 4 * h2p + h2p * 4 * hp + hp * 4 * hp + hp * fp
             + 4 * hp + fp
             + tc * bt * fp)
        + 2 * (bt * h2p + bt * hp))
    vmem_limit = int(min(max(2 * est, 8 << 20), 64 << 20))

    grid_spec = pltpu.PrefetchScalarGridSpec(
        num_scalar_prefetch=0,
        grid=(n_btiles, n_tchunks),
        in_specs=[
            pl.BlockSpec((period, bt, 4 * h2p), lambda b, t: (0, b, 0)),
            pl.BlockSpec((h2p, 4 * h2p), lambda b, t: (0, 0)),
            pl.BlockSpec((h2p, 4 * hp), lambda b, t: (0, 0)),
            pl.BlockSpec((hp, 4 * hp), lambda b, t: (0, 0)),
            pl.BlockSpec((1, 4 * hp), lambda b, t: (0, 0)),
            pl.BlockSpec((hp, fp), lambda b, t: (0, 0)),
            pl.BlockSpec((1, fp), lambda b, t: (0, 0)),
        ],
        out_specs=pl.BlockSpec((tc, bt, fp), lambda b, t: (t, b, 0)),
        scratch_shapes=[
            pltpu.VMEM((bt, h2p), jnp.float32),   # h1
            pltpu.VMEM((bt, h2p), jnp.float32),   # c1
            pltpu.VMEM((bt, hp), jnp.float32),    # h2
            pltpu.VMEM((bt, hp), jnp.float32),    # c2
        ],
    )

    out_time = pl.pallas_call(
        _decoder_kernel,
        out_shape=jax.ShapeDtypeStruct((s_pad, bp, fp), jnp.float32),
        grid_spec=grid_spec,
        compiler_params=pltpu.CompilerParams(
            dimension_semantics=("parallel", "arbitrary"),
            vmem_limit_bytes=vmem_limit),
    )(xw1_cyc, whh1_t, wih2_t, whh2_t, b2_row, wout_t, bout_row)

    # strip padding, back to PyTorch batch_first layout (batch, seq_len, F)
    y = out_time[:seq_len, :batch, :n_features]
    return jnp.transpose(y, (1, 0, 2))


# ----------------------------------------------------------------------------
# Deterministic parameter init (raw PyTorch layouts: nn.LSTM / nn.Linear)
# ----------------------------------------------------------------------------
def init_params(key, embedding_dim, n_features):
    hid2 = 2 * embedding_dim
    hid = 2 * hid2
    ks = jax.random.split(key, 10)

    def u(k, shape, fan):
        bound = 1.0 / np.sqrt(fan)
        return jax.random.uniform(k, shape, jnp.float32, -bound, bound)

    w_ih1 = u(ks[0], (4 * hid2, embedding_dim), hid2)
    w_hh1 = u(ks[1], (4 * hid2, hid2), hid2)
    b_ih1 = u(ks[2], (4 * hid2,), hid2)
    b_hh1 = u(ks[3], (4 * hid2,), hid2)
    w_ih2 = u(ks[4], (4 * hid, hid2), hid)
    w_hh2 = u(ks[5], (4 * hid, hid), hid)
    b_ih2 = u(ks[6], (4 * hid,), hid)
    b_hh2 = u(ks[7], (4 * hid,), hid)
    w_out = u(ks[8], (n_features, hid), hid)
    b_out = u(ks[9], (n_features,), hid)
    return (w_ih1, w_hh1, b_ih1, b_hh1,
            w_ih2, w_hh2, b_ih2, b_hh2,
            w_out, b_out)


# ----------------------------------------------------------------------------
# Pure-JAX reference (exact torch semantics, lax.scan) for correctness check.
# ----------------------------------------------------------------------------
def _ref_forward(x, raw_params, *, seq_len, embedding_dim, n_features):
    batch = x.shape[0]
    hid2 = 2 * embedding_dim
    hid = 2 * hid2
    (w_ih1, w_hh1, b_ih1, b_hh1,
     w_ih2, w_hh2, b_ih2, b_hh2,
     w_out, b_out) = raw_params

    # exact torch: i.repeat(seq_len,1,1).reshape(-1, seq_len, E)
    rep = jnp.broadcast_to(x, (seq_len, batch, embedding_dim))
    seq = rep.reshape(-1, seq_len, embedding_dim)          # (B, S, E)
    xs = jnp.transpose(seq, (1, 0, 2))                     # (S, B, E)

    def run(xs, w_ih, w_hh, b, hidn):
        def stp(carry, x_t):
            h, c = carry
            g = x_t @ w_ih.T + h @ w_hh.T + b
            i_g = jax.nn.sigmoid(g[:, :hidn])
            f_g = jax.nn.sigmoid(g[:, hidn:2 * hidn])
            g_g = jnp.tanh(g[:, 2 * hidn:3 * hidn])
            o_g = jax.nn.sigmoid(g[:, 3 * hidn:])
            c = f_g * c + i_g * g_g
            h = o_g * jnp.tanh(c)
            return (h, c), h
        h0 = jnp.zeros((xs.shape[1], hidn), jnp.float32)
        _, hs = lax.scan(stp, (h0, jnp.zeros_like(h0)), xs)
        return hs

    h1 = run(xs, w_ih1, w_hh1, b_ih1 + b_hh1, hid2)        # (S, B, hid2)
    h2 = run(h1, w_ih2, w_hh2, b_ih2 + b_hh2, hid)         # (S, B, hid)
    y = h2 @ w_out.T + b_out                               # (S, B, F)
    return jnp.transpose(y, (1, 0, 2))


if __name__ == "__main__":
    batch = 2
    seq_len = 8
    embedding_dim = 8
    n_features = 4

    key = jax.random.PRNGKey(0)
    k_x, k_p = jax.random.split(key)
    x = jax.random.normal(k_x, (batch, embedding_dim), jnp.float32)
    raw_params = init_params(k_p, embedding_dim, n_features)

    out = lstm_decoder_forward(x, raw_params, seq_len=seq_len,
                               embedding_dim=embedding_dim,
                               n_features=n_features)
    out = jax.block_until_ready(out)

    ref = _ref_forward(x, raw_params, seq_len=seq_len,
                       embedding_dim=embedding_dim, n_features=n_features)
    assert out.shape == (batch, seq_len, n_features)
    np.testing.assert_allclose(np.asarray(out), np.asarray(ref),
                               rtol=1e-3, atol=1e-4)
    print("KERNEL_OK")
</pallas_src>

<mosaic_0001>
module attributes {stable_mosaic.version = 11 : i64} {
  func.func @_decoder_kernel(%arg0: i32, %arg1: i32, %arg2: memref<2x8x512xf32, #tpu.memory_space<vmem>>, %arg3: memref<128x512xf32, #tpu.memory_space<vmem>>, %arg4: memref<128x512xf32, #tpu.memory_space<vmem>>, %arg5: memref<128x512xf32, #tpu.memory_space<vmem>>, %arg6: memref<1x512xf32, #tpu.memory_space<vmem>>, %arg7: memref<128x128xf32, #tpu.memory_space<vmem>>, %arg8: memref<1x128xf32, #tpu.memory_space<vmem>>, %arg9: memref<8x8x128xf32, #tpu.memory_space<vmem>>, %arg10: memref<8x128xf32, #tpu.memory_space<vmem>>, %arg11: memref<8x128xf32, #tpu.memory_space<vmem>>, %arg12: memref<8x128xf32, #tpu.memory_space<vmem>>, %arg13: memref<8x128xf32, #tpu.memory_space<vmem>>) attributes {dimension_semantics = [#tpu.dimension_semantics<parallel>, #tpu.dimension_semantics<arbitrary>], iteration_bounds = array<i64: 1, 1>, scalar_prefetch = 0 : i64, scratch_operands = 4 : i64, tpu.core_type = #tpu.core_type<tc>, window_params = [{transform_indices = @transform_0, window_bounds = array<i64: 2, 8, 512>}, {pipeline_mode = #tpu.pipeline_mode<synchronous>, transform_indices = @transform_1, window_bounds = array<i64: 128, 512>}, {pipeline_mode = #tpu.pipeline_mode<synchronous>, transform_indices = @transform_2, window_bounds = array<i64: 128, 512>}, {pipeline_mode = #tpu.pipeline_mode<synchronous>, transform_indices = @transform_3, window_bounds = array<i64: 128, 512>}, {pipeline_mode = #tpu.pipeline_mode<synchronous>, transform_indices = @transform_4, window_bounds = array<i64: 1, 512>}, {pipeline_mode = #tpu.pipeline_mode<synchronous>, transform_indices = @transform_5, window_bounds = array<i64: 128, 128>}, {pipeline_mode = #tpu.pipeline_mode<synchronous>, transform_indices = @transform_6, window_bounds = array<i64: 1, 128>}, {transform_indices = @transform_7, window_bounds = array<i64: 8, 8, 128>}]} {
    %c0_i32 = arith.constant 0 : i32
    %0 = arith.cmpi eq, %arg1, %c0_i32 : i32
    %1 = arith.extui %0 : i1 to i32
    %c0_i32_0 = arith.constant 0 : i32
    %2 = arith.cmpi ne, %1, %c0_i32_0 : i32
    scf.if %2 {
      %cst_245 = arith.constant 0.000000e+00 : f32
      %658 = vector.broadcast %cst_245 : f32 to vector<8x128xf32>
      %c0_246 = arith.constant 0 : index
      %c0_247 = arith.constant 0 : index
      %659 = vector.load %arg10[%c0_246, %c0_247] : memref<8x128xf32, #tpu.memory_space<vmem>>, vector<8x128xf32>
      tpu.vector_store %arg10[%c0_246, %c0_247], %658 {strides = array<i32>} : memref<8x128xf32, #tpu.memory_space<vmem>>, vector<8x128xf32>,
      %cst_248 = arith.constant 0.000000e+00 : f32
      %660 = vector.broadcast %cst_248 : f32 to vector<8x128xf32>
      %c0_249 = arith.constant 0 : index
      %c0_250 = arith.constant 0 : index
      %661 = vector.load %arg11[%c0_249, %c0_250] : memref<8x128xf32, #tpu.memory_space<vmem>>, vector<8x128xf32>
      tpu.vector_store %arg11[%c0_249, %c0_250], %660 {strides = array<i32>} : memref<8x128xf32, #tpu.memory_space<vmem>>, vector<8x128xf32>,
      %cst_251 = arith.constant 0.000000e+00 : f32
      %662 = vector.broadcast %cst_251 : f32 to vector<8x128xf32>
      %c0_252 = arith.constant 0 : index
      %c0_253 = arith.constant 0 : index
      %663 = vector.load %arg12[%c0_252, %c0_253] : memref<8x128xf32, #tpu.memory_space<vmem>>, vector<8x128xf32>
      tpu.vector_store %arg12[%c0_252, %c0_253], %662 {strides = array<i32>} : memref<8x128xf32, #tpu.memory_space<vmem>>, vector<8x128xf32>,
      %cst_254 = arith.constant 0.000000e+00 : f32
      %664 = vector.broadcast %cst_254 : f32 to vector<8x128xf32>
      %c0_255 = arith.constant 0 : index
      %c0_256 = arith.constant 0 : index
      %665 = vector.load %arg13[%c0_255, %c0_256] : memref<8x128xf32, #tpu.memory_space<vmem>>, vector<8x128xf32>
      tpu.vector_store %arg13[%c0_255, %c0_256], %664 {strides = array<i32>} : memref<8x128xf32, #tpu.memory_space<vmem>>, vector<8x128xf32>,
    } else {
    }
    %c0 = arith.constant 0 : index
    %c0_1 = arith.constant 0 : index
    %3 = vector.load %arg6[%c0, %c0_1] : memref<1x512xf32, #tpu.memory_space<vmem>>, vector<1x512xf32>
    %4 = vector.shape_cast %3 : vector<1x512xf32> to vector<1x512xf32>
    %5 = vector.broadcast %4 : vector<1x512xf32> to vector<8x512xf32>
    %c0_2 = arith.constant 0 : index
    %c0_3 = arith.constant 0 : index
    %6 = vector.load %arg8[%c0_2, %c0_3] : memref<1x128xf32, #tpu.memory_space<vmem>>, vector<1x128xf32>
    %7 = vector.shape_cast %6 : vector<1x128xf32> to vector<1x128xf32>
    %8 = vector.broadcast %7 : vector<1x128xf32> to vector<8x128xf32>
    %c8_i32 = arith.constant 8 : i32
    %9 = arith.muli %arg1, %c8_i32 : i32
    %c0_4 = arith.constant 0 : index
    %c0_5 = arith.constant 0 : index
    %10 = vector.load %arg10[%c0_4, %c0_5] : memref<8x128xf32, #tpu.memory_space<vmem>>, vector<8x128xf32>
    %c0_6 = arith.constant 0 : index
    %c0_7 = arith.constant 0 : index
    %11 = vector.load %arg11[%c0_6, %c0_7] : memref<8x128xf32, #tpu.memory_space<vmem>>, vector<8x128xf32>
    %c0_8 = arith.constant 0 : index
    %c0_9 = arith.constant 0 : index
    %12 = vector.load %arg12[%c0_8, %c0_9] : memref<8x128xf32, #tpu.memory_space<vmem>>, vector<8x128xf32>
    %c0_10 = arith.constant 0 : index
    %c0_11 = arith.constant 0 : index
    %13 = vector.load %arg13[%c0_10, %c0_11] : memref<8x128xf32, #tpu.memory_space<vmem>>, vector<8x128xf32>
    %c0_i32_12 = arith.constant 0 : i32
    %14 = arith.addi %9, %c0_i32_12 : i32
    %c0_13 = arith.constant 0 : index
    %c0_14 = arith.constant 0 : index
    %15 = vector.load %arg5[%c0_13, %c0_14] : memref<128x512xf32, #tpu.memory_space<vmem>>, vector<128x512xf32>
    %cst = arith.constant dense<0.000000e+00> : vector<8x512xf32>
    %16 = tpu.matmul %12, %15, %cst {dimension_numbers = #tpu.dot_dimension_numbers<[1], [0], [0], [1], [0, 0, 1, 1], [], []>} : vector<8x128xf32>, vector<128x512xf32>, vector<8x512xf32> -> vector<8x512xf32>
    %c2_i32 = arith.constant 2 : i32
    %c0_i32_15 = arith.constant 0 : i32
    %17 = arith.cmpi eq, %c2_i32, %c0_i32_15 : i32
    %c1_i32 = arith.constant 1 : i32
    %18 = arith.select %17, %c1_i32, %c2_i32 : i32
    %19 = arith.remsi %14, %18 : i32
    %c0_i32_16 = arith.constant 0 : i32
    %20 = arith.cmpi ne, %19, %c0_i32_16 : i32
    %c0_i32_17 = arith.constant 0 : i32
    %21 = arith.cmpi slt, %19, %c0_i32_17 : i32
    %c0_i32_18 = arith.constant 0 : i32
    %22 = arith.cmpi slt, %18, %c0_i32_18 : i32
    %23 = arith.xori %21, %22 : i1
    %24 = arith.andi %23, %20 : i1
    %25 = arith.addi %19, %18 : i32
    %26 = arith.select %24, %25, %19 : i32
    %27 = arith.index_cast %26 : i32 to index
    %c0_19 = arith.constant 0 : index
    %c0_20 = arith.constant 0 : index
    %28 = vector.load %arg2[%27, %c0_19, %c0_20] : memref<2x8x512xf32, #tpu.memory_space<vmem>>, vector<1x8x512xf32>
    %29 = vector.shape_cast %28 : vector<1x8x512xf32> to vector<8x512xf32>
    %c0_21 = arith.constant 0 : index
    %c0_22 = arith.constant 0 : index
    %30 = vector.load %arg3[%c0_21, %c0_22] : memref<128x512xf32, #tpu.memory_space<vmem>>, vector<128x512xf32>
    %cst_23 = arith.constant dense<0.000000e+00> : vector<8x512xf32>
    %31 = tpu.matmul %10, %30, %cst_23 {dimension_numbers = #tpu.dot_dimension_numbers<[1], [0], [0], [1], [0, 0, 1, 1], [], []>} : vector<8x128xf32>, vector<128x512xf32>, vector<8x512xf32> -> vector<8x512xf32>
    %32 = arith.addf %29, %31 : vector<8x512xf32>
    %33 = vector.extract_strided_slice %32 {offsets = [0, 0], sizes = [8, 128], strides = [1, 1]} : vector<8x512xf32> to vector<8x128xf32>
    %34 = arith.negf %33 : vector<8x128xf32>
    %35 = math.exp %34 : vector<8x128xf32>
    %cst_24 = arith.constant 1.000000e+00 : f32
    %36 = vector.broadcast %cst_24 : f32 to vector<8x128xf32>
    %37 = arith.addf %36, %35 : vector<8x128xf32>
    %38 = arith.divf %36, %37 : vector<8x128xf32>
    %39 = vector.extract_strided_slice %32 {offsets = [0, 128], sizes = [8, 128], strides = [1, 1]} : vector<8x512xf32> to vector<8x128xf32>
    %40 = arith.negf %39 : vector<8x128xf32>
    %41 = math.exp %40 : vector<8x128xf32>
    %cst_25 = arith.constant 1.000000e+00 : f32
    %42 = vector.broadcast %cst_25 : f32 to vector<8x128xf32>
    %43 = arith.addf %42, %41 : vector<8x128xf32>
    %44 = arith.divf %42, %43 : vector<8x128xf32>
    %45 = vector.extract_strided_slice %32 {offsets = [0, 256], sizes = [8, 128], strides = [1, 1]} : vector<8x512xf32> to vector<8x128xf32>
    %46 = math.tanh %45 : vector<8x128xf32>
    %47 = vector.extract_strided_slice %32 {offsets = [0, 384], sizes = [8, 128], strides = [1, 1]} : vector<8x512xf32> to vector<8x128xf32>
    %48 = arith.negf %47 : vector<8x128xf32>
    %49 = math.exp %48 : vector<8x128xf32>
    %cst_26 = arith.constant 1.000000e+00 : f32
    %50 = vector.broadcast %cst_26 : f32 to vector<8x128xf32>
    %51 = arith.addf %50, %49 : vector<8x128xf32>
    %52 = arith.divf %50, %51 : vector<8x128xf32>
    %53 = arith.mulf %44, %11 : vector<8x128xf32>
    %54 = arith.mulf %38, %46 : vector<8x128xf32>
    %55 = arith.addf %53, %54 : vector<8x128xf32>
    %56 = math.tanh %55 : vector<8x128xf32>
    %57 = arith.mulf %52, %56 : vector<8x128xf32>
    %c0_27 = arith.constant 0 : index
    %c0_28 = arith.constant 0 : index
    %58 = vector.load %arg4[%c0_27, %c0_28] : memref<128x512xf32, #tpu.memory_space<vmem>>, vector<128x512xf32>
    %cst_29 = arith.constant dense<0.000000e+00> : vector<8x512xf32>
    %59 = tpu.matmul %57, %58, %cst_29 {dimension_numbers = #tpu.dot_dimension_numbers<[1], [0], [0], [1], [0, 0, 1, 1], [], []>} : vector<8x128xf32>, vector<128x512xf32>, vector<8x512xf32> -> vector<8x512xf32>
    %60 = arith.addf %59, %16 : vector<8x512xf32>
    %61 = arith.addf %60, %5 : vector<8x512xf32>
    %62 = vector.extract_strided_slice %61 {offsets = [0, 0], sizes = [8, 128], strides = [1, 1]} : vector<8x512xf32> to vector<8x128xf32>
    %63 = arith.negf %62 : vector<8x128xf32>
    %64 = math.exp %63 : vector<8x128xf32>
    %cst_30 = arith.constant 1.000000e+00 : f32
    %65 = vector.broadcast %cst_30 : f32 to vector<8x128xf32>
    %66 = arith.addf %65, %64 : vector<8x128xf32>
    %67 = arith.divf %65, %66 : vector<8x128xf32>
    %68 = vector.extract_strided_slice %61 {offsets = [0, 128], sizes = [8, 128], strides = [1, 1]} : vector<8x512xf32> to vector<8x128xf32>
    %69 = arith.negf %68 : vector<8x128xf32>
    %70 = math.exp %69 : vector<8x128xf32>
    %cst_31 = arith.constant 1.000000e+00 : f32
    %71 = vector.broadcast %cst_31 : f32 to vector<8x128xf32>
    %72 = arith.addf %71, %70 : vector<8x128xf32>
    %73 = arith.divf %71, %72 : vector<8x128xf32>
    %74 = vector.extract_strided_slice %61 {offsets = [0, 256], sizes = [8, 128], strides = [1, 1]} : vector<8x512xf32> to vector<8x128xf32>
    %75 = math.tanh %74 : vector<8x128xf32>
    %76 = vector.extract_strided_slice %61 {offsets = [0, 384], sizes = [8, 128], strides = [1, 1]} : vector<8x512xf32> to vector<8x128xf32>
    %77 = arith.negf %76 : vector<8x128xf32>
    %78 = math.exp %77 : vector<8x128xf32>
    %cst_32 = arith.constant 1.000000e+00 : f32
    %79 = vector.broadcast %cst_32 : f32 to vector<8x128xf32>
    %80 = arith.addf %79, %78 : vector<8x128xf32>
    %81 = arith.divf %79, %80 : vector<8x128xf32>
    %82 = arith.mulf %73, %13 : vector<8x128xf32>
    %83 = arith.mulf %67, %75 : vector<8x128xf32>
    %84 = arith.addf %82, %83 : vector<8x128xf32>
    %85 = math.tanh %84 : vector<8x128xf32>
    %86 = arith.mulf %81, %85 : vector<8x128xf32>
    %c0_33 = arith.constant 0 : index
    %c0_34 = arith.constant 0 : index
    %87 = vector.load %arg7[%c0_33, %c0_34] : memref<128x128xf32, #tpu.memory_space<vmem>>, vector<128x128xf32>
    %cst_35 = arith.constant dense<0.000000e+00> : vector<8x128xf32>
    %88 = tpu.matmul %86, %87, %cst_35 {dimension_numbers = #tpu.dot_dimension_numbers<[1], [0], [0], [1], [0, 0, 1, 1], [], []>} : vector<8x128xf32>, vector<128x128xf32>, vector<8x128xf32> -> vector<8x128xf32>
    %89 = arith.addf %88, %8 : vector<8x128xf32>
    %90 = arith.index_cast %c0_i32_12 : i32 to index
    %c0_36 = arith.constant 0 : index
    %c0_37 = arith.constant 0 : index
    %91 = vector.load %arg9[%90, %c0_36, %c0_37] : memref<8x8x128xf32, #tpu.memory_space<vmem>>, vector<1x8x128xf32>
    %92 = vector.shape_cast %91 : vector<1x8x128xf32> to vector<8x128xf32>
    %93 = vector.shape_cast %89 : vector<8x128xf32> to vector<1x8x128xf32>
    tpu.vector_store %arg9[%90, %c0_36, %c0_37], %93 {strides = array<i32>} : memref<8x8x128xf32, #tpu.memory_space<vmem>>, vector<1x8x128xf32>,
    %c1_i32_38 = arith.constant 1 : i32
    %94 = arith.addi %9, %c1_i32_38 : i32
    %c0_39 = arith.constant 0 : index
    %c0_40 = arith.constant 0 : index
    %95 = vector.load %arg5[%c0_39, %c0_40] : memref<128x512xf32, #tpu.memory_space<vmem>>, vector<128x512xf32>
    %cst_41 = arith.constant dense<0.000000e+00> : vector<8x512xf32>
    %96 = tpu.matmul %86, %95, %cst_41 {dimension_numbers = #tpu.dot_dimension_numbers<[1], [0], [0], [1], [0, 0, 1, 1], [], []>} : vector<8x128xf32>, vector<128x512xf32>, vector<8x512xf32> -> vector<8x512xf32>
    %c2_i32_42 = arith.constant 2 : i32
    %c0_i32_43 = arith.constant 0 : i32
    %97 = arith.cmpi eq, %c2_i32_42, %c0_i32_43 : i32
    %c1_i32_44 = arith.constant 1 : i32
    %98 = arith.select %97, %c1_i32_44, %c2_i32_42 : i32
    %99 = arith.remsi %94, %98 : i32
    %c0_i32_45 = arith.constant 0 : i32
    %100 = arith.cmpi ne, %99, %c0_i32_45 : i32
    %c0_i32_46 = arith.constant 0 : i32
    %101 = arith.cmpi slt, %99, %c0_i32_46 : i32
    %c0_i32_47 = arith.constant 0 : i32
    %102 = arith.cmpi slt, %98, %c0_i32_47 : i32
    %103 = arith.xori %101, %102 : i1
    %104 = arith.andi %103, %100 : i1
    %105 = arith.addi %99, %98 : i32
    %106 = arith.select %104, %105, %99 : i32
    %107 = arith.index_cast %106 : i32 to index
    %c0_48 = arith.constant 0 : index
    %c0_49 = arith.constant 0 : index
    %108 = vector.load %arg2[%107, %c0_48, %c0_49] : memref<2x8x512xf32, #tpu.memory_space<vmem>>, vector<1x8x512xf32>
    %109 = vector.shape_cast %108 : vector<1x8x512xf32> to vector<8x512xf32>
    %c0_50 = arith.constant 0 : index
    %c0_51 = arith.constant 0 : index
    %110 = vector.load %arg3[%c0_50, %c0_51] : memref<128x512xf32, #tpu.memory_space<vmem>>, vector<128x512xf32>
    %cst_52 = arith.constant dense<0.000000e+00> : vector<8x512xf32>
    %111 = tpu.matmul %57, %110, %cst_52 {dimension_numbers = #tpu.dot_dimension_numbers<[1], [0], [0], [1], [0, 0, 1, 1], [], []>} : vector<8x128xf32>, vector<128x512xf32>, vector<8x512xf32> -> vector<8x512xf32>
    %112 = arith.addf %109, %111 : vector<8x512xf32>
    %113 = vector.extract_strided_slice %112 {offsets = [0, 0], sizes = [8, 128], strides = [1, 1]} : vector<8x512xf32> to vector<8x128xf32>
    %114 = arith.negf %113 : vector<8x128xf32>
    %115 = math.exp %114 : vector<8x128xf32>
    %cst_53 = arith.constant 1.000000e+00 : f32
    %116 = vector.broadcast %cst_53 : f32 to vector<8x128xf32>
    %117 = arith.addf %116, %115 : vector<8x128xf32>
    %118 = arith.divf %116, %117 : vector<8x128xf32>
    %119 = vector.extract_strided_slice %112 {offsets = [0, 128], sizes = [8, 128], strides = [1, 1]} : vector<8x512xf32> to vector<8x128xf32>
    %120 = arith.negf %119 : vector<8x128xf32>
    %121 = math.exp %120 : vector<8x128xf32>
    %cst_54 = arith.constant 1.000000e+00 : f32
    %122 = vector.broadcast %cst_54 : f32 to vector<8x128xf32>
    %123 = arith.addf %122, %121 : vector<8x128xf32>
    %124 = arith.divf %122, %123 : vector<8x128xf32>
    %125 = vector.extract_strided_slice %112 {offsets = [0, 256], sizes = [8, 128], strides = [1, 1]} : vector<8x512xf32> to vector<8x128xf32>
    %126 = math.tanh %125 : vector<8x128xf32>
    %127 = vector.extract_strided_slice %112 {offsets = [0, 384], sizes = [8, 128], strides = [1, 1]} : vector<8x512xf32> to vector<8x128xf32>
    %128 = arith.negf %127 : vector<8x128xf32>
    %129 = math.exp %128 : vector<8x128xf32>
    %cst_55 = arith.constant 1.000000e+00 : f32
    %130 = vector.broadcast %cst_55 : f32 to vector<8x128xf32>
    %131 = arith.addf %130, %129 : vector<8x128xf32>
    %132 = arith.divf %130, %131 : vector<8x128xf32>
    %133 = arith.mulf %124, %55 : vector<8x128xf32>
    %134 = arith.mulf %118, %126 : vector<8x128xf32>
    %135 = arith.addf %133, %134 : vector<8x128xf32>
    %136 = math.tanh %135 : vector<8x128xf32>
    %137 = arith.mulf %132, %136 : vector<8x128xf32>
    %c0_56 = arith.constant 0 : index
    %c0_57 = arith.constant 0 : index
    %138 = vector.load %arg4[%c0_56, %c0_57] : memref<128x512xf32, #tpu.memory_space<vmem>>, vector<128x512xf32>
    %cst_58 = arith.constant dense<0.000000e+00> : vector<8x512xf32>
    %139 = tpu.matmul %137, %138, %cst_58 {dimension_numbers = #tpu.dot_dimension_numbers<[1], [0], [0], [1], [0, 0, 1, 1], [], []>} : vector<8x128xf32>, vector<128x512xf32>, vector<8x512xf32> -> vector<8x512xf32>
    %140 = arith.addf %139, %96 : vector<8x512xf32>
    %141 = arith.addf %140, %5 : vector<8x512xf32>
    %142 = vector.extract_strided_slice %141 {offsets = [0, 0], sizes = [8, 128], strides = [1, 1]} : vector<8x512xf32> to vector<8x128xf32>
    %143 = arith.negf %142 : vector<8x128xf32>
    %144 = math.exp %143 : vector<8x128xf32>
    %cst_59 = arith.constant 1.000000e+00 : f32
    %145 = vector.broadcast %cst_59 : f32 to vector<8x128xf32>
    %146 = arith.addf %145, %144 : vector<8x128xf32>
    %147 = arith.divf %145, %146 : vector<8x128xf32>
    %148 = vector.extract_strided_slice %141 {offsets = [0, 128], sizes = [8, 128], strides = [1, 1]} : vector<8x512xf32> to vector<8x128xf32>
    %149 = arith.negf %148 : vector<8x128xf32>
    %150 = math.exp %149 : vector<8x128xf32>
    %cst_60 = arith.constant 1.000000e+00 : f32
    %151 = vector.broadcast %cst_60 : f32 to vector<8x128xf32>
    %152 = arith.addf %151, %150 : vector<8x128xf32>
    %153 = arith.divf %151, %152 : vector<8x128xf32>
    %154 = vector.extract_strided_slice %141 {offsets = [0, 256], sizes = [8, 128], strides = [1, 1]} : vector<8x512xf32> to vector<8x128xf32>
    %155 = math.tanh %154 : vector<8x128xf32>
    %156 = vector.extract_strided_slice %141 {offsets = [0, 384], sizes = [8, 128], strides = [1, 1]} : vector<8x512xf32> to vector<8x128xf32>
    %157 = arith.negf %156 : vector<8x128xf32>
    %158 = math.exp %157 : vector<8x128xf32>
    %cst_61 = arith.constant 1.000000e+00 : f32
    %159 = vector.broadcast %cst_61 : f32 to vector<8x128xf32>
    %160 = arith.addf %159, %158 : vector<8x128xf32>
    %161 = arith.divf %159, %160 : vector<8x128xf32>
    %162 = arith.mulf %153, %84 : vector<8x128xf32>
    %163 = arith.mulf %147, %155 : vector<8x128xf32>
    %164 = arith.addf %162, %163 : vector<8x128xf32>
    %165 = math.tanh %164 : vector<8x128xf32>
    %166 = arith.mulf %161, %165 : vector<8x128xf32>
    %c0_62 = arith.constant 0 : index
    %c0_63 = arith.constant 0 : index
    %167 = vector.load %arg7[%c0_62, %c0_63] : memref<128x128xf32, #tpu.memory_space<vmem>>, vector<128x128xf32>
    %cst_64 = arith.constant dense<0.000000e+00> : vector<8x128xf32>
    %168 = tpu.matmul %166, %167, %cst_64 {dimension_numbers = #tpu.dot_dimension_numbers<[1], [0], [0], [1], [0, 0, 1, 1], [], []>} : vector<8x128xf32>, vector<128x128xf32>, vector<8x128xf32> -> vector<8x128xf32>
    %169 = arith.addf %168, %8 : vector<8x128xf32>
    %170 = arith.index_cast %c1_i32_38 : i32 to index
    %c0_65 = arith.constant 0 : index
    %c0_66 = arith.constant 0 : index
    %171 = vector.load %arg9[%170, %c0_65, %c0_66] : memref<8x8x128xf32, #tpu.memory_space<vmem>>, vector<1x8x128xf32>
    %172 = vector.shape_cast %171 : vector<1x8x128xf32> to vector<8x128xf32>
    %173 = vector.shape_cast %169 : vector<8x128xf32> to vector<1x8x128xf32>
    tpu.vector_store %arg9[%170, %c0_65, %c0_66], %173 {strides = array<i32>} : memref<8x8x128xf32, #tpu.memory_space<vmem>>, vector<1x8x128xf32>,
    %c2_i32_67 = arith.constant 2 : i32
    %174 = arith.addi %9, %c2_i32_67 : i32
    %c0_68 = arith.constant 0 : index
    %c0_69 = arith.constant 0 : index
    %175 = vector.load %arg5[%c0_68, %c0_69] : memref<128x512xf32, #tpu.memory_space<vmem>>, vector<128x512xf32>
    %cst_70 = arith.constant dense<0.000000e+00> : vector<8x512xf32>
    %176 = tpu.matmul %166, %175, %cst_70 {dimension_numbers = #tpu.dot_dimension_numbers<[1], [0], [0], [1], [0, 0, 1, 1], [], []>} : vector<8x128xf32>, vector<128x512xf32>, vector<8x512xf32> -> vector<8x512xf32>
    %c2_i32_71 = arith.constant 2 : i32
    %c0_i32_72 = arith.constant 0 : i32
    %177 = arith.cmpi eq, %c2_i32_71, %c0_i32_72 : i32
    %c1_i32_73 = arith.constant 1 : i32
    %178 = arith.select %177, %c1_i32_73, %c2_i32_71 : i32
    %179 = arith.remsi %174, %178 : i32
    %c0_i32_74 = arith.constant 0 : i32
    %180 = arith.cmpi ne, %179, %c0_i32_74 : i32
    %c0_i32_75 = arith.constant 0 : i32
    %181 = arith.cmpi slt, %179, %c0_i32_75 : i32
    %c0_i32_76 = arith.constant 0 : i32
    %182 = arith.cmpi slt, %178, %c0_i32_76 : i32
    %183 = arith.xori %181, %182 : i1
    %184 = arith.andi %183, %180 : i1
    %185 = arith.addi %179, %178 : i32
    %186 = arith.select %184, %185, %179 : i32
    %187 = arith.index_cast %186 : i32 to index
    %c0_77 = arith.constant 0 : index
    %c0_78 = arith.constant 0 : index
    %188 = vector.load %arg2[%187, %c0_77, %c0_78] : memref<2x8x512xf32, #tpu.memory_space<vmem>>, vector<1x8x512xf32>
    %189 = vector.shape_cast %188 : vector<1x8x512xf32> to vector<8x512xf32>
    %c0_79 = arith.constant 0 : index
    %c0_80 = arith.constant 0 : index
    %190 = vector.load %arg3[%c0_79, %c0_80] : memref<128x512xf32, #tpu.memory_space<vmem>>, vector<128x512xf32>
    %cst_81 = arith.constant dense<0.000000e+00> : vector<8x512xf32>
    %191 = tpu.matmul %137, %190, %cst_81 {dimension_numbers = #tpu.dot_dimension_numbers<[1], [0], [0], [1], [0, 0, 1, 1], [], []>} : vector<8x128xf32>, vector<128x512xf32>, vector<8x512xf32> -> vector<8x512xf32>
    %192 = arith.addf %189, %191 : vector<8x512xf32>
    %193 = vector.extract_strided_slice %192 {offsets = [0, 0], sizes = [8, 128], strides = [1, 1]} : vector<8x512xf32> to vector<8x128xf32>
    %194 = arith.negf %193 : vector<8x128xf32>
    %195 = math.exp %194 : vector<8x128xf32>
    %cst_82 = arith.constant 1.000000e+00 : f32
    %196 = vector.broadcast %cst_82 : f32 to vector<8x128xf32>
    %197 = arith.addf %196, %195 : vector<8x128xf32>
    %198 = arith.divf %196, %197 : vector<8x128xf32>
    %199 = vector.extract_strided_slice %192 {offsets = [0, 128], sizes = [8, 128], strides = [1, 1]} : vector<8x512xf32> to vector<8x128xf32>
    %200 = arith.negf %199 : vector<8x128xf32>
    %201 = math.exp %200 : vector<8x128xf32>
    %cst_83 = arith.constant 1.000000e+00 : f32
    %202 = vector.broadcast %cst_83 : f32 to vector<8x128xf32>
    %203 = arith.addf %202, %201 : vector<8x128xf32>
    %204 = arith.divf %202, %203 : vector<8x128xf32>
    %205 = vector.extract_strided_slice %192 {offsets = [0, 256], sizes = [8, 128], strides = [1, 1]} : vector<8x512xf32> to vector<8x128xf32>
    %206 = math.tanh %205 : vector<8x128xf32>
    %207 = vector.extract_strided_slice %192 {offsets = [0, 384], sizes = [8, 128], strides = [1, 1]} : vector<8x512xf32> to vector<8x128xf32>
    %208 = arith.negf %207 : vector<8x128xf32>
    %209 = math.exp %208 : vector<8x128xf32>
    %cst_84 = arith.constant 1.000000e+00 : f32
    %210 = vector.broadcast %cst_84 : f32 to vector<8x128xf32>
    %211 = arith.addf %210, %209 : vector<8x128xf32>
    %212 = arith.divf %210, %211 : vector<8x128xf32>
    %213 = arith.mulf %204, %135 : vector<8x128xf32>
    %214 = arith.mulf %198, %206 : vector<8x128xf32>
    %215 = arith.addf %213, %214 : vector<8x128xf32>
    %216 = math.tanh %215 : vector<8x128xf32>
    %217 = arith.mulf %212, %216 : vector<8x128xf32>
    %c0_85 = arith.constant 0 : index
    %c0_86 = arith.constant 0 : index
    %218 = vector.load %arg4[%c0_85, %c0_86] : memref<128x512xf32, #tpu.memory_space<vmem>>, vector<128x512xf32>
    %cst_87 = arith.constant dense<0.000000e+00> : vector<8x512xf32>
    %219 = tpu.matmul %217, %218, %cst_87 {dimension_numbers = #tpu.dot_dimension_numbers<[1], [0], [0], [1], [0, 0, 1, 1], [], []>} : vector<8x128xf32>, vector<128x512xf32>, vector<8x512xf32> -> vector<8x512xf32>
    %220 = arith.addf %219, %176 : vector<8x512xf32>
    %221 = arith.addf %220, %5 : vector<8x512xf32>
    %222 = vector.extract_strided_slice %221 {offsets = [0, 0], sizes = [8, 128], strides = [1, 1]} : vector<8x512xf32> to vector<8x128xf32>
    %223 = arith.negf %222 : vector<8x128xf32>
    %224 = math.exp %223 : vector<8x128xf32>
    %cst_88 = arith.constant 1.000000e+00 : f32
    %225 = vector.broadcast %cst_88 : f32 to vector<8x128xf32>
    %226 = arith.addf %225, %224 : vector<8x128xf32>
    %227 = arith.divf %225, %226 : vector<8x128xf32>
    %228 = vector.extract_strided_slice %221 {offsets = [0, 128], sizes = [8, 128], strides = [1, 1]} : vector<8x512xf32> to vector<8x128xf32>
    %229 = arith.negf %228 : vector<8x128xf32>
    %230 = math.exp %229 : vector<8x128xf32>
    %cst_89 = arith.constant 1.000000e+00 : f32
    %231 = vector.broadcast %cst_89 : f32 to vector<8x128xf32>
    %232 = arith.addf %231, %230 : vector<8x128xf32>
    %233 = arith.divf %231, %232 : vector<8x128xf32>
    %234 = vector.extract_strided_slice %221 {offsets = [0, 256], sizes = [8, 128], strides = [1, 1]} : vector<8x512xf32> to vector<8x128xf32>
    %235 = math.tanh %234 : vector<8x128xf32>
    %236 = vector.extract_strided_slice %221 {offsets = [0, 384], sizes = [8, 128], strides = [1, 1]} : vector<8x512xf32> to vector<8x128xf32>
    %237 = arith.negf %236 : vector<8x128xf32>
    %238 = math.exp %237 : vector<8x128xf32>
    %cst_90 = arith.constant 1.000000e+00 : f32
    %239 = vector.broadcast %cst_90 : f32 to vector<8x128xf32>
    %240 = arith.addf %239, %238 : vector<8x128xf32>
    %241 = arith.divf %239, %240 : vector<8x128xf32>
    %242 = arith.mulf %233, %164 : vector<8x128xf32>
    %243 = arith.mulf %227, %235 : vector<8x128xf32>
    %244 = arith.addf %242, %243 : vector<8x128xf32>
    %245 = math.tanh %244 : vector<8x128xf32>
    %246 = arith.mulf %241, %245 : vector<8x128xf32>
    %c0_91 = arith.constant 0 : index
    %c0_92 = arith.constant 0 : index
    %247 = vector.load %arg7[%c0_91, %c0_92] : memref<128x128xf32, #tpu.memory_space<vmem>>, vector<128x128xf32>
    %cst_93 = arith.constant dense<0.000000e+00> : vector<8x128xf32>
    %248 = tpu.matmul %246, %247, %cst_93 {dimension_numbers = #tpu.dot_dimension_numbers<[1], [0], [0], [1], [0, 0, 1, 1], [], []>} : vector<8x128xf32>, vector<128x128xf32>, vector<8x128xf32> -> vector<8x128xf32>
    %249 = arith.addf %248, %8 : vector<8x128xf32>
    %250 = arith.index_cast %c2_i32_67 : i32 to index
    %c0_94 = arith.constant 0 : index
    %c0_95 = arith.constant 0 : index
    %251 = vector.load %arg9[%250, %c0_94, %c0_95] : memref<8x8x128xf32, #tpu.memory_space<vmem>>, vector<1x8x128xf32>
    %252 = vector.shape_cast %251 : vector<1x8x128xf32> to vector<8x128xf32>
    %253 = vector.shape_cast %249 : vector<8x128xf32> to vector<1x8x128xf32>
    tpu.vector_store %arg9[%250, %c0_94, %c0_95], %253 {strides = array<i32>} : memref<8x8x128xf32, #tpu.memory_space<vmem>>, vector<1x8x128xf32>,
    %c3_i32 = arith.constant 3 : i32
    %254 = arith.addi %9, %c3_i32 : i32
    %c0_96 = arith.constant 0 : index
    %c0_97 = arith.constant 0 : index
    %255 = vector.load %arg5[%c0_96, %c0_97] : memref<128x512xf32, #tpu.memory_space<vmem>>, vector<128x512xf32>
    %cst_98 = arith.constant dense<0.000000e+00> : vector<8x512xf32>
    %256 = tpu.matmul %246, %255, %cst_98 {dimension_numbers = #tpu.dot_dimension_numbers<[1], [0], [0], [1], [0, 0, 1, 1], [], []>} : vector<8x128xf32>, vector<128x512xf32>, vector<8x512xf32> -> vector<8x512xf32>
    %c2_i32_99 = arith.constant 2 : i32
    %c0_i32_100 = arith.constant 0 : i32
    %257 = arith.cmpi eq, %c2_i32_99, %c0_i32_100 : i32
    %c1_i32_101 = arith.constant 1 : i32
    %258 = arith.select %257, %c1_i32_101, %c2_i32_99 : i32
    %259 = arith.remsi %254, %258 : i32
    %c0_i32_102 = arith.constant 0 : i32
    %260 = arith.cmpi ne, %259, %c0_i32_102 : i32
    %c0_i32_103 = arith.constant 0 : i32
    %261 = arith.cmpi slt, %259, %c0_i32_103 : i32
    %c0_i32_104 = arith.constant 0 : i32
    %262 = arith.cmpi slt, %258, %c0_i32_104 : i32
    %263 = arith.xori %261, %262 : i1
    %264 = arith.andi %263, %260 : i1
    %265 = arith.addi %259, %258 : i32
    %266 = arith.select %264, %265, %259 : i32
    %267 = arith.index_cast %266 : i32 to index
    %c0_105 = arith.constant 0 : index
    %c0_106 = arith.constant 0 : index
    %268 = vector.load %arg2[%267, %c0_105, %c0_106] : memref<2x8x512xf32, #tpu.memory_space<vmem>>, vector<1x8x512xf32>
    %269 = vector.shape_cast %268 : vector<1x8x512xf32> to vector<8x512xf32>
    %c0_107 = arith.constant 0 : index
    %c0_108 = arith.constant 0 : index
    %270 = vector.load %arg3[%c0_107, %c0_108] : memref<128x512xf32, #tpu.memory_space<vmem>>, vector<128x512xf32>
    %cst_109 = arith.constant dense<0.000000e+00> : vector<8x512xf32>
    %271 = tpu.matmul %217, %270, %cst_109 {dimension_numbers = #tpu.dot_dimension_numbers<[1], [0], [0], [1], [0, 0, 1, 1], [], []>} : vector<8x128xf32>, vector<128x512xf32>, vector<8x512xf32> -> vector<8x512xf32>
    %272 = arith.addf %269, %271 : vector<8x512xf32>
    %273 = vector.extract_strided_slice %272 {offsets = [0, 0], sizes = [8, 128], strides = [1, 1]} : vector<8x512xf32> to vector<8x128xf32>
    %274 = arith.negf %273 : vector<8x128xf32>
    %275 = math.exp %274 : vector<8x128xf32>
    %cst_110 = arith.constant 1.000000e+00 : f32
    %276 = vector.broadcast %cst_110 : f32 to vector<8x128xf32>
    %277 = arith.addf %276, %275 : vector<8x128xf32>
    %278 = arith.divf %276, %277 : vector<8x128xf32>
    %279 = vector.extract_strided_slice %272 {offsets = [0, 128], sizes = [8, 128], strides = [1, 1]} : vector<8x512xf32> to vector<8x128xf32>
    %280 = arith.negf %279 : vector<8x128xf32>
    %281 = math.exp %280 : vector<8x128xf32>
    %cst_111 = arith.constant 1.000000e+00 : f32
    %282 = vector.broadcast %cst_111 : f32 to vector<8x128xf32>
    %283 = arith.addf %282, %281 : vector<8x128xf32>
    %284 = arith.divf %282, %283 : vector<8x128xf32>
    %285 = vector.extract_strided_slice %272 {offsets = [0, 256], sizes = [8, 128], strides = [1, 1]} : vector<8x512xf32> to vector<8x128xf32>
    %286 = math.tanh %285 : vector<8x128xf32>
    %287 = vector.extract_strided_slice %272 {offsets = [0, 384], sizes = [8, 128], strides = [1, 1]} : vector<8x512xf32> to vector<8x128xf32>
    %288 = arith.negf %287 : vector<8x128xf32>
    %289 = math.exp %288 : vector<8x128xf32>
    %cst_112 = arith.constant 1.000000e+00 : f32
    %290 = vector.broadcast %cst_112 : f32 to vector<8x128xf32>
    %291 = arith.addf %290, %289 : vector<8x128xf32>
    %292 = arith.divf %290, %291 : vector<8x128xf32>
    %293 = arith.mulf %284, %215 : vector<8x128xf32>
    %294 = arith.mulf %278, %286 : vector<8x128xf32>
    %295 = arith.addf %293, %294 : vector<8x128xf32>
    %296 = math.tanh %295 : vector<8x128xf32>
    %297 = arith.mulf %292, %296 : vector<8x128xf32>
    %c0_113 = arith.constant 0 : index
    %c0_114 = arith.constant 0 : index
    %298 = vector.load %arg4[%c0_113, %c0_114] : memref<128x512xf32, #tpu.memory_space<vmem>>, vector<128x512xf32>
    %cst_115 = arith.constant dense<0.000000e+00> : vector<8x512xf32>
    %299 = tpu.matmul %297, %298, %cst_115 {dimension_numbers = #tpu.dot_dimension_numbers<[1], [0], [0], [1], [0, 0, 1, 1], [], []>} : vector<8x128xf32>, vector<128x512xf32>, vector<8x512xf32> -> vector<8x512xf32>
    %300 = arith.addf %299, %256 : vector<8x512xf32>
    %301 = arith.addf %300, %5 : vector<8x512xf32>
    %302 = vector.extract_strided_slice %301 {offsets = [0, 0], sizes = [8, 128], strides = [1, 1]} : vector<8x512xf32> to vector<8x128xf32>
    %303 = arith.negf %302 : vector<8x128xf32>
    %304 = math.exp %303 : vector<8x128xf32>
    %cst_116 = arith.constant 1.000000e+00 : f32
    %305 = vector.broadcast %cst_116 : f32 to vector<8x128xf32>
    %306 = arith.addf %305, %304 : vector<8x128xf32>
    %307 = arith.divf %305, %306 : vector<8x128xf32>
    %308 = vector.extract_strided_slice %301 {offsets = [0, 128], sizes = [8, 128], strides = [1, 1]} : vector<8x512xf32> to vector<8x128xf32>
    %309 = arith.negf %308 : vector<8x128xf32>
    %310 = math.exp %309 : vector<8x128xf32>
    %cst_117 = arith.constant 1.000000e+00 : f32
    %311 = vector.broadcast %cst_117 : f32 to vector<8x128xf32>
    %312 = arith.addf %311, %310 : vector<8x128xf32>
    %313 = arith.divf %311, %312 : vector<8x128xf32>
    %314 = vector.extract_strided_slice %301 {offsets = [0, 256], sizes = [8, 128], strides = [1, 1]} : vector<8x512xf32> to vector<8x128xf32>
    %315 = math.tanh %314 : vector<8x128xf32>
    %316 = vector.extract_strided_slice %301 {offsets = [0, 384], sizes = [8, 128], strides = [1, 1]} : vector<8x512xf32> to vector<8x128xf32>
    %317 = arith.negf %316 : vector<8x128xf32>
    %318 = math.exp %317 : vector<8x128xf32>
    %cst_118 = arith.constant 1.000000e+00 : f32
    %319 = vector.broadcast %cst_118 : f32 to vector<8x128xf32>
    %320 = arith.addf %319, %318 : vector<8x128xf32>
    %321 = arith.divf %319, %320 : vector<8x128xf32>
    %322 = arith.mulf %313, %244 : vector<8x128xf32>
    %323 = arith.mulf %307, %315 : vector<8x128xf32>
    %324 = arith.addf %322, %323 : vector<8x128xf32>
    %325 = math.tanh %324 : vector<8x128xf32>
    %326 = arith.mulf %321, %325 : vector<8x128xf32>
    %c0_119 = arith.constant 0 : index
    %c0_120 = arith.constant 0 : index
    %327 = vector.load %arg7[%c0_119, %c0_120] : memref<128x128xf32, #tpu.memory_space<vmem>>, vector<128x128xf32>
    %cst_121 = arith.constant dense<0.000000e+00> : vector<8x128xf32>
    %328 = tpu.matmul %326, %327, %cst_121 {dimension_numbers = #tpu.dot_dimension_numbers<[1], [0], [0], [1], [0, 0, 1, 1], [], []>} : vector<8x128xf32>, vector<128x128xf32>, vector<8x128xf32> -> vector<8x128xf32>
    %329 = arith.addf %328, %8 : vector<8x128xf32>
    %330 = arith.index_cast %c3_i32 : i32 to index
    %c0_122 = arith.constant 0 : index
    %c0_123 = arith.constant 0 : index
    %331 = vector.load %arg9[%330, %c0_122, %c0_123] : memref<8x8x128xf32, #tpu.memory_space<vmem>>, vector<1x8x128xf32>
    %332 = vector.shape_cast %331 : vector<1x8x128xf32> to vector<8x128xf32>
    %333 = vector.shape_cast %329 : vector<8x128xf32> to vector<1x8x128xf32>
    tpu.vector_store %arg9[%330, %c0_122, %c0_123], %333 {strides = array<i32>} : memref<8x8x128xf32, #tpu.memory_space<vmem>>, vector<1x8x128xf32>,
    %c4_i32 = arith.constant 4 : i32
    %334 = arith.addi %9, %c4_i32 : i32
    %c0_124 = arith.constant 0 : index
    %c0_125 = arith.constant 0 : index
    %335 = vector.load %arg5[%c0_124, %c0_125] : memref<128x512xf32, #tpu.memory_space<vmem>>, vector<128x512xf32>
    %cst_126 = arith.constant dense<0.000000e+00> : vector<8x512xf32>
    %336 = tpu.matmul %326, %335, %cst_126 {dimension_numbers = #tpu.dot_dimension_numbers<[1], [0], [0], [1], [0, 0, 1, 1], [], []>} : vector<8x128xf32>, vector<128x512xf32>, vector<8x512xf32> -> vector<8x512xf32>
    %c2_i32_127 = arith.constant 2 : i32
    %c0_i32_128 = arith.constant 0 : i32
    %337 = arith.cmpi eq, %c2_i32_127, %c0_i32_128 : i32
    %c1_i32_129 = arith.constant 1 : i32
    %338 = arith.select %337, %c1_i32_129, %c2_i32_127 : i32
    %339 = arith.remsi %334, %338 : i32
    %c0_i32_130 = arith.constant 0 : i32
    %340 = arith.cmpi ne, %339, %c0_i32_130 : i32
    %c0_i32_131 = arith.constant 0 : i32
    %341 = arith.cmpi slt, %339, %c0_i32_131 : i32
    %c0_i32_132 = arith.constant 0 : i32
    %342 = arith.cmpi slt, %338, %c0_i32_132 : i32
    %343 = arith.xori %341, %342 : i1
    %344 = arith.andi %343, %340 : i1
    %345 = arith.addi %339, %338 : i32
    %346 = arith.select %344, %345, %339 : i32
    %347 = arith.index_cast %346 : i32 to index
    %c0_133 = arith.constant 0 : index
    %c0_134 = arith.constant 0 : index
    %348 = vector.load %arg2[%347, %c0_133, %c0_134] : memref<2x8x512xf32, #tpu.memory_space<vmem>>, vector<1x8x512xf32>
    %349 = vector.shape_cast %348 : vector<1x8x512xf32> to vector<8x512xf32>
    %c0_135 = arith.constant 0 : index
    %c0_136 = arith.constant 0 : index
    %350 = vector.load %arg3[%c0_135, %c0_136] : memref<128x512xf32, #tpu.memory_space<vmem>>, vector<128x512xf32>
    %cst_137 = arith.constant dense<0.000000e+00> : vector<8x512xf32>
    %351 = tpu.matmul %297, %350, %cst_137 {dimension_numbers = #tpu.dot_dimension_numbers<[1], [0], [0], [1], [0, 0, 1, 1], [], []>} : vector<8x128xf32>, vector<128x512xf32>, vector<8x512xf32> -> vector<8x512xf32>
    %352 = arith.addf %349, %351 : vector<8x512xf32>
    %353 = vector.extract_strided_slice %352 {offsets = [0, 0], sizes = [8, 128], strides = [1, 1]} : vector<8x512xf32> to vector<8x128xf32>
    %354 = arith.negf %353 : vector<8x128xf32>
    %355 = math.exp %354 : vector<8x128xf32>
    %cst_138 = arith.constant 1.000000e+00 : f32
    %356 = vector.broadcast %cst_138 : f32 to vector<8x128xf32>
    %357 = arith.addf %356, %355 : vector<8x128xf32>
    %358 = arith.divf %356, %357 : vector<8x128xf32>
    %359 = vector.extract_strided_slice %352 {offsets = [0, 128], sizes = [8, 128], strides = [1, 1]} : vector<8x512xf32> to vector<8x128xf32>
    %360 = arith.negf %359 : vector<8x128xf32>
    %361 = math.exp %360 : vector<8x128xf32>
    %cst_139 = arith.constant 1.000000e+00 : f32
    %362 = vector.broadcast %cst_139 : f32 to vector<8x128xf32>
    %363 = arith.addf %362, %361 : vector<8x128xf32>
    %364 = arith.divf %362, %363 : vector<8x128xf32>
    %365 = vector.extract_strided_slice %352 {offsets = [0, 256], sizes = [8, 128], strides = [1, 1]} : vector<8x512xf32> to vector<8x128xf32>
    %366 = math.tanh %365 : vector<8x128xf32>
    %367 = vector.extract_strided_slice %352 {offsets = [0, 384], sizes = [8, 128], strides = [1, 1]} : vector<8x512xf32> to vector<8x128xf32>
    %368 = arith.negf %367 : vector<8x128xf32>
    %369 = math.exp %368 : vector<8x128xf32>
    %cst_140 = arith.constant 1.000000e+00 : f32
    %370 = vector.broadcast %cst_140 : f32 to vector<8x128xf32>
    %371 = arith.addf %370, %369 : vector<8x128xf32>
    %372 = arith.divf %370, %371 : vector<8x128xf32>
    %373 = arith.mulf %364, %295 : vector<8x128xf32>
    %374 = arith.mulf %358, %366 : vector<8x128xf32>
    %375 = arith.addf %373, %374 : vector<8x128xf32>
    %376 = math.tanh %375 : vector<8x128xf32>
    %377 = arith.mulf %372, %376 : vector<8x128xf32>
    %c0_141 = arith.constant 0 : index
    %c0_142 = arith.constant 0 : index
    %378 = vector.load %arg4[%c0_141, %c0_142] : memref<128x512xf32, #tpu.memory_space<vmem>>, vector<128x512xf32>
    %cst_143 = arith.constant dense<0.000000e+00> : vector<8x512xf32>
    %379 = tpu.matmul %377, %378, %cst_143 {dimension_numbers = #tpu.dot_dimension_numbers<[1], [0], [0], [1], [0, 0, 1, 1], [], []>} : vector<8x128xf32>, vector<128x512xf32>, vector<8x512xf32> -> vector<8x512xf32>
    %380 = arith.addf %379, %336 : vector<8x512xf32>
    %381 = arith.addf %380, %5 : vector<8x512xf32>
    %382 = vector.extract_strided_slice %381 {offsets = [0, 0], sizes = [8, 128], strides = [1, 1]} : vector<8x512xf32> to vector<8x128xf32>
    %383 = arith.negf %382 : vector<8x128xf32>
    %384 = math.exp %383 : vector<8x128xf32>
    %cst_144 = arith.constant 1.000000e+00 : f32
    %385 = vector.broadcast %cst_144 : f32 to vector<8x128xf32>
    %386 = arith.addf %385, %384 : vector<8x128xf32>
    %387 = arith.divf %385, %386 : vector<8x128xf32>
    %388 = vector.extract_strided_slice %381 {offsets = [0, 128], sizes = [8, 128], strides = [1, 1]} : vector<8x512xf32> to vector<8x128xf32>
    %389 = arith.negf %388 : vector<8x128xf32>
    %390 = math.exp %389 : vector<8x128xf32>
    %cst_145 = arith.constant 1.000000e+00 : f32
    %391 = vector.broadcast %cst_145 : f32 to vector<8x128xf32>
    %392 = arith.addf %391, %390 : vector<8x128xf32>
    %393 = arith.divf %391, %392 : vector<8x128xf32>
    %394 = vector.extract_strided_slice %381 {offsets = [0, 256], sizes = [8, 128], strides = [1, 1]} : vector<8x512xf32> to vector<8x128xf32>
    %395 = math.tanh %394 : vector<8x128xf32>
    %396 = vector.extract_strided_slice %381 {offsets = [0, 384], sizes = [8, 128], strides = [1, 1]} : vector<8x512xf32> to vector<8x128xf32>
    %397 = arith.negf %396 : vector<8x128xf32>
    %398 = math.exp %397 : vector<8x128xf32>
    %cst_146 = arith.constant 1.000000e+00 : f32
    %399 = vector.broadcast %cst_146 : f32 to vector<8x128xf32>
    %400 = arith.addf %399, %398 : vector<8x128xf32>
    %401 = arith.divf %399, %400 : vector<8x128xf32>
    %402 = arith.mulf %393, %324 : vector<8x128xf32>
    %403 = arith.mulf %387, %395 : vector<8x128xf32>
    %404 = arith.addf %402, %403 : vector<8x128xf32>
    %405 = math.tanh %404 : vector<8x128xf32>
    %406 = arith.mulf %401, %405 : vector<8x128xf32>
    %c0_147 = arith.constant 0 : index
    %c0_148 = arith.constant 0 : index
    %407 = vector.load %arg7[%c0_147, %c0_148] : memref<128x128xf32, #tpu.memory_space<vmem>>, vector<128x128xf32>
    %cst_149 = arith.constant dense<0.000000e+00> : vector<8x128xf32>
    %408 = tpu.matmul %406, %407, %cst_149 {dimension_numbers = #tpu.dot_dimension_numbers<[1], [0], [0], [1], [0, 0, 1, 1], [], []>} : vector<8x128xf32>, vector<128x128xf32>, vector<8x128xf32> -> vector<8x128xf32>
    %409 = arith.addf %408, %8 : vector<8x128xf32>
    %410 = arith.index_cast %c4_i32 : i32 to index
    %c0_150 = arith.constant 0 : index
    %c0_151 = arith.constant 0 : index
    %411 = vector.load %arg9[%410, %c0_150, %c0_151] : memref<8x8x128xf32, #tpu.memory_space<vmem>>, vector<1x8x128xf32>
    %412 = vector.shape_cast %411 : vector<1x8x128xf32> to vector<8x128xf32>
    %413 = vector.shape_cast %409 : vector<8x128xf32> to vector<1x8x128xf32>
    tpu.vector_store %arg9[%410, %c0_150, %c0_151], %413 {strides = array<i32>} : memref<8x8x128xf32, #tpu.memory_space<vmem>>, vector<1x8x128xf32>,
    %c5_i32 = arith.constant 5 : i32
    %414 = arith.addi %9, %c5_i32 : i32
    %c0_152 = arith.constant 0 : index
    %c0_153 = arith.constant 0 : index
    %415 = vector.load %arg5[%c0_152, %c0_153] : memref<128x512xf32, #tpu.memory_space<vmem>>, vector<128x512xf32>
    %cst_154 = arith.constant dense<0.000000e+00> : vector<8x512xf32>
    %416 = tpu.matmul %406, %415, %cst_154 {dimension_numbers = #tpu.dot_dimension_numbers<[1], [0], [0], [1], [0, 0, 1, 1], [], []>} : vector<8x128xf32>, vector<128x512xf32>, vector<8x512xf32> -> vector<8x512xf32>
    %c2_i32_155 = arith.constant 2 : i32
    %c0_i32_156 = arith.constant 0 : i32
    %417 = arith.cmpi eq, %c2_i32_155, %c0_i32_156 : i32
    %c1_i32_157 = arith.constant 1 : i32
    %418 = arith.select %417, %c1_i32_157, %c2_i32_155 : i32
    %419 = arith.remsi %414, %418 : i32
    %c0_i32_158 = arith.constant 0 : i32
    %420 = arith.cmpi ne, %419, %c0_i32_158 : i32
    %c0_i32_159 = arith.constant 0 : i32
    %421 = arith.cmpi slt, %419, %c0_i32_159 : i32
    %c0_i32_160 = arith.constant 0 : i32
    %422 = arith.cmpi slt, %418, %c0_i32_160 : i32
    %423 = arith.xori %421, %422 : i1
    %424 = arith.andi %423, %420 : i1
    %425 = arith.addi %419, %418 : i32
    %426 = arith.select %424, %425, %419 : i32
    %427 = arith.index_cast %426 : i32 to index
    %c0_161 = arith.constant 0 : index
    %c0_162 = arith.constant 0 : index
    %428 = vector.load %arg2[%427, %c0_161, %c0_162] : memref<2x8x512xf32, #tpu.memory_space<vmem>>, vector<1x8x512xf32>
    %429 = vector.shape_cast %428 : vector<1x8x512xf32> to vector<8x512xf32>
    %c0_163 = arith.constant 0 : index
    %c0_164 = arith.constant 0 : index
    %430 = vector.load %arg3[%c0_163, %c0_164] : memref<128x512xf32, #tpu.memory_space<vmem>>, vector<128x512xf32>
    %cst_165 = arith.constant dense<0.000000e+00> : vector<8x512xf32>
    %431 = tpu.matmul %377, %430, %cst_165 {dimension_numbers = #tpu.dot_dimension_numbers<[1], [0], [0], [1], [0, 0, 1, 1], [], []>} : vector<8x128xf32>, vector<128x512xf32>, vector<8x512xf32> -> vector<8x512xf32>
    %432 = arith.addf %429, %431 : vector<8x512xf32>
    %433 = vector.extract_strided_slice %432 {offsets = [0, 0], sizes = [8, 128], strides = [1, 1]} : vector<8x512xf32> to vector<8x128xf32>
    %434 = arith.negf %433 : vector<8x128xf32>
    %435 = math.exp %434 : vector<8x128xf32>
    %cst_166 = arith.constant 1.000000e+00 : f32
    %436 = vector.broadcast %cst_166 : f32 to vector<8x128xf32>
    %437 = arith.addf %436, %435 : vector<8x128xf32>
    %438 = arith.divf %436, %437 : vector<8x128xf32>
    %439 = vector.extract_strided_slice %432 {offsets = [0, 128], sizes = [8, 128], strides = [1, 1]} : vector<8x512xf32> to vector<8x128xf32>
    %440 = arith.negf %439 : vector<8x128xf32>
    %441 = math.exp %440 : vector<8x128xf32>
    %cst_167 = arith.constant 1.000000e+00 : f32
    %442 = vector.broadcast %cst_167 : f32 to vector<8x128xf32>
    %443 = arith.addf %442, %441 : vector<8x128xf32>
    %444 = arith.divf %442, %443 : vector<8x128xf32>
    %445 = vector.extract_strided_slice %432 {offsets = [0, 256], sizes = [8, 128], strides = [1, 1]} : vector<8x512xf32> to vector<8x128xf32>
    %446 = math.tanh %445 : vector<8x128xf32>
    %447 = vector.extract_strided_slice %432 {offsets = [0, 384], sizes = [8, 128], strides = [1, 1]} : vector<8x512xf32> to vector<8x128xf32>
    %448 = arith.negf %447 : vector<8x128xf32>
    %449 = math.exp %448 : vector<8x128xf32>
    %cst_168 = arith.constant 1.000000e+00 : f32
    %450 = vector.broadcast %cst_168 : f32 to vector<8x128xf32>
    %451 = arith.addf %450, %449 : vector<8x128xf32>
    %452 = arith.divf %450, %451 : vector<8x128xf32>
    %453 = arith.mulf %444, %375 : vector<8x128xf32>
    %454 = arith.mulf %438, %446 : vector<8x128xf32>
    %455 = arith.addf %453, %454 : vector<8x128xf32>
    %456 = math.tanh %455 : vector<8x128xf32>
    %457 = arith.mulf %452, %456 : vector<8x128xf32>
    %c0_169 = arith.constant 0 : index
    %c0_170 = arith.constant 0 : index
    %458 = vector.load %arg4[%c0_169, %c0_170] : memref<128x512xf32, #tpu.memory_space<vmem>>, vector<128x512xf32>
    %cst_171 = arith.constant dense<0.000000e+00> : vector<8x512xf32>
    %459 = tpu.matmul %457, %458, %cst_171 {dimension_numbers = #tpu.dot_dimension_numbers<[1], [0], [0], [1], [0, 0, 1, 1], [], []>} : vector<8x128xf32>, vector<128x512xf32>, vector<8x512xf32> -> vector<8x512xf32>
    %460 = arith.addf %459, %416 : vector<8x512xf32>
    %461 = arith.addf %460, %5 : vector<8x512xf32>
    %462 = vector.extract_strided_slice %461 {offsets = [0, 0], sizes = [8, 128], strides = [1, 1]} : vector<8x512xf32> to vector<8x128xf32>
    %463 = arith.negf %462 : vector<8x128xf32>
    %464 = math.exp %463 : vector<8x128xf32>
    %cst_172 = arith.constant 1.000000e+00 : f32
    %465 = vector.broadcast %cst_172 : f32 to vector<8x128xf32>
    %466 = arith.addf %465, %464 : vector<8x128xf32>
    %467 = arith.divf %465, %466 : vector<8x128xf32>
    %468 = vector.extract_strided_slice %461 {offsets = [0, 128], sizes = [8, 128], strides = [1, 1]} : vector<8x512xf32> to vector<8x128xf32>
    %469 = arith.negf %468 : vector<8x128xf32>
    %470 = math.exp %469 : vector<8x128xf32>
    %cst_173 = arith.constant 1.000000e+00 : f32
    %471 = vector.broadcast %cst_173 : f32 to vector<8x128xf32>
    %472 = arith.addf %471, %470 : vector<8x128xf32>
    %473 = arith.divf %471, %472 : vector<8x128xf32>
    %474 = vector.extract_strided_slice %461 {offsets = [0, 256], sizes = [8, 128], strides = [1, 1]} : vector<8x512xf32> to vector<8x128xf32>
    %475 = math.tanh %474 : vector<8x128xf32>
    %476 = vector.extract_strided_slice %461 {offsets = [0, 384], sizes = [8, 128], strides = [1, 1]} : vector<8x512xf32> to vector<8x128xf32>
    %477 = arith.negf %476 : vector<8x128xf32>
    %478 = math.exp %477 : vector<8x128xf32>
    %cst_174 = arith.constant 1.000000e+00 : f32
    %479 = vector.broadcast %cst_174 : f32 to vector<8x128xf32>
    %480 = arith.addf %479, %478 : vector<8x128xf32>
    %481 = arith.divf %479, %480 : vector<8x128xf32>
    %482 = arith.mulf %473, %404 : vector<8x128xf32>
    %483 = arith.mulf %467, %475 : vector<8x128xf32>
    %484 = arith.addf %482, %483 : vector<8x128xf32>
    %485 = math.tanh %484 : vector<8x128xf32>
    %486 = arith.mulf %481, %485 : vector<8x128xf32>
    %c0_175 = arith.constant 0 : index
    %c0_176 = arith.constant 0 : index
    %487 = vector.load %arg7[%c0_175, %c0_176] : memref<128x128xf32, #tpu.memory_space<vmem>>, vector<128x128xf32>
    %cst_177 = arith.constant dense<0.000000e+00> : vector<8x128xf32>
    %488 = tpu.matmul %486, %487, %cst_177 {dimension_numbers = #tpu.dot_dimension_numbers<[1], [0], [0], [1], [0, 0, 1, 1], [], []>} : vector<8x128xf32>, vector<128x128xf32>, vector<8x128xf32> -> vector<8x128xf32>
    %489 = arith.addf %488, %8 : vector<8x128xf32>
    %490 = arith.index_cast %c5_i32 : i32 to index
    %c0_178 = arith.constant 0 : index
    %c0_179 = arith.constant 0 : index
    %491 = vector.load %arg9[%490, %c0_178, %c0_179] : memref<8x8x128xf32, #tpu.memory_space<vmem>>, vector<1x8x128xf32>
    %492 = vector.shape_cast %491 : vector<1x8x128xf32> to vector<8x128xf32>
    %493 = vector.shape_cast %489 : vector<8x128xf32> to vector<1x8x128xf32>
    tpu.vector_store %arg9[%490, %c0_178, %c0_179], %493 {strides = array<i32>} : memref<8x8x128xf32, #tpu.memory_space<vmem>>, vector<1x8x128xf32>,
    %c6_i32 = arith.constant 6 : i32
    %494 = arith.addi %9, %c6_i32 : i32
    %c0_180 = arith.constant 0 : index
    %c0_181 = arith.constant 0 : index
    %495 = vector.load %arg5[%c0_180, %c0_181] : memref<128x512xf32, #tpu.memory_space<vmem>>, vector<128x512xf32>
    %cst_182 = arith.constant dense<0.000000e+00> : vector<8x512xf32>
    %496 = tpu.matmul %486, %495, %cst_182 {dimension_numbers = #tpu.dot_dimension_numbers<[1], [0], [0], [1], [0, 0, 1, 1], [], []>} : vector<8x128xf32>, vector<128x512xf32>, vector<8x512xf32> -> vector<8x512xf32>
    %c2_i32_183 = arith.constant 2 : i32
    %c0_i32_184 = arith.constant 0 : i32
    %497 = arith.cmpi eq, %c2_i32_183, %c0_i32_184 : i32
    %c1_i32_185 = arith.constant 1 : i32
    %498 = arith.select %497, %c1_i32_185, %c2_i32_183 : i32
    %499 = arith.remsi %494, %498 : i32
    %c0_i32_186 = arith.constant 0 : i32
    %500 = arith.cmpi ne, %499, %c0_i32_186 : i32
    %c0_i32_187 = arith.constant 0 : i32
    %501 = arith.cmpi slt, %499, %c0_i32_187 : i32
    %c0_i32_188 = arith.constant 0 : i32
    %502 = arith.cmpi slt, %498, %c0_i32_188 : i32
    %503 = arith.xori %501, %502 : i1
    %504 = arith.andi %503, %500 : i1
    %505 = arith.addi %499, %498 : i32
    %506 = arith.select %504, %505, %499 : i32
    %507 = arith.index_cast %506 : i32 to index
    %c0_189 = arith.constant 0 : index
    %c0_190 = arith.constant 0 : index
    %508 = vector.load %arg2[%507, %c0_189, %c0_190] : memref<2x8x512xf32, #tpu.memory_space<vmem>>, vector<1x8x512xf32>
    %509 = vector.shape_cast %508 : vector<1x8x512xf32> to vector<8x512xf32>
    %c0_191 = arith.constant 0 : index
    %c0_192 = arith.constant 0 : index
    %510 = vector.load %arg3[%c0_191, %c0_192] : memref<128x512xf32, #tpu.memory_space<vmem>>, vector<128x512xf32>
    %cst_193 = arith.constant dense<0.000000e+00> : vector<8x512xf32>
    %511 = tpu.matmul %457, %510, %cst_193 {dimension_numbers = #tpu.dot_dimension_numbers<[1], [0], [0], [1], [0, 0, 1, 1], [], []>} : vector<8x128xf32>, vector<128x512xf32>, vector<8x512xf32> -> vector<8x512xf32>
    %512 = arith.addf %509, %511 : vector<8x512xf32>
    %513 = vector.extract_strided_slice %512 {offsets = [0, 0], sizes = [8, 128], strides = [1, 1]} : vector<8x512xf32> to vector<8x128xf32>
    %514 = arith.negf %513 : vector<8x128xf32>
    %515 = math.exp %514 : vector<8x128xf32>
    %cst_194 = arith.constant 1.000000e+00 : f32
    %516 = vector.broadcast %cst_194 : f32 to vector<8x128xf32>
    %517 = arith.addf %516, %515 : vector<8x128xf32>
    %518 = arith.divf %516, %517 : vector<8x128xf32>
    %519 = vector.extract_strided_slice %512 {offsets = [0, 128], sizes = [8, 128], strides = [1, 1]} : vector<8x512xf32> to vector<8x128xf32>
    %520 = arith.negf %519 : vector<8x128xf32>
    %521 = math.exp %520 : vector<8x128xf32>
    %cst_195 = arith.constant 1.000000e+00 : f32
    %522 = vector.broadcast %cst_195 : f32 to vector<8x128xf32>
    %523 = arith.addf %522, %521 : vector<8x128xf32>
    %524 = arith.divf %522, %523 : vector<8x128xf32>
    %525 = vector.extract_strided_slice %512 {offsets = [0, 256], sizes = [8, 128], strides = [1, 1]} : vector<8x512xf32> to vector<8x128xf32>
    %526 = math.tanh %525 : vector<8x128xf32>
    %527 = vector.extract_strided_slice %512 {offsets = [0, 384], sizes = [8, 128], strides = [1, 1]} : vector<8x512xf32> to vector<8x128xf32>
    %528 = arith.negf %527 : vector<8x128xf32>
    %529 = math.exp %528 : vector<8x128xf32>
    %cst_196 = arith.constant 1.000000e+00 : f32
    %530 = vector.broadcast %cst_196 : f32 to vector<8x128xf32>
    %531 = arith.addf %530, %529 : vector<8x128xf32>
    %532 = arith.divf %530, %531 : vector<8x128xf32>
    %533 = arith.mulf %524, %455 : vector<8x128xf32>
    %534 = arith.mulf %518, %526 : vector<8x128xf32>
    %535 = arith.addf %533, %534 : vector<8x128xf32>
    %536 = math.tanh %535 : vector<8x128xf32>
    %537 = arith.mulf %532, %536 : vector<8x128xf32>
    %c0_197 = arith.constant 0 : index
    %c0_198 = arith.constant 0 : index
    %538 = vector.load %arg4[%c0_197, %c0_198] : memref<128x512xf32, #tpu.memory_space<vmem>>, vector<128x512xf32>
    %cst_199 = arith.constant dense<0.000000e+00> : vector<8x512xf32>
    %539 = tpu.matmul %537, %538, %cst_199 {dimension_numbers = #tpu.dot_dimension_numbers<[1], [0], [0], [1], [0, 0, 1, 1], [], []>} : vector<8x128xf32>, vector<128x512xf32>, vector<8x512xf32> -> vector<8x512xf32>
    %540 = arith.addf %539, %496 : vector<8x512xf32>
    %541 = arith.addf %540, %5 : vector<8x512xf32>
    %542 = vector.extract_strided_slice %541 {offsets = [0, 0], sizes = [8, 128], strides = [1, 1]} : vector<8x512xf32> to vector<8x128xf32>
    %543 = arith.negf %542 : vector<8x128xf32>
    %544 = math.exp %543 : vector<8x128xf32>
    %cst_200 = arith.constant 1.000000e+00 : f32
    %545 = vector.broadcast %cst_200 : f32 to vector<8x128xf32>
    %546 = arith.addf %545, %544 : vector<8x128xf32>
    %547 = arith.divf %545, %546 : vector<8x128xf32>
    %548 = vector.extract_strided_slice %541 {offsets = [0, 128], sizes = [8, 128], strides = [1, 1]} : vector<8x512xf32> to vector<8x128xf32>
    %549 = arith.negf %548 : vector<8x128xf32>
    %550 = math.exp %549 : vector<8x128xf32>
    %cst_201 = arith.constant 1.000000e+00 : f32
    %551 = vector.broadcast %cst_201 : f32 to vector<8x128xf32>
    %552 = arith.addf %551, %550 : vector<8x128xf32>
    %553 = arith.divf %551, %552 : vector<8x128xf32>
    %554 = vector.extract_strided_slice %541 {offsets = [0, 256], sizes = [8, 128], strides = [1, 1]} : vector<8x512xf32> to vector<8x128xf32>
    %555 = math.tanh %554 : vector<8x128xf32>
    %556 = vector.extract_strided_slice %541 {offsets = [0, 384], sizes = [8, 128], strides = [1, 1]} : vector<8x512xf32> to vector<8x128xf32>
    %557 = arith.negf %556 : vector<8x128xf32>
    %558 = math.exp %557 : vector<8x128xf32>
    %cst_202 = arith.constant 1.000000e+00 : f32
    %559 = vector.broadcast %cst_202 : f32 to vector<8x128xf32>
    %560 = arith.addf %559, %558 : vector<8x128xf32>
    %561 = arith.divf %559, %560 : vector<8x128xf32>
    %562 = arith.mulf %553, %484 : vector<8x128xf32>
    %563 = arith.mulf %547, %555 : vector<8x128xf32>
    %564 = arith.addf %562, %563 : vector<8x128xf32>
    %565 = math.tanh %564 : vector<8x128xf32>
    %566 = arith.mulf %561, %565 : vector<8x128xf32>
    %c0_203 = arith.constant 0 : index
    %c0_204 = arith.constant 0 : index
    %567 = vector.load %arg7[%c0_203, %c0_204] : memref<128x128xf32, #tpu.memory_space<vmem>>, vector<128x128xf32>
    %cst_205 = arith.constant dense<0.000000e+00> : vector<8x128xf32>
    %568 = tpu.matmul %566, %567, %cst_205 {dimension_numbers = #tpu.dot_dimension_numbers<[1], [0], [0], [1], [0, 0, 1, 1], [], []>} : vector<8x128xf32>, vector<128x128xf32>, vector<8x128xf32> -> vector<8x128xf32>
    %569 = arith.addf %568, %8 : vector<8x128xf32>
    %570 = arith.index_cast %c6_i32 : i32 to index
    %c0_206 = arith.constant 0 : index
    %c0_207 = arith.constant 0 : index
    %571 = vector.load %arg9[%570, %c0_206, %c0_207] : memref<8x8x128xf32, #tpu.memory_space<vmem>>, vector<1x8x128xf32>
    %572 = vector.shape_cast %571 : vector<1x8x128xf32> to vector<8x128xf32>
    %573 = vector.shape_cast %569 : vector<8x128xf32> to vector<1x8x128xf32>
    tpu.vector_store %arg9[%570, %c0_206, %c0_207], %573 {strides = array<i32>} : memref<8x8x128xf32, #tpu.memory_space<vmem>>, vector<1x8x128xf32>,
    %c7_i32 = arith.constant 7 : i32
    %574 = arith.addi %9, %c7_i32 : i32
    %c0_208 = arith.constant 0 : index
    %c0_209 = arith.constant 0 : index
    %575 = vector.load %arg5[%c0_208, %c0_209] : memref<128x512xf32, #tpu.memory_space<vmem>>, vector<128x512xf32>
    %cst_210 = arith.constant dense<0.000000e+00> : vector<8x512xf32>
    %576 = tpu.matmul %566, %575, %cst_210 {dimension_numbers = #tpu.dot_dimension_numbers<[1], [0], [0], [1], [0, 0, 1, 1], [], []>} : vector<8x128xf32>, vector<128x512xf32>, vector<8x512xf32> -> vector<8x512xf32>
    %c2_i32_211 = arith.constant 2 : i32
    %c0_i32_212 = arith.constant 0 : i32
    %577 = arith.cmpi eq, %c2_i32_211, %c0_i32_212 : i32
    %c1_i32_213 = arith.constant 1 : i32
    %578 = arith.select %577, %c1_i32_213, %c2_i32_211 : i32
    %579 = arith.remsi %574, %578 : i32
    %c0_i32_214 = arith.constant 0 : i32
    %580 = arith.cmpi ne, %579, %c0_i32_214 : i32
    %c0_i32_215 = arith.constant 0 : i32
    %581 = arith.cmpi slt, %579, %c0_i32_215 : i32
    %c0_i32_216 = arith.constant 0 : i32
    %582 = arith.cmpi slt, %578, %c0_i32_216 : i32
    %583 = arith.xori %581, %582 : i1
    %584 = arith.andi %583, %580 : i1
    %585 = arith.addi %579, %578 : i32
    %586 = arith.select %584, %585, %579 : i32
    %587 = arith.index_cast %586 : i32 to index
    %c0_217 = arith.constant 0 : index
    %c0_218 = arith.constant 0 : index
    %588 = vector.load %arg2[%587, %c0_217, %c0_218] : memref<2x8x512xf32, #tpu.memory_space<vmem>>, vector<1x8x512xf32>
    %589 = vector.shape_cast %588 : vector<1x8x512xf32> to vector<8x512xf32>
    %c0_219 = arith.constant 0 : index
    %c0_220 = arith.constant 0 : index
    %590 = vector.load %arg3[%c0_219, %c0_220] : memref<128x512xf32, #tpu.memory_space<vmem>>, vector<128x512xf32>
    %cst_221 = arith.constant dense<0.000000e+00> : vector<8x512xf32>
    %591 = tpu.matmul %537, %590, %cst_221 {dimension_numbers = #tpu.dot_dimension_numbers<[1], [0], [0], [1], [0, 0, 1, 1], [], []>} : vector<8x128xf32>, vector<128x512xf32>, vector<8x512xf32> -> vector<8x512xf32>
    %592 = arith.addf %589, %591 : vector<8x512xf32>
    %593 = vector.extract_strided_slice %592 {offsets = [0, 0], sizes = [8, 128], strides = [1, 1]} : vector<8x512xf32> to vector<8x128xf32>
    %594 = arith.negf %593 : vector<8x128xf32>
    %595 = math.exp %594 : vector<8x128xf32>
    %cst_222 = arith.constant 1.000000e+00 : f32
    %596 = vector.broadcast %cst_222 : f32 to vector<8x128xf32>
    %597 = arith.addf %596, %595 : vector<8x128xf32>
    %598 = arith.divf %596, %597 : vector<8x128xf32>
    %599 = vector.extract_strided_slice %592 {offsets = [0, 128], sizes = [8, 128], strides = [1, 1]} : vector<8x512xf32> to vector<8x128xf32>
    %600 = arith.negf %599 : vector<8x128xf32>
    %601 = math.exp %600 : vector<8x128xf32>
    %cst_223 = arith.constant 1.000000e+00 : f32
    %602 = vector.broadcast %cst_223 : f32 to vector<8x128xf32>
    %603 = arith.addf %602, %601 : vector<8x128xf32>
    %604 = arith.divf %602, %603 : vector<8x128xf32>
    %605 = vector.extract_strided_slice %592 {offsets = [0, 256], sizes = [8, 128], strides = [1, 1]} : vector<8x512xf32> to vector<8x128xf32>
    %606 = math.tanh %605 : vector<8x128xf32>
    %607 = vector.extract_strided_slice %592 {offsets = [0, 384], sizes = [8, 128], strides = [1, 1]} : vector<8x512xf32> to vector<8x128xf32>
    %608 = arith.negf %607 : vector<8x128xf32>
    %609 = math.exp %608 : vector<8x128xf32>
    %cst_224 = arith.constant 1.000000e+00 : f32
    %610 = vector.broadcast %cst_224 : f32 to vector<8x128xf32>
    %611 = arith.addf %610, %609 : vector<8x128xf32>
    %612 = arith.divf %610, %611 : vector<8x128xf32>
    %613 = arith.mulf %604, %535 : vector<8x128xf32>
    %614 = arith.mulf %598, %606 : vector<8x128xf32>
    %615 = arith.addf %613, %614 : vector<8x128xf32>
    %616 = math.tanh %615 : vector<8x128xf32>
    %617 = arith.mulf %612, %616 : vector<8x128xf32>
    %c0_225 = arith.constant 0 : index
    %c0_226 = arith.constant 0 : index
    %618 = vector.load %arg4[%c0_225, %c0_226] : memref<128x512xf32, #tpu.memory_space<vmem>>, vector<128x512xf32>
    %cst_227 = arith.constant dense<0.000000e+00> : vector<8x512xf32>
    %619 = tpu.matmul %617, %618, %cst_227 {dimension_numbers = #tpu.dot_dimension_numbers<[1], [0], [0], [1], [0, 0, 1, 1], [], []>} : vector<8x128xf32>, vector<128x512xf32>, vector<8x512xf32> -> vector<8x512xf32>
    %620 = arith.addf %619, %576 : vector<8x512xf32>
    %621 = arith.addf %620, %5 : vector<8x512xf32>
    %622 = vector.extract_strided_slice %621 {offsets = [0, 0], sizes = [8, 128], strides = [1, 1]} : vector<8x512xf32> to vector<8x128xf32>
    %623 = arith.negf %622 : vector<8x128xf32>
    %624 = math.exp %623 : vector<8x128xf32>
    %cst_228 = arith.constant 1.000000e+00 : f32
    %625 = vector.broadcast %cst_228 : f32 to vector<8x128xf32>
    %626 = arith.addf %625, %624 : vector<8x128xf32>
    %627 = arith.divf %625, %626 : vector<8x128xf32>
    %628 = vector.extract_strided_slice %621 {offsets = [0, 128], sizes = [8, 128], strides = [1, 1]} : vector<8x512xf32> to vector<8x128xf32>
    %629 = arith.negf %628 : vector<8x128xf32>
    %630 = math.exp %629 : vector<8x128xf32>
    %cst_229 = arith.constant 1.000000e+00 : f32
    %631 = vector.broadcast %cst_229 : f32 to vector<8x128xf32>
    %632 = arith.addf %631, %630 : vector<8x128xf32>
    %633 = arith.divf %631, %632 : vector<8x128xf32>
    %634 = vector.extract_strided_slice %621 {offsets = [0, 256], sizes = [8, 128], strides = [1, 1]} : vector<8x512xf32> to vector<8x128xf32>
    %635 = math.tanh %634 : vector<8x128xf32>
    %636 = vector.extract_strided_slice %621 {offsets = [0, 384], sizes = [8, 128], strides = [1, 1]} : vector<8x512xf32> to vector<8x128xf32>
    %637 = arith.negf %636 : vector<8x128xf32>
    %638 = math.exp %637 : vector<8x128xf32>
    %cst_230 = arith.constant 1.000000e+00 : f32
    %639 = vector.broadcast %cst_230 : f32 to vector<8x128xf32>
    %640 = arith.addf %639, %638 : vector<8x128xf32>
    %641 = arith.divf %639, %640 : vector<8x128xf32>
    %642 = arith.mulf %633, %564 : vector<8x128xf32>
    %643 = arith.mulf %627, %635 : vector<8x128xf32>
    %644 = arith.addf %642, %643 : vector<8x128xf32>
    %645 = math.tanh %644 : vector<8x128xf32>
    %646 = arith.mulf %641, %645 : vector<8x128xf32>
    %c0_231 = arith.constant 0 : index
    %c0_232 = arith.constant 0 : index
    %647 = vector.load %arg7[%c0_231, %c0_232] : memref<128x128xf32, #tpu.memory_space<vmem>>, vector<128x128xf32>
    %cst_233 = arith.constant dense<0.000000e+00> : vector<8x128xf32>
    %648 = tpu.matmul %646, %647, %cst_233 {dimension_numbers = #tpu.dot_dimension_numbers<[1], [0], [0], [1], [0, 0, 1, 1], [], []>} : vector<8x128xf32>, vector<128x128xf32>, vector<8x128xf32> -> vector<8x128xf32>
    %649 = arith.addf %648, %8 : vector<8x128xf32>
    %650 = arith.index_cast %c7_i32 : i32 to index
    %c0_234 = arith.constant 0 : index
    %c0_235 = arith.constant 0 : index
    %651 = vector.load %arg9[%650, %c0_234, %c0_235] : memref<8x8x128xf32, #tpu.memory_space<vmem>>, vector<1x8x128xf32>
    %652 = vector.shape_cast %651 : vector<1x8x128xf32> to vector<8x128xf32>
    %653 = vector.shape_cast %649 : vector<8x128xf32> to vector<1x8x128xf32>
    tpu.vector_store %arg9[%650, %c0_234, %c0_235], %653 {strides = array<i32>} : memref<8x8x128xf32, #tpu.memory_space<vmem>>, vector<1x8x128xf32>,
    %c8_i32_236 = arith.constant 8 : i32
    %c0_237 = arith.constant 0 : index
    %c0_238 = arith.constant 0 : index
    %654 = vector.load %arg10[%c0_237, %c0_238] : memref<8x128xf32, #tpu.memory_space<vmem>>, vector<8x128xf32>
    tpu.vector_store %arg10[%c0_237, %c0_238], %617 {strides = array<i32>} : memref<8x128xf32, #tpu.memory_space<vmem>>, vector<8x128xf32>,
    %c0_239 = arith.constant 0 : index
    %c0_240 = arith.constant 0 : index
    %655 = vector.load %arg11[%c0_239, %c0_240] : memref<8x128xf32, #tpu.memory_space<vmem>>, vector<8x128xf32>
    tpu.vector_store %arg11[%c0_239, %c0_240], %615 {strides = array<i32>} : memref<8x128xf32, #tpu.memory_space<vmem>>, vector<8x128xf32>,
    %c0_241 = arith.constant 0 : index
    %c0_242 = arith.constant 0 : index
    %656 = vector.load %arg12[%c0_241, %c0_242] : memref<8x128xf32, #tpu.memory_space<vmem>>, vector<8x128xf32>
    tpu.vector_store %arg12[%c0_241, %c0_242], %646 {strides = array<i32>} : memref<8x128xf32, #tpu.memory_space<vmem>>, vector<8x128xf32>,
    %c0_243 = arith.constant 0 : index
    %c0_244 = arith.constant 0 : index
    %657 = vector.load %arg13[%c0_243, %c0_244] : memref<8x128xf32, #tpu.memory_space<vmem>>, vector<8x128xf32>
    tpu.vector_store %arg13[%c0_243, %c0_244], %644 {strides = array<i32>} : memref<8x128xf32, #tpu.memory_space<vmem>>, vector<8x128xf32>,
    return
  }
  func.func @transform_0(%arg0: i32, %arg1: i32) -> (i32, i32, i32) {
    %c0_i32 = arith.constant 0 : i32
    %c0_i32_0 = arith.constant 0 : i32
    %c0_i32_1 = arith.constant 0 : i32
    return %c0_i32, %arg0, %c0_i32_0 : i32, i32, i32
  }
  func.func @transform_1(%arg0: i32, %arg1: i32) -> (i32, i32) {
    %c0_i32 = arith.constant 0 : i32
    %c0_i32_0 = arith.constant 0 : i32
    %c0_i32_1 = arith.constant 0 : i32
    return %c0_i32, %c0_i32_0 : i32, i32
  }
  func.func @transform_2(%arg0: i32, %arg1: i32) -> (i32, i32) {
    %c0_i32 = arith.constant 0 : i32
    %c0_i32_0 = arith.constant 0 : i32
    %c0_i32_1 = arith.constant 0 : i32
    return %c0_i32, %c0_i32_0 : i32, i32
  }
  func.func @transform_3(%arg0: i32, %arg1: i32) -> (i32, i32) {
    %c0_i32 = arith.constant 0 : i32
    %c0_i32_0 = arith.constant 0 : i32
    %c0_i32_1 = arith.constant 0 : i32
    return %c0_i32, %c0_i32_0 : i32, i32
  }
  func.func @transform_4(%arg0: i32, %arg1: i32) -> (i32, i32) {
    %c0_i32 = arith.constant 0 : i32
    %c0_i32_0 = arith.constant 0 : i32
    %c0_i32_1 = arith.constant 0 : i32
    return %c0_i32, %c0_i32_0 : i32, i32
  }
  func.func @transform_5(%arg0: i32, %arg1: i32) -> (i32, i32) {
    %c0_i32 = arith.constant 0 : i32
    %c0_i32_0 = arith.constant 0 : i32
    %c0_i32_1 = arith.constant 0 : i32
    return %c0_i32, %c0_i32_0 : i32, i32
  }
  func.func @transform_6(%arg0: i32, %arg1: i32) -> (i32, i32) {
    %c0_i32 = arith.constant 0 : i32
    %c0_i32_0 = arith.constant 0 : i32
    %c0_i32_1 = arith.constant 0 : i32
    return %c0_i32, %c0_i32_0 : i32, i32
  }
  func.func @transform_7(%arg0: i32, %arg1: i32) -> (i32, i32, i32) {
    %c0_i32 = arith.constant 0 : i32
    %c0_i32_0 = arith.constant 0 : i32
    return %arg1, %arg0, %c0_i32 : i32, i32, i32
  }
}

</mosaic_0001>

<llo_original>
// kernel: tpu_custom_call.1
$region0: #{tpu_custom_call.1}
  #allocation0 [shape = 'u32[]', space=smem, size = 0x4, offset = 0x4, fixed_abs, tag = 'smem constant byte address 0x4 - core index']
  #allocation1 [shape = 'u32[144,128]{1,0:T(1,128)}', space=vmem, size = 0x12000, scoped, tag = 'internal scratch']
  #allocation2 [shape = 'f32[8,128]{1,0:T(8,128)}', space=vmem, size = 0x1000, scoped, tag = 'scratch operand']
  #allocation3 [shape = 'f32[8,128]{1,0:T(8,128)}', space=vmem, size = 0x1000, scoped, tag = 'scratch operand']
  #allocation4 [shape = 'f32[8,128]{1,0:T(8,128)}', space=vmem, size = 0x1000, scoped, tag = 'scratch operand']
  #allocation5 [shape = 'f32[8,128]{1,0:T(8,128)}', space=vmem, size = 0x1000, scoped, tag = 'scratch operand']
  %s0 = inlined_call_operand.hbm [shape: f32[2,8,512], index: 0, kind: input, shape index: {}]
  %s1 = inlined_call_operand.hbm [shape: f32[128,512], index: 1, kind: input, shape index: {}]
  %s2 = inlined_call_operand.hbm [shape: f32[128,512], index: 2, kind: input, shape index: {}]
  %s3 = inlined_call_operand.hbm [shape: f32[128,512], index: 3, kind: input, shape index: {}]
  %s4 = inlined_call_operand.vmem [shape: f32[1,512], index: 4, kind: input, shape index: {}]
  %s5 = inlined_call_operand.hbm [shape: f32[128,128], index: 5, kind: input, shape index: {}]
  %s6 = inlined_call_operand.vmem [shape: f32[1,128], index: 6, kind: input, shape index: {}]
  %s7 = inlined_call_operand.hbm [shape: f32[8,8,128], index: 7, kind: output, shape index: {}]
  %s8 = sld [smem:[#allocation0]]
  $region62: #{tpu_custom_call.1} parent=0
    _
  %s10 = ssub.s32 1, %s8
  %s11 = scalar_select 0, %s10, %s8
  $region1: #{tpu_custom_call.1} parent=0
    #allocation6 [shape = 'u8[32768]{0}', space=vmem, size = 0x8000, scoped, tag = 'input window, operand 0, single buffered']
    #allocation7 [shape = 's32[1]{0}', space=sflag, size = 0x4, scoped, tag = 'scoped memory for tpu_custom_call.1']
    #allocation8 [shape = 's32[1]{0}', space=sflag, size = 0x4, scoped, tag = 'scoped memory for tpu_custom_call.1']
    #allocation9 [shape = 'u8[262144]{0}', space=vmem, size = 0x40000, scoped, tag = 'input window, operand 1, single buffered']
    #allocation10 [shape = 's32[1]{0}', space=sflag, size = 0x4, scoped, tag = 'scoped memory for tpu_custom_call.1']
    #allocation11 [shape = 'u8[262144]{0}', space=vmem, size = 0x40000, scoped, tag = 'input window, operand 2, single buffered']
    #allocation12 [shape = 'u8[262144]{0}', space=vmem, size = 0x40000, scoped, tag = 'input window, operand 3, single buffered']
    #allocation13 [shape = 's32[1]{0}', space=sflag, size = 0x4, scoped, tag = 'scoped memory for tpu_custom_call.1']
    #allocation14 [shape = 'u8[65536]{0}', space=vmem, size = 0x10000, scoped, tag = 'input window, operand 5, single buffered']
    #allocation15 [shape = 'u8[32768]{0}', space=vmem, size = 0x8000, scoped, tag = 'output window, operand 0, single buffered']
    %12 = vsyncpa [#allocation7], 0
    %13 = vsyncpa [#allocation10], 0
    %14 = vsyncpa [#allocation13], 0
    %15 = vsyncpa [#allocation8], 0
    // Predicated region
    $region2: #{tpu_custom_call.1} parent=1 // pred_check
      _
    $region3: #{tpu_custom_call.1} parent=1 // pred_check_branch
      %17 = sbr.rel (0) target = $region5
    $region4: #{tpu_custom_call.1} parent=1 // pred_region
      %s19 = ssub.s32 1024, 1024
      %20 = vsyncadd [#allocation7], %s19
      %s21 = sshll.u32 [#allocation6], 4
      %s22 = int_to_ptr.vmem [resolvable:$true] %s21
      %27 = dma.hbm_to_vmem [thread:$0]  %s0, 1024, %s22, [#allocation7], 512, 512, 32
    $region5: #{tpu_custom_call.1} parent=1 // pred_fallthru
      _
    // Predicated region
    $region6: #{tpu_custom_call.1} parent=1 // pred_check
      _
    $region7: #{tpu_custom_call.1} parent=1 // pred_check_branch
      %29 = sbr.rel (0) target = $region9
    $region8: #{tpu_custom_call.1} parent=1 // pred_region
      %s31 = ssub.s32 8192, 8192
      %32 = vsyncadd [#allocation10], %s31
      %s33 = sshll.u32 [#allocation9], 4
      %s34 = int_to_ptr.vmem [resolvable:$true] %s33
      %39 = dma.hbm_to_vmem [thread:$0]  %s1, 8192, %s34, [#allocation10], 512, 512, 32
    $region9: #{tpu_custom_call.1} parent=1 // pred_fallthru
      _
    // Predicated region
    $region10: #{tpu_custom_call.1} parent=1 // pred_check
      _
    $region11: #{tpu_custom_call.1} parent=1 // pred_check_branch
      %41 = sbr.rel (0) target = $region13
    $region12: #{tpu_custom_call.1} parent=1 // pred_region
      %s43 = ssub.s32 8192, 8192
      %44 = vsyncadd [#allocation10], %s43
      %s45 = sshll.u32 [#allocation11], 4
      %s46 = int_to_ptr.vmem [resolvable:$true] %s45
      %51 = dma.hbm_to_vmem [thread:$0]  %s2, 8192, %s46, [#allocation10], 512, 512, 32
    $region13: #{tpu_custom_call.1} parent=1 // pred_fallthru
      _
    // Predicated region
    $region14: #{tpu_custom_call.1} parent=1 // pred_check
      _
    $region15: #{tpu_custom_call.1} parent=1 // pred_check_branch
      %53 = sbr.rel (0) target = $region17
    $region16: #{tpu_custom_call.1} parent=1 // pred_region
      %s55 = ssub.s32 8192, 8192
      %56 = vsyncadd [#allocation13], %s55
      %s57 = sshll.u32 [#allocation12], 4
      %s58 = int_to_ptr.vmem [resolvable:$true] %s57
      %63 = dma.hbm_to_vmem [thread:$0]  %s3, 8192, %s58, [#allocation13], 512, 512, 32
    $region17: #{tpu_custom_call.1} parent=1 // pred_fallthru
      _
    // Predicated region
    $region18: #{tpu_custom_call.1} parent=1 // pred_check
      _
    $region19: #{tpu_custom_call.1} parent=1 // pred_check_branch
      %65 = sbr.rel (0) target = $region21
    $region20: #{tpu_custom_call.1} parent=1 // pred_region
      _
    $region21: #{tpu_custom_call.1} parent=1 // pred_fallthru
      _
    // Predicated region
    $region22: #{tpu_custom_call.1} parent=1 // pred_check
      _
    $region23: #{tpu_custom_call.1} parent=1 // pred_check_branch
      %67 = sbr.rel (0) target = $region25
    $region24: #{tpu_custom_call.1} parent=1 // pred_region
      %s69 = ssub.s32 2048, 2048
      %70 = vsyncadd [#allocation13], %s69
      %s71 = sshll.u32 [#allocation14], 4
      %s72 = int_to_ptr.vmem [resolvable:$true] %s71
      %77 = dma.hbm_to_vmem [thread:$0]  %s5, 2048, %s72, [#allocation13], 128, 128, 8
    $region25: #{tpu_custom_call.1} parent=1 // pred_fallthru
      _
    // Predicated region
    $region26: #{tpu_custom_call.1} parent=1 // pred_check
      _
    $region27: #{tpu_custom_call.1} parent=1 // pred_check_branch
      %79 = sbr.rel (0) target = $region29
    $region28: #{tpu_custom_call.1} parent=1 // pred_region
      _
    $region29: #{tpu_custom_call.1} parent=1 // pred_fallthru
      _
    // Predicated region
    $region30: #{tpu_custom_call.1} parent=1 // pred_check
      _
    $region31: #{tpu_custom_call.1} parent=1 // pred_check_branch
      %81 = sbr.rel (0) target = $region33
    $region32: #{tpu_custom_call.1} parent=1 // pred_region
      %82 = dma.done [#allocation7], 1024
    $region33: #{tpu_custom_call.1} parent=1 // pred_fallthru
      _
    // Predicated region
    $region34: #{tpu_custom_call.1} parent=1 // pred_check
      _
    $region35: #{tpu_custom_call.1} parent=1 // pred_check_branch
      %84 = sbr.rel (0) target = $region37
    $region36: #{tpu_custom_call.1} parent=1 // pred_region
      %85 = dma.done [#allocation10], 8192
    $region37: #{tpu_custom_call.1} parent=1 // pred_fallthru
      _
    // Predicated region
    $region38: #{tpu_custom_call.1} parent=1 // pred_check
      _
    $region39: #{tpu_custom_call.1} parent=1 // pred_check_branch
      %87 = sbr.rel (0) target = $region41
    $region40: #{tpu_custom_call.1} parent=1 // pred_region
      %88 = dma.done [#allocation10], 8192
    $region41: #{tpu_custom_call.1} parent=1 // pred_fallthru
      _
    // Predicated region
    $region42: #{tpu_custom_call.1} parent=1 // pred_check
      _
    $region43: #{tpu_custom_call.1} parent=1 // pred_check_branch
      %90 = sbr.rel (0) target = $region45
    $region44: #{tpu_custom_call.1} parent=1 // pred_region
      %91 = dma.done [#allocation13], 8192
    $region45: #{tpu_custom_call.1} parent=1 // pred_fallthru
      _
    // Predicated region
    $region46: #{tpu_custom_call.1} parent=1 // pred_check
      _
    $region47: #{tpu_custom_call.1} parent=1 // pred_check_branch
      %93 = sbr.rel (0) target = $region49
    $region48: #{tpu_custom_call.1} parent=1 // pred_region
      %94 = dma.done [#allocation13], 2048
    $region49: #{tpu_custom_call.1} parent=1 // pred_fallthru
      _
    %p95 = scmp.eq.s32.totalorder 0, 0
    // Predicated region
    $region50: #{tpu_custom_call.1} parent=1 // pred_check
      %p96 = pneg %p95
    $region51: #{tpu_custom_call.1} parent=1 // pred_check_branch
      %98 = sbr.rel (%p96) target = $region53
    $region52: #{tpu_custom_call.1} parent=1 // pred_region
      %99 = vst [vmem:[#allocation2] sm:$0xff] 0.0
      %100 = vst [vmem:[#allocation3] sm:$0xff] 0.0
      %101 = vst [vmem:[#allocation4] sm:$0xff] 0.0
      %102 = vst [vmem:[#allocation5] sm:$0xff] 0.0
    $region53: #{tpu_custom_call.1} parent=1 // pred_fallthru
      _
    %v103 = vld [vmem:[%s4] sm:$0xf]
    %v105 = vlaneseq
    %v106 = vshrl.u32 %v105, 7
    %v107 = vsub.s32 0, %v106
    %v108 = vrot.slane %v103, %v107
    %v109 = vlaneseq
    %v110 = vshrl.u32 %v109, 7
    %v111 = vsub.s32 1, %v110
    %v112 = vrot.slane %v103, %v111
    %v113 = vlaneseq
    %v114 = vshrl.u32 %v113, 7
    %v115 = vsub.s32 2, %v114
    %v116 = vrot.slane %v103, %v115
    %v117 = vlaneseq
    %v118 = vshrl.u32 %v117, 7
    %v119 = vsub.s32 3, %v118
    %v120 = vrot.slane %v103, %v119
    %v125 = vld [vmem:[%s6] sm:$0x1]
    %v127 = vlaneseq
    %v128 = vshrl.u32 %v127, 7
    %v129 = vsub.s32 0, %v128
    %v130 = vrot.slane %v125, %v129
    %s132 = smul.u32 0, 8
    %v133 = vld [vmem:[#allocation2] sm:$0xff]
    %v134 = vld [vmem:[#allocation3] sm:$0xff]
    %v135 = vld [vmem:[#allocation4] sm:$0xff]
    %v136 = vld [vmem:[#allocation5] sm:$0xff]
    %v137 = vld [vmem:[#allocation12] sm:$0xff]
    %v138 = vld [vmem:[#allocation12 + $0x8] sm:$0xff]
    %v139 = vld [vmem:[#allocation12 + $0x10] sm:$0xff]
    %v140 = vld [vmem:[#allocation12 + $0x18] sm:$0xff]
    %v141 = vld [vmem:[#allocation12 + $0x20] sm:$0xff]
    %v142 = vld [vmem:[#allocation12 + $0x28] sm:$0xff]
    %v143 = vld [vmem:[#allocation12 + $0x30] sm:$0xff]
    %v144 = vld [vmem:[#allocation12 + $0x38] sm:$0xff]
    %v145 = vld [vmem:[#allocation12 + $0x40] sm:$0xff]
    %v146 = vld [vmem:[#allocation12 + $0x48] sm:$0xff]
    %v147 = vld [vmem:[#allocation12 + $0x50] sm:$0xff]
    %v148 = vld [vmem:[#allocation12 + $0x58] sm:$0xff]
    %v149 = vld [vmem:[#allocation12 + $0x60] sm:$0xff]
    %v150 = vld [vmem:[#allocation12 + $0x68] sm:$0xff]
    %v151 = vld [vmem:[#allocation12 + $0x70] sm:$0xff]
    %v152 = vld [vmem:[#allocation12 + $0x78] sm:$0xff]
    %v153 = vld [vmem:[#allocation12 + $0x80] sm:$0xff]
    %v154 = vld [vmem:[#allocation12 + $0x88] sm:$0xff]
    %v155 = vld [vmem:[#allocation12 + $0x90] sm:$0xff]
    %v156 = vld [vmem:[#allocation12 + $0x98] sm:$0xff]
    %v157 = vld [vmem:[#allocation12 + $0xa0] sm:$0xff]
    %v158 = vld [vmem:[#allocation12 + $0xa8] sm:$0xff]
    %v159 = vld [vmem:[#allocation12 + $0xb0] sm:$0xff]
    %v160 = vld [vmem:[#allocation12 + $0xb8] sm:$0xff]
    %v161 = vld [vmem:[#allocation12 + $0xc0] sm:$0xff]
    %v162 = vld [vmem:[#allocation12 + $0xc8] sm:$0xff]
    %v163 = vld [vmem:[#allocation12 + $0xd0] sm:$0xff]
    %v164 = vld [vmem:[#allocation12 + $0xd8] sm:$0xff]
    %v165 = vld [vmem:[#allocation12 + $0xe0] sm:$0xff]
    %v166 = vld [vmem:[#allocation12 + $0xe8] sm:$0xff]
    %v167 = vld [vmem:[#allocation12 + $0xf0] sm:$0xff]
    %v168 = vld [vmem:[#allocation12 + $0xf8] sm:$0xff]
    %v169 = vld [vmem:[#allocation12 + $0x100] sm:$0xff]
    %v170 = vld [vmem:[#allocation12 + $0x108] sm:$0xff]
    %v171 = vld [vmem:[#allocation12 + $0x110] sm:$0xff]
    %v172 = vld [vmem:[#allocation12 + $0x118] sm:$0xff]
    %v173 = vld [vmem:[#allocation12 + $0x120] sm:$0xff]
    %v174 = vld [vmem:[#allocation12 + $0x128] sm:$0xff]
    %v175 = vld [vmem:[#allocation12 + $0x130] sm:$0xff]
    %v176 = vld [vmem:[#allocation12 + $0x138] sm:$0xff]
    %v177 = vld [vmem:[#allocation12 + $0x140] sm:$0xff]
    %v178 = vld [vmem:[#allocation12 + $0x148] sm:$0xff]
    %v179 = vld [vmem:[#allocation12 + $0x150] sm:$0xff]
    %v180 = vld [vmem:[#allocation12 + $0x158] sm:$0xff]
    %v181 = vld [vmem:[#allocation12 + $0x160] sm:$0xff]
    %v182 = vld [vmem:[#allocation12 + $0x168] sm:$0xff]
    %v183 = vld [vmem:[#allocation12 + $0x170] sm:$0xff]
    %v184 = vld [vmem:[#allocation12 + $0x178] sm:$0xff]
    %v185 = vld [vmem:[#allocation12 + $0x180] sm:$0xff]
    %v186 = vld [vmem:[#allocation12 + $0x188] sm:$0xff]
    %v187 = vld [vmem:[#allocation12 + $0x190] sm:$0xff]
    %v188 = vld [vmem:[#allocation12 + $0x198] sm:$0xff]
    %v189 = vld [vmem:[#allocation12 + $0x1a0] sm:$0xff]
    %v190 = vld [vmem:[#allocation12 + $0x1a8] sm:$0xff]
    %v191 = vld [vmem:[#allocation12 + $0x1b0] sm:$0xff]
    %v192 = vld [vmem:[#allocation12 + $0x1b8] sm:$0xff]
    %v193 = vld [vmem:[#allocation12 + $0x1c0] sm:$0xff]
    %v194 = vld [vmem:[#allocation12 + $0x1c8] sm:$0xff]
    %v195 = vld [vmem:[#allocation12 + $0x1d0] sm:$0xff]
    %v196 = vld [vmem:[#allocation12 + $0x1d8] sm:$0xff]
    %v197 = vld [vmem:[#allocation12 + $0x1e0] sm:$0xff]
    %v198 = vld [vmem:[#allocation12 + $0x1e8] sm:$0xff]
    %v199 = vld [vmem:[#allocation12 + $0x1f0] sm:$0xff]
    %v200 = vld [vmem:[#allocation12 + $0x1f8] sm:$0xff]
    %201 = vmatprep.subr.mxu0 %v198
    %202 = vmatpush1.msra.mxu0 %v197
    %203 = vmatprep.subr.mxu0 %v194
    %204 = vmatpush1.msra.mxu0 %v193
    %205 = vmatprep.subr.mxu0 %v190
    %206 = vmatpush1.msra.mxu0 %v189
    %207 = vmatprep.subr.mxu0 %v186
    %208 = vmatpush1.msra.mxu0 %v185
    %209 = vmatprep.subr.mxu0 %v182
    %210 = vmatpush1.msra.mxu0 %v181
    %211 = vmatprep.subr.mxu0 %v178
    %212 = vmatpush1.msra.mxu0 %v177
    %213 = vmatprep.subr.mxu0 %v174
    %214 = vmatpush1.msra.mxu0 %v173
    %215 = vmatprep.subr.mxu0 %v170
    %216 = vmatpush1.msra.mxu0 %v169
    %217 = vmatprep.subr.mxu0 %v166
    %218 = vmatpush1.msra.mxu0 %v165
    %219 = vmatprep.subr.mxu0 %v162
    %220 = vmatpush1.msra.mxu0 %v161
    %221 = vmatprep.subr.mxu0 %v158
    %222 = vmatpush1.msra.mxu0 %v157
    %223 = vmatprep.subr.mxu0 %v154
    %224 = vmatpush1.msra.mxu0 %v153
    %225 = vmatprep.subr.mxu0 %v150
    %226 = vmatpush1.msra.mxu0 %v149
    %227 = vmatprep.subr.mxu0 %v146
    %228 = vmatpush1.msra.mxu0 %v145
    %229 = vmatprep.subr.mxu0 %v142
    %230 = vmatpush1.msra.mxu0 %v141
    %231 = vmatprep.subr.mxu0 %v138
    %232 = vmatpush1.msra.mxu0 %v137
    %233 = vmatprep.subr.mxu0 0.0
    %234 = vmatpush2.msra.mxu0 0.0
    %235 = vmatprep.subr.mxu0 0.0
    %236 = vmatpush2.msra.mxu0 0.0
    %237 = vmatprep.subr.mxu0 0.0
    %238 = vmatpush2.msra.mxu0 0.0
    %239 = vmatprep.subr.mxu0 0.0
    %240 = vmatpush2.msra.mxu0 0.0
    %241 = vmatprep.subr.mxu0 0.0
    %242 = vmatpush2.msra.mxu0 0.0
    %243 = vmatprep.subr.mxu0 0.0
    %244 = vmatpush2.msra.mxu0 0.0
    %245 = vmatprep.subr.mxu0 0.0
    %246 = vmatpush2.msra.mxu0 0.0
    %247 = vmatprep.subr.mxu0 0.0
    %248 = vmatpush2.msra.mxu0 0.0
    %249 = vmatprep.subr.mxu0 0.0
    %250 = vmatpush2.msra.mxu0 0.0
    %251 = vmatprep.subr.mxu0 0.0
    %252 = vmatpush2.msra.mxu0 0.0
    %253 = vmatprep.subr.mxu0 0.0
    %254 = vmatpush2.msra.mxu0 0.0
    %255 = vmatprep.subr.mxu0 0.0
    %256 = vmatpush2.msra.mxu0 0.0
    %257 = vmatprep.subr.mxu0 0.0
    %258 = vmatpush2.msra.mxu0 0.0
    %259 = vmatprep.subr.mxu0 0.0
    %260 = vmatpush2.msra.mxu0 0.0
    %261 = vmatprep.subr.mxu0 0.0
    %262 = vmatpush2.msra.mxu0 0.0
    %263 = vmatprep.subr.mxu0 0.0
    %264 = vmatpush2.msra.mxu0 0.0
    %265 = vmatprep.mubr.f32.mxu0 0.0
    %266 = vmatmul.mubr.f32.gmra.mxu0 %v135
    %v267 = vpop.f32.mrf.mxu0
    %v268 = vadd.f32 0.0, %v267
    %v269 = vpop.f32.mrf.mxu0
    %v270 = vadd.f32 0.0, %v269
    %271 = vdwg.mxu0
    %272 = vmatprep.subr.mxu0 %v200
    %273 = vmatpush1.msra.mxu0 %v199
    %274 = vmatprep.subr.mxu0 %v196
    %275 = vmatpush1.msra.mxu0 %v195
    %276 = vmatprep.subr.mxu0 %v192
    %277 = vmatpush1.msra.mxu0 %v191
    %278 = vmatprep.subr.mxu0 %v188
    %279 = vmatpush1.msra.mxu0 %v187
    %280 = vmatprep.subr.mxu0 %v184
    %281 = vmatpush1.msra.mxu0 %v183
    %282 = vmatprep.subr.mxu0 %v180
    %283 = vmatpush1.msra.mxu0 %v179
    %284 = vmatprep.subr.mxu0 %v176
    %285 = vmatpush1.msra.mxu0 %v175
    %286 = vmatprep.subr.mxu0 %v172
    %287 = vmatpush1.msra.mxu0 %v171
    %288 = vmatprep.subr.mxu0 %v168
    %289 = vmatpush1.msra.mxu0 %v167
    %290 = vmatprep.subr.mxu0 %v164
    %291 = vmatpush1.msra.mxu0 %v163
    %292 = vmatprep.subr.mxu0 %v160
    %293 = vmatpush1.msra.mxu0 %v159
    %294 = vmatprep.subr.mxu0 %v156
    %295 = vmatpush1.msra.mxu0 %v155
    %296 = vmatprep.subr.mxu0 %v152
    %297 = vmatpush1.msra.mxu0 %v151
    %298 = vmatprep.subr.mxu0 %v148
    %299 = vmatpush1.msra.mxu0 %v147
    %300 = vmatprep.subr.mxu0 %v144
    %301 = vmatpush1.msra.mxu0 %v143
    %302 = vmatprep.subr.mxu0 %v140
    %303 = vmatpush1.msra.mxu0 %v139
    %304 = vmatprep.subr.mxu0 0.0
    %305 = vmatpush2.msra.mxu0 0.0
    %306 = vmatprep.subr.mxu0 0.0
    %307 = vmatpush2.msra.mxu0 0.0
    %308 = vmatprep.subr.mxu0 0.0
    %309 = vmatpush2.msra.mxu0 0.0
    %310 = vmatprep.subr.mxu0 0.0
    %311 = vmatpush2.msra.mxu0 0.0
    %312 = vmatprep.subr.mxu0 0.0
    %313 = vmatpush2.msra.mxu0 0.0
    %314 = vmatprep.subr.mxu0 0.0
    %315 = vmatpush2.msra.mxu0 0.0
    %316 = vmatprep.subr.mxu0 0.0
    %317 = vmatpush2.msra.mxu0 0.0
    %318 = vmatprep.subr.mxu0 0.0
    %319 = vmatpush2.msra.mxu0 0.0
    %320 = vmatprep.subr.mxu0 0.0
    %321 = vmatpush2.msra.mxu0 0.0
    %322 = vmatprep.subr.mxu0 0.0
    %323 = vmatpush2.msra.mxu0 0.0
    %324 = vmatprep.subr.mxu0 0.0
    %325 = vmatpush2.msra.mxu0 0.0
    %326 = vmatprep.subr.mxu0 0.0
    %327 = vmatpush2.msra.mxu0 0.0
    %328 = vmatprep.subr.mxu0 0.0
    %329 = vmatpush2.msra.mxu0 0.0
    %330 = vmatprep.subr.mxu0 0.0
    %331 = vmatpush2.msra.mxu0 0.0
    %332 = vmatprep.subr.mxu0 0.0
    %333 = vmatpush2.msra.mxu0 0.0
    %334 = vmatprep.subr.mxu0 0.0
    %335 = vmatpush2.msra.mxu0 0.0
    %336 = vmatprep.mubr.f32.mxu0 0.0
    %337 = vmatmul.mubr.f32.gmra.mxu0 %v135
    %v338 = vpop.f32.mrf.mxu0
    %v339 = vadd.f32 0.0, %v338
    %v340 = vpop.f32.mrf.mxu0
    %v341 = vadd.f32 0.0, %v340
    %342 = vdwg.mxu0
    %p343 = scmp.lt.s32.totalorder %s132, 0
    %s344 = ssub.s32 0, %s132
    %s345 = scalar_select %p343, %s344, %s132
    %s346 = sand.u32 %s345, 1
    %s347 = ssub.s32 0, %s346
    %s348 = scalar_select %p343, %s347, %s346
    %p349 = scmp.ne.s32.totalorder %s348, 0
    %p350 = scmp.lt.s32.totalorder %s348, 0
    %p351 = pnand %p350, %p349
    %p352 = pneg %p351
    %s353 = sadd.s32 %s348, 2
    %s354 = scalar_select %p352, %s353, %s348
    %s355 = smul.u32 %s354, 4
    %s356 = smul.addr %s355, 8
    %s357 = scalar_lea.vmem [#allocation6], %s356
    %v358 = vld [vmem:[%s357] sm:$0xff]
    %v359 = vld [vmem:[%s357 + $0x8] sm:$0xff]
    %v360 = vld [vmem:[%s357 + $0x10] sm:$0xff]
    %v361 = vld [vmem:[%s357 + $0x18] sm:$0xff]
    %v362 = vld [vmem:[#allocation9] sm:$0xff]
    %v363 = vld [vmem:[#allocation9 + $0x8] sm:$0xff]
    %v364 = vld [vmem:[#allocation9 + $0x10] sm:$0xff]
    %v365 = vld [vmem:[#allocation9 + $0x18] sm:$0xff]
    %v366 = vld [vmem:[#allocation9 + $0x20] sm:$0xff]
    %v367 = vld [vmem:[#allocation9 + $0x28] sm:$0xff]
    %v368 = vld [vmem:[#allocation9 + $0x30] sm:$0xff]
    %v369 = vld [vmem:[#allocation9 + $0x38] sm:$0xff]
    %v370 = vld [vmem:[#allocation9 + $0x40] sm:$0xff]
    %v371 = vld [vmem:[#allocation9 + $0x48] sm:$0xff]
    %v372 = vld [vmem:[#allocation9 + $0x50] sm:$0xff]
    %v373 = vld [vmem:[#allocation9 + $0x58] sm:$0xff]
    %v374 = vld [vmem:[#allocation9 + $0x60] sm:$0xff]
    %v375 = vld [vmem:[#allocation9 + $0x68] sm:$0xff]
    %v376 = vld [vmem:[#allocation9 + $0x70] sm:$0xff]
    %v377 = vld [vmem:[#allocation9 + $0x78] sm:$0xff]
    %v378 = vld [vmem:[#allocation9 + $0x80] sm:$0xff]
    %v379 = vld [vmem:[#allocation9 + $0x88] sm:$0xff]
    %v380 = vld [vmem:[#allocation9 + $0x90] sm:$0xff]
    %v381 = vld [vmem:[#allocation9 + $0x98] sm:$0xff]
    %v382 = vld [vmem:[#allocation9 + $0xa0] sm:$0xff]
    %v383 = vld [vmem:[#allocation9 + $0xa8] sm:$0xff]
    %v384 = vld [vmem:[#allocation9 + $0xb0] sm:$0xff]
    %v385 = vld [vmem:[#allocation9 + $0xb8] sm:$0xff]
    %v386 = vld [vmem:[#allocation9 + $0xc0] sm:$0xff]
    %v387 = vld [vmem:[#allocation9 + $0xc8] sm:$0xff]
    %v388 = vld [vmem:[#allocation9 + $0xd0] sm:$0xff]
    %v389 = vld [vmem:[#allocation9 + $0xd8] sm:$0xff]
    %v390 = vld [vmem:[#allocation9 + $0xe0] sm:$0xff]
    %v391 = vld [vmem:[#allocation9 + $0xe8] sm:$0xff]
    %v392 = vld [vmem:[#allocation9 + $0xf0] sm:$0xff]
    %v393 = vld [vmem:[#allocation9 + $0xf8] sm:$0xff]
    %v394 = vld [vmem:[#allocation9 + $0x100] sm:$0xff]
    %v395 = vld [vmem:[#allocation9 + $0x108] sm:$0xff]
    %v396 = vld [vmem:[#allocation9 + $0x110] sm:$0xff]
    %v397 = vld [vmem:[#allocation9 + $0x118] sm:$0xff]
    %v398 = vld [vmem:[#allocation9 + $0x120] sm:$0xff]
    %v399 = vld [vmem:[#allocation9 + $0x128] sm:$0xff]
    %v400 = vld [vmem:[#allocation9 + $0x130] sm:$0xff]
    %v401 = vld [vmem:[#allocation9 + $0x138] sm:$0xff]
    %v402 = vld [vmem:[#allocation9 + $0x140] sm:$0xff]
    %v403 = vld [vmem:[#allocation9 + $0x148] sm:$0xff]
    %v404 = vld [vmem:[#allocation9 + $0x150] sm:$0xff]
    %v405 = vld [vmem:[#allocation9 + $0x158] sm:$0xff]
    %v406 = vld [vmem:[#allocation9 + $0x160] sm:$0xff]
    %v407 = vld [vmem:[#allocation9 + $0x168] sm:$0xff]
    %v408 = vld [vmem:[#allocation9 + $0x170] sm:$0xff]
    %v409 = vld [vmem:[#allocation9 + $0x178] sm:$0xff]
    %v410 = vld [vmem:[#allocation9 + $0x180] sm:$0xff]
    %v411 = vld [vmem:[#allocation9 + $0x188] sm:$0xff]
    %v412 = vld [vmem:[#allocation9 + $0x190] sm:$0xff]
    %v413 = vld [vmem:[#allocation9 + $0x198] sm:$0xff]
    %v414 = vld [vmem:[#allocation9 + $0x1a0] sm:$0xff]
    %v415 = vld [vmem:[#allocation9 + $0x1a8] sm:$0xff]
    %v416 = vld [vmem:[#allocation9 + $0x1b0] sm:$0xff]
    %v417 = vld [vmem:[#allocation9 + $0x1b8] sm:$0xff]
    %v418 = vld [vmem:[#allocation9 + $0x1c0] sm:$0xff]
    %v419 = vld [vmem:[#allocation9 + $0x1c8] sm:$0xff]
    %v420 = vld [vmem:[#allocation9 + $0x1d0] sm:$0xff]
    %v421 = vld [vmem:[#allocation9 + $0x1d8] sm:$0xff]
    %v422 = vld [vmem:[#allocation9 + $0x1e0] sm:$0xff]
    %v423 = vld [vmem:[#allocation9 + $0x1e8] sm:$0xff]
    %v424 = vld [vmem:[#allocation9 + $0x1f0] sm:$0xff]
    %v425 = vld [vmem:[#allocation9 + $0x1f8] sm:$0xff]
    %426 = vmatprep.subr.mxu0 %v423
    %427 = vmatpush1.msra.mxu0 %v422
    %428 = vmatprep.subr.mxu0 %v419
    %429 = vmatpush1.msra.mxu0 %v418
    %430 = vmatprep.subr.mxu0 %v415
    %431 = vmatpush1.msra.mxu0 %v414
    %432 = vmatprep.subr.mxu0 %v411
    %433 = vmatpush1.msra.mxu0 %v410
    %434 = vmatprep.subr.mxu0 %v407
    %435 = vmatpush1.msra.mxu0 %v406
    %436 = vmatprep.subr.mxu0 %v403
    %437 = vmatpush1.msra.mxu0 %v402
    %438 = vmatprep.subr.mxu0 %v399
    %439 = vmatpush1.msra.mxu0 %v398
    %440 = vmatprep.subr.mxu0 %v395
    %441 = vmatpush1.msra.mxu0 %v394
    %442 = vmatprep.subr.mxu0 %v391
    %443 = vmatpush1.msra.mxu0 %v390
    %444 = vmatprep.subr.mxu0 %v387
    %445 = vmatpush1.msra.mxu0 %v386
    %446 = vmatprep.subr.mxu0 %v383
    %447 = vmatpush1.msra.mxu0 %v382
    %448 = vmatprep.subr.mxu0 %v379
    %449 = vmatpush1.msra.mxu0 %v378
    %450 = vmatprep.subr.mxu0 %v375
    %451 = vmatpush1.msra.mxu0 %v374
    %452 = vmatprep.subr.mxu0 %v371
    %453 = vmatpush1.msra.mxu0 %v370
    %454 = vmatprep.subr.mxu0 %v367
    %455 = vmatpush1.msra.mxu0 %v366
    %456 = vmatprep.subr.mxu0 %v363
    %457 = vmatpush1.msra.mxu0 %v362
    %458 = vmatprep.subr.mxu0 0.0
    %459 = vmatpush2.msra.mxu0 0.0
    %460 = vmatprep.subr.mxu0 0.0
    %461 = vmatpush2.msra.mxu0 0.0
    %462 = vmatprep.subr.mxu0 0.0
    %463 = vmatpush2.msra.mxu0 0.0
    %464 = vmatprep.subr.mxu0 0.0
    %465 = vmatpush2.msra.mxu0 0.0
    %466 = vmatprep.subr.mxu0 0.0
    %467 = vmatpush2.msra.mxu0 0.0
    %468 = vmatprep.subr.mxu0 0.0
    %469 = vmatpush2.msra.mxu0 0.0
    %470 = vmatprep.subr.mxu0 0.0
    %471 = vmatpush2.msra.mxu0 0.0
    %472 = vmatprep.subr.mxu0 0.0
    %473 = vmatpush2.msra.mxu0 0.0
    %474 = vmatprep.subr.mxu0 0.0
    %475 = vmatpush2.msra.mxu0 0.0
    %476 = vmatprep.subr.mxu0 0.0
    %477 = vmatpush2.msra.mxu0 0.0
    %478 = vmatprep.subr.mxu0 0.0
    %479 = vmatpush2.msra.mxu0 0.0
    %480 = vmatprep.subr.mxu0 0.0
    %481 = vmatpush2.msra.mxu0 0.0
    %482 = vmatprep.subr.mxu0 0.0
    %483 = vmatpush2.msra.mxu0 0.0
    %484 = vmatprep.subr.mxu0 0.0
    %485 = vmatpush2.msra.mxu0 0.0
    %486 = vmatprep.subr.mxu0 0.0
    %487 = vmatpush2.msra.mxu0 0.0
    %488 = vmatprep.subr.mxu0 0.0
    %489 = vmatpush2.msra.mxu0 0.0
    %490 = vmatprep.mubr.f32.mxu0 0.0
    %491 = vmatmul.mubr.f32.gmra.mxu0 %v133
    %v492 = vpop.f32.mrf.mxu0
    %v493 = vadd.f32 0.0, %v492
    %v494 = vpop.f32.mrf.mxu0
    %v495 = vadd.f32 0.0, %v494
    %496 = vdwg.mxu0
    %497 = vmatprep.subr.mxu0 %v425
    %498 = vmatpush1.msra.mxu0 %v424
    %499 = vmatprep.subr.mxu0 %v421
    %500 = vmatpush1.msra.mxu0 %v420
    %501 = vmatprep.subr.mxu0 %v417
    %502 = vmatpush1.msra.mxu0 %v416
    %503 = vmatprep.subr.mxu0 %v413
    %504 = vmatpush1.msra.mxu0 %v412
    %505 = vmatprep.subr.mxu0 %v409
    %506 = vmatpush1.msra.mxu0 %v408
    %507 = vmatprep.subr.mxu0 %v405
    %508 = vmatpush1.msra.mxu0 %v404
    %509 = vmatprep.subr.mxu0 %v401
    %510 = vmatpush1.msra.mxu0 %v400
    %511 = vmatprep.subr.mxu0 %v397
    %512 = vmatpush1.msra.mxu0 %v396
    %513 = vmatprep.subr.mxu0 %v393
    %514 = vmatpush1.msra.mxu0 %v392
    %515 = vmatprep.subr.mxu0 %v389
    %516 = vmatpush1.msra.mxu0 %v388
    %517 = vmatprep.subr.mxu0 %v385
    %518 = vmatpush1.msra.mxu0 %v384
    %519 = vmatprep.subr.mxu0 %v381
    %520 = vmatpush1.msra.mxu0 %v380
    %521 = vmatprep.subr.mxu0 %v377
    %522 = vmatpush1.msra.mxu0 %v376
    %523 = vmatprep.subr.mxu0 %v373
    %524 = vmatpush1.msra.mxu0 %v372
    %525 = vmatprep.subr.mxu0 %v369
    %526 = vmatpush1.msra.mxu0 %v368
    %527 = vmatprep.subr.mxu0 %v365
    %528 = vmatpush1.msra.mxu0 %v364
    %529 = vmatprep.subr.mxu0 0.0
    %530 = vmatpush2.msra.mxu0 0.0
    %531 = vmatprep.subr.mxu0 0.0
    %532 = vmatpush2.msra.mxu0 0.0
    %533 = vmatprep.subr.mxu0 0.0
    %534 = vmatpush2.msra.mxu0 0.0
    %535 = vmatprep.subr.mxu0 0.0
    %536 = vmatpush2.msra.mxu0 0.0
    %537 = vmatprep.subr.mxu0 0.0
    %538 = vmatpush2.msra.mxu0 0.0
    %539 = vmatprep.subr.mxu0 0.0
    %540 = vmatpush2.msra.mxu0 0.0
    %541 = vmatprep.subr.mxu0 0.0
    %542 = vmatpush2.msra.mxu0 0.0
    %543 = vmatprep.subr.mxu0 0.0
    %544 = vmatpush2.msra.mxu0 0.0
    %545 = vmatprep.subr.mxu0 0.0
    %546 = vmatpush2.msra.mxu0 0.0
    %547 = vmatprep.subr.mxu0 0.0
    %548 = vmatpush2.msra.mxu0 0.0
    %549 = vmatprep.subr.mxu0 0.0
    %550 = vmatpush2.msra.mxu0 0.0
    %551 = vmatprep.subr.mxu0 0.0
    %552 = vmatpush2.msra.mxu0 0.0
    %553 = vmatprep.subr.mxu0 0.0
    %554 = vmatpush2.msra.mxu0 0.0
    %555 = vmatprep.subr.mxu0 0.0
    %556 = vmatpush2.msra.mxu0 0.0
    %557 = vmatprep.subr.mxu0 0.0
    %558 = vmatpush2.msra.mxu0 0.0
    %559 = vmatprep.subr.mxu0 0.0
    %560 = vmatpush2.msra.mxu0 0.0
    %561 = vmatprep.mubr.f32.mxu0 0.0
    %562 = vmatmul.mubr.f32.gmra.mxu0 %v133
    %v563 = vpop.f32.mrf.mxu0
    %v564 = vadd.f32 0.0, %v563
    %v565 = vpop.f32.mrf.mxu0
    %v566 = vadd.f32 0.0, %v565
    %567 = vdwg.mxu0
    %v568 = vadd.f32 %v358, %v493
    %v569 = vadd.f32 %v359, %v495
    %v570 = vadd.f32 %v360, %v564
    %v571 = vadd.f32 %v361, %v566
    %v572 = vxor.u32 %v568, 2147483648
    %v573 = vmul.f32 %v572, 1.442695
    %v574 = vpow.pop %v573
    %v575 = vadd.f32 %v574, 1.0
    %v576 = vrcp.pop %v575
    %v577 = vmul.f32 1.0, %v576
    %v578 = vxor.u32 %v569, 2147483648
    %v579 = vmul.f32 %v578, 1.442695
    %v580 = vpow.pop %v579
    %v581 = vadd.f32 %v580, 1.0
    %v582 = vrcp.pop %v581
    %v583 = vmul.f32 1.0, %v582
    %v584 = vtanh.pop %v570
    %v585 = vxor.u32 %v571, 2147483648
    %v586 = vmul.f32 %v585, 1.442695
    %v587 = vpow.pop %v586
    %v588 = vadd.f32 %v587, 1.0
    %v589 = vrcp.pop %v588
    %v590 = vmul.f32 1.0, %v589
    %v591 = vmul.f32 %v583, %v134
    %v592 = vmul.f32 %v577, %v584
    %v593 = vadd.f32 %v591, %v592
    %v594 = vtanh.pop %v593
    %v595 = vmul.f32 %v590, %v594
    %v596 = vld [vmem:[#allocation11] sm:$0xff]
    %v597 = vld [vmem:[#allocation11 + $0x8] sm:$0xff]
    %v598 = vld [vmem:[#allocation11 + $0x10] sm:$0xff]
    %v599 = vld [vmem:[#allocation11 + $0x18] sm:$0xff]
    %v600 = vld [vmem:[#allocation11 + $0x20] sm:$0xff]
    %v601 = vld [vmem:[#allocation11 + $0x28] sm:$0xff]
    %v602 = vld [vmem:[#allocation11 + $0x30] sm:$0xff]
    %v603 = vld [vmem:[#allocation11 + $0x38] sm:$0xff]
    %v604 = vld [vmem:[#allocation11 + $0x40] sm:$0xff]
    %v605 = vld [vmem:[#allocation11 + $0x48] sm:$0xff]
    %v606 = vld [vmem:[#allocation11 + $0x50] sm:$0xff]
    %v607 = vld [vmem:[#allocation11 + $0x58] sm:$0xff]
    %v608 = vld [vmem:[#allocation11 + $0x60] sm:$0xff]
    %v609 = vld [vmem:[#allocation11 + $0x68] sm:$0xff]
    %v610 = vld [vmem:[#allocation11 + $0x70] sm:$0xff]
    %v611 = vld [vmem:[#allocation11 + $0x78] sm:$0xff]
    %v612 = vld [vmem:[#allocation11 + $0x80] sm:$0xff]
    %v613 = vld [vmem:[#allocation11 + $0x88] sm:$0xff]
    %v614 = vld [vmem:[#allocation11 + $0x90] sm:$0xff]
    %v615 = vld [vmem:[#allocation11 + $0x98] sm:$0xff]
    %v616 = vld [vmem:[#allocation11 + $0xa0] sm:$0xff]
    %v617 = vld [vmem:[#allocation11 + $0xa8] sm:$0xff]
    %v618 = vld [vmem:[#allocation11 + $0xb0] sm:$0xff]
    %v619 = vld [vmem:[#allocation11 + $0xb8] sm:$0xff]
    %v620 = vld [vmem:[#allocation11 + $0xc0] sm:$0xff]
    %v621 = vld [vmem:[#allocation11 + $0xc8] sm:$0xff]
    %v622 = vld [vmem:[#allocation11 + $0xd0] sm:$0xff]
    %v623 = vld [vmem:[#allocation11 + $0xd8] sm:$0xff]
    %v624 = vld [vmem:[#allocation11 + $0xe0] sm:$0xff]
    %v625 = vld [vmem:[#allocation11 + $0xe8] sm:$0xff]
    %v626 = vld [vmem:[#allocation11 + $0xf0] sm:$0xff]
    %v627 = vld [vmem:[#allocation11 + $0xf8] sm:$0xff]
    %v628 = vld [vmem:[#allocation11 + $0x100] sm:$0xff]
    %v629 = vld [vmem:[#allocation11 + $0x108] sm:$0xff]
    %v630 = vld [vmem:[#allocation11 + $0x110] sm:$0xff]
    %v631 = vld [vmem:[#allocation11 + $0x118] sm:$0xff]
    %v632 = vld [vmem:[#allocation11 + $0x120] sm:$0xff]
    %v633 = vld [vmem:[#allocation11 + $0x128] sm:$0xff]
    %v634 = vld [vmem:[#allocation11 + $0x130] sm:$0xff]
    %v635 = vld [vmem:[#allocation11 + $0x138] sm:$0xff]
    %v636 = vld [vmem:[#allocation11 + $0x140] sm:$0xff]
    %v637 = vld [vmem:[#allocation11 + $0x148] sm:$0xff]
    %v638 = vld [vmem:[#allocation11 + $0x150] sm:$0xff]
    %v639 = vld [vmem:[#allocation11 + $0x158] sm:$0xff]
    %v640 = vld [vmem:[#allocation11 + $0x160] sm:$0xff]
    %v641 = vld [vmem:[#allocation11 + $0x168] sm:$0xff]
    %v642 = vld [vmem:[#allocation11 + $0x170] sm:$0xff]
    %v643 = vld [vmem:[#allocation11 + $0x178] sm:$0xff]
    %v644 = vld [vmem:[#allocation11 + $0x180] sm:$0xff]
    %v645 = vld [vmem:[#allocation11 + $0x188] sm:$0xff]
    %v646 = vld [vmem:[#allocation11 + $0x190] sm:$0xff]
    %v647 = vld [vmem:[#allocation11 + $0x198] sm:$0xff]
    %v648 = vld [vmem:[#allocation11 + $0x1a0] sm:$0xff]
    %v649 = vld [vmem:[#allocation11 + $0x1a8] sm:$0xff]
    %v650 = vld [vmem:[#allocation11 + $0x1b0] sm:$0xff]
    %v651 = vld [vmem:[#allocation11 + $0x1b8] sm:$0xff]
    %v652 = vld [vmem:[#allocation11 + $0x1c0] sm:$0xff]
    %v653 = vld [vmem:[#allocation11 + $0x1c8] sm:$0xff]
    %v654 = vld [vmem:[#allocation11 + $0x1d0] sm:$0xff]
    %v655 = vld [vmem:[#allocation11 + $0x1d8] sm:$0xff]
    %v656 = vld [vmem:[#allocation11 + $0x1e0] sm:$0xff]
    %v657 = vld [vmem:[#allocation11 + $0x1e8] sm:$0xff]
    %v658 = vld [vmem:[#allocation11 + $0x1f0] sm:$0xff]
    %v659 = vld [vmem:[#allocation11 + $0x1f8] sm:$0xff]
    %660 = vmatprep.subr.mxu0 %v657
    %661 = vmatpush1.msra.mxu0 %v656
    %662 = vmatprep.subr.mxu0 %v653
    %663 = vmatpush1.msra.mxu0 %v652
    %664 = vmatprep.subr.mxu0 %v649
    %665 = vmatpush1.msra.mxu0 %v648
    %666 = vmatprep.subr.mxu0 %v645
    %667 = vmatpush1.msra.mxu0 %v644
    %668 = vmatprep.subr.mxu0 %v641
    %669 = vmatpush1.msra.mxu0 %v640
    %670 = vmatprep.subr.mxu0 %v637
    %671 = vmatpush1.msra.mxu0 %v636
    %672 = vmatprep.subr.mxu0 %v633
    %673 = vmatpush1.msra.mxu0 %v632
    %674 = vmatprep.subr.mxu0 %v629
    %675 = vmatpush1.msra.mxu0 %v628
    %676 = vmatprep.subr.mxu0 %v625
    %677 = vmatpush1.msra.mxu0 %v624
    %678 = vmatprep.subr.mxu0 %v621
    %679 = vmatpush1.msra.mxu0 %v620
    %680 = vmatprep.subr.mxu0 %v617
    %681 = vmatpush1.msra.mxu0 %v616
    %682 = vmatprep.subr.mxu0 %v613
    %683 = vmatpush1.msra.mxu0 %v612
    %684 = vmatprep.subr.mxu0 %v609
    %685 = vmatpush1.msra.mxu0 %v608
    %686 = vmatprep.subr.mxu0 %v605
    %687 = vmatpush1.msra.mxu0 %v604
    %688 = vmatprep.subr.mxu0 %v601
    %689 = vmatpush1.msra.mxu0 %v600
    %690 = vmatprep.subr.mxu0 %v597
    %691 = vmatpush1.msra.mxu0 %v596
    %692 = vmatprep.subr.mxu0 0.0
    %693 = vmatpush2.msra.mxu0 0.0
    %694 = vmatprep.subr.mxu0 0.0
    %695 = vmatpush2.msra.mxu0 0.0
    %696 = vmatprep.subr.mxu0 0.0
    %697 = vmatpush2.msra.mxu0 0.0
    %698 = vmatprep.subr.mxu0 0.0
    %699 = vmatpush2.msra.mxu0 0.0
    %700 = vmatprep.subr.mxu0 0.0
    %701 = vmatpush2.msra.mxu0 0.0
    %702 = vmatprep.subr.mxu0 0.0
    %703 = vmatpush2.msra.mxu0 0.0
    %704 = vmatprep.subr.mxu0 0.0
    %705 = vmatpush2.msra.mxu0 0.0
    %706 = vmatprep.subr.mxu0 0.0
    %707 = vmatpush2.msra.mxu0 0.0
    %708 = vmatprep.subr.mxu0 0.0
    %709 = vmatpush2.msra.mxu0 0.0
    %710 = vmatprep.subr.mxu0 0.0
    %711 = vmatpush2.msra.mxu0 0.0
    %712 = vmatprep.subr.mxu0 0.0
    %713 = vmatpush2.msra.mxu0 0.0
    %714 = vmatprep.subr.mxu0 0.0
    %715 = vmatpush2.msra.mxu0 0.0
    %716 = vmatprep.subr.mxu0 0.0
    %717 = vmatpush2.msra.mxu0 0.0
    %718 = vmatprep.subr.mxu0 0.0
    %719 = vmatpush2.msra.mxu0 0.0
    %720 = vmatprep.subr.mxu0 0.0
    %721 = vmatpush2.msra.mxu0 0.0
    %722 = vmatprep.subr.mxu0 0.0
    %723 = vmatpush2.msra.mxu0 0.0
    %724 = vmatprep.mubr.f32.mxu0 0.0
    %725 = vmatmul.mubr.f32.gmra.mxu0 %v595
    %v726 = vpop.f32.mrf.mxu0
    %v727 = vadd.f32 %v268, %v726
    %v728 = vpop.f32.mrf.mxu0
    %v729 = vadd.f32 %v270, %v728
    %730 = vdwg.mxu0
    %731 = vmatprep.subr.mxu0 %v659
    %732 = vmatpush1.msra.mxu0 %v658
    %733 = vmatprep.subr.mxu0 %v655
    %734 = vmatpush1.msra.mxu0 %v654
    %735 = vmatprep.subr.mxu0 %v651
    %736 = vmatpush1.msra.mxu0 %v650
    %737 = vmatprep.subr.mxu0 %v647
    %738 = vmatpush1.msra.mxu0 %v646
    %739 = vmatprep.subr.mxu0 %v643
    %740 = vmatpush1.msra.mxu0 %v642
    %741 = vmatprep.subr.mxu0 %v639
    %742 = vmatpush1.msra.mxu0 %v638
    %743 = vmatprep.subr.mxu0 %v635
    %744 = vmatpush1.msra.mxu0 %v634
    %745 = vmatprep.subr.mxu0 %v631
    %746 = vmatpush1.msra.mxu0 %v630
    %747 = vmatprep.subr.mxu0 %v627
    %748 = vmatpush1.msra.mxu0 %v626
    %749 = vmatprep.subr.mxu0 %v623
    %750 = vmatpush1.msra.mxu0 %v622
    %751 = vmatprep.subr.mxu0 %v619
    %752 = vmatpush1.msra.mxu0 %v618
    %753 = vmatprep.subr.mxu0 %v615
    %754 = vmatpush1.msra.mxu0 %v614
    %755 = vmatprep.subr.mxu0 %v611
    %756 = vmatpush1.msra.mxu0 %v610
    %757 = vmatprep.subr.mxu0 %v607
    %758 = vmatpush1.msra.mxu0 %v606
    %759 = vmatprep.subr.mxu0 %v603
    %760 = vmatpush1.msra.mxu0 %v602
    %761 = vmatprep.subr.mxu0 %v599
    %762 = vmatpush1.msra.mxu0 %v598
    %763 = vmatprep.subr.mxu0 0.0
    %764 = vmatpush2.msra.mxu0 0.0
    %765 = vmatprep.subr.mxu0 0.0
    %766 = vmatpush2.msra.mxu0 0.0
    %767 = vmatprep.subr.mxu0 0.0
    %768 = vmatpush2.msra.mxu0 0.0
    %769 = vmatprep.subr.mxu0 0.0
    %770 = vmatpush2.msra.mxu0 0.0
    %771 = vmatprep.subr.mxu0 0.0
    %772 = vmatpush2.msra.mxu0 0.0
    %773 = vmatprep.subr.mxu0 0.0
    %774 = vmatpush2.msra.mxu0 0.0
    %775 = vmatprep.subr.mxu0 0.0
    %776 = vmatpush2.msra.mxu0 0.0
    %777 = vmatprep.subr.mxu0 0.0
    %778 = vmatpush2.msra.mxu0 0.0
    %779 = vmatprep.subr.mxu0 0.0
    %780 = vmatpush2.msra.mxu0 0.0
    %781 = vmatprep.subr.mxu0 0.0
    %782 = vmatpush2.msra.mxu0 0.0
    %783 = vmatprep.subr.mxu0 0.0
    %784 = vmatpush2.msra.mxu0 0.0
    %785 = vmatprep.subr.mxu0 0.0
    %786 = vmatpush2.msra.mxu0 0.0
    %787 = vmatprep.subr.mxu0 0.0
    %788 = vmatpush2.msra.mxu0 0.0
    %789 = vmatprep.subr.mxu0 0.0
    %790 = vmatpush2.msra.mxu0 0.0
    %791 = vmatprep.subr.mxu0 0.0
    %792 = vmatpush2.msra.mxu0 0.0
    %793 = vmatprep.subr.mxu0 0.0
    %794 = vmatpush2.msra.mxu0 0.0
    %795 = vmatprep.mubr.f32.mxu0 0.0
    %796 = vmatmul.mubr.f32.gmra.mxu0 %v595
    %v797 = vpop.f32.mrf.mxu0
    %v798 = vadd.f32 %v339, %v797
    %v799 = vpop.f32.mrf.mxu0
    %v800 = vadd.f32 %v341, %v799
    %801 = vdwg.mxu0
    %v802 = vadd.f32 %v727, %v108
    %v803 = vadd.f32 %v729, %v112
    %v804 = vadd.f32 %v798, %v116
    %v805 = vadd.f32 %v800, %v120
    %v806 = vxor.u32 %v802, 2147483648
    %v807 = vmul.f32 %v806, 1.442695
    %v808 = vpow.pop %v807
    %v809 = vadd.f32 %v808, 1.0
    %v810 = vrcp.pop %v809
    %v811 = vmul.f32 1.0, %v810
    %v812 = vxor.u32 %v803, 2147483648
    %v813 = vmul.f32 %v812, 1.442695
    %v814 = vpow.pop %v813
    %v815 = vadd.f32 %v814, 1.0
    %v816 = vrcp.pop %v815
    %v817 = vmul.f32 1.0, %v816
    %v818 = vtanh.pop %v804
    %v819 = vxor.u32 %v805, 2147483648
    %v820 = vmul.f32 %v819, 1.442695
    %v821 = vpow.pop %v820
    %v822 = vadd.f32 %v821, 1.0
    %v823 = vrcp.pop %v822
    %v824 = vmul.f32 1.0, %v823
    %v825 = vmul.f32 %v817, %v136
    %v826 = vmul.f32 %v811, %v818
    %v827 = vadd.f32 %v825, %v826
    %v828 = vtanh.pop %v827
    %v829 = vmul.f32 %v824, %v828
    %v830 = vld [vmem:[#allocation14] sm:$0xff]
    %v831 = vld [vmem:[#allocation14 + $0x8] sm:$0xff]
    %v832 = vld [vmem:[#allocation14 + $0x10] sm:$0xff]
    %v833 = vld [vmem:[#allocation14 + $0x18] sm:$0xff]
    %v834 = vld [vmem:[#allocation14 + $0x20] sm:$0xff]
    %v835 = vld [vmem:[#allocation14 + $0x28] sm:$0xff]
    %v836 = vld [vmem:[#allocation14 + $0x30] sm:$0xff]
    %v837 = vld [vmem:[#allocation14 + $0x38] sm:$0xff]
    %v838 = vld [vmem:[#allocation14 + $0x40] sm:$0xff]
    %v839 = vld [vmem:[#allocation14 + $0x48] sm:$0xff]
    %v840 = vld [vmem:[#allocation14 + $0x50] sm:$0xff]
    %v841 = vld [vmem:[#allocation14 + $0x58] sm:$0xff]
    %v842 = vld [vmem:[#allocation14 + $0x60] sm:$0xff]
    %v843 = vld [vmem:[#allocation14 + $0x68] sm:$0xff]
    %v844 = vld [vmem:[#allocation14 + $0x70] sm:$0xff]
    %v845 = vld [vmem:[#allocation14 + $0x78] sm:$0xff]
    %846 = vmatprep.subr.mxu0 0.0
    %847 = vmatpush1.msra.mxu0 %v845
    %848 = vmatprep.subr.mxu0 0.0
    %849 = vmatpush1.msra.mxu0 %v844
    %850 = vmatprep.subr.mxu0 0.0
    %851 = vmatpush1.msra.mxu0 %v843
    %852 = vmatprep.subr.mxu0 0.0
    %853 = vmatpush1.msra.mxu0 %v842
    %854 = vmatprep.subr.mxu0 0.0
    %855 = vmatpush1.msra.mxu0 %v841
    %856 = vmatprep.subr.mxu0 0.0
    %857 = vmatpush1.msra.mxu0 %v840
    %858 = vmatprep.subr.mxu0 0.0
    %859 = vmatpush1.msra.mxu0 %v839
    %860 = vmatprep.subr.mxu0 0.0
    %861 = vmatpush1.msra.mxu0 %v838
    %862 = vmatprep.subr.mxu0 0.0
    %863 = vmatpush1.msra.mxu0 %v837
    %864 = vmatprep.subr.mxu0 0.0
    %865 = vmatpush1.msra.mxu0 %v836
    %866 = vmatprep.subr.mxu0 0.0
    %867 = vmatpush1.msra.mxu0 %v835
    %868 = vmatprep.subr.mxu0 0.0
    %869 = vmatpush1.msra.mxu0 %v834
    %870 = vmatprep.subr.mxu0 0.0
    %871 = vmatpush1.msra.mxu0 %v833
    %872 = vmatprep.subr.mxu0 0.0
    %873 = vmatpush1.msra.mxu0 %v832
    %874 = vmatprep.subr.mxu0 0.0
    %875 = vmatpush1.msra.mxu0 %v831
    %876 = vmatprep.subr.mxu0 0.0
    %877 = vmatpush1.msra.mxu0 %v830
    %878 = vmatprep.subr.mxu0 0.0
    %879 = vmatpush2.msra.mxu0 0.0
    %880 = vmatprep.subr.mxu0 0.0
    %881 = vmatpush2.msra.mxu0 0.0
    %882 = vmatprep.subr.mxu0 0.0
    %883 = vmatpush2.msra.mxu0 0.0
    %884 = vmatprep.subr.mxu0 0.0
    %885 = vmatpush2.msra.mxu0 0.0
    %886 = vmatprep.subr.mxu0 0.0
    %887 = vmatpush2.msra.mxu0 0.0
    %888 = vmatprep.subr.mxu0 0.0
    %889 = vmatpush2.msra.mxu0 0.0
    %890 = vmatprep.subr.mxu0 0.0
    %891 = vmatpush2.msra.mxu0 0.0
    %892 = vmatprep.subr.mxu0 0.0
    %893 = vmatpush2.msra.mxu0 0.0
    %894 = vmatprep.subr.mxu0 0.0
    %895 = vmatpush2.msra.mxu0 0.0
    %896 = vmatprep.subr.mxu0 0.0
    %897 = vmatpush2.msra.mxu0 0.0
    %898 = vmatprep.subr.mxu0 0.0
    %899 = vmatpush2.msra.mxu0 0.0
    %900 = vmatprep.subr.mxu0 0.0
    %901 = vmatpush2.msra.mxu0 0.0
    %902 = vmatprep.subr.mxu0 0.0
    %903 = vmatpush2.msra.mxu0 0.0
    %904 = vmatprep.subr.mxu0 0.0
    %905 = vmatpush2.msra.mxu0 0.0
    %906 = vmatprep.subr.mxu0 0.0
    %907 = vmatpush2.msra.mxu0 0.0
    %908 = vmatprep.subr.mxu0 0.0
    %909 = vmatpush2.msra.mxu0 0.0
    %910 = vmatprep.mubr.f32.mxu0 0.0
    %911 = vmatmul.mubr.f32.gmra.mxu0 %v829
    %v912 = vpop.f32.mrf.mxu0
    %v913 = vadd.f32 %v130, %v912
    %v914 = vpop.f32.mrf.mxu0
    %915 = vdwg.mxu0
    %916 = vst [vmem:[#allocation15] sm:$0xff] %v913
    %s917 = sadd.s32 %s132, 1
    %v918 = vld [vmem:[#allocation12] sm:$0xff]
    %v919 = vld [vmem:[#allocation12 + $0x8] sm:$0xff]
    %v920 = vld [vmem:[#allocation12 + $0x10] sm:$0xff]
    %v921 = vld [vmem:[#allocation12 + $0x18] sm:$0xff]
    %v922 = vld [vmem:[#allocation12 + $0x20] sm:$0xff]
    %v923 = vld [vmem:[#allocation12 + $0x28] sm:$0xff]
    %v924 = vld [vmem:[#allocation12 + $0x30] sm:$0xff]
    %v925 = vld [vmem:[#allocation12 + $0x38] sm:$0xff]
    %v926 = vld [vmem:[#allocation12 + $0x40] sm:$0xff]
    %v927 = vld [vmem:[#allocation12 + $0x48] sm:$0xff]
    %v928 = vld [vmem:[#allocation12 + $0x50] sm:$0xff]
    %v929 = vld [vmem:[#allocation12 + $0x58] sm:$0xff]
    %v930 = vld [vmem:[#allocation12 + $0x60] sm:$0xff]
    %v931 = vld [vmem:[#allocation12 + $0x68] sm:$0xff]
    %v932 = vld [vmem:[#allocation12 + $0x70] sm:$0xff]
    %v933 = vld [vmem:[#allocation12 + $0x78] sm:$0xff]
    %v934 = vld [vmem:[#allocation12 + $0x80] sm:$0xff]
    %v935 = vld [vmem:[#allocation12 + $0x88] sm:$0xff]
    %v936 = vld [vmem:[#allocation12 + $0x90] sm:$0xff]
    %v937 = vld [vmem:[#allocation12 + $0x98] sm:$0xff]
    %v938 = vld [vmem:[#allocation12 + $0xa0] sm:$0xff]
    %v939 = vld [vmem:[#allocation12 + $0xa8] sm:$0xff]
    %v940 = vld [vmem:[#allocation12 + $0xb0] sm:$0xff]
    %v941 = vld [vmem:[#allocation12 + $0xb8] sm:$0xff]
    %v942 = vld [vmem:[#allocation12 + $0xc0] sm:$0xff]
    %v943 = vld [vmem:[#allocation12 + $0xc8] sm:$0xff]
    %v944 = vld [vmem:[#allocation12 + $0xd0] sm:$0xff]
    %v945 = vld [vmem:[#allocation12 + $0xd8] sm:$0xff]
    %v946 = vld [vmem:[#allocation12 + $0xe0] sm:$0xff]
    %v947 = vld [vmem:[#allocation12 + $0xe8] sm:$0xff]
    %v948 = vld [vmem:[#allocation12 + $0xf0] sm:$0xff]
    %v949 = vld [vmem:[#allocation12 + $0xf8] sm:$0xff]
    %v950 = vld [vmem:[#allocation12 + $0x100] sm:$0xff]
    %v951 = vld [vmem:[#allocation12 + $0x108] sm:$0xff]
    %v952 = vld [vmem:[#allocation12 + $0x110] sm:$0xff]
    %v953 = vld [vmem:[#allocation12 + $0x118] sm:$0xff]
    %v954 = vld [vmem:[#allocation12 + $0x120] sm:$0xff]
    %v955 = vld [vmem:[#allocation12 + $0x128] sm:$0xff]
    %v956 = vld [vmem:[#allocation12 + $0x130] sm:$0xff]
    %v957 = vld [vmem:[#allocation12 + $0x138] sm:$0xff]
    %v958 = vld [vmem:[#allocation12 + $0x140] sm:$0xff]
    %v959 = vld [vmem:[#allocation12 + $0x148] sm:$0xff]
    %v960 = vld [vmem:[#allocation12 + $0x150] sm:$0xff]
    %v961 = vld [vmem:[#allocation12 + $0x158] sm:$0xff]
    %v962 = vld [vmem:[#allocation12 + $0x160] sm:$0xff]
    %v963 = vld [vmem:[#allocation12 + $0x168] sm:$0xff]
    %v964 = vld [vmem:[#allocation12 + $0x170] sm:$0xff]
    %v965 = vld [vmem:[#allocation12 + $0x178] sm:$0xff]
    %v966 = vld [vmem:[#allocation12 + $0x180] sm:$0xff]
    %v967 = vld [vmem:[#allocation12 + $0x188] sm:$0xff]
    %v968 = vld [vmem:[#allocation12 + $0x190] sm:$0xff]
    %v969 = vld [vmem:[#allocation12 + $0x198] sm:$0xff]
    %v970 = vld [vmem:[#allocation12 + $0x1a0] sm:$0xff]
    %v971 = vld [vmem:[#allocation12 + $0x1a8] sm:$0xff]
    %v972 = vld [vmem:[#allocation12 + $0x1b0] sm:$0xff]
    %v973 = vld [vmem:[#allocation12 + $0x1b8] sm:$0xff]
    %v974 = vld [vmem:[#allocation12 + $0x1c0] sm:$0xff]
    %v975 = vld [vmem:[#allocation12 + $0x1c8] sm:$0xff]
    %v976 = vld [vmem:[#allocation12 + $0x1d0] sm:$0xff]
    %v977 = vld [vmem:[#allocation12 + $0x1d8] sm:$0xff]
    %v978 = vld [vmem:[#allocation12 + $0x1e0] sm:$0xff]
    %v979 = vld [vmem:[#allocation12 + $0x1e8] sm:$0xff]
    %v980 = vld [vmem:[#allocation12 + $0x1f0] sm:$0xff]
    %v981 = vld [vmem:[#allocation12 + $0x1f8] sm:$0xff]
    %982 = vmatprep.subr.mxu0 %v979
    %983 = vmatpush1.msra.mxu0 %v978
    %984 = vmatprep.subr.mxu0 %v975
    %985 = vmatpush1.msra.mxu0 %v974
    %986 = vmatprep.subr.mxu0 %v971
    %987 = vmatpush1.msra.mxu0 %v970
    %988 = vmatprep.subr.mxu0 %v967
    %989 = vmatpush1.msra.mxu0 %v966
    %990 = vmatprep.subr.mxu0 %v963
    %991 = vmatpush1.msra.mxu0 %v962
    %992 = vmatprep.subr.mxu0 %v959
    %993 = vmatpush1.msra.mxu0 %v958
    %994 = vmatprep.subr.mxu0 %v955
    %995 = vmatpush1.msra.mxu0 %v954
    %996 = vmatprep.subr.mxu0 %v951
    %997 = vmatpush1.msra.mxu0 %v950
    %998 = vmatprep.subr.mxu0 %v947
    %999 = vmatpush1.msra.mxu0 %v946
    %1000 = vmatprep.subr.mxu0 %v943
    %1001 = vmatpush1.msra.mxu0 %v942
    %1002 = vmatprep.subr.mxu0 %v939
    %1003 = vmatpush1.msra.mxu0 %v938
    %1004 = vmatprep.subr.mxu0 %v935
    %1005 = vmatpush1.msra.mxu0 %v934
    %1006 = vmatprep.subr.mxu0 %v931
    %1007 = vmatpush1.msra.mxu0 %v930
    %1008 = vmatprep.subr.mxu0 %v927
    %1009 = vmatpush1.msra.mxu0 %v926
    %1010 = vmatprep.subr.mxu0 %v923
    %1011 = vmatpush1.msra.mxu0 %v922
    %1012 = vmatprep.subr.mxu0 %v919
    %1013 = vmatpush1.msra.mxu0 %v918
    %1014 = vmatprep.subr.mxu0 0.0
    %1015 = vmatpush2.msra.mxu0 0.0
    %1016 = vmatprep.subr.mxu0 0.0
    %1017 = vmatpush2.msra.mxu0 0.0
    %1018 = vmatprep.subr.mxu0 0.0
    %1019 = vmatpush2.msra.mxu0 0.0
    %1020 = vmatprep.subr.mxu0 0.0
    %1021 = vmatpush2.msra.mxu0 0.0
    %1022 = vmatprep.subr.mxu0 0.0
    %1023 = vmatpush2.msra.mxu0 0.0
    %1024 = vmatprep.subr.mxu0 0.0
    %1025 = vmatpush2.msra.mxu0 0.0
    %1026 = vmatprep.subr.mxu0 0.0
    %1027 = vmatpush2.msra.mxu0 0.0
    %1028 = vmatprep.subr.mxu0 0.0
    %1029 = vmatpush2.msra.mxu0 0.0
    %1030 = vmatprep.subr.mxu0 0.0
    %1031 = vmatpush2.msra.mxu0 0.0
    %1032 = vmatprep.subr.mxu0 0.0
    %1033 = vmatpush2.msra.mxu0 0.0
    %1034 = vmatprep.subr.mxu0 0.0
    %1035 = vmatpush2.msra.mxu0 0.0
    %1036 = vmatprep.subr.mxu0 0.0
    %1037 = vmatpush2.msra.mxu0 0.0
    %1038 = vmatprep.subr.mxu0 0.0
    %1039 = vmatpush2.msra.mxu0 0.0
    %1040 = vmatprep.subr.mxu0 0.0
    %1041 = vmatpush2.msra.mxu0 0.0
    %1042 = vmatprep.subr.mxu0 0.0
    %1043 = vmatpush2.msra.mxu0 0.0
    %1044 = vmatprep.subr.mxu0 0.0
    %1045 = vmatpush2.msra.mxu0 0.0
    %1046 = vmatprep.mubr.f32.mxu0 0.0
    %1047 = vmatmul.mubr.f32.gmra.mxu0 %v829
    %v1048 = vpop.f32.mrf.mxu0
    %v1049 = vadd.f32 0.0, %v1048
    %v1050 = vpop.f32.mrf.mxu0
    %v1051 = vadd.f32 0.0, %v1050
    %1052 = vdwg.mxu0
    %1053 = vmatprep.subr.mxu0 %v981
    %1054 = vmatpush1.msra.mxu0 %v980
    %1055 = vmatprep.subr.mxu0 %v977
    %1056 = vmatpush1.msra.mxu0 %v976
    %1057 = vmatprep.subr.mxu0 %v973
    %1058 = vmatpush1.msra.mxu0 %v972
    %1059 = vmatprep.subr.mxu0 %v969
    %1060 = vmatpush1.msra.mxu0 %v968
    %1061 = vmatprep.subr.mxu0 %v965
    %1062 = vmatpush1.msra.mxu0 %v964
    %1063 = vmatprep.subr.mxu0 %v961
    %1064 = vmatpush1.msra.mxu0 %v960
    %1065 = vmatprep.subr.mxu0 %v957
    %1066 = vmatpush1.msra.mxu0 %v956
    %1067 = vmatprep.subr.mxu0 %v953
    %1068 = vmatpush1.msra.mxu0 %v952
    %1069 = vmatprep.subr.mxu0 %v949
    %1070 = vmatpush1.msra.mxu0 %v948
    %1071 = vmatprep.subr.mxu0 %v945
    %1072 = vmatpush1.msra.mxu0 %v944
    %1073 = vmatprep.subr.mxu0 %v941
    %1074 = vmatpush1.msra.mxu0 %v940
    %1075 = vmatprep.subr.mxu0 %v937
    %1076 = vmatpush1.msra.mxu0 %v936
    %1077 = vmatprep.subr.mxu0 %v933
    %1078 = vmatpush1.msra.mxu0 %v932
    %1079 = vmatprep.subr.mxu0 %v929
    %1080 = vmatpush1.msra.mxu0 %v928
    %1081 = vmatprep.subr.mxu0 %v925
    %1082 = vmatpush1.msra.mxu0 %v924
    %1083 = vmatprep.subr.mxu0 %v921
    %1084 = vmatpush1.msra.mxu0 %v920
    %1085 = vmatprep.subr.mxu0 0.0
    %1086 = vmatpush2.msra.mxu0 0.0
    %1087 = vmatprep.subr.mxu0 0.0
    %1088 = vmatpush2.msra.mxu0 0.0
    %1089 = vmatprep.subr.mxu0 0.0
    %1090 = vmatpush2.msra.mxu0 0.0
    %1091 = vmatprep.subr.mxu0 0.0
    %1092 = vmatpush2.msra.mxu0 0.0
    %1093 = vmatprep.subr.mxu0 0.0
    %1094 = vmatpush2.msra.mxu0 0.0
    %1095 = vmatprep.subr.mxu0 0.0
    %1096 = vmatpush2.msra.mxu0 0.0
    %1097 = vmatprep.subr.mxu0 0.0
    %1098 = vmatpush2.msra.mxu0 0.0
    %1099 = vmatprep.subr.mxu0 0.0
    %1100 = vmatpush2.msra.mxu0 0.0
    %1101 = vmatprep.subr.mxu0 0.0
    %1102 = vmatpush2.msra.mxu0 0.0
    %1103 = vmatprep.subr.mxu0 0.0
    %1104 = vmatpush2.msra.mxu0 0.0
    %1105 = vmatprep.subr.mxu0 0.0
    %1106 = vmatpush2.msra.mxu0 0.0
    %1107 = vmatprep.subr.mxu0 0.0
    %1108 = vmatpush2.msra.mxu0 0.0
    %1109 = vmatprep.subr.mxu0 0.0
    %1110 = vmatpush2.msra.mxu0 0.0
    %1111 = vmatprep.subr.mxu0 0.0
    %1112 = vmatpush2.msra.mxu0 0.0
    %1113 = vmatprep.subr.mxu0 0.0
    %1114 = vmatpush2.msra.mxu0 0.0
    %1115 = vmatprep.subr.mxu0 0.0
    %1116 = vmatpush2.msra.mxu0 0.0
    %1117 = vmatprep.mubr.f32.mxu0 0.0
    %1118 = vmatmul.mubr.f32.gmra.mxu0 %v829
    %v1119 = vpop.f32.mrf.mxu0
    %v1120 = vadd.f32 0.0, %v1119
    %v1121 = vpop.f32.mrf.mxu0
    %v1122 = vadd.f32 0.0, %v1121
    %1123 = vdwg.mxu0
    %p1124 = scmp.lt.s32.totalorder %s917, 0
    %s1125 = ssub.s32 0, %s917
    %s1126 = scalar_select %p1124, %s1125, %s917
    %s1127 = sand.u32 %s1126, 1
    %s1128 = ssub.s32 0, %s1127
    %s1129 = scalar_select %p1124, %s1128, %s1127
    %p1130 = scmp.ne.s32.totalorder %s1129, 0
    %p1131 = scmp.lt.s32.totalorder %s1129, 0
    %p1132 = pnand %p1131, %p1130
    %p1133 = pneg %p1132
    %s1134 = sadd.s32 %s1129, 2
    %s1135 = scalar_select %p1133, %s1134, %s1129
    %s1136 = smul.u32 %s1135, 4
    %s1137 = smul.addr %s1136, 8
    %s1138 = scalar_lea.vmem [#allocation6], %s1137
    %v1139 = vld [vmem:[%s1138] sm:$0xff]
    %v1140 = vld [vmem:[%s1138 + $0x8] sm:$0xff]
    %v1141 = vld [vmem:[%s1138 + $0x10] sm:$0xff]
    %v1142 = vld [vmem:[%s1138 + $0x18] sm:$0xff]
    %v1143 = vld [vmem:[#allocation9] sm:$0xff]
    %v1144 = vld [vmem:[#allocation9 + $0x8] sm:$0xff]
    %v1145 = vld [vmem:[#allocation9 + $0x10] sm:$0xff]
    %v1146 = vld [vmem:[#allocation9 + $0x18] sm:$0xff]
    %v1147 = vld [vmem:[#allocation9 + $0x20] sm:$0xff]
    %v1148 = vld [vmem:[#allocation9 + $0x28] sm:$0xff]
    %v1149 = vld [vmem:[#allocation9 + $0x30] sm:$0xff]
    %v1150 = vld [vmem:[#allocation9 + $0x38] sm:$0xff]
    %v1151 = vld [vmem:[#allocation9 + $0x40] sm:$0xff]
    %v1152 = vld [vmem:[#allocation9 + $0x48] sm:$0xff]
    %v1153 = vld [vmem:[#allocation9 + $0x50] sm:$0xff]
    %v1154 = vld [vmem:[#allocation9 + $0x58] sm:$0xff]
    %v1155 = vld [vmem:[#allocation9 + $0x60] sm:$0xff]
    %v1156 = vld [vmem:[#allocation9 + $0x68] sm:$0xff]
    %v1157 = vld [vmem:[#allocation9 + $0x70] sm:$0xff]
    %v1158 = vld [vmem:[#allocation9 + $0x78] sm:$0xff]
    %v1159 = vld [vmem:[#allocation9 + $0x80] sm:$0xff]
    %v1160 = vld [vmem:[#allocation9 + $0x88] sm:$0xff]
    %v1161 = vld [vmem:[#allocation9 + $0x90] sm:$0xff]
    %v1162 = vld [vmem:[#allocation9 + $0x98] sm:$0xff]
    %v1163 = vld [vmem:[#allocation9 + $0xa0] sm:$0xff]
    %v1164 = vld [vmem:[#allocation9 + $0xa8] sm:$0xff]
    %v1165 = vld [vmem:[#allocation9 + $0xb0] sm:$0xff]
    %v1166 = vld [vmem:[#allocation9 + $0xb8] sm:$0xff]
    %v1167 = vld [vmem:[#allocation9 + $0xc0] sm:$0xff]
    %v1168 = vld [vmem:[#allocation9 + $0xc8] sm:$0xff]
    %v1169 = vld [vmem:[#allocation9 + $0xd0] sm:$0xff]
    %v1170 = vld [vmem:[#allocation9 + $0xd8] sm:$0xff]
    %v1171 = vld [vmem:[#allocation9 + $0xe0] sm:$0xff]
    %v1172 = vld [vmem:[#allocation9 + $0xe8] sm:$0xff]
    %v1173 = vld [vmem:[#allocation9 + $0xf0] sm:$0xff]
    %v1174 = vld [vmem:[#allocation9 + $0xf8] sm:$0xff]
    %v1175 = vld [vmem:[#allocation9 + $0x100] sm:$0xff]
    %v1176 = vld [vmem:[#allocation9 + $0x108] sm:$0xff]
    %v1177 = vld [vmem:[#allocation9 + $0x110] sm:$0xff]
    %v1178 = vld [vmem:[#allocation9 + $0x118] sm:$0xff]
    %v1179 = vld [vmem:[#allocation9 + $0x120] sm:$0xff]
    %v1180 = vld [vmem:[#allocation9 + $0x128] sm:$0xff]
    %v1181 = vld [vmem:[#allocation9 + $0x130] sm:$0xff]
    %v1182 = vld [vmem:[#allocation9 + $0x138] sm:$0xff]
    %v1183 = vld [vmem:[#allocation9 + $0x140] sm:$0xff]
    %v1184 = vld [vmem:[#allocation9 + $0x148] sm:$0xff]
    %v1185 = vld [vmem:[#allocation9 + $0x150] sm:$0xff]
    %v1186 = vld [vmem:[#allocation9 + $0x158] sm:$0xff]
    %v1187 = vld [vmem:[#allocation9 + $0x160] sm:$0xff]
    %v1188 = vld [vmem:[#allocation9 + $0x168] sm:$0xff]
    %v1189 = vld [vmem:[#allocation9 + $0x170] sm:$0xff]
    %v1190 = vld [vmem:[#allocation9 + $0x178] sm:$0xff]
    %v1191 = vld [vmem:[#allocation9 + $0x180] sm:$0xff]
    %v1192 = vld [vmem:[#allocation9 + $0x188] sm:$0xff]
    %v1193 = vld [vmem:[#allocation9 + $0x190] sm:$0xff]
    %v1194 = vld [vmem:[#allocation9 + $0x198] sm:$0xff]
    %v1195 = vld [vmem:[#allocation9 + $0x1a0] sm:$0xff]
    %v1196 = vld [vmem:[#allocation9 + $0x1a8] sm:$0xff]
    %v1197 = vld [vmem:[#allocation9 + $0x1b0] sm:$0xff]
    %v1198 = vld [vmem:[#allocation9 + $0x1b8] sm:$0xff]
    %v1199 = vld [vmem:[#allocation9 + $0x1c0] sm:$0xff]
    %v1200 = vld [vmem:[#allocation9 + $0x1c8] sm:$0xff]
    %v1201 = vld [vmem:[#allocation9 + $0x1d0] sm:$0xff]
    %v1202 = vld [vmem:[#allocation9 + $0x1d8] sm:$0xff]
    %v1203 = vld [vmem:[#allocation9 + $0x1e0] sm:$0xff]
    %v1204 = vld [vmem:[#allocation9 + $0x1e8] sm:$0xff]
    %v1205 = vld [vmem:[#allocation9 + $0x1f0] sm:$0xff]
    %v1206 = vld [vmem:[#allocation9 + $0x1f8] sm:$0xff]
    %1207 = vmatprep.subr.mxu0 %v1204
    %1208 = vmatpush1.msra.mxu0 %v1203
    %1209 = vmatprep.subr.mxu0 %v1200
    %1210 = vmatpush1.msra.mxu0 %v1199
    %1211 = vmatprep.subr.mxu0 %v1196
    %1212 = vmatpush1.msra.mxu0 %v1195
    %1213 = vmatprep.subr.mxu0 %v1192
    %1214 = vmatpush1.msra.mxu0 %v1191
    %1215 = vmatprep.subr.mxu0 %v1188
    %1216 = vmatpush1.msra.mxu0 %v1187
    %1217 = vmatprep.subr.mxu0 %v1184
    %1218 = vmatpush1.msra.mxu0 %v1183
    %1219 = vmatprep.subr.mxu0 %v1180
    %1220 = vmatpush1.msra.mxu0 %v1179
    %1221 = vmatprep.subr.mxu0 %v1176
    %1222 = vmatpush1.msra.mxu0 %v1175
    %1223 = vmatprep.subr.mxu0 %v1172
    %1224 = vmatpush1.msra.mxu0 %v1171
    %1225 = vmatprep.subr.mxu0 %v1168
    %1226 = vmatpush1.msra.mxu0 %v1167
    %1227 = vmatprep.subr.mxu0 %v1164
    %1228 = vmatpush1.msra.mxu0 %v1163
    %1229 = vmatprep.subr.mxu0 %v1160
    %1230 = vmatpush1.msra.mxu0 %v1159
    %1231 = vmatprep.subr.mxu0 %v1156
    %1232 = vmatpush1.msra.mxu0 %v1155
    %1233 = vmatprep.subr.mxu0 %v1152
    %1234 = vmatpush1.msra.mxu0 %v1151
    %1235 = vmatprep.subr.mxu0 %v1148
    %1236 = vmatpush1.msra.mxu0 %v1147
    %1237 = vmatprep.subr.mxu0 %v1144
    %1238 = vmatpush1.msra.mxu0 %v1143
    %1239 = vmatprep.subr.mxu0 0.0
    %1240 = vmatpush2.msra.mxu0 0.0
    %1241 = vmatprep.subr.mxu0 0.0
    %1242 = vmatpush2.msra.mxu0 0.0
    %1243 = vmatprep.subr.mxu0 0.0
    %1244 = vmatpush2.msra.mxu0 0.0
    %1245 = vmatprep.subr.mxu0 0.0
    %1246 = vmatpush2.msra.mxu0 0.0
    %1247 = vmatprep.subr.mxu0 0.0
    %1248 = vmatpush2.msra.mxu0 0.0
    %1249 = vmatprep.subr.mxu0 0.0
    %1250 = vmatpush2.msra.mxu0 0.0
    %1251 = vmatprep.subr.mxu0 0.0
    %1252 = vmatpush2.msra.mxu0 0.0
    %1253 = vmatprep.subr.mxu0 0.0
    %1254 = vmatpush2.msra.mxu0 0.0
    %1255 = vmatprep.subr.mxu0 0.0
    %1256 = vmatpush2.msra.mxu0 0.0
    %1257 = vmatprep.subr.mxu0 0.0
    %1258 = vmatpush2.msra.mxu0 0.0
    %1259 = vmatprep.subr.mxu0 0.0
    %1260 = vmatpush2.msra.mxu0 0.0
    %1261 = vmatprep.subr.mxu0 0.0
    %1262 = vmatpush2.msra.mxu0 0.0
    %1263 = vmatprep.subr.mxu0 0.0
    %1264 = vmatpush2.msra.mxu0 0.0
    %1265 = vmatprep.subr.mxu0 0.0
    %1266 = vmatpush2.msra.mxu0 0.0
    %1267 = vmatprep.subr.mxu0 0.0
    %1268 = vmatpush2.msra.mxu0 0.0
    %1269 = vmatprep.subr.mxu0 0.0
    %1270 = vmatpush2.msra.mxu0 0.0
    %1271 = vmatprep.mubr.f32.mxu0 0.0
    %1272 = vmatmul.mubr.f32.gmra.mxu0 %v595
    %v1273 = vpop.f32.mrf.mxu0
    %v1274 = vadd.f32 0.0, %v1273
    %v1275 = vpop.f32.mrf.mxu0
    %v1276 = vadd.f32 0.0, %v1275
    %1277 = vdwg.mxu0
    %1278 = vmatprep.subr.mxu0 %v1206
    %1279 = vmatpush1.msra.mxu0 %v1205
    %1280 = vmatprep.subr.mxu0 %v1202
    %1281 = vmatpush1.msra.mxu0 %v1201
    %1282 = vmatprep.subr.mxu0 %v1198
    %1283 = vmatpush1.msra.mxu0 %v1197
    %1284 = vmatprep.subr.mxu0 %v1194
    %1285 = vmatpush1.msra.mxu0 %v1193
    %1286 = vmatprep.subr.mxu0 %v1190
    %1287 = vmatpush1.msra.mxu0 %v1189
    %1288 = vmatprep.subr.mxu0 %v1186
    %1289 = vmatpush1.msra.mxu0 %v1185
    %1290 = vmatprep.subr.mxu0 %v1182
    %1291 = vmatpush1.msra.mxu0 %v1181
    %1292 = vmatprep.subr.mxu0 %v1178
    %1293 = vmatpush1.msra.mxu0 %v1177
    %1294 = vmatprep.subr.mxu0 %v1174
    %1295 = vmatpush1.msra.mxu0 %v1173
    %1296 = vmatprep.subr.mxu0 %v1170
    %1297 = vmatpush1.msra.mxu0 %v1169
    %1298 = vmatprep.subr.mxu0 %v1166
    %1299 = vmatpush1.msra.mxu0 %v1165
    %1300 = vmatprep.subr.mxu0 %v1162
    %1301 = vmatpush1.msra.mxu0 %v1161
    %1302 = vmatprep.subr.mxu0 %v1158
    %1303 = vmatpush1.msra.mxu0 %v1157
    %1304 = vmatprep.subr.mxu0 %v1154
    %1305 = vmatpush1.msra.mxu0 %v1153
    %1306 = vmatprep.subr.mxu0 %v1150
    %1307 = vmatpush1.msra.mxu0 %v1149
    %1308 = vmatprep.subr.mxu0 %v1146
    %1309 = vmatpush1.msra.mxu0 %v1145
    %1310 = vmatprep.subr.mxu0 0.0
    %1311 = vmatpush2.msra.mxu0 0.0
    %1312 = vmatprep.subr.mxu0 0.0
    %1313 = vmatpush2.msra.mxu0 0.0
    %1314 = vmatprep.subr.mxu0 0.0
    %1315 = vmatpush2.msra.mxu0 0.0
    %1316 = vmatprep.subr.mxu0 0.0
    %1317 = vmatpush2.msra.mxu0 0.0
    %1318 = vmatprep.subr.mxu0 0.0
    %1319 = vmatpush2.msra.mxu0 0.0
    %1320 = vmatprep.subr.mxu0 0.0
    %1321 = vmatpush2.msra.mxu0 0.0
    %1322 = vmatprep.subr.mxu0 0.0
    %1323 = vmatpush2.msra.mxu0 0.0
    %1324 = vmatprep.subr.mxu0 0.0
    %1325 = vmatpush2.msra.mxu0 0.0
    %1326 = vmatprep.subr.mxu0 0.0
    %1327 = vmatpush2.msra.mxu0 0.0
    %1328 = vmatprep.subr.mxu0 0.0
    %1329 = vmatpush2.msra.mxu0 0.0
    %1330 = vmatprep.subr.mxu0 0.0
    %1331 = vmatpush2.msra.mxu0 0.0
    %1332 = vmatprep.subr.mxu0 0.0
    %1333 = vmatpush2.msra.mxu0 0.0
    %1334 = vmatprep.subr.mxu0 0.0
    %1335 = vmatpush2.msra.mxu0 0.0
    %1336 = vmatprep.subr.mxu0 0.0
    %1337 = vmatpush2.msra.mxu0 0.0
    %1338 = vmatprep.subr.mxu0 0.0
    %1339 = vmatpush2.msra.mxu0 0.0
    %1340 = vmatprep.subr.mxu0 0.0
    %1341 = vmatpush2.msra.mxu0 0.0
    %1342 = vmatprep.mubr.f32.mxu0 0.0
    %1343 = vmatmul.mubr.f32.gmra.mxu0 %v595
    %v1344 = vpop.f32.mrf.mxu0
    %v1345 = vadd.f32 0.0, %v1344
    %v1346 = vpop.f32.mrf.mxu0
    %v1347 = vadd.f32 0.0, %v1346
    %1348 = vdwg.mxu0
    %v1349 = vadd.f32 %v1139, %v1274
    %v1350 = vadd.f32 %v1140, %v1276
    %v1351 = vadd.f32 %v1141, %v1345
    %v1352 = vadd.f32 %v1142, %v1347
    %v1353 = vxor.u32 %v1349, 2147483648
    %v1354 = vmul.f32 %v1353, 1.442695
    %v1355 = vpow.pop %v1354
    %v1356 = vadd.f32 %v1355, 1.0
    %v1357 = vrcp.pop %v1356
    %v1358 = vmul.f32 1.0, %v1357
    %v1359 = vxor.u32 %v1350, 2147483648
    %v1360 = vmul.f32 %v1359, 1.442695
    %v1361 = vpow.pop %v1360
    %v1362 = vadd.f32 %v1361, 1.0
    %v1363 = vrcp.pop %v1362
    %v1364 = vmul.f32 1.0, %v1363
    %v1365 = vtanh.pop %v1351
    %v1366 = vxor.u32 %v1352, 2147483648
    %v1367 = vmul.f32 %v1366, 1.442695
    %v1368 = vpow.pop %v1367
    %v1369 = vadd.f32 %v1368, 1.0
    %v1370 = vrcp.pop %v1369
    %v1371 = vmul.f32 1.0, %v1370
    %v1372 = vmul.f32 %v1364, %v593
    %v1373 = vmul.f32 %v1358, %v1365
    %v1374 = vadd.f32 %v1372, %v1373
    %v1375 = vtanh.pop %v1374
    %v1376 = vmul.f32 %v1371, %v1375
    %v1377 = vld [vmem:[#allocation11] sm:$0xff]
    %v1378 = vld [vmem:[#allocation11 + $0x8] sm:$0xff]
    %v1379 = vld [vmem:[#allocation11 + $0x10] sm:$0xff]
    %v1380 = vld [vmem:[#allocation11 + $0x18] sm:$0xff]
    %v1381 = vld [vmem:[#allocation11 + $0x20] sm:$0xff]
    %v1382 = vld [vmem:[#allocation11 + $0x28] sm:$0xff]
    %v1383 = vld [vmem:[#allocation11 + $0x30] sm:$0xff]
    %v1384 = vld [vmem:[#allocation11 + $0x38] sm:$0xff]
    %v1385 = vld [vmem:[#allocation11 + $0x40] sm:$0xff]
    %v1386 = vld [vmem:[#allocation11 + $0x48] sm:$0xff]
    %v1387 = vld [vmem:[#allocation11 + $0x50] sm:$0xff]
    %v1388 = vld [vmem:[#allocation11 + $0x58] sm:$0xff]
    %v1389 = vld [vmem:[#allocation11 + $0x60] sm:$0xff]
    %v1390 = vld [vmem:[#allocation11 + $0x68] sm:$0xff]
    %v1391 = vld [vmem:[#allocation11 + $0x70] sm:$0xff]
    %v1392 = vld [vmem:[#allocation11 + $0x78] sm:$0xff]
    %v1393 = vld [vmem:[#allocation11 + $0x80] sm:$0xff]
    %v1394 = vld [vmem:[#allocation11 + $0x88] sm:$0xff]
    %v1395 = vld [vmem:[#allocation11 + $0x90] sm:$0xff]
    %v1396 = vld [vmem:[#allocation11 + $0x98] sm:$0xff]
    %v1397 = vld [vmem:[#allocation11 + $0xa0] sm:$0xff]
    %v1398 = vld [vmem:[#allocation11 + $0xa8] sm:$0xff]
    %v1399 = vld [vmem:[#allocation11 + $0xb0] sm:$0xff]
    %v1400 = vld [vmem:[#allocation11 + $0xb8] sm:$0xff]
    %v1401 = vld [vmem:[#allocation11 + $0xc0] sm:$0xff]
    %v1402 = vld [vmem:[#allocation11 + $0xc8] sm:$0xff]
    %v1403 = vld [vmem:[#allocation11 + $0xd0] sm:$0xff]
    %v1404 = vld [vmem:[#allocation11 + $0xd8] sm:$0xff]
    %v1405 = vld [vmem:[#allocation11 + $0xe0] sm:$0xff]
    %v1406 = vld [vmem:[#allocation11 + $0xe8] sm:$0xff]
    %v1407 = vld [vmem:[#allocation11 + $0xf0] sm:$0xff]
    %v1408 = vld [vmem:[#allocation11 + $0xf8] sm:$0xff]
    %v1409 = vld [vmem:[#allocation11 + $0x100] sm:$0xff]
    %v1410 = vld [vmem:[#allocation11 + $0x108] sm:$0xff]
    %v1411 = vld [vmem:[#allocation11 + $0x110] sm:$0xff]
    %v1412 = vld [vmem:[#allocation11 + $0x118] sm:$0xff]
    %v1413 = vld [vmem:[#allocation11 + $0x120] sm:$0xff]
    %v1414 = vld [vmem:[#allocation11 + $0x128] sm:$0xff]
    %v1415 = vld [vmem:[#allocation11 + $0x130] sm:$0xff]
    %v1416 = vld [vmem:[#allocation11 + $0x138] sm:$0xff]
    %v1417 = vld [vmem:[#allocation11 + $0x140] sm:$0xff]
    %v1418 = vld [vmem:[#allocation11 + $0x148] sm:$0xff]
    %v1419 = vld [vmem:[#allocation11 + $0x150] sm:$0xff]
    %v1420 = vld [vmem:[#allocation11 + $0x158] sm:$0xff]
    %v1421 = vld [vmem:[#allocation11 + $0x160] sm:$0xff]
    %v1422 = vld [vmem:[#allocation11 + $0x168] sm:$0xff]
    %v1423 = vld [vmem:[#allocation11 + $0x170] sm:$0xff]
    %v1424 = vld [vmem:[#allocation11 + $0x178] sm:$0xff]
    %v1425 = vld [vmem:[#allocation11 + $0x180] sm:$0xff]
    %v1426 = vld [vmem:[#allocation11 + $0x188] sm:$0xff]
    %v1427 = vld [vmem:[#allocation11 + $0x190] sm:$0xff]
    %v1428 = vld [vmem:[#allocation11 + $0x198] sm:$0xff]
    %v1429 = vld [vmem:[#allocation11 + $0x1a0] sm:$0xff]
    %v1430 = vld [vmem:[#allocation11 + $0x1a8] sm:$0xff]
    %v1431 = vld [vmem:[#allocation11 + $0x1b0] sm:$0xff]
    %v1432 = vld [vmem:[#allocation11 + $0x1b8] sm:$0xff]
    %v1433 = vld [vmem:[#allocation11 + $0x1c0] sm:$0xff]
    %v1434 = vld [vmem:[#allocation11 + $0x1c8] sm:$0xff]
    %v1435 = vld [vmem:[#allocation11 + $0x1d0] sm:$0xff]
    %v1436 = vld [vmem:[#allocation11 + $0x1d8] sm:$0xff]
    %v1437 = vld [vmem:[#allocation11 + $0x1e0] sm:$0xff]
    %v1438 = vld [vmem:[#allocation11 + $0x1e8] sm:$0xff]
    %v1439 = vld [vmem:[#allocation11 + $0x1f0] sm:$0xff]
    %v1440 = vld [vmem:[#allocation11 + $0x1f8] sm:$0xff]
    %1441 = vmatprep.subr.mxu0 %v1438
    %1442 = vmatpush1.msra.mxu0 %v1437
    %1443 = vmatprep.subr.mxu0 %v1434
    %1444 = vmatpush1.msra.mxu0 %v1433
    %1445 = vmatprep.subr.mxu0 %v1430
    %1446 = vmatpush1.msra.mxu0 %v1429
    %1447 = vmatprep.subr.mxu0 %v1426
    %1448 = vmatpush1.msra.mxu0 %v1425
    %1449 = vmatprep.subr.mxu0 %v1422
    %1450 = vmatpush1.msra.mxu0 %v1421
    %1451 = vmatprep.subr.mxu0 %v1418
    %1452 = vmatpush1.msra.mxu0 %v1417
    %1453 = vmatprep.subr.mxu0 %v1414
    %1454 = vmatpush1.msra.mxu0 %v1413
    %1455 = vmatprep.subr.mxu0 %v1410
    %1456 = vmatpush1.msra.mxu0 %v1409
    %1457 = vmatprep.subr.mxu0 %v1406
    %1458 = vmatpush1.msra.mxu0 %v1405
    %1459 = vmatprep.subr.mxu0 %v1402
    %1460 = vmatpush1.msra.mxu0 %v1401
    %1461 = vmatprep.subr.mxu0 %v1398
    %1462 = vmatpush1.msra.mxu0 %v1397
    %1463 = vmatprep.subr.mxu0 %v1394
    %1464 = vmatpush1.msra.mxu0 %v1393
    %1465 = vmatprep.subr.mxu0 %v1390
    %1466 = vmatpush1.msra.mxu0 %v1389
    %1467 = vmatprep.subr.mxu0 %v1386
    %1468 = vmatpush1.msra.mxu0 %v1385
    %1469 = vmatprep.subr.mxu0 %v1382
    %1470 = vmatpush1.msra.mxu0 %v1381
    %1471 = vmatprep.subr.mxu0 %v1378
    %1472 = vmatpush1.msra.mxu0 %v1377
    %1473 = vmatprep.subr.mxu0 0.0
    %1474 = vmatpush2.msra.mxu0 0.0
    %1475 = vmatprep.subr.mxu0 0.0
    %1476 = vmatpush2.msra.mxu0 0.0
    %1477 = vmatprep.subr.mxu0 0.0
    %1478 = vmatpush2.msra.mxu0 0.0
    %1479 = vmatprep.subr.mxu0 0.0
    %1480 = vmatpush2.msra.mxu0 0.0
    %1481 = vmatprep.subr.mxu0 0.0
    %1482 = vmatpush2.msra.mxu0 0.0
    %1483 = vmatprep.subr.mxu0 0.0
    %1484 = vmatpush2.msra.mxu0 0.0
    %1485 = vmatprep.subr.mxu0 0.0
    %1486 = vmatpush2.msra.mxu0 0.0
    %1487 = vmatprep.subr.mxu0 0.0
    %1488 = vmatpush2.msra.mxu0 0.0
    %1489 = vmatprep.subr.mxu0 0.0
    %1490 = vmatpush2.msra.mxu0 0.0
    %1491 = vmatprep.subr.mxu0 0.0
    %1492 = vmatpush2.msra.mxu0 0.0
    %1493 = vmatprep.subr.mxu0 0.0
    %1494 = vmatpush2.msra.mxu0 0.0
    %1495 = vmatprep.subr.mxu0 0.0
    %1496 = vmatpush2.msra.mxu0 0.0
    %1497 = vmatprep.subr.mxu0 0.0
    %1498 = vmatpush2.msra.mxu0 0.0
    %1499 = vmatprep.subr.mxu0 0.0
    %1500 = vmatpush2.msra.mxu0 0.0
    %1501 = vmatprep.subr.mxu0 0.0
    %1502 = vmatpush2.msra.mxu0 0.0
    %1503 = vmatprep.subr.mxu0 0.0
    %1504 = vmatpush2.msra.mxu0 0.0
    %1505 = vmatprep.mubr.f32.mxu0 0.0
    %1506 = vmatmul.mubr.f32.gmra.mxu0 %v1376
    %v1507 = vpop.f32.mrf.mxu0
    %v1508 = vadd.f32 %v1049, %v1507
    %v1509 = vpop.f32.mrf.mxu0
    %v1510 = vadd.f32 %v1051, %v1509
    %1511 = vdwg.mxu0
    %1512 = vmatprep.subr.mxu0 %v1440
    %1513 = vmatpush1.msra.mxu0 %v1439
    %1514 = vmatprep.subr.mxu0 %v1436
    %1515 = vmatpush1.msra.mxu0 %v1435
    %1516 = vmatprep.subr.mxu0 %v1432
    %1517 = vmatpush1.msra.mxu0 %v1431
    %1518 = vmatprep.subr.mxu0 %v1428
    %1519 = vmatpush1.msra.mxu0 %v1427
    %1520 = vmatprep.subr.mxu0 %v1424
    %1521 = vmatpush1.msra.mxu0 %v1423
    %1522 = vmatprep.subr.mxu0 %v1420
    %1523 = vmatpush1.msra.mxu0 %v1419
    %1524 = vmatprep.subr.mxu0 %v1416
    %1525 = vmatpush1.msra.mxu0 %v1415
    %1526 = vmatprep.subr.mxu0 %v1412
    %1527 = vmatpush1.msra.mxu0 %v1411
    %1528 = vmatprep.subr.mxu0 %v1408
    %1529 = vmatpush1.msra.mxu0 %v1407
    %1530 = vmatprep.subr.mxu0 %v1404
    %1531 = vmatpush1.msra.mxu0 %v1403
    %1532 = vmatprep.subr.mxu0 %v1400
    %1533 = vmatpush1.msra.mxu0 %v1399
    %1534 = vmatprep.subr.mxu0 %v1396
    %1535 = vmatpush1.msra.mxu0 %v1395
    %1536 = vmatprep.subr.mxu0 %v1392
    %1537 = vmatpush1.msra.mxu0 %v1391
    %1538 = vmatprep.subr.mxu0 %v1388
    %1539 = vmatpush1.msra.mxu0 %v1387
    %1540 = vmatprep.subr.mxu0 %v1384
    %1541 = vmatpush1.msra.mxu0 %v1383
    %1542 = vmatprep.subr.mxu0 %v1380
    %1543 = vmatpush1.msra.mxu0 %v1379
    %1544 = vmatprep.subr.mxu0 0.0
    %1545 = vmatpush2.msra.mxu0 0.0
    %1546 = vmatprep.subr.mxu0 0.0
    %1547 = vmatpush2.msra.mxu0 0.0
    %1548 = vmatprep.subr.mxu0 0.0
    %1549 = vmatpush2.msra.mxu0 0.0
    %1550 = vmatprep.subr.mxu0 0.0
    %1551 = vmatpush2.msra.mxu0 0.0
    %1552 = vmatprep.subr.mxu0 0.0
    %1553 = vmatpush2.msra.mxu0 0.0
    %1554 = vmatprep.subr.mxu0 0.0
    %1555 = vmatpush2.msra.mxu0 0.0
    %1556 = vmatprep.subr.mxu0 0.0
    %1557 = vmatpush2.msra.mxu0 0.0
    %1558 = vmatprep.subr.mxu0 0.0
    %1559 = vmatpush2.msra.mxu0 0.0
    %1560 = vmatprep.subr.mxu0 0.0
    %1561 = vmatpush2.msra.mxu0 0.0
    %1562 = vmatprep.subr.mxu0 0.0
    %1563 = vmatpush2.msra.mxu0 0.0
    %1564 = vmatprep.subr.mxu0 0.0
    %1565 = vmatpush2.msra.mxu0 0.0
    %1566 = vmatprep.subr.mxu0 0.0
    %1567 = vmatpush2.msra.mxu0 0.0
    %1568 = vmatprep.subr.mxu0 0.0
    %1569 = vmatpush2.msra.mxu0 0.0
    %1570 = vmatprep.subr.mxu0 0.0
    %1571 = vmatpush2.msra.mxu0 0.0
    %1572 = vmatprep.subr.mxu0 0.0
    %1573 = vmatpush2.msra.mxu0 0.0
    %1574 = vmatprep.subr.mxu0 0.0
    %1575 = vmatpush2.msra.mxu0 0.0
    %1576 = vmatprep.mubr.f32.mxu0 0.0
    %1577 = vmatmul.mubr.f32.gmra.mxu0 %v1376
    %v1578 = vpop.f32.mrf.mxu0
    %v1579 = vadd.f32 %v1120, %v1578
    %v1580 = vpop.f32.mrf.mxu0
    %v1581 = vadd.f32 %v1122, %v1580
    %1582 = vdwg.mxu0
    %v1583 = vadd.f32 %v1508, %v108
    %v1584 = vadd.f32 %v1510, %v112
    %v1585 = vadd.f32 %v1579, %v116
    %v1586 = vadd.f32 %v1581, %v120
    %v1587 = vxor.u32 %v1583, 2147483648
    %v1588 = vmul.f32 %v1587, 1.442695
    %v1589 = vpow.pop %v1588
    %v1590 = vadd.f32 %v1589, 1.0
    %v1591 = vrcp.pop %v1590
    %v1592 = vmul.f32 1.0, %v1591
    %v1593 = vxor.u32 %v1584, 2147483648
    %v1594 = vmul.f32 %v1593, 1.442695
    %v1595 = vpow.pop %v1594
    %v1596 = vadd.f32 %v1595, 1.0
    %v1597 = vrcp.pop %v1596
    %v1598 = vmul.f32 1.0, %v1597
    %v1599 = vtanh.pop %v1585
    %v1600 = vxor.u32 %v1586, 2147483648
    %v1601 = vmul.f32 %v1600, 1.442695
    %v1602 = vpow.pop %v1601
    %v1603 = vadd.f32 %v1602, 1.0
    %v1604 = vrcp.pop %v1603
    %v1605 = vmul.f32 1.0, %v1604
    %v1606 = vmul.f32 %v1598, %v827
    %v1607 = vmul.f32 %v1592, %v1599
    %v1608 = vadd.f32 %v1606, %v1607
    %v1609 = vtanh.pop %v1608
    %v1610 = vmul.f32 %v1605, %v1609
    %v1611 = vld [vmem:[#allocation14] sm:$0xff]
    %v1612 = vld [vmem:[#allocation14 + $0x8] sm:$0xff]
    %v1613 = vld [vmem:[#allocation14 + $0x10] sm:$0xff]
    %v1614 = vld [vmem:[#allocation14 + $0x18] sm:$0xff]
    %v1615 = vld [vmem:[#allocation14 + $0x20] sm:$0xff]
    %v1616 = vld [vmem:[#allocation14 + $0x28] sm:$0xff]
    %v1617 = vld [vmem:[#allocation14 + $0x30] sm:$0xff]
    %v1618 = vld [vmem:[#allocation14 + $0x38] sm:$0xff]
    %v1619 = vld [vmem:[#allocation14 + $0x40] sm:$0xff]
    %v1620 = vld [vmem:[#allocation14 + $0x48] sm:$0xff]
    %v1621 = vld [vmem:[#allocation14 + $0x50] sm:$0xff]
    %v1622 = vld [vmem:[#allocation14 + $0x58] sm:$0xff]
    %v1623 = vld [vmem:[#allocation14 + $0x60] sm:$0xff]
    %v1624 = vld [vmem:[#allocation14 + $0x68] sm:$0xff]
    %v1625 = vld [vmem:[#allocation14 + $0x70] sm:$0xff]
    %v1626 = vld [vmem:[#allocation14 + $0x78] sm:$0xff]
    %1627 = vmatprep.subr.mxu0 0.0
    %1628 = vmatpush1.msra.mxu0 %v1626
    %1629 = vmatprep.subr.mxu0 0.0
    %1630 = vmatpush1.msra.mxu0 %v1625
    %1631 = vmatprep.subr.mxu0 0.0
    %1632 = vmatpush1.msra.mxu0 %v1624
    %1633 = vmatprep.subr.mxu0 0.0
    %1634 = vmatpush1.msra.mxu0 %v1623
    %1635 = vmatprep.subr.mxu0 0.0
    %1636 = vmatpush1.msra.mxu0 %v1622
    %1637 = vmatprep.subr.mxu0 0.0
    %1638 = vmatpush1.msra.mxu0 %v1621
    %1639 = vmatprep.subr.mxu0 0.0
    %1640 = vmatpush1.msra.mxu0 %v1620
    %1641 = vmatprep.subr.mxu0 0.0
    %1642 = vmatpush1.msra.mxu0 %v1619
    %1643 = vmatprep.subr.mxu0 0.0
    %1644 = vmatpush1.msra.mxu0 %v1618
    %1645 = vmatprep.subr.mxu0 0.0
    %1646 = vmatpush1.msra.mxu0 %v1617
    %1647 = vmatprep.subr.mxu0 0.0
    %1648 = vmatpush1.msra.mxu0 %v1616
    %1649 = vmatprep.subr.mxu0 0.0
    %1650 = vmatpush1.msra.mxu0 %v1615
    %1651 = vmatprep.subr.mxu0 0.0
    %1652 = vmatpush1.msra.mxu0 %v1614
    %1653 = vmatprep.subr.mxu0 0.0
    %1654 = vmatpush1.msra.mxu0 %v1613
    %1655 = vmatprep.subr.mxu0 0.0
    %1656 = vmatpush1.msra.mxu0 %v1612
    %1657 = vmatprep.subr.mxu0 0.0
    %1658 = vmatpush1.msra.mxu0 %v1611
    %1659 = vmatprep.subr.mxu0 0.0
    %1660 = vmatpush2.msra.mxu0 0.0
    %1661 = vmatprep.subr.mxu0 0.0
    %1662 = vmatpush2.msra.mxu0 0.0
    %1663 = vmatprep.subr.mxu0 0.0
    %1664 = vmatpush2.msra.mxu0 0.0
    %1665 = vmatprep.subr.mxu0 0.0
    %1666 = vmatpush2.msra.mxu0 0.0
    %1667 = vmatprep.subr.mxu0 0.0
    %1668 = vmatpush2.msra.mxu0 0.0
    %1669 = vmatprep.subr.mxu0 0.0
    %1670 = vmatpush2.msra.mxu0 0.0
    %1671 = vmatprep.subr.mxu0 0.0
    %1672 = vmatpush2.msra.mxu0 0.0
    %1673 = vmatprep.subr.mxu0 0.0
    %1674 = vmatpush2.msra.mxu0 0.0
    %1675 = vmatprep.subr.mxu0 0.0
    %1676 = vmatpush2.msra.mxu0 0.0
    %1677 = vmatprep.subr.mxu0 0.0
    %1678 = vmatpush2.msra.mxu0 0.0
    %1679 = vmatprep.subr.mxu0 0.0
    %1680 = vmatpush2.msra.mxu0 0.0
    %1681 = vmatprep.subr.mxu0 0.0
    %1682 = vmatpush2.msra.mxu0 0.0
    %1683 = vmatprep.subr.mxu0 0.0
    %1684 = vmatpush2.msra.mxu0 0.0
    %1685 = vmatprep.subr.mxu0 0.0
    %1686 = vmatpush2.msra.mxu0 0.0
    %1687 = vmatprep.subr.mxu0 0.0
    %1688 = vmatpush2.msra.mxu0 0.0
    %1689 = vmatprep.subr.mxu0 0.0
    %1690 = vmatpush2.msra.mxu0 0.0
    %1691 = vmatprep.mubr.f32.mxu0 0.0
    %1692 = vmatmul.mubr.f32.gmra.mxu0 %v1610
    %v1693 = vpop.f32.mrf.mxu0
    %v1694 = vadd.f32 %v130, %v1693
    %v1695 = vpop.f32.mrf.mxu0
    %1696 = vdwg.mxu0
    %s1697 = scalar_lea.vmem [#allocation15], 8
    %1698 = vst [vmem:[%s1697] sm:$0xff] %v1694
    %s1699 = sadd.s32 %s132, 2
    %v1700 = vld [vmem:[#allocation12] sm:$0xff]
    %v1701 = vld [vmem:[#allocation12 + $0x8] sm:$0xff]
    %v1702 = vld [vmem:[#allocation12 + $0x10] sm:$0xff]
    %v1703 = vld [vmem:[#allocation12 + $0x18] sm:$0xff]
    %v1704 = vld [vmem:[#allocation12 + $0x20] sm:$0xff]
    %v1705 = vld [vmem:[#allocation12 + $0x28] sm:$0xff]
    %v1706 = vld [vmem:[#allocation12 + $0x30] sm:$0xff]
    %v1707 = vld [vmem:[#allocation12 + $0x38] sm:$0xff]
    %v1708 = vld [vmem:[#allocation12 + $0x40] sm:$0xff]
    %v1709 = vld [vmem:[#allocation12 + $0x48] sm:$0xff]
    %v1710 = vld [vmem:[#allocation12 + $0x50] sm:$0xff]
    %v1711 = vld [vmem:[#allocation12 + $0x58] sm:$0xff]
    %v1712 = vld [vmem:[#allocation12 + $0x60] sm:$0xff]
    %v1713 = vld [vmem:[#allocation12 + $0x68] sm:$0xff]
    %v1714 = vld [vmem:[#allocation12 + $0x70] sm:$0xff]
    %v1715 = vld [vmem:[#allocation12 + $0x78] sm:$0xff]
    %v1716 = vld [vmem:[#allocation12 + $0x80] sm:$0xff]
    %v1717 = vld [vmem:[#allocation12 + $0x88] sm:$0xff]
    %v1718 = vld [vmem:[#allocation12 + $0x90] sm:$0xff]
    %v1719 = vld [vmem:[#allocation12 + $0x98] sm:$0xff]
    %v1720 = vld [vmem:[#allocation12 + $0xa0] sm:$0xff]
    %v1721 = vld [vmem:[#allocation12 + $0xa8] sm:$0xff]
    %v1722 = vld [vmem:[#allocation12 + $0xb0] sm:$0xff]
    %v1723 = vld [vmem:[#allocation12 + $0xb8] sm:$0xff]
    %v1724 = vld [vmem:[#allocation12 + $0xc0] sm:$0xff]
    %v1725 = vld [vmem:[#allocation12 + $0xc8] sm:$0xff]
    %v1726 = vld [vmem:[#allocation12 + $0xd0] sm:$0xff]
    %v1727 = vld [vmem:[#allocation12 + $0xd8] sm:$0xff]
    %v1728 = vld [vmem:[#allocation12 + $0xe0] sm:$0xff]
    %v1729 = vld [vmem:[#allocation12 + $0xe8] sm:$0xff]
    %v1730 = vld [vmem:[#allocation12 + $0xf0] sm:$0xff]
    %v1731 = vld [vmem:[#allocation12 + $0xf8] sm:$0xff]
    %v1732 = vld [vmem:[#allocation12 + $0x100] sm:$0xff]
    %v1733 = vld [vmem:[#allocation12 + $0x108] sm:$0xff]
    %v1734 = vld [vmem:[#allocation12 + $0x110] sm:$0xff]
    %v1735 = vld [vmem:[#allocation12 + $0x118] sm:$0xff]
    %v1736 = vld [vmem:[#allocation12 + $0x120] sm:$0xff]
    %v1737 = vld [vmem:[#allocation12 + $0x128] sm:$0xff]
    %v1738 = vld [vmem:[#allocation12 + $0x130] sm:$0xff]
    %v1739 = vld [vmem:[#allocation12 + $0x138] sm:$0xff]
    %v1740 = vld [vmem:[#allocation12 + $0x140] sm:$0xff]
    %v1741 = vld [vmem:[#allocation12 + $0x148] sm:$0xff]
    %v1742 = vld [vmem:[#allocation12 + $0x150] sm:$0xff]
    %v1743 = vld [vmem:[#allocation12 + $0x158] sm:$0xff]
    %v1744 = vld [vmem:[#allocation12 + $0x160] sm:$0xff]
    %v1745 = vld [vmem:[#allocation12 + $0x168] sm:$0xff]
    %v1746 = vld [vmem:[#allocation12 + $0x170] sm:$0xff]
    %v1747 = vld [vmem:[#allocation12 + $0x178] sm:$0xff]
    %v1748 = vld [vmem:[#allocation12 + $0x180] sm:$0xff]
    %v1749 = vld [vmem:[#allocation12 + $0x188] sm:$0xff]
    %v1750 = vld [vmem:[#allocation12 + $0x190] sm:$0xff]
    %v1751 = vld [vmem:[#allocation12 + $0x198] sm:$0xff]
    %v1752 = vld [vmem:[#allocation12 + $0x1a0] sm:$0xff]
    %v1753 = vld [vmem:[#allocation12 + $0x1a8] sm:$0xff]
    %v1754 = vld [vmem:[#allocation12 + $0x1b0] sm:$0xff]
    %v1755 = vld [vmem:[#allocation12 + $0x1b8] sm:$0xff]
    %v1756 = vld [vmem:[#allocation12 + $0x1c0] sm:$0xff]
    %v1757 = vld [vmem:[#allocation12 + $0x1c8] sm:$0xff]
    %v1758 = vld [vmem:[#allocation12 + $0x1d0] sm:$0xff]
    %v1759 = vld [vmem:[#allocation12 + $0x1d8] sm:$0xff]
    %v1760 = vld [vmem:[#allocation12 + $0x1e0] sm:$0xff]
    %v1761 = vld [vmem:[#allocation12 + $0x1e8] sm:$0xff]
    %v1762 = vld [vmem:[#allocation12 + $0x1f0] sm:$0xff]
    %v1763 = vld [vmem:[#allocation12 + $0x1f8] sm:$0xff]
    %1764 = vmatprep.subr.mxu0 %v1761
    %1765 = vmatpush1.msra.mxu0 %v1760
    %1766 = vmatprep.subr.mxu0 %v1757
    %1767 = vmatpush1.msra.mxu0 %v1756
    %1768 = vmatprep.subr.mxu0 %v1753
    %1769 = vmatpush1.msra.mxu0 %v1752
    %1770 = vmatprep.subr.mxu0 %v1749
    %1771 = vmatpush1.msra.mxu0 %v1748
    %1772 = vmatprep.subr.mxu0 %v1745
    %1773 = vmatpush1.msra.mxu0 %v1744
    %1774 = vmatprep.subr.mxu0 %v1741
    %1775 = vmatpush1.msra.mxu0 %v1740
    %1776 = vmatprep.subr.mxu0 %v1737
    %1777 = vmatpush1.msra.mxu0 %v1736
    %1778 = vmatprep.subr.mxu0 %v1733
    %1779 = vmatpush1.msra.mxu0 %v1732
    %1780 = vmatprep.subr.mxu0 %v1729
    %1781 = vmatpush1.msra.mxu0 %v1728
    %1782 = vmatprep.subr.mxu0 %v1725
    %1783 = vmatpush1.msra.mxu0 %v1724
    %1784 = vmatprep.subr.mxu0 %v1721
    %1785 = vmatpush1.msra.mxu0 %v1720
    %1786 = vmatprep.subr.mxu0 %v1717
    %1787 = vmatpush1.msra.mxu0 %v1716
    %1788 = vmatprep.subr.mxu0 %v1713
    %1789 = vmatpush1.msra.mxu0 %v1712
    %1790 = vmatprep.subr.mxu0 %v1709
    %1791 = vmatpush1.msra.mxu0 %v1708
    %1792 = vmatprep.subr.mxu0 %v1705
    %1793 = vmatpush1.msra.mxu0 %v1704
    %1794 = vmatprep.subr.mxu0 %v1701
    %1795 = vmatpush1.msra.mxu0 %v1700
    %1796 = vmatprep.subr.mxu0 0.0
    %1797 = vmatpush2.msra.mxu0 0.0
    %1798 = vmatprep.subr.mxu0 0.0
    %1799 = vmatpush2.msra.mxu0 0.0
    %1800 = vmatprep.subr.mxu0 0.0
    %1801 = vmatpush2.msra.mxu0 0.0
    %1802 = vmatprep.subr.mxu0 0.0
    %1803 = vmatpush2.msra.mxu0 0.0
    %1804 = vmatprep.subr.mxu0 0.0
    %1805 = vmatpush2.msra.mxu0 0.0
    %1806 = vmatprep.subr.mxu0 0.0
    %1807 = vmatpush2.msra.mxu0 0.0
    %1808 = vmatprep.subr.mxu0 0.0
    %1809 = vmatpush2.msra.mxu0 0.0
    %1810 = vmatprep.subr.mxu0 0.0
    %1811 = vmatpush2.msra.mxu0 0.0
    %1812 = vmatprep.subr.mxu0 0.0
    %1813 = vmatpush2.msra.mxu0 0.0
    %1814 = vmatprep.subr.mxu0 0.0
    %1815 = vmatpush2.msra.mxu0 0.0
    %1816 = vmatprep.subr.mxu0 0.0
    %1817 = vmatpush2.msra.mxu0 0.0
    %1818 = vmatprep.subr.mxu0 0.0
    %1819 = vmatpush2.msra.mxu0 0.0
    %1820 = vmatprep.subr.mxu0 0.0
    %1821 = vmatpush2.msra.mxu0 0.0
    %1822 = vmatprep.subr.mxu0 0.0
    %1823 = vmatpush2.msra.mxu0 0.0
    %1824 = vmatprep.subr.mxu0 0.0
    %1825 = vmatpush2.msra.mxu0 0.0
    %1826 = vmatprep.subr.mxu0 0.0
    %1827 = vmatpush2.msra.mxu0 0.0
    %1828 = vmatprep.mubr.f32.mxu0 0.0
    %1829 = vmatmul.mubr.f32.gmra.mxu0 %v1610
    %v1830 = vpop.f32.mrf.mxu0
    %v1831 = vadd.f32 0.0, %v1830
    %v1832 = vpop.f32.mrf.mxu0
    %v1833 = vadd.f32 0.0, %v1832
    %1834 = vdwg.mxu0
    %1835 = vmatprep.subr.mxu0 %v1763
    %1836 = vmatpush1.msra.mxu0 %v1762
    %1837 = vmatprep.subr.mxu0 %v1759
    %1838 = vmatpush1.msra.mxu0 %v1758
    %1839 = vmatprep.subr.mxu0 %v1755
    %1840 = vmatpush1.msra.mxu0 %v1754
    %1841 = vmatprep.subr.mxu0 %v1751
    %1842 = vmatpush1.msra.mxu0 %v1750
    %1843 = vmatprep.subr.mxu0 %v1747
    %1844 = vmatpush1.msra.mxu0 %v1746
    %1845 = vmatprep.subr.mxu0 %v1743
    %1846 = vmatpush1.msra.mxu0 %v1742
    %1847 = vmatprep.subr.mxu0 %v1739
    %1848 = vmatpush1.msra.mxu0 %v1738
    %1849 = vmatprep.subr.mxu0 %v1735
    %1850 = vmatpush1.msra.mxu0 %v1734
    %1851 = vmatprep.subr.mxu0 %v1731
    %1852 = vmatpush1.msra.mxu0 %v1730
    %1853 = vmatprep.subr.mxu0 %v1727
    %1854 = vmatpush1.msra.mxu0 %v1726
    %1855 = vmatprep.subr.mxu0 %v1723
    %1856 = vmatpush1.msra.mxu0 %v1722
    %1857 = vmatprep.subr.mxu0 %v1719
    %1858 = vmatpush1.msra.mxu0 %v1718
    %1859 = vmatprep.subr.mxu0 %v1715
    %1860 = vmatpush1.msra.mxu0 %v1714
    %1861 = vmatprep.subr.mxu0 %v1711
    %1862 = vmatpush1.msra.mxu0 %v1710
    %1863 = vmatprep.subr.mxu0 %v1707
    %1864 = vmatpush1.msra.mxu0 %v1706
    %1865 = vmatprep.subr.mxu0 %v1703
    %1866 = vmatpush1.msra.mxu0 %v1702
    %1867 = vmatprep.subr.mxu0 0.0
    %1868 = vmatpush2.msra.mxu0 0.0
    %1869 = vmatprep.subr.mxu0 0.0
    %1870 = vmatpush2.msra.mxu0 0.0
    %1871 = vmatprep.subr.mxu0 0.0
    %1872 = vmatpush2.msra.mxu0 0.0
    %1873 = vmatprep.subr.mxu0 0.0
    %1874 = vmatpush2.msra.mxu0 0.0
    %1875 = vmatprep.subr.mxu0 0.0
    %1876 = vmatpush2.msra.mxu0 0.0
    %1877 = vmatprep.subr.mxu0 0.0
    %1878 = vmatpush2.msra.mxu0 0.0
    %1879 = vmatprep.subr.mxu0 0.0
    %1880 = vmatpush2.msra.mxu0 0.0
    %1881 = vmatprep.subr.mxu0 0.0
    %1882 = vmatpush2.msra.mxu0 0.0
    %1883 = vmatprep.subr.mxu0 0.0
    %1884 = vmatpush2.msra.mxu0 0.0
    %1885 = vmatprep.subr.mxu0 0.0
    %1886 = vmatpush2.msra.mxu0 0.0
    %1887 = vmatprep.subr.mxu0 0.0
    %1888 = vmatpush2.msra.mxu0 0.0
    %1889 = vmatprep.subr.mxu0 0.0
    %1890 = vmatpush2.msra.mxu0 0.0
    %1891 = vmatprep.subr.mxu0 0.0
    %1892 = vmatpush2.msra.mxu0 0.0
    %1893 = vmatprep.subr.mxu0 0.0
    %1894 = vmatpush2.msra.mxu0 0.0
    %1895 = vmatprep.subr.mxu0 0.0
    %1896 = vmatpush2.msra.mxu0 0.0
    %1897 = vmatprep.subr.mxu0 0.0
    %1898 = vmatpush2.msra.mxu0 0.0
    %1899 = vmatprep.mubr.f32.mxu0 0.0
    %1900 = vmatmul.mubr.f32.gmra.mxu0 %v1610
    %v1901 = vpop.f32.mrf.mxu0
    %v1902 = vadd.f32 0.0, %v1901
    %v1903 = vpop.f32.mrf.mxu0
    %v1904 = vadd.f32 0.0, %v1903
    %1905 = vdwg.mxu0
    %p1906 = scmp.lt.s32.totalorder %s1699, 0
    %s1907 = ssub.s32 0, %s1699
    %s1908 = scalar_select %p1906, %s1907, %s1699
    %s1909 = sand.u32 %s1908, 1
    %s1910 = ssub.s32 0, %s1909
    %s1911 = scalar_select %p1906, %s1910, %s1909
    %p1912 = scmp.ne.s32.totalorder %s1911, 0
    %p1913 = scmp.lt.s32.totalorder %s1911, 0
    %p1914 = pnand %p1913, %p1912
    %p1915 = pneg %p1914
    %s1916 = sadd.s32 %s1911, 2
    %s1917 = scalar_select %p1915, %s1916, %s1911
    %s1918 = smul.u32 %s1917, 4
    %s1919 = smul.addr %s1918, 8
    %s1920 = scalar_lea.vmem [#allocation6], %s1919
    %v1921 = vld [vmem:[%s1920] sm:$0xff]
    %v1922 = vld [vmem:[%s1920 + $0x8] sm:$0xff]
    %v1923 = vld [vmem:[%s1920 + $0x10] sm:$0xff]
    %v1924 = vld [vmem:[%s1920 + $0x18] sm:$0xff]
    %v1925 = vld [vmem:[#allocation9] sm:$0xff]
    %v1926 = vld [vmem:[#allocation9 + $0x8] sm:$0xff]
    %v1927 = vld [vmem:[#allocation9 + $0x10] sm:$0xff]
    %v1928 = vld [vmem:[#allocation9 + $0x18] sm:$0xff]
    %v1929 = vld [vmem:[#allocation9 + $0x20] sm:$0xff]
    %v1930 = vld [vmem:[#allocation9 + $0x28] sm:$0xff]
    %v1931 = vld [vmem:[#allocation9 + $0x30] sm:$0xff]
    %v1932 = vld [vmem:[#allocation9 + $0x38] sm:$0xff]
    %v1933 = vld [vmem:[#allocation9 + $0x40] sm:$0xff]
    %v1934 = vld [vmem:[#allocation9 + $0x48] sm:$0xff]
    %v1935 = vld [vmem:[#allocation9 + $0x50] sm:$0xff]
    %v1936 = vld [vmem:[#allocation9 + $0x58] sm:$0xff]
    %v1937 = vld [vmem:[#allocation9 + $0x60] sm:$0xff]
    %v1938 = vld [vmem:[#allocation9 + $0x68] sm:$0xff]
    %v1939 = vld [vmem:[#allocation9 + $0x70] sm:$0xff]
    %v1940 = vld [vmem:[#allocation9 + $0x78] sm:$0xff]
    %v1941 = vld [vmem:[#allocation9 + $0x80] sm:$0xff]
    %v1942 = vld [vmem:[#allocation9 + $0x88] sm:$0xff]
    %v1943 = vld [vmem:[#allocation9 + $0x90] sm:$0xff]
    %v1944 = vld [vmem:[#allocation9 + $0x98] sm:$0xff]
    %v1945 = vld [vmem:[#allocation9 + $0xa0] sm:$0xff]
    %v1946 = vld [vmem:[#allocation9 + $0xa8] sm:$0xff]
    %v1947 = vld [vmem:[#allocation9 + $0xb0] sm:$0xff]
    %v1948 = vld [vmem:[#allocation9 + $0xb8] sm:$0xff]
    %v1949 = vld [vmem:[#allocation9 + $0xc0] sm:$0xff]
    %v1950 = vld [vmem:[#allocation9 + $0xc8] sm:$0xff]
    %v1951 = vld [vmem:[#allocation9 + $0xd0] sm:$0xff]
    %v1952 = vld [vmem:[#allocation9 + $0xd8] sm:$0xff]
    %v1953 = vld [vmem:[#allocation9 + $0xe0] sm:$0xff]
    %v1954 = vld [vmem:[#allocation9 + $0xe8] sm:$0xff]
    %v1955 = vld [vmem:[#allocation9 + $0xf0] sm:$0xff]
    %v1956 = vld [vmem:[#allocation9 + $0xf8] sm:$0xff]
    %v1957 = vld [vmem:[#allocation9 + $0x100] sm:$0xff]
    %v1958 = vld [vmem:[#allocation9 + $0x108] sm:$0xff]
    %v1959 = vld [vmem:[#allocation9 + $0x110] sm:$0xff]
    %v1960 = vld [vmem:[#allocation9 + $0x118] sm:$0xff]
    %v1961 = vld [vmem:[#allocation9 + $0x120] sm:$0xff]
    %v1962 = vld [vmem:[#allocation9 + $0x128] sm:$0xff]
    %v1963 = vld [vmem:[#allocation9 + $0x130] sm:$0xff]
    %v1964 = vld [vmem:[#allocation9 + $0x138] sm:$0xff]
    %v1965 = vld [vmem:[#allocation9 + $0x140] sm:$0xff]
    %v1966 = vld [vmem:[#allocation9 + $0x148] sm:$0xff]
    %v1967 = vld [vmem:[#allocation9 + $0x150] sm:$0xff]
    %v1968 = vld [vmem:[#allocation9 + $0x158] sm:$0xff]
    %v1969 = vld [vmem:[#allocation9 + $0x160] sm:$0xff]
    %v1970 = vld [vmem:[#allocation9 + $0x168] sm:$0xff]
    %v1971 = vld [vmem:[#allocation9 + $0x170] sm:$0xff]
    %v1972 = vld [vmem:[#allocation9 + $0x178] sm:$0xff]
    %v1973 = vld [vmem:[#allocation9 + $0x180] sm:$0xff]
    %v1974 = vld [vmem:[#allocation9 + $0x188] sm:$0xff]
    %v1975 = vld [vmem:[#allocation9 + $0x190] sm:$0xff]
    %v1976 = vld [vmem:[#allocation9 + $0x198] sm:$0xff]
    %v1977 = vld [vmem:[#allocation9 + $0x1a0] sm:$0xff]
    %v1978 = vld [vmem:[#allocation9 + $0x1a8] sm:$0xff]
    %v1979 = vld [vmem:[#allocation9 + $0x1b0] sm:$0xff]
    %v1980 = vld [vmem:[#allocation9 + $0x1b8] sm:$0xff]
    %v1981 = vld [vmem:[#allocation9 + $0x1c0] sm:$0xff]
    %v1982 = vld [vmem:[#allocation9 + $0x1c8] sm:$0xff]
    %v1983 = vld [vmem:[#allocation9 + $0x1d0] sm:$0xff]
    %v1984 = vld [vmem:[#allocation9 + $0x1d8] sm:$0xff]
    %v1985 = vld [vmem:[#allocation9 + $0x1e0] sm:$0xff]
    %v1986 = vld [vmem:[#allocation9 + $0x1e8] sm:$0xff]
    %v1987 = vld [vmem:[#allocation9 + $0x1f0] sm:$0xff]
    %v1988 = vld [vmem:[#allocation9 + $0x1f8] sm:$0xff]
    %1989 = vmatprep.subr.mxu0 %v1986
    %1990 = vmatpush1.msra.mxu0 %v1985
    %1991 = vmatprep.subr.mxu0 %v1982
    %1992 = vmatpush1.msra.mxu0 %v1981
    %1993 = vmatprep.subr.mxu0 %v1978
    %1994 = vmatpush1.msra.mxu0 %v1977
    %1995 = vmatprep.subr.mxu0 %v1974
    %1996 = vmatpush1.msra.mxu0 %v1973
    %1997 = vmatprep.subr.mxu0 %v1970
    %1998 = vmatpush1.msra.mxu0 %v1969
    %1999 = vmatprep.subr.mxu0 %v1966
    %2000 = vmatpush1.msra.mxu0 %v1965
    %2001 = vmatprep.subr.mxu0 %v1962
    %2002 = vmatpush1.msra.mxu0 %v1961
    %2003 = vmatprep.subr.mxu0 %v1958
    %2004 = vmatpush1.msra.mxu0 %v1957
    %2005 = vmatprep.subr.mxu0 %v1954
    %2006 = vmatpush1.msra.mxu0 %v1953
    %2007 = vmatprep.subr.mxu0 %v1950
    %2008 = vmatpush1.msra.mxu0 %v1949
    %2009 = vmatprep.subr.mxu0 %v1946
    %2010 = vmatpush1.msra.mxu0 %v1945
    %2011 = vmatprep.subr.mxu0 %v1942
    %2012 = vmatpush1.msra.mxu0 %v1941
    %2013 = vmatprep.subr.mxu0 %v1938
    %2014 = vmatpush1.msra.mxu0 %v1937
    %2015 = vmatprep.subr.mxu0 %v1934
    %2016 = vmatpush1.msra.mxu0 %v1933
    %2017 = vmatprep.subr.mxu0 %v1930
    %2018 = vmatpush1.msra.mxu0 %v1929
    %2019 = vmatprep.subr.mxu0 %v1926
    %2020 = vmatpush1.msra.mxu0 %v1925
    %2021 = vmatprep.subr.mxu0 0.0
    %2022 = vmatpush2.msra.mxu0 0.0
    %2023 = vmatprep.subr.mxu0 0.0
    %2024 = vmatpush2.msra.mxu0 0.0
    %2025 = vmatprep.subr.mxu0 0.0
    %2026 = vmatpush2.msra.mxu0 0.0
    %2027 = vmatprep.subr.mxu0 0.0
    %2028 = vmatpush2.msra.mxu0 0.0
    %2029 = vmatprep.subr.mxu0 0.0
    %2030 = vmatpush2.msra.mxu0 0.0
    %2031 = vmatprep.subr.mxu0 0.0
    %2032 = vmatpush2.msra.mxu0 0.0
    %2033 = vmatprep.subr.mxu0 0.0
    %2034 = vmatpush2.msra.mxu0 0.0
    %2035 = vmatprep.subr.mxu0 0.0
    %2036 = vmatpush2.msra.mxu0 0.0
    %2037 = vmatprep.subr.mxu0 0.0
    %2038 = vmatpush2.msra.mxu0 0.0
    %2039 = vmatprep.subr.mxu0 0.0
    %2040 = vmatpush2.msra.mxu0 0.0
    %2041 = vmatprep.subr.mxu0 0.0
    %2042 = vmatpush2.msra.mxu0 0.0
    %2043 = vmatprep.subr.mxu0 0.0
    %2044 = vmatpush2.msra.mxu0 0.0
    %2045 = vmatprep.subr.mxu0 0.0
    %2046 = vmatpush2.msra.mxu0 0.0
    %2047 = vmatprep.subr.mxu0 0.0
    %2048 = vmatpush2.msra.mxu0 0.0
    %2049 = vmatprep.subr.mxu0 0.0
    %2050 = vmatpush2.msra.mxu0 0.0
    %2051 = vmatprep.subr.mxu0 0.0
    %2052 = vmatpush2.msra.mxu0 0.0
    %2053 = vmatprep.mubr.f32.mxu0 0.0
    %2054 = vmatmul.mubr.f32.gmra.mxu0 %v1376
    %v2055 = vpop.f32.mrf.mxu0
    %v2056 = vadd.f32 0.0, %v2055
    %v2057 = vpop.f32.mrf.mxu0
    %v2058 = vadd.f32 0.0, %v2057
    %2059 = vdwg.mxu0
    %2060 = vmatprep.subr.mxu0 %v1988
    %2061 = vmatpush1.msra.mxu0 %v1987
    %2062 = vmatprep.subr.mxu0 %v1984
    %2063 = vmatpush1.msra.mxu0 %v1983
    %2064 = vmatprep.subr.mxu0 %v1980
    %2065 = vmatpush1.msra.mxu0 %v1979
    %2066 = vmatprep.subr.mxu0 %v1976
    %2067 = vmatpush1.msra.mxu0 %v1975
    %2068 = vmatprep.subr.mxu0 %v1972
    %2069 = vmatpush1.msra.mxu0 %v1971
    %2070 = vmatprep.subr.mxu0 %v1968
    %2071 = vmatpush1.msra.mxu0 %v1967
    %2072 = vmatprep.subr.mxu0 %v1964
    %2073 = vmatpush1.msra.mxu0 %v1963
    %2074 = vmatprep.subr.mxu0 %v1960
    %2075 = vmatpush1.msra.mxu0 %v1959
    %2076 = vmatprep.subr.mxu0 %v1956
    %2077 = vmatpush1.msra.mxu0 %v1955
    %2078 = vmatprep.subr.mxu0 %v1952
    %2079 = vmatpush1.msra.mxu0 %v1951
    %2080 = vmatprep.subr.mxu0 %v1948
    %2081 = vmatpush1.msra.mxu0 %v1947
    %2082 = vmatprep.subr.mxu0 %v1944
    %2083 = vmatpush1.msra.mxu0 %v1943
    %2084 = vmatprep.subr.mxu0 %v1940
    %2085 = vmatpush1.msra.mxu0 %v1939
    %2086 = vmatprep.subr.mxu0 %v1936
    %2087 = vmatpush1.msra.mxu0 %v1935
    %2088 = vmatprep.subr.mxu0 %v1932
    %2089 = vmatpush1.msra.mxu0 %v1931
    %2090 = vmatprep.subr.mxu0 %v1928
    %2091 = vmatpush1.msra.mxu0 %v1927
    %2092 = vmatprep.subr.mxu0 0.0
    %2093 = vmatpush2.msra.mxu0 0.0
    %2094 = vmatprep.subr.mxu0 0.0
    %2095 = vmatpush2.msra.mxu0 0.0
    %2096 = vmatprep.subr.mxu0 0.0
    %2097 = vmatpush2.msra.mxu0 0.0
    %2098 = vmatprep.subr.mxu0 0.0
    %2099 = vmatpush2.msra.mxu0 0.0
    %2100 = vmatprep.subr.mxu0 0.0
    %2101 = vmatpush2.msra.mxu0 0.0
    %2102 = vmatprep.subr.mxu0 0.0
    %2103 = vmatpush2.msra.mxu0 0.0
    %2104 = vmatprep.subr.mxu0 0.0
    %2105 = vmatpush2.msra.mxu0 0.0
    %2106 = vmatprep.subr.mxu0 0.0
    %2107 = vmatpush2.msra.mxu0 0.0
    %2108 = vmatprep.subr.mxu0 0.0
    %2109 = vmatpush2.msra.mxu0 0.0
    %2110 = vmatprep.subr.mxu0 0.0
    %2111 = vmatpush2.msra.mxu0 0.0
    %2112 = vmatprep.subr.mxu0 0.0
    %2113 = vmatpush2.msra.mxu0 0.0
    %2114 = vmatprep.subr.mxu0 0.0
    %2115 = vmatpush2.msra.mxu0 0.0
    %2116 = vmatprep.subr.mxu0 0.0
    %2117 = vmatpush2.msra.mxu0 0.0
    %2118 = vmatprep.subr.mxu0 0.0
    %2119 = vmatpush2.msra.mxu0 0.0
    %2120 = vmatprep.subr.mxu0 0.0
    %2121 = vmatpush2.msra.mxu0 0.0
    %2122 = vmatprep.subr.mxu0 0.0
    %2123 = vmatpush2.msra.mxu0 0.0
    %2124 = vmatprep.mubr.f32.mxu0 0.0
    %2125 = vmatmul.mubr.f32.gmra.mxu0 %v1376
    %v2126 = vpop.f32.mrf.mxu0
    %v2127 = vadd.f32 0.0, %v2126
    %v2128 = vpop.f32.mrf.mxu0
    %v2129 = vadd.f32 0.0, %v2128
    %2130 = vdwg.mxu0
    %v2131 = vadd.f32 %v1921, %v2056
    %v2132 = vadd.f32 %v1922, %v2058
    %v2133 = vadd.f32 %v1923, %v2127
    %v2134 = vadd.f32 %v1924, %v2129
    %v2135 = vxor.u32 %v2131, 2147483648
    %v2136 = vmul.f32 %v2135, 1.442695
    %v2137 = vpow.pop %v2136
    %v2138 = vadd.f32 %v2137, 1.0
    %v2139 = vrcp.pop %v2138
    %v2140 = vmul.f32 1.0, %v2139
    %v2141 = vxor.u32 %v2132, 2147483648
    %v2142 = vmul.f32 %v2141, 1.442695
    %v2143 = vpow.pop %v2142
    %v2144 = vadd.f32 %v2143, 1.0
    %v2145 = vrcp.pop %v2144
    %v2146 = vmul.f32 1.0, %v2145
    %v2147 = vtanh.pop %v2133
    %v2148 = vxor.u32 %v2134, 2147483648
    %v2149 = vmul.f32 %v2148, 1.442695
    %v2150 = vpow.pop %v2149
    %v2151 = vadd.f32 %v2150, 1.0
    %v2152 = vrcp.pop %v2151
    %v2153 = vmul.f32 1.0, %v2152
    %v2154 = vmul.f32 %v2146, %v1374
    %v2155 = vmul.f32 %v2140, %v2147
    %v2156 = vadd.f32 %v2154, %v2155
    %v2157 = vtanh.pop %v2156
    %v2158 = vmul.f32 %v2153, %v2157
    %v2159 = vld [vmem:[#allocation11] sm:$0xff]
    %v2160 = vld [vmem:[#allocation11 + $0x8] sm:$0xff]
    %v2161 = vld [vmem:[#allocation11 + $0x10] sm:$0xff]
    %v2162 = vld [vmem:[#allocation11 + $0x18] sm:$0xff]
    %v2163 = vld [vmem:[#allocation11 + $0x20] sm:$0xff]
    %v2164 = vld [vmem:[#allocation11 + $0x28] sm:$0xff]
    %v2165 = vld [vmem:[#allocation11 + $0x30] sm:$0xff]
    %v2166 = vld [vmem:[#allocation11 + $0x38] sm:$0xff]
    %v2167 = vld [vmem:[#allocation11 + $0x40] sm:$0xff]
    %v2168 = vld [vmem:[#allocation11 + $0x48] sm:$0xff]
    %v2169 = vld [vmem:[#allocation11 + $0x50] sm:$0xff]
    %v2170 = vld [vmem:[#allocation11 + $0x58] sm:$0xff]
    %v2171 = vld [vmem:[#allocation11 + $0x60] sm:$0xff]
    %v2172 = vld [vmem:[#allocation11 + $0x68] sm:$0xff]
    %v2173 = vld [vmem:[#allocation11 + $0x70] sm:$0xff]
    %v2174 = vld [vmem:[#allocation11 + $0x78] sm:$0xff]
    %v2175 = vld [vmem:[#allocation11 + $0x80] sm:$0xff]
    %v2176 = vld [vmem:[#allocation11 + $0x88] sm:$0xff]
    %v2177 = vld [vmem:[#allocation11 + $0x90] sm:$0xff]
    %v2178 = vld [vmem:[#allocation11 + $0x98] sm:$0xff]
    %v2179 = vld [vmem:[#allocation11 + $0xa0] sm:$0xff]
    %v2180 = vld [vmem:[#allocation11 + $0xa8] sm:$0xff]
    %v2181 = vld [vmem:[#allocation11 + $0xb0] sm:$0xff]
    %v2182 = vld [vmem:[#allocation11 + $0xb8] sm:$0xff]
    %v2183 = vld [vmem:[#allocation11 + $0xc0] sm:$0xff]
    %v2184 = vld [vmem:[#allocation11 + $0xc8] sm:$0xff]
    %v2185 = vld [vmem:[#allocation11 + $0xd0] sm:$0xff]
    %v2186 = vld [vmem:[#allocation11 + $0xd8] sm:$0xff]
    %v2187 = vld [vmem:[#allocation11 + $0xe0] sm:$0xff]
    %v2188 = vld [vmem:[#allocation11 + $0xe8] sm:$0xff]
    %v2189 = vld [vmem:[#allocation11 + $0xf0] sm:$0xff]
    %v2190 = vld [vmem:[#allocation11 + $0xf8] sm:$0xff]
    %v2191 = vld [vmem:[#allocation11 + $0x100] sm:$0xff]
    %v2192 = vld [vmem:[#allocation11 + $0x108] sm:$0xff]
    %v2193 = vld [vmem:[#allocation11 + $0x110] sm:$0xff]
    %v2194 = vld [vmem:[#allocation11 + $0x118] sm:$0xff]
    %v2195 = vld [vmem:[#allocation11 + $0x120] sm:$0xff]
    %v2196 = vld [vmem:[#allocation11 + $0x128] sm:$0xff]
    %v2197 = vld [vmem:[#allocation11 + $0x130] sm:$0xff]
    %v2198 = vld [vmem:[#allocation11 + $0x138] sm:$0xff]
    %v2199 = vld [vmem:[#allocation11 + $0x140] sm:$0xff]
    %v2200 = vld [vmem:[#allocation11 + $0x148] sm:$0xff]
    %v2201 = vld [vmem:[#allocation11 + $0x150] sm:$0xff]
    %v2202 = vld [vmem:[#allocation11 + $0x158] sm:$0xff]
    %v2203 = vld [vmem:[#allocation11 + $0x160] sm:$0xff]
    %v2204 = vld [vmem:[#allocation11 + $0x168] sm:$0xff]
    %v2205 = vld [vmem:[#allocation11 + $0x170] sm:$0xff]
    %v2206 = vld [vmem:[#allocation11 + $0x178] sm:$0xff]
    %v2207 = vld [vmem:[#allocation11 + $0x180] sm:$0xff]
    %v2208 = vld [vmem:[#allocation11 + $0x188] sm:$0xff]
    %v2209 = vld [vmem:[#allocation11 + $0x190] sm:$0xff]
    %v2210 = vld [vmem:[#allocation11 + $0x198] sm:$0xff]
    %v2211 = vld [vmem:[#allocation11 + $0x1a0] sm:$0xff]
    %v2212 = vld [vmem:[#allocation11 + $0x1a8] sm:$0xff]
    %v2213 = vld [vmem:[#allocation11 + $0x1b0] sm:$0xff]
    %v2214 = vld [vmem:[#allocation11 + $0x1b8] sm:$0xff]
    %v2215 = vld [vmem:[#allocation11 + $0x1c0] sm:$0xff]
    %v2216 = vld [vmem:[#allocation11 + $0x1c8] sm:$0xff]
    %v2217 = vld [vmem:[#allocation11 + $0x1d0] sm:$0xff]
    %v2218 = vld [vmem:[#allocation11 + $0x1d8] sm:$0xff]
    %v2219 = vld [vmem:[#allocation11 + $0x1e0] sm:$0xff]
    %v2220 = vld [vmem:[#allocation11 + $0x1e8] sm:$0xff]
    %v2221 = vld [vmem:[#allocation11 + $0x1f0] sm:$0xff]
    %v2222 = vld [vmem:[#allocation11 + $0x1f8] sm:$0xff]
    %2223 = vmatprep.subr.mxu0 %v2220
    %2224 = vmatpush1.msra.mxu0 %v2219
    %2225 = vmatprep.subr.mxu0 %v2216
    %2226 = vmatpush1.msra.mxu0 %v2215
    %2227 = vmatprep.subr.mxu0 %v2212
    %2228 = vmatpush1.msra.mxu0 %v2211
    %2229 = vmatprep.subr.mxu0 %v2208
    %2230 = vmatpush1.msra.mxu0 %v2207
    %2231 = vmatprep.subr.mxu0 %v2204
    %2232 = vmatpush1.msra.mxu0 %v2203
    %2233 = vmatprep.subr.mxu0 %v2200
    %2234 = vmatpush1.msra.mxu0 %v2199
    %2235 = vmatprep.subr.mxu0 %v2196
    %2236 = vmatpush1.msra.mxu0 %v2195
    %2237 = vmatprep.subr.mxu0 %v2192
    %2238 = vmatpush1.msra.mxu0 %v2191
    %2239 = vmatprep.subr.mxu0 %v2188
    %2240 = vmatpush1.msra.mxu0 %v2187
    %2241 = vmatprep.subr.mxu0 %v2184
    %2242 = vmatpush1.msra.mxu0 %v2183
    %2243 = vmatprep.subr.mxu0 %v2180
    %2244 = vmatpush1.msra.mxu0 %v2179
    %2245 = vmatprep.subr.mxu0 %v2176
    %2246 = vmatpush1.msra.mxu0 %v2175
    %2247 = vmatprep.subr.mxu0 %v2172
    %2248 = vmatpush1.msra.mxu0 %v2171
    %2249 = vmatprep.subr.mxu0 %v2168
    %2250 = vmatpush1.msra.mxu0 %v2167
    %2251 = vmatprep.subr.mxu0 %v2164
    %2252 = vmatpush1.msra.mxu0 %v2163
    %2253 = vmatprep.subr.mxu0 %v2160
    %2254 = vmatpush1.msra.mxu0 %v2159
    %2255 = vmatprep.subr.mxu0 0.0
    %2256 = vmatpush2.msra.mxu0 0.0
    %2257 = vmatprep.subr.mxu0 0.0
    %2258 = vmatpush2.msra.mxu0 0.0
    %2259 = vmatprep.subr.mxu0 0.0
    %2260 = vmatpush2.msra.mxu0 0.0
    %2261 = vmatprep.subr.mxu0 0.0
    %2262 = vmatpush2.msra.mxu0 0.0
    %2263 = vmatprep.subr.mxu0 0.0
    %2264 = vmatpush2.msra.mxu0 0.0
    %2265 = vmatprep.subr.mxu0 0.0
    %2266 = vmatpush2.msra.mxu0 0.0
    %2267 = vmatprep.subr.mxu0 0.0
    %2268 = vmatpush2.msra.mxu0 0.0
    %2269 = vmatprep.subr.mxu0 0.0
    %2270 = vmatpush2.msra.mxu0 0.0
    %2271 = vmatprep.subr.mxu0 0.0
    %2272 = vmatpush2.msra.mxu0 0.0
    %2273 = vmatprep.subr.mxu0 0.0
    %2274 = vmatpush2.msra.mxu0 0.0
    %2275 = vmatprep.subr.mxu0 0.0
    %2276 = vmatpush2.msra.mxu0 0.0
    %2277 = vmatprep.subr.mxu0 0.0
    %2278 = vmatpush2.msra.mxu0 0.0
    %2279 = vmatprep.subr.mxu0 0.0
    %2280 = vmatpush2.msra.mxu0 0.0
    %2281 = vmatprep.subr.mxu0 0.0
    %2282 = vmatpush2.msra.mxu0 0.0
    %2283 = vmatprep.subr.mxu0 0.0
    %2284 = vmatpush2.msra.mxu0 0.0
    %2285 = vmatprep.subr.mxu0 0.0
    %2286 = vmatpush2.msra.mxu0 0.0
    %2287 = vmatprep.mubr.f32.mxu0 0.0
    %2288 = vmatmul.mubr.f32.gmra.mxu0 %v2158
    %v2289 = vpop.f32.mrf.mxu0
    %v2290 = vadd.f32 %v1831, %v2289
    %v2291 = vpop.f32.mrf.mxu0
    %v2292 = vadd.f32 %v1833, %v2291
    %2293 = vdwg.mxu0
    %2294 = vmatprep.subr.mxu0 %v2222
    %2295 = vmatpush1.msra.mxu0 %v2221
    %2296 = vmatprep.subr.mxu0 %v2218
    %2297 = vmatpush1.msra.mxu0 %v2217
    %2298 = vmatprep.subr.mxu0 %v2214
    %2299 = vmatpush1.msra.mxu0 %v2213
    %2300 = vmatprep.subr.mxu0 %v2210
    %2301 = vmatpush1.msra.mxu0 %v2209
    %2302 = vmatprep.subr.mxu0 %v2206
    %2303 = vmatpush1.msra.mxu0 %v2205
    %2304 = vmatprep.subr.mxu0 %v2202
    %2305 = vmatpush1.msra.mxu0 %v2201
    %2306 = vmatprep.subr.mxu0 %v2198
    %2307 = vmatpush1.msra.mxu0 %v2197
    %2308 = vmatprep.subr.mxu0 %v2194
    %2309 = vmatpush1.msra.mxu0 %v2193
    %2310 = vmatprep.subr.mxu0 %v2190
    %2311 = vmatpush1.msra.mxu0 %v2189
    %2312 = vmatprep.subr.mxu0 %v2186
    %2313 = vmatpush1.msra.mxu0 %v2185
    %2314 = vmatprep.subr.mxu0 %v2182
    %2315 = vmatpush1.msra.mxu0 %v2181
    %2316 = vmatprep.subr.mxu0 %v2178
    %2317 = vmatpush1.msra.mxu0 %v2177
    %2318 = vmatprep.subr.mxu0 %v2174
    %2319 = vmatpush1.msra.mxu0 %v2173
    %2320 = vmatprep.subr.mxu0 %v2170
    %2321 = vmatpush1.msra.mxu0 %v2169
    %2322 = vmatprep.subr.mxu0 %v2166
    %2323 = vmatpush1.msra.mxu0 %v2165
    %2324 = vmatprep.subr.mxu0 %v2162
    %2325 = vmatpush1.msra.mxu0 %v2161
    %2326 = vmatprep.subr.mxu0 0.0
    %2327 = vmatpush2.msra.mxu0 0.0
    %2328 = vmatprep.subr.mxu0 0.0
    %2329 = vmatpush2.msra.mxu0 0.0
    %2330 = vmatprep.subr.mxu0 0.0
    %2331 = vmatpush2.msra.mxu0 0.0
    %2332 = vmatprep.subr.mxu0 0.0
    %2333 = vmatpush2.msra.mxu0 0.0
    %2334 = vmatprep.subr.mxu0 0.0
    %2335 = vmatpush2.msra.mxu0 0.0
    %2336 = vmatprep.subr.mxu0 0.0
    %2337 = vmatpush2.msra.mxu0 0.0
    %2338 = vmatprep.subr.mxu0 0.0
    %2339 = vmatpush2.msra.mxu0 0.0
    %2340 = vmatprep.subr.mxu0 0.0
    %2341 = vmatpush2.msra.mxu0 0.0
    %2342 = vmatprep.subr.mxu0 0.0
    %2343 = vmatpush2.msra.mxu0 0.0
    %2344 = vmatprep.subr.mxu0 0.0
    %2345 = vmatpush2.msra.mxu0 0.0
    %2346 = vmatprep.subr.mxu0 0.0
    %2347 = vmatpush2.msra.mxu0 0.0
    %2348 = vmatprep.subr.mxu0 0.0
    %2349 = vmatpush2.msra.mxu0 0.0
    %2350 = vmatprep.subr.mxu0 0.0
    %2351 = vmatpush2.msra.mxu0 0.0
    %2352 = vmatprep.subr.mxu0 0.0
    %2353 = vmatpush2.msra.mxu0 0.0
    %2354 = vmatprep.subr.mxu0 0.0
    %2355 = vmatpush2.msra.mxu0 0.0
    %2356 = vmatprep.subr.mxu0 0.0
    %2357 = vmatpush2.msra.mxu0 0.0
    %2358 = vmatprep.mubr.f32.mxu0 0.0
    %2359 = vmatmul.mubr.f32.gmra.mxu0 %v2158
    %v2360 = vpop.f32.mrf.mxu0
    %v2361 = vadd.f32 %v1902, %v2360
    %v2362 = vpop.f32.mrf.mxu0
    %v2363 = vadd.f32 %v1904, %v2362
    %2364 = vdwg.mxu0
    %v2365 = vadd.f32 %v2290, %v108
    %v2366 = vadd.f32 %v2292, %v112
    %v2367 = vadd.f32 %v2361, %v116
    %v2368 = vadd.f32 %v2363, %v120
    %v2369 = vxor.u32 %v2365, 2147483648
    %v2370 = vmul.f32 %v2369, 1.442695
    %v2371 = vpow.pop %v2370
    %v2372 = vadd.f32 %v2371, 1.0
    %v2373 = vrcp.pop %v2372
    %v2374 = vmul.f32 1.0, %v2373
    %v2375 = vxor.u32 %v2366, 2147483648
    %v2376 = vmul.f32 %v2375, 1.442695
    %v2377 = vpow.pop %v2376
    %v2378 = vadd.f32 %v2377, 1.0
    %v2379 = vrcp.pop %v2378
    %v2380 = vmul.f32 1.0, %v2379
    %v2381 = vtanh.pop %v2367
    %v2382 = vxor.u32 %v2368, 2147483648
    %v2383 = vmul.f32 %v2382, 1.442695
    %v2384 = vpow.pop %v2383
    %v2385 = vadd.f32 %v2384, 1.0
    %v2386 = vrcp.pop %v2385
    %v2387 = vmul.f32 1.0, %v2386
    %v2388 = vmul.f32 %v2380, %v1608
    %v2389 = vmul.f32 %v2374, %v2381
    %v2390 = vadd.f32 %v2388, %v2389
    %v2391 = vtanh.pop %v2390
    %v2392 = vmul.f32 %v2387, %v2391
    %v2393 = vld [vmem:[#allocation14] sm:$0xff]
    %v2394 = vld [vmem:[#allocation14 + $0x8] sm:$0xff]
    %v2395 = vld [vmem:[#allocation14 + $0x10] sm:$0xff]
    %v2396 = vld [vmem:[#allocation14 + $0x18] sm:$0xff]
    %v2397 = vld [vmem:[#allocation14 + $0x20] sm:$0xff]
    %v2398 = vld [vmem:[#allocation14 + $0x28] sm:$0xff]
    %v2399 = vld [vmem:[#allocation14 + $0x30] sm:$0xff]
    %v2400 = vld [vmem:[#allocation14 + $0x38] sm:$0xff]
    %v2401 = vld [vmem:[#allocation14 + $0x40] sm:$0xff]
    %v2402 = vld [vmem:[#allocation14 + $0x48] sm:$0xff]
    %v2403 = vld [vmem:[#allocation14 + $0x50] sm:$0xff]
    %v2404 = vld [vmem:[#allocation14 + $0x58] sm:$0xff]
    %v2405 = vld [vmem:[#allocation14 + $0x60] sm:$0xff]
    %v2406 = vld [vmem:[#allocation14 + $0x68] sm:$0xff]
    %v2407 = vld [vmem:[#allocation14 + $0x70] sm:$0xff]
    %v2408 = vld [vmem:[#allocation14 + $0x78] sm:$0xff]
    %2409 = vmatprep.subr.mxu0 0.0
    %2410 = vmatpush1.msra.mxu0 %v2408
    %2411 = vmatprep.subr.mxu0 0.0
    %2412 = vmatpush1.msra.mxu0 %v2407
    %2413 = vmatprep.subr.mxu0 0.0
    %2414 = vmatpush1.msra.mxu0 %v2406
    %2415 = vmatprep.subr.mxu0 0.0
    %2416 = vmatpush1.msra.mxu0 %v2405
    %2417 = vmatprep.subr.mxu0 0.0
    %2418 = vmatpush1.msra.mxu0 %v2404
    %2419 = vmatprep.subr.mxu0 0.0
    %2420 = vmatpush1.msra.mxu0 %v2403
    %2421 = vmatprep.subr.mxu0 0.0
    %2422 = vmatpush1.msra.mxu0 %v2402
    %2423 = vmatprep.subr.mxu0 0.0
    %2424 = vmatpush1.msra.mxu0 %v2401
    %2425 = vmatprep.subr.mxu0 0.0
    %2426 = vmatpush1.msra.mxu0 %v2400
    %2427 = vmatprep.subr.mxu0 0.0
    %2428 = vmatpush1.msra.mxu0 %v2399
    %2429 = vmatprep.subr.mxu0 0.0
    %2430 = vmatpush1.msra.mxu0 %v2398
    %2431 = vmatprep.subr.mxu0 0.0
    %2432 = vmatpush1.msra.mxu0 %v2397
    %2433 = vmatprep.subr.mxu0 0.0
    %2434 = vmatpush1.msra.mxu0 %v2396
    %2435 = vmatprep.subr.mxu0 0.0
    %2436 = vmatpush1.msra.mxu0 %v2395
    %2437 = vmatprep.subr.mxu0 0.0
    %2438 = vmatpush1.msra.mxu0 %v2394
    %2439 = vmatprep.subr.mxu0 0.0
    %2440 = vmatpush1.msra.mxu0 %v2393
    %2441 = vmatprep.subr.mxu0 0.0
    %2442 = vmatpush2.msra.mxu0 0.0
    %2443 = vmatprep.subr.mxu0 0.0
    %2444 = vmatpush2.msra.mxu0 0.0
    %2445 = vmatprep.subr.mxu0 0.0
    %2446 = vmatpush2.msra.mxu0 0.0
    %2447 = vmatprep.subr.mxu0 0.0
    %2448 = vmatpush2.msra.mxu0 0.0
    %2449 = vmatprep.subr.mxu0 0.0
    %2450 = vmatpush2.msra.mxu0 0.0
    %2451 = vmatprep.subr.mxu0 0.0
    %2452 = vmatpush2.msra.mxu0 0.0
    %2453 = vmatprep.subr.mxu0 0.0
    %2454 = vmatpush2.msra.mxu0 0.0
    %2455 = vmatprep.subr.mxu0 0.0
    %2456 = vmatpush2.msra.mxu0 0.0
    %2457 = vmatprep.subr.mxu0 0.0
    %2458 = vmatpush2.msra.mxu0 0.0
    %2459 = vmatprep.subr.mxu0 0.0
    %2460 = vmatpush2.msra.mxu0 0.0
    %2461 = vmatprep.subr.mxu0 0.0
    %2462 = vmatpush2.msra.mxu0 0.0
    %2463 = vmatprep.subr.mxu0 0.0
    %2464 = vmatpush2.msra.mxu0 0.0
    %2465 = vmatprep.subr.mxu0 0.0
    %2466 = vmatpush2.msra.mxu0 0.0
    %2467 = vmatprep.subr.mxu0 0.0
    %2468 = vmatpush2.msra.mxu0 0.0
    %2469 = vmatprep.subr.mxu0 0.0
    %2470 = vmatpush2.msra.mxu0 0.0
    %2471 = vmatprep.subr.mxu0 0.0
    %2472 = vmatpush2.msra.mxu0 0.0
    %2473 = vmatprep.mubr.f32.mxu0 0.0
    %2474 = vmatmul.mubr.f32.gmra.mxu0 %v2392
    %v2475 = vpop.f32.mrf.mxu0
    %v2476 = vadd.f32 %v130, %v2475
    %v2477 = vpop.f32.mrf.mxu0
    %2478 = vdwg.mxu0
    %s2479 = scalar_lea.vmem [#allocation15], 16
    %2480 = vst [vmem:[%s2479] sm:$0xff] %v2476
    %s2481 = sadd.s32 %s132, 3
    %v2482 = vld [vmem:[#allocation12] sm:$0xff]
    %v2483 = vld [vmem:[#allocation12 + $0x8] sm:$0xff]
    %v2484 = vld [vmem:[#allocation12 + $0x10] sm:$0xff]
    %v2485 = vld [vmem:[#allocation12 + $0x18] sm:$0xff]
    %v2486 = vld [vmem:[#allocation12 + $0x20] sm:$0xff]
    %v2487 = vld [vmem:[#allocation12 + $0x28] sm:$0xff]
    %v2488 = vld [vmem:[#allocation12 + $0x30] sm:$0xff]
    %v2489 = vld [vmem:[#allocation12 + $0x38] sm:$0xff]
    %v2490 = vld [vmem:[#allocation12 + $0x40] sm:$0xff]
    %v2491 = vld [vmem:[#allocation12 + $0x48] sm:$0xff]
    %v2492 = vld [vmem:[#allocation12 + $0x50] sm:$0xff]
    %v2493 = vld [vmem:[#allocation12 + $0x58] sm:$0xff]
    %v2494 = vld [vmem:[#allocation12 + $0x60] sm:$0xff]
    %v2495 = vld [vmem:[#allocation12 + $0x68] sm:$0xff]
    %v2496 = vld [vmem:[#allocation12 + $0x70] sm:$0xff]
    %v2497 = vld [vmem:[#allocation12 + $0x78] sm:$0xff]
    %v2498 = vld [vmem:[#allocation12 + $0x80] sm:$0xff]
    %v2499 = vld [vmem:[#allocation12 + $0x88] sm:$0xff]
    %v2500 = vld [vmem:[#allocation12 + $0x90] sm:$0xff]
    %v2501 = vld [vmem:[#allocation12 + $0x98] sm:$0xff]
    %v2502 = vld [vmem:[#allocation12 + $0xa0] sm:$0xff]
    %v2503 = vld [vmem:[#allocation12 + $0xa8] sm:$0xff]
    %v2504 = vld [vmem:[#allocation12 + $0xb0] sm:$0xff]
    %v2505 = vld [vmem:[#allocation12 + $0xb8] sm:$0xff]
    %v2506 = vld [vmem:[#allocation12 + $0xc0] sm:$0xff]
    %v2507 = vld [vmem:[#allocation12 + $0xc8] sm:$0xff]
    %v2508 = vld [vmem:[#allocation12 + $0xd0] sm:$0xff]
    %v2509 = vld [vmem:[#allocation12 + $0xd8] sm:$0xff]
    %v2510 = vld [vmem:[#allocation12 + $0xe0] sm:$0xff]
    %v2511 = vld [vmem:[#allocation12 + $0xe8] sm:$0xff]
    %v2512 = vld [vmem:[#allocation12 + $0xf0] sm:$0xff]
    %v2513 = vld [vmem:[#allocation12 + $0xf8] sm:$0xff]
    %v2514 = vld [vmem:[#allocation12 + $0x100] sm:$0xff]
    %v2515 = vld [vmem:[#allocation12 + $0x108] sm:$0xff]
    %v2516 = vld [vmem:[#allocation12 + $0x110] sm:$0xff]
    %v2517 = vld [vmem:[#allocation12 + $0x118] sm:$0xff]
    %v2518 = vld [vmem:[#allocation12 + $0x120] sm:$0xff]
    %v2519 = vld [vmem:[#allocation12 + $0x128] sm:$0xff]
    %v2520 = vld [vmem:[#allocation12 + $0x130] sm:$0xff]
    %v2521 = vld [vmem:[#allocation12 + $0x138] sm:$0xff]
    %v2522 = vld [vmem:[#allocation12 + $0x140] sm:$0xff]
    %v2523 = vld [vmem:[#allocation12 + $0x148] sm:$0xff]
    %v2524 = vld [vmem:[#allocation12 + $0x150] sm:$0xff]
    %v2525 = vld [vmem:[#allocation12 + $0x158] sm:$0xff]
    %v2526 = vld [vmem:[#allocation12 + $0x160] sm:$0xff]
    %v2527 = vld [vmem:[#allocation12 + $0x168] sm:$0xff]
    %v2528 = vld [vmem:[#allocation12 + $0x170] sm:$0xff]
    %v2529 = vld [vmem:[#allocation12 + $0x178] sm:$0xff]
    %v2530 = vld [vmem:[#allocation12 + $0x180] sm:$0xff]
    %v2531 = vld [vmem:[#allocation12 + $0x188] sm:$0xff]
    %v2532 = vld [vmem:[#allocation12 + $0x190] sm:$0xff]
    %v2533 = vld [vmem:[#allocation12 + $0x198] sm:$0xff]
    %v2534 = vld [vmem:[#allocation12 + $0x1a0] sm:$0xff]
    %v2535 = vld [vmem:[#allocation12 + $0x1a8] sm:$0xff]
    %v2536 = vld [vmem:[#allocation12 + $0x1b0] sm:$0xff]
    %v2537 = vld [vmem:[#allocation12 + $0x1b8] sm:$0xff]
    %v2538 = vld [vmem:[#allocation12 + $0x1c0] sm:$0xff]
    %v2539 = vld [vmem:[#allocation12 + $0x1c8] sm:$0xff]
    %v2540 = vld [vmem:[#allocation12 + $0x1d0] sm:$0xff]
    %v2541 = vld [vmem:[#allocation12 + $0x1d8] sm:$0xff]
    %v2542 = vld [vmem:[#allocation12 + $0x1e0] sm:$0xff]
    %v2543 = vld [vmem:[#allocation12 + $0x1e8] sm:$0xff]
    %v2544 = vld [vmem:[#allocation12 + $0x1f0] sm:$0xff]
    %v2545 = vld [vmem:[#allocation12 + $0x1f8] sm:$0xff]
    %2546 = vmatprep.subr.mxu0 %v2543
    %2547 = vmatpush1.msra.mxu0 %v2542
    %2548 = vmatprep.subr.mxu0 %v2539
    %2549 = vmatpush1.msra.mxu0 %v2538
    %2550 = vmatprep.subr.mxu0 %v2535
    %2551 = vmatpush1.msra.mxu0 %v2534
    %2552 = vmatprep.subr.mxu0 %v2531
    %2553 = vmatpush1.msra.mxu0 %v2530
    %2554 = vmatprep.subr.mxu0 %v2527
    %2555 = vmatpush1.msra.mxu0 %v2526
    %2556 = vmatprep.subr.mxu0 %v2523
    %2557 = vmatpush1.msra.mxu0 %v2522
    %2558 = vmatprep.subr.mxu0 %v2519
    %2559 = vmatpush1.msra.mxu0 %v2518
    %2560 = vmatprep.subr.mxu0 %v2515
    %2561 = vmatpush1.msra.mxu0 %v2514
    %2562 = vmatprep.subr.mxu0 %v2511
    %2563 = vmatpush1.msra.mxu0 %v2510
    %2564 = vmatprep.subr.mxu0 %v2507
    %2565 = vmatpush1.msra.mxu0 %v2506
    %2566 = vmatprep.subr.mxu0 %v2503
    %2567 = vmatpush1.msra.mxu0 %v2502
    %2568 = vmatprep.subr.mxu0 %v2499
    %2569 = vmatpush1.msra.mxu0 %v2498
    %2570 = vmatprep.subr.mxu0 %v2495
    %2571 = vmatpush1.msra.mxu0 %v2494
    %2572 = vmatprep.subr.mxu0 %v2491
    %2573 = vmatpush1.msra.mxu0 %v2490
    %2574 = vmatprep.subr.mxu0 %v2487
    %2575 = vmatpush1.msra.mxu0 %v2486
    %2576 = vmatprep.subr.mxu0 %v2483
    %2577 = vmatpush1.msra.mxu0 %v2482
    %2578 = vmatprep.subr.mxu0 0.0
    %2579 = vmatpush2.msra.mxu0 0.0
    %2580 = vmatprep.subr.mxu0 0.0
    %2581 = vmatpush2.msra.mxu0 0.0
    %2582 = vmatprep.subr.mxu0 0.0
    %2583 = vmatpush2.msra.mxu0 0.0
    %2584 = vmatprep.subr.mxu0 0.0
    %2585 = vmatpush2.msra.mxu0 0.0
    %2586 = vmatprep.subr.mxu0 0.0
    %2587 = vmatpush2.msra.mxu0 0.0
    %2588 = vmatprep.subr.mxu0 0.0
    %2589 = vmatpush2.msra.mxu0 0.0
    %2590 = vmatprep.subr.mxu0 0.0
    %2591 = vmatpush2.msra.mxu0 0.0
    %2592 = vmatprep.subr.mxu0 0.0
    %2593 = vmatpush2.msra.mxu0 0.0
    %2594 = vmatprep.subr.mxu0 0.0
    %2595 = vmatpush2.msra.mxu0 0.0
    %2596 = vmatprep.subr.mxu0 0.0
    %2597 = vmatpush2.msra.mxu0 0.0
    %2598 = vmatprep.subr.mxu0 0.0
    %2599 = vmatpush2.msra.mxu0 0.0
    %2600 = vmatprep.subr.mxu0 0.0
    %2601 = vmatpush2.msra.mxu0 0.0
    %2602 = vmatprep.subr.mxu0 0.0
    %2603 = vmatpush2.msra.mxu0 0.0
    %2604 = vmatprep.subr.mxu0 0.0
    %2605 = vmatpush2.msra.mxu0 0.0
    %2606 = vmatprep.subr.mxu0 0.0
    %2607 = vmatpush2.msra.mxu0 0.0
    %2608 = vmatprep.subr.mxu0 0.0
    %2609 = vmatpush2.msra.mxu0 0.0
    %2610 = vmatprep.mubr.f32.mxu0 0.0
    %2611 = vmatmul.mubr.f32.gmra.mxu0 %v2392
    %v2612 = vpop.f32.mrf.mxu0
    %v2613 = vadd.f32 0.0, %v2612
    %v2614 = vpop.f32.mrf.mxu0
    %v2615 = vadd.f32 0.0, %v2614
    %2616 = vdwg.mxu0
    %2617 = vmatprep.subr.mxu0 %v2545
    %2618 = vmatpush1.msra.mxu0 %v2544
    %2619 = vmatprep.subr.mxu0 %v2541
    %2620 = vmatpush1.msra.mxu0 %v2540
    %2621 = vmatprep.subr.mxu0 %v2537
    %2622 = vmatpush1.msra.mxu0 %v2536
    %2623 = vmatprep.subr.mxu0 %v2533
    %2624 = vmatpush1.msra.mxu0 %v2532
    %2625 = vmatprep.subr.mxu0 %v2529
    %2626 = vmatpush1.msra.mxu0 %v2528
    %2627 = vmatprep.subr.mxu0 %v2525
    %2628 = vmatpush1.msra.mxu0 %v2524
    %2629 = vmatprep.subr.mxu0 %v2521
    %2630 = vmatpush1.msra.mxu0 %v2520
    %2631 = vmatprep.subr.mxu0 %v2517
    %2632 = vmatpush1.msra.mxu0 %v2516
    %2633 = vmatprep.subr.mxu0 %v2513
    %2634 = vmatpush1.msra.mxu0 %v2512
    %2635 = vmatprep.subr.mxu0 %v2509
    %2636 = vmatpush1.msra.mxu0 %v2508
    %2637 = vmatprep.subr.mxu0 %v2505
    %2638 = vmatpush1.msra.mxu0 %v2504
    %2639 = vmatprep.subr.mxu0 %v2501
    %2640 = vmatpush1.msra.mxu0 %v2500
    %2641 = vmatprep.subr.mxu0 %v2497
    %2642 = vmatpush1.msra.mxu0 %v2496
    %2643 = vmatprep.subr.mxu0 %v2493
    %2644 = vmatpush1.msra.mxu0 %v2492
    %2645 = vmatprep.subr.mxu0 %v2489
    %2646 = vmatpush1.msra.mxu0 %v2488
    %2647 = vmatprep.subr.mxu0 %v2485
    %2648 = vmatpush1.msra.mxu0 %v2484
    %2649 = vmatprep.subr.mxu0 0.0
    %2650 = vmatpush2.msra.mxu0 0.0
    %2651 = vmatprep.subr.mxu0 0.0
    %2652 = vmatpush2.msra.mxu0 0.0
    %2653 = vmatprep.subr.mxu0 0.0
    %2654 = vmatpush2.msra.mxu0 0.0
    %2655 = vmatprep.subr.mxu0 0.0
    %2656 = vmatpush2.msra.mxu0 0.0
    %2657 = vmatprep.subr.mxu0 0.0
    %2658 = vmatpush2.msra.mxu0 0.0
    %2659 = vmatprep.subr.mxu0 0.0
    %2660 = vmatpush2.msra.mxu0 0.0
    %2661 = vmatprep.subr.mxu0 0.0
    %2662 = vmatpush2.msra.mxu0 0.0
    %2663 = vmatprep.subr.mxu0 0.0
    %2664 = vmatpush2.msra.mxu0 0.0
    %2665 = vmatprep.subr.mxu0 0.0
    %2666 = vmatpush2.msra.mxu0 0.0
    %2667 = vmatprep.subr.mxu0 0.0
    %2668 = vmatpush2.msra.mxu0 0.0
    %2669 = vmatprep.subr.mxu0 0.0
    %2670 = vmatpush2.msra.mxu0 0.0
    %2671 = vmatprep.subr.mxu0 0.0
    %2672 = vmatpush2.msra.mxu0 0.0
    %2673 = vmatprep.subr.mxu0 0.0
    %2674 = vmatpush2.msra.mxu0 0.0
    %2675 = vmatprep.subr.mxu0 0.0
    %2676 = vmatpush2.msra.mxu0 0.0
    %2677 = vmatprep.subr.mxu0 0.0
    %2678 = vmatpush2.msra.mxu0 0.0
    %2679 = vmatprep.subr.mxu0 0.0
    %2680 = vmatpush2.msra.mxu0 0.0
    %2681 = vmatprep.mubr.f32.mxu0 0.0
    %2682 = vmatmul.mubr.f32.gmra.mxu0 %v2392
    %v2683 = vpop.f32.mrf.mxu0
    %v2684 = vadd.f32 0.0, %v2683
    %v2685 = vpop.f32.mrf.mxu0
    %v2686 = vadd.f32 0.0, %v2685
    %2687 = vdwg.mxu0
    %p2688 = scmp.lt.s32.totalorder %s2481, 0
    %s2689 = ssub.s32 0, %s2481
    %s2690 = scalar_select %p2688, %s2689, %s2481
    %s2691 = sand.u32 %s2690, 1
    %s2692 = ssub.s32 0, %s2691
    %s2693 = scalar_select %p2688, %s2692, %s2691
    %p2694 = scmp.ne.s32.totalorder %s2693, 0
    %p2695 = scmp.lt.s32.totalorder %s2693, 0
    %p2696 = pnand %p2695, %p2694
    %p2697 = pneg %p2696
    %s2698 = sadd.s32 %s2693, 2
    %s2699 = scalar_select %p2697, %s2698, %s2693
    %s2700 = smul.u32 %s2699, 4
    %s2701 = smul.addr %s2700, 8
    %s2702 = scalar_lea.vmem [#allocation6], %s2701
    %v2703 = vld [vmem:[%s2702] sm:$0xff]
    %v2704 = vld [vmem:[%s2702 + $0x8] sm:$0xff]
    %v2705 = vld [vmem:[%s2702 + $0x10] sm:$0xff]
    %v2706 = vld [vmem:[%s2702 + $0x18] sm:$0xff]
    %v2707 = vld [vmem:[#allocation9] sm:$0xff]
    %v2708 = vld [vmem:[#allocation9 + $0x8] sm:$0xff]
    %v2709 = vld [vmem:[#allocation9 + $0x10] sm:$0xff]
    %v2710 = vld [vmem:[#allocation9 + $0x18] sm:$0xff]
    %v2711 = vld [vmem:[#allocation9 + $0x20] sm:$0xff]
    %v2712 = vld [vmem:[#allocation9 + $0x28] sm:$0xff]
    %v2713 = vld [vmem:[#allocation9 + $0x30] sm:$0xff]
    %v2714 = vld [vmem:[#allocation9 + $0x38] sm:$0xff]
    %v2715 = vld [vmem:[#allocation9 + $0x40] sm:$0xff]
    %v2716 = vld [vmem:[#allocation9 + $0x48] sm:$0xff]
    %v2717 = vld [vmem:[#allocation9 + $0x50] sm:$0xff]
    %v2718 = vld [vmem:[#allocation9 + $0x58] sm:$0xff]
    %v2719 = vld [vmem:[#allocation9 + $0x60] sm:$0xff]
    %v2720 = vld [vmem:[#allocation9 + $0x68] sm:$0xff]
    %v2721 = vld [vmem:[#allocation9 + $0x70] sm:$0xff]
    %v2722 = vld [vmem:[#allocation9 + $0x78] sm:$0xff]
    %v2723 = vld [vmem:[#allocation9 + $0x80] sm:$0xff]
    %v2724 = vld [vmem:[#allocation9 + $0x88] sm:$0xff]
    %v2725 = vld [vmem:[#allocation9 + $0x90] sm:$0xff]
    %v2726 = vld [vmem:[#allocation9 + $0x98] sm:$0xff]
    %v2727 = vld [vmem:[#allocation9 + $0xa0] sm:$0xff]
    %v2728 = vld [vmem:[#allocation9 + $0xa8] sm:$0xff]
    %v2729 = vld [vmem:[#allocation9 + $0xb0] sm:$0xff]
    %v2730 = vld [vmem:[#allocation9 + $0xb8] sm:$0xff]
    %v2731 = vld [vmem:[#allocation9 + $0xc0] sm:$0xff]
    %v2732 = vld [vmem:[#allocation9 + $0xc8] sm:$0xff]
    %v2733 = vld [vmem:[#allocation9 + $0xd0] sm:$0xff]
    %v2734 = vld [vmem:[#allocation9 + $0xd8] sm:$0xff]
    %v2735 = vld [vmem:[#allocation9 + $0xe0] sm:$0xff]
    %v2736 = vld [vmem:[#allocation9 + $0xe8] sm:$0xff]
    %v2737 = vld [vmem:[#allocation9 + $0xf0] sm:$0xff]
    %v2738 = vld [vmem:[#allocation9 + $0xf8] sm:$0xff]
    %v2739 = vld [vmem:[#allocation9 + $0x100] sm:$0xff]
    %v2740 = vld [vmem:[#allocation9 + $0x108] sm:$0xff]
    %v2741 = vld [vmem:[#allocation9 + $0x110] sm:$0xff]
    %v2742 = vld [vmem:[#allocation9 + $0x118] sm:$0xff]
    %v2743 = vld [vmem:[#allocation9 + $0x120] sm:$0xff]
    %v2744 = vld [vmem:[#allocation9 + $0x128] sm:$0xff]
    %v2745 = vld [vmem:[#allocation9 + $0x130] sm:$0xff]
    %v2746 = vld [vmem:[#allocation9 + $0x138] sm:$0xff]
    %v2747 = vld [vmem:[#allocation9 + $0x140] sm:$0xff]
    %v2748 = vld [vmem:[#allocation9 + $0x148] sm:$0xff]
    %v2749 = vld [vmem:[#allocation9 + $0x150] sm:$0xff]
    %v2750 = vld [vmem:[#allocation9 + $0x158] sm:$0xff]
    %v2751 = vld [vmem:[#allocation9 + $0x160] sm:$0xff]
    %v2752 = vld [vmem:[#allocation9 + $0x168] sm:$0xff]
    %v2753 = vld [vmem:[#allocation9 + $0x170] sm:$0xff]
    %v2754 = vld [vmem:[#allocation9 + $0x178] sm:$0xff]
    %v2755 = vld [vmem:[#allocation9 + $0x180] sm:$0xff]
    %v2756 = vld [vmem:[#allocation9 + $0x188] sm:$0xff]
    %v2757 = vld [vmem:[#allocation9 + $0x190] sm:$0xff]
    %v2758 = vld [vmem:[#allocation9 + $0x198] sm:$0xff]
    %v2759 = vld [vmem:[#allocation9 + $0x1a0] sm:$0xff]
    %v2760 = vld [vmem:[#allocation9 + $0x1a8] sm:$0xff]
    %v2761 = vld [vmem:[#allocation9 + $0x1b0] sm:$0xff]
    %v2762 = vld [vmem:[#allocation9 + $0x1b8] sm:$0xff]
    %v2763 = vld [vmem:[#allocation9 + $0x1c0] sm:$0xff]
    %v2764 = vld [vmem:[#allocation9 + $0x1c8] sm:$0xff]
    %v2765 = vld [vmem:[#allocation9 + $0x1d0] sm:$0xff]
    %v2766 = vld [vmem:[#allocation9 + $0x1d8] sm:$0xff]
    %v2767 = vld [vmem:[#allocation9 + $0x1e0] sm:$0xff]
    %v2768 = vld [vmem:[#allocation9 + $0x1e8] sm:$0xff]
    %v2769 = vld [vmem:[#allocation9 + $0x1f0] sm:$0xff]
    %v2770 = vld [vmem:[#allocation9 + $0x1f8] sm:$0xff]
    %2771 = vmatprep.subr.mxu0 %v2768
    %2772 = vmatpush1.msra.mxu0 %v2767
    %2773 = vmatprep.subr.mxu0 %v2764
    %2774 = vmatpush1.msra.mxu0 %v2763
    %2775 = vmatprep.subr.mxu0 %v2760
    %2776 = vmatpush1.msra.mxu0 %v2759
    %2777 = vmatprep.subr.mxu0 %v2756
    %2778 = vmatpush1.msra.mxu0 %v2755
    %2779 = vmatprep.subr.mxu0 %v2752
    %2780 = vmatpush1.msra.mxu0 %v2751
    %2781 = vmatprep.subr.mxu0 %v2748
    %2782 = vmatpush1.msra.mxu0 %v2747
    %2783 = vmatprep.subr.mxu0 %v2744
    %2784 = vmatpush1.msra.mxu0 %v2743
    %2785 = vmatprep.subr.mxu0 %v2740
    %2786 = vmatpush1.msra.mxu0 %v2739
    %2787 = vmatprep.subr.mxu0 %v2736
    %2788 = vmatpush1.msra.mxu0 %v2735
    %2789 = vmatprep.subr.mxu0 %v2732
    %2790 = vmatpush1.msra.mxu0 %v2731
    %2791 = vmatprep.subr.mxu0 %v2728
    %2792 = vmatpush1.msra.mxu0 %v2727
    %2793 = vmatprep.subr.mxu0 %v2724
    %2794 = vmatpush1.msra.mxu0 %v2723
    %2795 = vmatprep.subr.mxu0 %v2720
    %2796 = vmatpush1.msra.mxu0 %v2719
    %2797 = vmatprep.subr.mxu0 %v2716
    %2798 = vmatpush1.msra.mxu0 %v2715
    %2799 = vmatprep.subr.mxu0 %v2712
    %2800 = vmatpush1.msra.mxu0 %v2711
    %2801 = vmatprep.subr.mxu0 %v2708
    %2802 = vmatpush1.msra.mxu0 %v2707
    %2803 = vmatprep.subr.mxu0 0.0
    %2804 = vmatpush2.msra.mxu0 0.0
    %2805 = vmatprep.subr.mxu0 0.0
    %2806 = vmatpush2.msra.mxu0 0.0
    %2807 = vmatprep.subr.mxu0 0.0
    %2808 = vmatpush2.msra.mxu0 0.0
    %2809 = vmatprep.subr.mxu0 0.0
    %2810 = vmatpush2.msra.mxu0 0.0
    %2811 = vmatprep.subr.mxu0 0.0
    %2812 = vmatpush2.msra.mxu0 0.0
    %2813 = vmatprep.subr.mxu0 0.0
    %2814 = vmatpush2.msra.mxu0 0.0
    %2815 = vmatprep.subr.mxu0 0.0
    %2816 = vmatpush2.msra.mxu0 0.0
    %2817 = vmatprep.subr.mxu0 0.0
    %2818 = vmatpush2.msra.mxu0 0.0
    %2819 = vmatprep.subr.mxu0 0.0
    %2820 = vmatpush2.msra.mxu0 0.0
    %2821 = vmatprep.subr.mxu0 0.0
    %2822 = vmatpush2.msra.mxu0 0.0
    %2823 = vmatprep.subr.mxu0 0.0
    %2824 = vmatpush2.msra.mxu0 0.0
    %2825 = vmatprep.subr.mxu0 0.0
    %2826 = vmatpush2.msra.mxu0 0.0
    %2827 = vmatprep.subr.mxu0 0.0
    %2828 = vmatpush2.msra.mxu0 0.0
    %2829 = vmatprep.subr.mxu0 0.0
    %2830 = vmatpush2.msra.mxu0 0.0
    %2831 = vmatprep.subr.mxu0 0.0
    %2832 = vmatpush2.msra.mxu0 0.0
    %2833 = vmatprep.subr.mxu0 0.0
    %2834 = vmatpush2.msra.mxu0 0.0
    %2835 = vmatprep.mubr.f32.mxu0 0.0
    %2836 = vmatmul.mubr.f32.gmra.mxu0 %v2158
    %v2837 = vpop.f32.mrf.mxu0
    %v2838 = vadd.f32 0.0, %v2837
    %v2839 = vpop.f32.mrf.mxu0
    %v2840 = vadd.f32 0.0, %v2839
    %2841 = vdwg.mxu0
    %2842 = vmatprep.subr.mxu0 %v2770
    %2843 = vmatpush1.msra.mxu0 %v2769
    %2844 = vmatprep.subr.mxu0 %v2766
    %2845 = vmatpush1.msra.mxu0 %v2765
    %2846 = vmatprep.subr.mxu0 %v2762
    %2847 = vmatpush1.msra.mxu0 %v2761
    %2848 = vmatprep.subr.mxu0 %v2758
    %2849 = vmatpush1.msra.mxu0 %v2757
    %2850 = vmatprep.subr.mxu0 %v2754
    %2851 = vmatpush1.msra.mxu0 %v2753
    %2852 = vmatprep.subr.mxu0 %v2750
    %2853 = vmatpush1.msra.mxu0 %v2749
    %2854 = vmatprep.subr.mxu0 %v2746
    %2855 = vmatpush1.msra.mxu0 %v2745
    %2856 = vmatprep.subr.mxu0 %v2742
    %2857 = vmatpush1.msra.mxu0 %v2741
    %2858 = vmatprep.subr.mxu0 %v2738
    %2859 = vmatpush1.msra.mxu0 %v2737
    %2860 = vmatprep.subr.mxu0 %v2734
    %2861 = vmatpush1.msra.mxu0 %v2733
    %2862 = vmatprep.subr.mxu0 %v2730
    %2863 = vmatpush1.msra.mxu0 %v2729
    %2864 = vmatprep.subr.mxu0 %v2726
    %2865 = vmatpush1.msra.mxu0 %v2725
    %2866 = vmatprep.subr.mxu0 %v2722
    %2867 = vmatpush1.msra.mxu0 %v2721
    %2868 = vmatprep.subr.mxu0 %v2718
    %2869 = vmatpush1.msra.mxu0 %v2717
    %2870 = vmatprep.subr.mxu0 %v2714
    %2871 = vmatpush1.msra.mxu0 %v2713
    %2872 = vmatprep.subr.mxu0 %v2710
    %2873 = vmatpush1.msra.mxu0 %v2709
    %2874 = vmatprep.subr.mxu0 0.0
    %2875 = vmatpush2.msra.mxu0 0.0
    %2876 = vmatprep.subr.mxu0 0.0
    %2877 = vmatpush2.msra.mxu0 0.0
    %2878 = vmatprep.subr.mxu0 0.0
    %2879 = vmatpush2.msra.mxu0 0.0
    %2880 = vmatprep.subr.mxu0 0.0
    %2881 = vmatpush2.msra.mxu0 0.0
    %2882 = vmatprep.subr.mxu0 0.0
    %2883 = vmatpush2.msra.mxu0 0.0
    %2884 = vmatprep.subr.mxu0 0.0
    %2885 = vmatpush2.msra.mxu0 0.0
    %2886 = vmatprep.subr.mxu0 0.0
    %2887 = vmatpush2.msra.mxu0 0.0
    %2888 = vmatprep.subr.mxu0 0.0
    %2889 = vmatpush2.msra.mxu0 0.0
    %2890 = vmatprep.subr.mxu0 0.0
    %2891 = vmatpush2.msra.mxu0 0.0
    %2892 = vmatprep.subr.mxu0 0.0
    %2893 = vmatpush2.msra.mxu0 0.0
    %2894 = vmatprep.subr.mxu0 0.0
    %2895 = vmatpush2.msra.mxu0 0.0
    %2896 = vmatprep.subr.mxu0 0.0
    %2897 = vmatpush2.msra.mxu0 0.0
    %2898 = vmatprep.subr.mxu0 0.0
    %2899 = vmatpush2.msra.mxu0 0.0
    %2900 = vmatprep.subr.mxu0 0.0
    %2901 = vmatpush2.msra.mxu0 0.0
    %2902 = vmatprep.subr.mxu0 0.0
    %2903 = vmatpush2.msra.mxu0 0.0
    %2904 = vmatprep.subr.mxu0 0.0
    %2905 = vmatpush2.msra.mxu0 0.0
    %2906 = vmatprep.mubr.f32.mxu0 0.0
    %2907 = vmatmul.mubr.f32.gmra.mxu0 %v2158
    %v2908 = vpop.f32.mrf.mxu0
    %v2909 = vadd.f32 0.0, %v2908
    %v2910 = vpop.f32.mrf.mxu0
    %v2911 = vadd.f32 0.0, %v2910
    %2912 = vdwg.mxu0
    %v2913 = vadd.f32 %v2703, %v2838
    %v2914 = vadd.f32 %v2704, %v2840
    %v2915 = vadd.f32 %v2705, %v2909
    %v2916 = vadd.f32 %v2706, %v2911
    %v2917 = vxor.u32 %v2913, 2147483648
    %v2918 = vmul.f32 %v2917, 1.442695
    %v2919 = vpow.pop %v2918
    %v2920 = vadd.f32 %v2919, 1.0
    %v2921 = vrcp.pop %v2920
    %v2922 = vmul.f32 1.0, %v2921
    %v2923 = vxor.u32 %v2914, 2147483648
    %v2924 = vmul.f32 %v2923, 1.442695
    %v2925 = vpow.pop %v2924
    %v2926 = vadd.f32 %v2925, 1.0
    %v2927 = vrcp.pop %v2926
    %v2928 = vmul.f32 1.0, %v2927
    %v2929 = vtanh.pop %v2915
    %v2930 = vxor.u32 %v2916, 2147483648
    %v2931 = vmul.f32 %v2930, 1.442695
    %v2932 = vpow.pop %v2931
    %v2933 = vadd.f32 %v2932, 1.0
    %v2934 = vrcp.pop %v2933
    %v2935 = vmul.f32 1.0, %v2934
    %v2936 = vmul.f32 %v2928, %v2156
    %v2937 = vmul.f32 %v2922, %v2929
    %v2938 = vadd.f32 %v2936, %v2937
    %v2939 = vtanh.pop %v2938
    %v2940 = vmul.f32 %v2935, %v2939
    %v2941 = vld [vmem:[#allocation11] sm:$0xff]
    %v2942 = vld [vmem:[#allocation11 + $0x8] sm:$0xff]
    %v2943 = vld [vmem:[#allocation11 + $0x10] sm:$0xff]
    %v2944 = vld [vmem:[#allocation11 + $0x18] sm:$0xff]
    %v2945 = vld [vmem:[#allocation11 + $0x20] sm:$0xff]
    %v2946 = vld [vmem:[#allocation11 + $0x28] sm:$0xff]
    %v2947 = vld [vmem:[#allocation11 + $0x30] sm:$0xff]
    %v2948 = vld [vmem:[#allocation11 + $0x38] sm:$0xff]
    %v2949 = vld [vmem:[#allocation11 + $0x40] sm:$0xff]
    %v2950 = vld [vmem:[#allocation11 + $0x48] sm:$0xff]
    %v2951 = vld [vmem:[#allocation11 + $0x50] sm:$0xff]
    %v2952 = vld [vmem:[#allocation11 + $0x58] sm:$0xff]
    %v2953 = vld [vmem:[#allocation11 + $0x60] sm:$0xff]
    %v2954 = vld [vmem:[#allocation11 + $0x68] sm:$0xff]
    %v2955 = vld [vmem:[#allocation11 + $0x70] sm:$0xff]
    %v2956 = vld [vmem:[#allocation11 + $0x78] sm:$0xff]
    %v2957 = vld [vmem:[#allocation11 + $0x80] sm:$0xff]
    %v2958 = vld [vmem:[#allocation11 + $0x88] sm:$0xff]
    %v2959 = vld [vmem:[#allocation11 + $0x90] sm:$0xff]
    %v2960 = vld [vmem:[#allocation11 + $0x98] sm:$0xff]
    %v2961 = vld [vmem:[#allocation11 + $0xa0] sm:$0xff]
    %v2962 = vld [vmem:[#allocation11 + $0xa8] sm:$0xff]
    %v2963 = vld [vmem:[#allocation11 + $0xb0] sm:$0xff]
    %v2964 = vld [vmem:[#allocation11 + $0xb8] sm:$0xff]
    %v2965 = vld [vmem:[#allocation11 + $0xc0] sm:$0xff]
    %v2966 = vld [vmem:[#allocation11 + $0xc8] sm:$0xff]
    %v2967 = vld [vmem:[#allocation11 + $0xd0] sm:$0xff]
    %v2968 = vld [vmem:[#allocation11 + $0xd8] sm:$0xff]
    %v2969 = vld [vmem:[#allocation11 + $0xe0] sm:$0xff]
    %v2970 = vld [vmem:[#allocation11 + $0xe8] sm:$0xff]
    %v2971 = vld [vmem:[#allocation11 + $0xf0] sm:$0xff]
    %v2972 = vld [vmem:[#allocation11 + $0xf8] sm:$0xff]
    %v2973 = vld [vmem:[#allocation11 + $0x100] sm:$0xff]
    %v2974 = vld [vmem:[#allocation11 + $0x108] sm:$0xff]
    %v2975 = vld [vmem:[#allocation11 + $0x110] sm:$0xff]
    %v2976 = vld [vmem:[#allocation11 + $0x118] sm:$0xff]
    %v2977 = vld [vmem:[#allocation11 + $0x120] sm:$0xff]
    %v2978 = vld [vmem:[#allocation11 + $0x128] sm:$0xff]
    %v2979 = vld [vmem:[#allocation11 + $0x130] sm:$0xff]
    %v2980 = vld [vmem:[#allocation11 + $0x138] sm:$0xff]
    %v2981 = vld [vmem:[#allocation11 + $0x140] sm:$0xff]
    %v2982 = vld [vmem:[#allocation11 + $0x148] sm:$0xff]
    %v2983 = vld [vmem:[#allocation11 + $0x150] sm:$0xff]
    %v2984 = vld [vmem:[#allocation11 + $0x158] sm:$0xff]
    %v2985 = vld [vmem:[#allocation11 + $0x160] sm:$0xff]
    %v2986 = vld [vmem:[#allocation11 + $0x168] sm:$0xff]
    %v2987 = vld [vmem:[#allocation11 + $0x170] sm:$0xff]
    %v2988 = vld [vmem:[#allocation11 + $0x178] sm:$0xff]
    %v2989 = vld [vmem:[#allocation11 + $0x180] sm:$0xff]
    %v2990 = vld [vmem:[#allocation11 + $0x188] sm:$0xff]
    %v2991 = vld [vmem:[#allocation11 + $0x190] sm:$0xff]
    %v2992 = vld [vmem:[#allocation11 + $0x198] sm:$0xff]
    %v2993 = vld [vmem:[#allocation11 + $0x1a0] sm:$0xff]
    %v2994 = vld [vmem:[#allocation11 + $0x1a8] sm:$0xff]
    %v2995 = vld [vmem:[#allocation11 + $0x1b0] sm:$0xff]
    %v2996 = vld [vmem:[#allocation11 + $0x1b8] sm:$0xff]
    %v2997 = vld [vmem:[#allocation11 + $0x1c0] sm:$0xff]
    %v2998 = vld [vmem:[#allocation11 + $0x1c8] sm:$0xff]
    %v2999 = vld [vmem:[#allocation11 + $0x1d0] sm:$0xff]
    %v3000 = vld [vmem:[#allocation11 + $0x1d8] sm:$0xff]
    %v3001 = vld [vmem:[#allocation11 + $0x1e0] sm:$0xff]
    %v3002 = vld [vmem:[#allocation11 + $0x1e8] sm:$0xff]
    %v3003 = vld [vmem:[#allocation11 + $0x1f0] sm:$0xff]
    %v3004 = vld [vmem:[#allocation11 + $0x1f8] sm:$0xff]
    %3005 = vmatprep.subr.mxu0 %v3002
    %3006 = vmatpush1.msra.mxu0 %v3001
    %3007 = vmatprep.subr.mxu0 %v2998
    %3008 = vmatpush1.msra.mxu0 %v2997
    %3009 = vmatprep.subr.mxu0 %v2994
    %3010 = vmatpush1.msra.mxu0 %v2993
    %3011 = vmatprep.subr.mxu0 %v2990
    %3012 = vmatpush1.msra.mxu0 %v2989
    %3013 = vmatprep.subr.mxu0 %v2986
    %3014 = vmatpush1.msra.mxu0 %v2985
    %3015 = vmatprep.subr.mxu0 %v2982
    %3016 = vmatpush1.msra.mxu0 %v2981
    %3017 = vmatprep.subr.mxu0 %v2978
    %3018 = vmatpush1.msra.mxu0 %v2977
    %3019 = vmatprep.subr.mxu0 %v2974
    %3020 = vmatpush1.msra.mxu0 %v2973
    %3021 = vmatprep.subr.mxu0 %v2970
    %3022 = vmatpush1.msra.mxu0 %v2969
    %3023 = vmatprep.subr.mxu0 %v2966
    %3024 = vmatpush1.msra.mxu0 %v2965
    %3025 = vmatprep.subr.mxu0 %v2962
    %3026 = vmatpush1.msra.mxu0 %v2961
    %3027 = vmatprep.subr.mxu0 %v2958
    %3028 = vmatpush1.msra.mxu0 %v2957
    %3029 = vmatprep.subr.mxu0 %v2954
    %3030 = vmatpush1.msra.mxu0 %v2953
    %3031 = vmatprep.subr.mxu0 %v2950
    %3032 = vmatpush1.msra.mxu0 %v2949
    %3033 = vmatprep.subr.mxu0 %v2946
    %3034 = vmatpush1.msra.mxu0 %v2945
    %3035 = vmatprep.subr.mxu0 %v2942
    %3036 = vmatpush1.msra.mxu0 %v2941
    %3037 = vmatprep.subr.mxu0 0.0
    %3038 = vmatpush2.msra.mxu0 0.0
    %3039 = vmatprep.subr.mxu0 0.0
    %3040 = vmatpush2.msra.mxu0 0.0
    %3041 = vmatprep.subr.mxu0 0.0
    %3042 = vmatpush2.msra.mxu0 0.0
    %3043 = vmatprep.subr.mxu0 0.0
    %3044 = vmatpush2.msra.mxu0 0.0
    %3045 = vmatprep.subr.mxu0 0.0
    %3046 = vmatpush2.msra.mxu0 0.0
    %3047 = vmatprep.subr.mxu0 0.0
    %3048 = vmatpush2.msra.mxu0 0.0
    %3049 = vmatprep.subr.mxu0 0.0
    %3050 = vmatpush2.msra.mxu0 0.0
    %3051 = vmatprep.subr.mxu0 0.0
    %3052 = vmatpush2.msra.mxu0 0.0
    %3053 = vmatprep.subr.mxu0 0.0
    %3054 = vmatpush2.msra.mxu0 0.0
    %3055 = vmatprep.subr.mxu0 0.0
    %3056 = vmatpush2.msra.mxu0 0.0
    %3057 = vmatprep.subr.mxu0 0.0
    %3058 = vmatpush2.msra.mxu0 0.0
    %3059 = vmatprep.subr.mxu0 0.0
    %3060 = vmatpush2.msra.mxu0 0.0
    %3061 = vmatprep.subr.mxu0 0.0
    %3062 = vmatpush2.msra.mxu0 0.0
    %3063 = vmatprep.subr.mxu0 0.0
    %3064 = vmatpush2.msra.mxu0 0.0
    %3065 = vmatprep.subr.mxu0 0.0
    %3066 = vmatpush2.msra.mxu0 0.0
    %3067 = vmatprep.subr.mxu0 0.0
    %3068 = vmatpush2.msra.mxu0 0.0
    %3069 = vmatprep.mubr.f32.mxu0 0.0
    %3070 = vmatmul.mubr.f32.gmra.mxu0 %v2940
    %v3071 = vpop.f32.mrf.mxu0
    %v3072 = vadd.f32 %v2613, %v3071
    %v3073 = vpop.f32.mrf.mxu0
    %v3074 = vadd.f32 %v2615, %v3073
    %3075 = vdwg.mxu0
    %3076 = vmatprep.subr.mxu0 %v3004
    %3077 = vmatpush1.msra.mxu0 %v3003
    %3078 = vmatprep.subr.mxu0 %v3000
    %3079 = vmatpush1.msra.mxu0 %v2999
    %3080 = vmatprep.subr.mxu0 %v2996
    %3081 = vmatpush1.msra.mxu0 %v2995
    %3082 = vmatprep.subr.mxu0 %v2992
    %3083 = vmatpush1.msra.mxu0 %v2991
    %3084 = vmatprep.subr.mxu0 %v2988
    %3085 = vmatpush1.msra.mxu0 %v2987
    %3086 = vmatprep.subr.mxu0 %v2984
    %3087 = vmatpush1.msra.mxu0 %v2983
    %3088 = vmatprep.subr.mxu0 %v2980
    %3089 = vmatpush1.msra.mxu0 %v2979
    %3090 = vmatprep.subr.mxu0 %v2976
    %3091 = vmatpush1.msra.mxu0 %v2975
    %3092 = vmatprep.subr.mxu0 %v2972
    %3093 = vmatpush1.msra.mxu0 %v2971
    %3094 = vmatprep.subr.mxu0 %v2968
    %3095 = vmatpush1.msra.mxu0 %v2967
    %3096 = vmatprep.subr.mxu0 %v2964
    %3097 = vmatpush1.msra.mxu0 %v2963
    %3098 = vmatprep.subr.mxu0 %v2960
    %3099 = vmatpush1.msra.mxu0 %v2959
    %3100 = vmatprep.subr.mxu0 %v2956
    %3101 = vmatpush1.msra.mxu0 %v2955
    %3102 = vmatprep.subr.mxu0 %v2952
    %3103 = vmatpush1.msra.mxu0 %v2951
    %3104 = vmatprep.subr.mxu0 %v2948
    %3105 = vmatpush1.msra.mxu0 %v2947
    %3106 = vmatprep.subr.mxu0 %v2944
    %3107 = vmatpush1.msra.mxu0 %v2943
    %3108 = vmatprep.subr.mxu0 0.0
    %3109 = vmatpush2.msra.mxu0 0.0
    %3110 = vmatprep.subr.mxu0 0.0
    %3111 = vmatpush2.msra.mxu0 0.0
    %3112 = vmatprep.subr.mxu0 0.0
    %3113 = vmatpush2.msra.mxu0 0.0
    %3114 = vmatprep.subr.mxu0 0.0
    %3115 = vmatpush2.msra.mxu0 0.0
    %3116 = vmatprep.subr.mxu0 0.0
    %3117 = vmatpush2.msra.mxu0 0.0
    %3118 = vmatprep.subr.mxu0 0.0
    %3119 = vmatpush2.msra.mxu0 0.0
    %3120 = vmatprep.subr.mxu0 0.0
    %3121 = vmatpush2.msra.mxu0 0.0
    %3122 = vmatprep.subr.mxu0 0.0
    %3123 = vmatpush2.msra.mxu0 0.0
    %3124 = vmatprep.subr.mxu0 0.0
    %3125 = vmatpush2.msra.mxu0 0.0
    %3126 = vmatprep.subr.mxu0 0.0
    %3127 = vmatpush2.msra.mxu0 0.0
    %3128 = vmatprep.subr.mxu0 0.0
    %3129 = vmatpush2.msra.mxu0 0.0
    %3130 = vmatprep.subr.mxu0 0.0
    %3131 = vmatpush2.msra.mxu0 0.0
    %3132 = vmatprep.subr.mxu0 0.0
    %3133 = vmatpush2.msra.mxu0 0.0
    %3134 = vmatprep.subr.mxu0 0.0
    %3135 = vmatpush2.msra.mxu0 0.0
    %3136 = vmatprep.subr.mxu0 0.0
    %3137 = vmatpush2.msra.mxu0 0.0
    %3138 = vmatprep.subr.mxu0 0.0
    %3139 = vmatpush2.msra.mxu0 0.0
    %3140 = vmatprep.mubr.f32.mxu0 0.0
    %3141 = vmatmul.mubr.f32.gmra.mxu0 %v2940
    %v3142 = vpop.f32.mrf.mxu0
    %v3143 = vadd.f32 %v2684, %v3142
    %v3144 = vpop.f32.mrf.mxu0
    %v3145 = vadd.f32 %v2686, %v3144
    %3146 = vdwg.mxu0
    %v3147 = vadd.f32 %v3072, %v108
    %v3148 = vadd.f32 %v3074, %v112
    %v3149 = vadd.f32 %v3143, %v116
    %v3150 = vadd.f32 %v3145, %v120
    %v3151 = vxor.u32 %v3147, 2147483648
    %v3152 = vmul.f32 %v3151, 1.442695
    %v3153 = vpow.pop %v3152
    %v3154 = vadd.f32 %v3153, 1.0
    %v3155 = vrcp.pop %v3154
    %v3156 = vmul.f32 1.0, %v3155
    %v3157 = vxor.u32 %v3148, 2147483648
    %v3158 = vmul.f32 %v3157, 1.442695
    %v3159 = vpow.pop %v3158
    %v3160 = vadd.f32 %v3159, 1.0
    %v3161 = vrcp.pop %v3160
    %v3162 = vmul.f32 1.0, %v3161
    %v3163 = vtanh.pop %v3149
    %v3164 = vxor.u32 %v3150, 2147483648
    %v3165 = vmul.f32 %v3164, 1.442695
    %v3166 = vpow.pop %v3165
    %v3167 = vadd.f32 %v3166, 1.0
    %v3168 = vrcp.pop %v3167
    %v3169 = vmul.f32 1.0, %v3168
    %v3170 = vmul.f32 %v3162, %v2390
    %v3171 = vmul.f32 %v3156, %v3163
    %v3172 = vadd.f32 %v3170, %v3171
    %v3173 = vtanh.pop %v3172
    %v3174 = vmul.f32 %v3169, %v3173
    %v3175 = vld [vmem:[#allocation14] sm:$0xff]
    %v3176 = vld [vmem:[#allocation14 + $0x8] sm:$0xff]
    %v3177 = vld [vmem:[#allocation14 + $0x10] sm:$0xff]
    %v3178 = vld [vmem:[#allocation14 + $0x18] sm:$0xff]
    %v3179 = vld [vmem:[#allocation14 + $0x20] sm:$0xff]
    %v3180 = vld [vmem:[#allocation14 + $0x28] sm:$0xff]
    %v3181 = vld [vmem:[#allocation14 + $0x30] sm:$0xff]
    %v3182 = vld [vmem:[#allocation14 + $0x38] sm:$0xff]
    %v3183 = vld [vmem:[#allocation14 + $0x40] sm:$0xff]
    %v3184 = vld [vmem:[#allocation14 + $0x48] sm:$0xff]
    %v3185 = vld [vmem:[#allocation14 + $0x50] sm:$0xff]
    %v3186 = vld [vmem:[#allocation14 + $0x58] sm:$0xff]
    %v3187 = vld [vmem:[#allocation14 + $0x60] sm:$0xff]
    %v3188 = vld [vmem:[#allocation14 + $0x68] sm:$0xff]
    %v3189 = vld [vmem:[#allocation14 + $0x70] sm:$0xff]
    %v3190 = vld [vmem:[#allocation14 + $0x78] sm:$0xff]
    %3191 = vmatprep.subr.mxu0 0.0
    %3192 = vmatpush1.msra.mxu0 %v3190
    %3193 = vmatprep.subr.mxu0 0.0
    %3194 = vmatpush1.msra.mxu0 %v3189
    %3195 = vmatprep.subr.mxu0 0.0
    %3196 = vmatpush1.msra.mxu0 %v3188
    %3197 = vmatprep.subr.mxu0 0.0
    %3198 = vmatpush1.msra.mxu0 %v3187
    %3199 = vmatprep.subr.mxu0 0.0
    %3200 = vmatpush1.msra.mxu0 %v3186
    %3201 = vmatprep.subr.mxu0 0.0
    %3202 = vmatpush1.msra.mxu0 %v3185
    %3203 = vmatprep.subr.mxu0 0.0
    %3204 = vmatpush1.msra.mxu0 %v3184
    %3205 = vmatprep.subr.mxu0 0.0
    %3206 = vmatpush1.msra.mxu0 %v3183
    %3207 = vmatprep.subr.mxu0 0.0
    %3208 = vmatpush1.msra.mxu0 %v3182
    %3209 = vmatprep.subr.mxu0 0.0
    %3210 = vmatpush1.msra.mxu0 %v3181
    %3211 = vmatprep.subr.mxu0 0.0
    %3212 = vmatpush1.msra.mxu0 %v3180
    %3213 = vmatprep.subr.mxu0 0.0
    %3214 = vmatpush1.msra.mxu0 %v3179
    %3215 = vmatprep.subr.mxu0 0.0
    %3216 = vmatpush1.msra.mxu0 %v3178
    %3217 = vmatprep.subr.mxu0 0.0
    %3218 = vmatpush1.msra.mxu0 %v3177
    %3219 = vmatprep.subr.mxu0 0.0
    %3220 = vmatpush1.msra.mxu0 %v3176
    %3221 = vmatprep.subr.mxu0 0.0
    %3222 = vmatpush1.msra.mxu0 %v3175
    %3223 = vmatprep.subr.mxu0 0.0
    %3224 = vmatpush2.msra.mxu0 0.0
    %3225 = vmatprep.subr.mxu0 0.0
    %3226 = vmatpush2.msra.mxu0 0.0
    %3227 = vmatprep.subr.mxu0 0.0
    %3228 = vmatpush2.msra.mxu0 0.0
    %3229 = vmatprep.subr.mxu0 0.0
    %3230 = vmatpush2.msra.mxu0 0.0
    %3231 = vmatprep.subr.mxu0 0.0
    %3232 = vmatpush2.msra.mxu0 0.0
    %3233 = vmatprep.subr.mxu0 0.0
    %3234 = vmatpush2.msra.mxu0 0.0
    %3235 = vmatprep.subr.mxu0 0.0
    %3236 = vmatpush2.msra.mxu0 0.0
    %3237 = vmatprep.subr.mxu0 0.0
    %3238 = vmatpush2.msra.mxu0 0.0
    %3239 = vmatprep.subr.mxu0 0.0
    %3240 = vmatpush2.msra.mxu0 0.0
    %3241 = vmatprep.subr.mxu0 0.0
    %3242 = vmatpush2.msra.mxu0 0.0
    %3243 = vmatprep.subr.mxu0 0.0
    %3244 = vmatpush2.msra.mxu0 0.0
    %3245 = vmatprep.subr.mxu0 0.0
    %3246 = vmatpush2.msra.mxu0 0.0
    %3247 = vmatprep.subr.mxu0 0.0
    %3248 = vmatpush2.msra.mxu0 0.0
    %3249 = vmatprep.subr.mxu0 0.0
    %3250 = vmatpush2.msra.mxu0 0.0
    %3251 = vmatprep.subr.mxu0 0.0
    %3252 = vmatpush2.msra.mxu0 0.0
    %3253 = vmatprep.subr.mxu0 0.0
    %3254 = vmatpush2.msra.mxu0 0.0
    %3255 = vmatprep.mubr.f32.mxu0 0.0
    %3256 = vmatmul.mubr.f32.gmra.mxu0 %v3174
    %v3257 = vpop.f32.mrf.mxu0
    %v3258 = vadd.f32 %v130, %v3257
    %v3259 = vpop.f32.mrf.mxu0
    %3260 = vdwg.mxu0
    %s3261 = scalar_lea.vmem [#allocation15], 24
    %3262 = vst [vmem:[%s3261] sm:$0xff] %v3258
    %s3263 = sadd.s32 %s132, 4
    %v3264 = vld [vmem:[#allocation12] sm:$0xff]
    %v3265 = vld [vmem:[#allocation12 + $0x8] sm:$0xff]
    %v3266 = vld [vmem:[#allocation12 + $0x10] sm:$0xff]
    %v3267 = vld [vmem:[#allocation12 + $0x18] sm:$0xff]
    %v3268 = vld [vmem:[#allocation12 + $0x20] sm:$0xff]
    %v3269 = vld [vmem:[#allocation12 + $0x28] sm:$0xff]
    %v3270 = vld [vmem:[#allocation12 + $0x30] sm:$0xff]
    %v3271 = vld [vmem:[#allocation12 + $0x38] sm:$0xff]
    %v3272 = vld [vmem:[#allocation12 + $0x40] sm:$0xff]
    %v3273 = vld [vmem:[#allocation12 + $0x48] sm:$0xff]
    %v3274 = vld [vmem:[#allocation12 + $0x50] sm:$0xff]
    %v3275 = vld [vmem:[#allocation12 + $0x58] sm:$0xff]
    %v3276 = vld [vmem:[#allocation12 + $0x60] sm:$0xff]
    %v3277 = vld [vmem:[#allocation12 + $0x68] sm:$0xff]
    %v3278 = vld [vmem:[#allocation12 + $0x70] sm:$0xff]
    %v3279 = vld [vmem:[#allocation12 + $0x78] sm:$0xff]
    %v3280 = vld [vmem:[#allocation12 + $0x80] sm:$0xff]
    %v3281 = vld [vmem:[#allocation12 + $0x88] sm:$0xff]
    %v3282 = vld [vmem:[#allocation12 + $0x90] sm:$0xff]
    %v3283 = vld [vmem:[#allocation12 + $0x98] sm:$0xff]
    %v3284 = vld [vmem:[#allocation12 + $0xa0] sm:$0xff]
    %v3285 = vld [vmem:[#allocation12 + $0xa8] sm:$0xff]
    %v3286 = vld [vmem:[#allocation12 + $0xb0] sm:$0xff]
    %v3287 = vld [vmem:[#allocation12 + $0xb8] sm:$0xff]
    %v3288 = vld [vmem:[#allocation12 + $0xc0] sm:$0xff]
    %v3289 = vld [vmem:[#allocation12 + $0xc8] sm:$0xff]
    %v3290 = vld [vmem:[#allocation12 + $0xd0] sm:$0xff]
    %v3291 = vld [vmem:[#allocation12 + $0xd8] sm:$0xff]
    %v3292 = vld [vmem:[#allocation12 + $0xe0] sm:$0xff]
    %v3293 = vld [vmem:[#allocation12 + $0xe8] sm:$0xff]
    %v3294 = vld [vmem:[#allocation12 + $0xf0] sm:$0xff]
    %v3295 = vld [vmem:[#allocation12 + $0xf8] sm:$0xff]
    %v3296 = vld [vmem:[#allocation12 + $0x100] sm:$0xff]
    %v3297 = vld [vmem:[#allocation12 + $0x108] sm:$0xff]
    %v3298 = vld [vmem:[#allocation12 + $0x110] sm:$0xff]
    %v3299 = vld [vmem:[#allocation12 + $0x118] sm:$0xff]
    %v3300 = vld [vmem:[#allocation12 + $0x120] sm:$0xff]
    %v3301 = vld [vmem:[#allocation12 + $0x128] sm:$0xff]
    %v3302 = vld [vmem:[#allocation12 + $0x130] sm:$0xff]
    %v3303 = vld [vmem:[#allocation12 + $0x138] sm:$0xff]
    %v3304 = vld [vmem:[#allocation12 + $0x140] sm:$0xff]
    %v3305 = vld [vmem:[#allocation12 + $0x148] sm:$0xff]
    %v3306 = vld [vmem:[#allocation12 + $0x150] sm:$0xff]
    %v3307 = vld [vmem:[#allocation12 + $0x158] sm:$0xff]
    %v3308 = vld [vmem:[#allocation12 + $0x160] sm:$0xff]
    %v3309 = vld [vmem:[#allocation12 + $0x168] sm:$0xff]
    %v3310 = vld [vmem:[#allocation12 + $0x170] sm:$0xff]
    %v3311 = vld [vmem:[#allocation12 + $0x178] sm:$0xff]
    %v3312 = vld [vmem:[#allocation12 + $0x180] sm:$0xff]
    %v3313 = vld [vmem:[#allocation12 + $0x188] sm:$0xff]
    %v3314 = vld [vmem:[#allocation12 + $0x190] sm:$0xff]
    %v3315 = vld [vmem:[#allocation12 + $0x198] sm:$0xff]
    %v3316 = vld [vmem:[#allocation12 + $0x1a0] sm:$0xff]
    %v3317 = vld [vmem:[#allocation12 + $0x1a8] sm:$0xff]
    %v3318 = vld [vmem:[#allocation12 + $0x1b0] sm:$0xff]
    %v3319 = vld [vmem:[#allocation12 + $0x1b8] sm:$0xff]
    %v3320 = vld [vmem:[#allocation12 + $0x1c0] sm:$0xff]
    %v3321 = vld [vmem:[#allocation12 + $0x1c8] sm:$0xff]
    %v3322 = vld [vmem:[#allocation12 + $0x1d0] sm:$0xff]
    %v3323 = vld [vmem:[#allocation12 + $0x1d8] sm:$0xff]
    %v3324 = vld [vmem:[#allocation12 + $0x1e0] sm:$0xff]
    %v3325 = vld [vmem:[#allocation12 + $0x1e8] sm:$0xff]
    %v3326 = vld [vmem:[#allocation12 + $0x1f0] sm:$0xff]
    %v3327 = vld [vmem:[#allocation12 + $0x1f8] sm:$0xff]
    %3328 = vmatprep.subr.mxu0 %v3325
    %3329 = vmatpush1.msra.mxu0 %v3324
    %3330 = vmatprep.subr.mxu0 %v3321
    %3331 = vmatpush1.msra.mxu0 %v3320
    %3332 = vmatprep.subr.mxu0 %v3317
    %3333 = vmatpush1.msra.mxu0 %v3316
    %3334 = vmatprep.subr.mxu0 %v3313
    %3335 = vmatpush1.msra.mxu0 %v3312
    %3336 = vmatprep.subr.mxu0 %v3309
    %3337 = vmatpush1.msra.mxu0 %v3308
    %3338 = vmatprep.subr.mxu0 %v3305
    %3339 = vmatpush1.msra.mxu0 %v3304
    %3340 = vmatprep.subr.mxu0 %v3301
    %3341 = vmatpush1.msra.mxu0 %v3300
    %3342 = vmatprep.subr.mxu0 %v3297
    %3343 = vmatpush1.msra.mxu0 %v3296
    %3344 = vmatprep.subr.mxu0 %v3293
    %3345 = vmatpush1.msra.mxu0 %v3292
    %3346 = vmatprep.subr.mxu0 %v3289
    %3347 = vmatpush1.msra.mxu0 %v3288
    %3348 = vmatprep.subr.mxu0 %v3285
    %3349 = vmatpush1.msra.mxu0 %v3284
    %3350 = vmatprep.subr.mxu0 %v3281
    %3351 = vmatpush1.msra.mxu0 %v3280
    %3352 = vmatprep.subr.mxu0 %v3277
    %3353 = vmatpush1.msra.mxu0 %v3276
    %3354 = vmatprep.subr.mxu0 %v3273
    %3355 = vmatpush1.msra.mxu0 %v3272
    %3356 = vmatprep.subr.mxu0 %v3269
    %3357 = vmatpush1.msra.mxu0 %v3268
    %3358 = vmatprep.subr.mxu0 %v3265
    %3359 = vmatpush1.msra.mxu0 %v3264
    %3360 = vmatprep.subr.mxu0 0.0
    %3361 = vmatpush2.msra.mxu0 0.0
    %3362 = vmatprep.subr.mxu0 0.0
    %3363 = vmatpush2.msra.mxu0 0.0
    %3364 = vmatprep.subr.mxu0 0.0
    %3365 = vmatpush2.msra.mxu0 0.0
    %3366 = vmatprep.subr.mxu0 0.0
    %3367 = vmatpush2.msra.mxu0 0.0
    %3368 = vmatprep.subr.mxu0 0.0
    %3369 = vmatpush2.msra.mxu0 0.0
    %3370 = vmatprep.subr.mxu0 0.0
    %3371 = vmatpush2.msra.mxu0 0.0
    %3372 = vmatprep.subr.mxu0 0.0
    %3373 = vmatpush2.msra.mxu0 0.0
    %3374 = vmatprep.subr.mxu0 0.0
    %3375 = vmatpush2.msra.mxu0 0.0
    %3376 = vmatprep.subr.mxu0 0.0
    %3377 = vmatpush2.msra.mxu0 0.0
    %3378 = vmatprep.subr.mxu0 0.0
    %3379 = vmatpush2.msra.mxu0 0.0
    %3380 = vmatprep.subr.mxu0 0.0
    %3381 = vmatpush2.msra.mxu0 0.0
    %3382 = vmatprep.subr.mxu0 0.0
    %3383 = vmatpush2.msra.mxu0 0.0
    %3384 = vmatprep.subr.mxu0 0.0
    %3385 = vmatpush2.msra.mxu0 0.0
    %3386 = vmatprep.subr.mxu0 0.0
    %3387 = vmatpush2.msra.mxu0 0.0
    %3388 = vmatprep.subr.mxu0 0.0
    %3389 = vmatpush2.msra.mxu0 0.0
    %3390 = vmatprep.subr.mxu0 0.0
    %3391 = vmatpush2.msra.mxu0 0.0
    %3392 = vmatprep.mubr.f32.mxu0 0.0
    %3393 = vmatmul.mubr.f32.gmra.mxu0 %v3174
    %v3394 = vpop.f32.mrf.mxu0
    %v3395 = vadd.f32 0.0, %v3394
    %v3396 = vpop.f32.mrf.mxu0
    %v3397 = vadd.f32 0.0, %v3396
    %3398 = vdwg.mxu0
    %3399 = vmatprep.subr.mxu0 %v3327
    %3400 = vmatpush1.msra.mxu0 %v3326
    %3401 = vmatprep.subr.mxu0 %v3323
    %3402 = vmatpush1.msra.mxu0 %v3322
    %3403 = vmatprep.subr.mxu0 %v3319
    %3404 = vmatpush1.msra.mxu0 %v3318
    %3405 = vmatprep.subr.mxu0 %v3315
    %3406 = vmatpush1.msra.mxu0 %v3314
    %3407 = vmatprep.subr.mxu0 %v3311
    %3408 = vmatpush1.msra.mxu0 %v3310
    %3409 = vmatprep.subr.mxu0 %v3307
    %3410 = vmatpush1.msra.mxu0 %v3306
    %3411 = vmatprep.subr.mxu0 %v3303
    %3412 = vmatpush1.msra.mxu0 %v3302
    %3413 = vmatprep.subr.mxu0 %v3299
    %3414 = vmatpush1.msra.mxu0 %v3298
    %3415 = vmatprep.subr.mxu0 %v3295
    %3416 = vmatpush1.msra.mxu0 %v3294
    %3417 = vmatprep.subr.mxu0 %v3291
    %3418 = vmatpush1.msra.mxu0 %v3290
    %3419 = vmatprep.subr.mxu0 %v3287
    %3420 = vmatpush1.msra.mxu0 %v3286
    %3421 = vmatprep.subr.mxu0 %v3283
    %3422 = vmatpush1.msra.mxu0 %v3282
    %3423 = vmatprep.subr.mxu0 %v3279
    %3424 = vmatpush1.msra.mxu0 %v3278
    %3425 = vmatprep.subr.mxu0 %v3275
    %3426 = vmatpush1.msra.mxu0 %v3274
    %3427 = vmatprep.subr.mxu0 %v3271
    %3428 = vmatpush1.msra.mxu0 %v3270
    %3429 = vmatprep.subr.mxu0 %v3267
    %3430 = vmatpush1.msra.mxu0 %v3266
    %3431 = vmatprep.subr.mxu0 0.0
    %3432 = vmatpush2.msra.mxu0 0.0
    %3433 = vmatprep.subr.mxu0 0.0
    %3434 = vmatpush2.msra.mxu0 0.0
    %3435 = vmatprep.subr.mxu0 0.0
    %3436 = vmatpush2.msra.mxu0 0.0
    %3437 = vmatprep.subr.mxu0 0.0
    %3438 = vmatpush2.msra.mxu0 0.0
    %3439 = vmatprep.subr.mxu0 0.0
    %3440 = vmatpush2.msra.mxu0 0.0
    %3441 = vmatprep.subr.mxu0 0.0
    %3442 = vmatpush2.msra.mxu0 0.0
    %3443 = vmatprep.subr.mxu0 0.0
    %3444 = vmatpush2.msra.mxu0 0.0
    %3445 = vmatprep.subr.mxu0 0.0
    %3446 = vmatpush2.msra.mxu0 0.0
    %3447 = vmatprep.subr.mxu0 0.0
    %3448 = vmatpush2.msra.mxu0 0.0
    %3449 = vmatprep.subr.mxu0 0.0
    %3450 = vmatpush2.msra.mxu0 0.0
    %3451 = vmatprep.subr.mxu0 0.0
    %3452 = vmatpush2.msra.mxu0 0.0
    %3453 = vmatprep.subr.mxu0 0.0
    %3454 = vmatpush2.msra.mxu0 0.0
    %3455 = vmatprep.subr.mxu0 0.0
    %3456 = vmatpush2.msra.mxu0 0.0
    %3457 = vmatprep.subr.mxu0 0.0
    %3458 = vmatpush2.msra.mxu0 0.0
    %3459 = vmatprep.subr.mxu0 0.0
    %3460 = vmatpush2.msra.mxu0 0.0
    %3461 = vmatprep.subr.mxu0 0.0
    %3462 = vmatpush2.msra.mxu0 0.0
    %3463 = vmatprep.mubr.f32.mxu0 0.0
    %3464 = vmatmul.mubr.f32.gmra.mxu0 %v3174
    %v3465 = vpop.f32.mrf.mxu0
    %v3466 = vadd.f32 0.0, %v3465
    %v3467 = vpop.f32.mrf.mxu0
    %v3468 = vadd.f32 0.0, %v3467
    %3469 = vdwg.mxu0
    %p3470 = scmp.lt.s32.totalorder %s3263, 0
    %s3471 = ssub.s32 0, %s3263
    %s3472 = scalar_select %p3470, %s3471, %s3263
    %s3473 = sand.u32 %s3472, 1
    %s3474 = ssub.s32 0, %s3473
    %s3475 = scalar_select %p3470, %s3474, %s3473
    %p3476 = scmp.ne.s32.totalorder %s3475, 0
    %p3477 = scmp.lt.s32.totalorder %s3475, 0
    %p3478 = pnand %p3477, %p3476
    %p3479 = pneg %p3478
    %s3480 = sadd.s32 %s3475, 2
    %s3481 = scalar_select %p3479, %s3480, %s3475
    %s3482 = smul.u32 %s3481, 4
    %s3483 = smul.addr %s3482, 8
    %s3484 = scalar_lea.vmem [#allocation6], %s3483
    %v3485 = vld [vmem:[%s3484] sm:$0xff]
    %v3486 = vld [vmem:[%s3484 + $0x8] sm:$0xff]
    %v3487 = vld [vmem:[%s3484 + $0x10] sm:$0xff]
    %v3488 = vld [vmem:[%s3484 + $0x18] sm:$0xff]
    %v3489 = vld [vmem:[#allocation9] sm:$0xff]
    %v3490 = vld [vmem:[#allocation9 + $0x8] sm:$0xff]
    %v3491 = vld [vmem:[#allocation9 + $0x10] sm:$0xff]
    %v3492 = vld [vmem:[#allocation9 + $0x18] sm:$0xff]
    %v3493 = vld [vmem:[#allocation9 + $0x20] sm:$0xff]
    %v3494 = vld [vmem:[#allocation9 + $0x28] sm:$0xff]
    %v3495 = vld [vmem:[#allocation9 + $0x30] sm:$0xff]
    %v3496 = vld [vmem:[#allocation9 + $0x38] sm:$0xff]
    %v3497 = vld [vmem:[#allocation9 + $0x40] sm:$0xff]
    %v3498 = vld [vmem:[#allocation9 + $0x48] sm:$0xff]
    %v3499 = vld [vmem:[#allocation9 + $0x50] sm:$0xff]
    %v3500 = vld [vmem:[#allocation9 + $0x58] sm:$0xff]
    %v3501 = vld [vmem:[#allocation9 + $0x60] sm:$0xff]
    %v3502 = vld [vmem:[#allocation9 + $0x68] sm:$0xff]
    %v3503 = vld [vmem:[#allocation9 + $0x70] sm:$0xff]
    %v3504 = vld [vmem:[#allocation9 + $0x78] sm:$0xff]
    %v3505 = vld [vmem:[#allocation9 + $0x80] sm:$0xff]
    %v3506 = vld [vmem:[#allocation9 + $0x88] sm:$0xff]
    %v3507 = vld [vmem:[#allocation9 + $0x90] sm:$0xff]
    %v3508 = vld [vmem:[#allocation9 + $0x98] sm:$0xff]
    %v3509 = vld [vmem:[#allocation9 + $0xa0] sm:$0xff]
    %v3510 = vld [vmem:[#allocation9 + $0xa8] sm:$0xff]
    %v3511 = vld [vmem:[#allocation9 + $0xb0] sm:$0xff]
    %v3512 = vld [vmem:[#allocation9 + $0xb8] sm:$0xff]
    %v3513 = vld [vmem:[#allocation9 + $0xc0] sm:$0xff]
    %v3514 = vld [vmem:[#allocation9 + $0xc8] sm:$0xff]
    %v3515 = vld [vmem:[#allocation9 + $0xd0] sm:$0xff]
    %v3516 = vld [vmem:[#allocation9 + $0xd8] sm:$0xff]
    %v3517 = vld [vmem:[#allocation9 + $0xe0] sm:$0xff]
    %v3518 = vld [vmem:[#allocation9 + $0xe8] sm:$0xff]
    %v3519 = vld [vmem:[#allocation9 + $0xf0] sm:$0xff]
    %v3520 = vld [vmem:[#allocation9 + $0xf8] sm:$0xff]
    %v3521 = vld [vmem:[#allocation9 + $0x100] sm:$0xff]
    %v3522 = vld [vmem:[#allocation9 + $0x108] sm:$0xff]
    %v3523 = vld [vmem:[#allocation9 + $0x110] sm:$0xff]
    %v3524 = vld [vmem:[#allocation9 + $0x118] sm:$0xff]
    %v3525 = vld [vmem:[#allocation9 + $0x120] sm:$0xff]
    %v3526 = vld [vmem:[#allocation9 + $0x128] sm:$0xff]
    %v3527 = vld [vmem:[#allocation9 + $0x130] sm:$0xff]
    %v3528 = vld [vmem:[#allocation9 + $0x138] sm:$0xff]
    %v3529 = vld [vmem:[#allocation9 + $0x140] sm:$0xff]
    %v3530 = vld [vmem:[#allocation9 + $0x148] sm:$0xff]
    %v3531 = vld [vmem:[#allocation9 + $0x150] sm:$0xff]
    %v3532 = vld [vmem:[#allocation9 + $0x158] sm:$0xff]
    %v3533 = vld [vmem:[#allocation9 + $0x160] sm:$0xff]
    %v3534 = vld [vmem:[#allocation9 + $0x168] sm:$0xff]
    %v3535 = vld [vmem:[#allocation9 + $0x170] sm:$0xff]
    %v3536 = vld [vmem:[#allocation9 + $0x178] sm:$0xff]
    %v3537 = vld [vmem:[#allocation9 + $0x180] sm:$0xff]
    %v3538 = vld [vmem:[#allocation9 + $0x188] sm:$0xff]
    %v3539 = vld [vmem:[#allocation9 + $0x190] sm:$0xff]
    %v3540 = vld [vmem:[#allocation9 + $0x198] sm:$0xff]
    %v3541 = vld [vmem:[#allocation9 + $0x1a0] sm:$0xff]
    %v3542 = vld [vmem:[#allocation9 + $0x1a8] sm:$0xff]
    %v3543 = vld [vmem:[#allocation9 + $0x1b0] sm:$0xff]
    %v3544 = vld [vmem:[#allocation9 + $0x1b8] sm:$0xff]
    %v3545 = vld [vmem:[#allocation9 + $0x1c0] sm:$0xff]
    %v3546 = vld [vmem:[#allocation9 + $0x1c8] sm:$0xff]
    %v3547 = vld [vmem:[#allocation9 + $0x1d0] sm:$0xff]
    %v3548 = vld [vmem:[#allocation9 + $0x1d8] sm:$0xff]
    %v3549 = vld [vmem:[#allocation9 + $0x1e0] sm:$0xff]
    %v3550 = vld [vmem:[#allocation9 + $0x1e8] sm:$0xff]
    %v3551 = vld [vmem:[#allocation9 + $0x1f0] sm:$0xff]
    %v3552 = vld [vmem:[#allocation9 + $0x1f8] sm:$0xff]
    %3553 = vmatprep.subr.mxu0 %v3550
    %3554 = vmatpush1.msra.mxu0 %v3549
    %3555 = vmatprep.subr.mxu0 %v3546
    %3556 = vmatpush1.msra.mxu0 %v3545
    %3557 = vmatprep.subr.mxu0 %v3542
    %3558 = vmatpush1.msra.mxu0 %v3541
    %3559 = vmatprep.subr.mxu0 %v3538
    %3560 = vmatpush1.msra.mxu0 %v3537
    %3561 = vmatprep.subr.mxu0 %v3534
    %3562 = vmatpush1.msra.mxu0 %v3533
    %3563 = vmatprep.subr.mxu0 %v3530
    %3564 = vmatpush1.msra.mxu0 %v3529
    %3565 = vmatprep.subr.mxu0 %v3526
    %3566 = vmatpush1.msra.mxu0 %v3525
    %3567 = vmatprep.subr.mxu0 %v3522
    %3568 = vmatpush1.msra.mxu0 %v3521
    %3569 = vmatprep.subr.mxu0 %v3518
    %3570 = vmatpush1.msra.mxu0 %v3517
    %3571 = vmatprep.subr.mxu0 %v3514
    %3572 = vmatpush1.msra.mxu0 %v3513
    %3573 = vmatprep.subr.mxu0 %v3510
    %3574 = vmatpush1.msra.mxu0 %v3509
    %3575 = vmatprep.subr.mxu0 %v3506
    %3576 = vmatpush1.msra.mxu0 %v3505
    %3577 = vmatprep.subr.mxu0 %v3502
    %3578 = vmatpush1.msra.mxu0 %v3501
    %3579 = vmatprep.subr.mxu0 %v3498
    %3580 = vmatpush1.msra.mxu0 %v3497
    %3581 = vmatprep.subr.mxu0 %v3494
    %3582 = vmatpush1.msra.mxu0 %v3493
    %3583 = vmatprep.subr.mxu0 %v3490
    %3584 = vmatpush1.msra.mxu0 %v3489
    %3585 = vmatprep.subr.mxu0 0.0
    %3586 = vmatpush2.msra.mxu0 0.0
    %3587 = vmatprep.subr.mxu0 0.0
    %3588 = vmatpush2.msra.mxu0 0.0
    %3589 = vmatprep.subr.mxu0 0.0
    %3590 = vmatpush2.msra.mxu0 0.0
    %3591 = vmatprep.subr.mxu0 0.0
    %3592 = vmatpush2.msra.mxu0 0.0
    %3593 = vmatprep.subr.mxu0 0.0
    %3594 = vmatpush2.msra.mxu0 0.0
    %3595 = vmatprep.subr.mxu0 0.0
    %3596 = vmatpush2.msra.mxu0 0.0
    %3597 = vmatprep.subr.mxu0 0.0
    %3598 = vmatpush2.msra.mxu0 0.0
    %3599 = vmatprep.subr.mxu0 0.0
    %3600 = vmatpush2.msra.mxu0 0.0
    %3601 = vmatprep.subr.mxu0 0.0
    %3602 = vmatpush2.msra.mxu0 0.0
    %3603 = vmatprep.subr.mxu0 0.0
    %3604 = vmatpush2.msra.mxu0 0.0
    %3605 = vmatprep.subr.mxu0 0.0
    %3606 = vmatpush2.msra.mxu0 0.0
    %3607 = vmatprep.subr.mxu0 0.0
    %3608 = vmatpush2.msra.mxu0 0.0
    %3609 = vmatprep.subr.mxu0 0.0
    %3610 = vmatpush2.msra.mxu0 0.0
    %3611 = vmatprep.subr.mxu0 0.0
    %3612 = vmatpush2.msra.mxu0 0.0
    %3613 = vmatprep.subr.mxu0 0.0
    %3614 = vmatpush2.msra.mxu0 0.0
    %3615 = vmatprep.subr.mxu0 0.0
    %3616 = vmatpush2.msra.mxu0 0.0
    %3617 = vmatprep.mubr.f32.mxu0 0.0
    %3618 = vmatmul.mubr.f32.gmra.mxu0 %v2940
    %v3619 = vpop.f32.mrf.mxu0
    %v3620 = vadd.f32 0.0, %v3619
    %v3621 = vpop.f32.mrf.mxu0
    %v3622 = vadd.f32 0.0, %v3621
    %3623 = vdwg.mxu0
    %3624 = vmatprep.subr.mxu0 %v3552
    %3625 = vmatpush1.msra.mxu0 %v3551
    %3626 = vmatprep.subr.mxu0 %v3548
    %3627 = vmatpush1.msra.mxu0 %v3547
    %3628 = vmatprep.subr.mxu0 %v3544
    %3629 = vmatpush1.msra.mxu0 %v3543
    %3630 = vmatprep.subr.mxu0 %v3540
    %3631 = vmatpush1.msra.mxu0 %v3539
    %3632 = vmatprep.subr.mxu0 %v3536
    %3633 = vmatpush1.msra.mxu0 %v3535
    %3634 = vmatprep.subr.mxu0 %v3532
    %3635 = vmatpush1.msra.mxu0 %v3531
    %3636 = vmatprep.subr.mxu0 %v3528
    %3637 = vmatpush1.msra.mxu0 %v3527
    %3638 = vmatprep.subr.mxu0 %v3524
    %3639 = vmatpush1.msra.mxu0 %v3523
    %3640 = vmatprep.subr.mxu0 %v3520
    %3641 = vmatpush1.msra.mxu0 %v3519
    %3642 = vmatprep.subr.mxu0 %v3516
    %3643 = vmatpush1.msra.mxu0 %v3515
    %3644 = vmatprep.subr.mxu0 %v3512
    %3645 = vmatpush1.msra.mxu0 %v3511
    %3646 = vmatprep.subr.mxu0 %v3508
    %3647 = vmatpush1.msra.mxu0 %v3507
    %3648 = vmatprep.subr.mxu0 %v3504
    %3649 = vmatpush1.msra.mxu0 %v3503
    %3650 = vmatprep.subr.mxu0 %v3500
    %3651 = vmatpush1.msra.mxu0 %v3499
    %3652 = vmatprep.subr.mxu0 %v3496
    %3653 = vmatpush1.msra.mxu0 %v3495
    %3654 = vmatprep.subr.mxu0 %v3492
    %3655 = vmatpush1.msra.mxu0 %v3491
    %3656 = vmatprep.subr.mxu0 0.0
    %3657 = vmatpush2.msra.mxu0 0.0
    %3658 = vmatprep.subr.mxu0 0.0
    %3659 = vmatpush2.msra.mxu0 0.0
    %3660 = vmatprep.subr.mxu0 0.0
    %3661 = vmatpush2.msra.mxu0 0.0
    %3662 = vmatprep.subr.mxu0 0.0
    %3663 = vmatpush2.msra.mxu0 0.0
    %3664 = vmatprep.subr.mxu0 0.0
    %3665 = vmatpush2.msra.mxu0 0.0
    %3666 = vmatprep.subr.mxu0 0.0
    %3667 = vmatpush2.msra.mxu0 0.0
    %3668 = vmatprep.subr.mxu0 0.0
    %3669 = vmatpush2.msra.mxu0 0.0
    %3670 = vmatprep.subr.mxu0 0.0
    %3671 = vmatpush2.msra.mxu0 0.0
    %3672 = vmatprep.subr.mxu0 0.0
    %3673 = vmatpush2.msra.mxu0 0.0
    %3674 = vmatprep.subr.mxu0 0.0
    %3675 = vmatpush2.msra.mxu0 0.0
    %3676 = vmatprep.subr.mxu0 0.0
    %3677 = vmatpush2.msra.mxu0 0.0
    %3678 = vmatprep.subr.mxu0 0.0
    %3679 = vmatpush2.msra.mxu0 0.0
    %3680 = vmatprep.subr.mxu0 0.0
    %3681 = vmatpush2.msra.mxu0 0.0
    %3682 = vmatprep.subr.mxu0 0.0
    %3683 = vmatpush2.msra.mxu0 0.0
    %3684 = vmatprep.subr.mxu0 0.0
    %3685 = vmatpush2.msra.mxu0 0.0
    %3686 = vmatprep.subr.mxu0 0.0
    %3687 = vmatpush2.msra.mxu0 0.0
    %3688 = vmatprep.mubr.f32.mxu0 0.0
    %3689 = vmatmul.mubr.f32.gmra.mxu0 %v2940
    %v3690 = vpop.f32.mrf.mxu0
    %v3691 = vadd.f32 0.0, %v3690
    %v3692 = vpop.f32.mrf.mxu0
    %v3693 = vadd.f32 0.0, %v3692
    %3694 = vdwg.mxu0
    %v3695 = vadd.f32 %v3485, %v3620
    %v3696 = vadd.f32 %v3486, %v3622
    %v3697 = vadd.f32 %v3487, %v3691
    %v3698 = vadd.f32 %v3488, %v3693
    %v3699 = vxor.u32 %v3695, 2147483648
    %v3700 = vmul.f32 %v3699, 1.442695
    %v3701 = vpow.pop %v3700
    %v3702 = vadd.f32 %v3701, 1.0
    %v3703 = vrcp.pop %v3702
    %v3704 = vmul.f32 1.0, %v3703
    %v3705 = vxor.u32 %v3696, 2147483648
    %v3706 = vmul.f32 %v3705, 1.442695
    %v3707 = vpow.pop %v3706
    %v3708 = vadd.f32 %v3707, 1.0
    %v3709 = vrcp.pop %v3708
    %v3710 = vmul.f32 1.0, %v3709
    %v3711 = vtanh.pop %v3697
    %v3712 = vxor.u32 %v3698, 2147483648
    %v3713 = vmul.f32 %v3712, 1.442695
    %v3714 = vpow.pop %v3713
    %v3715 = vadd.f32 %v3714, 1.0
    %v3716 = vrcp.pop %v3715
    %v3717 = vmul.f32 1.0, %v3716
    %v3718 = vmul.f32 %v3710, %v2938
    %v3719 = vmul.f32 %v3704, %v3711
    %v3720 = vadd.f32 %v3718, %v3719
    %v3721 = vtanh.pop %v3720
    %v3722 = vmul.f32 %v3717, %v3721
    %v3723 = vld [vmem:[#allocation11] sm:$0xff]
    %v3724 = vld [vmem:[#allocation11 + $0x8] sm:$0xff]
    %v3725 = vld [vmem:[#allocation11 + $0x10] sm:$0xff]
    %v3726 = vld [vmem:[#allocation11 + $0x18] sm:$0xff]
    %v3727 = vld [vmem:[#allocation11 + $0x20] sm:$0xff]
    %v3728 = vld [vmem:[#allocation11 + $0x28] sm:$0xff]
    %v3729 = vld [vmem:[#allocation11 + $0x30] sm:$0xff]
    %v3730 = vld [vmem:[#allocation11 + $0x38] sm:$0xff]
    %v3731 = vld [vmem:[#allocation11 + $0x40] sm:$0xff]
    %v3732 = vld [vmem:[#allocation11 + $0x48] sm:$0xff]
    %v3733 = vld [vmem:[#allocation11 + $0x50] sm:$0xff]
    %v3734 = vld [vmem:[#allocation11 + $0x58] sm:$0xff]
    %v3735 = vld [vmem:[#allocation11 + $0x60] sm:$0xff]
    %v3736 = vld [vmem:[#allocation11 + $0x68] sm:$0xff]
    %v3737 = vld [vmem:[#allocation11 + $0x70] sm:$0xff]
    %v3738 = vld [vmem:[#allocation11 + $0x78] sm:$0xff]
    %v3739 = vld [vmem:[#allocation11 + $0x80] sm:$0xff]
    %v3740 = vld [vmem:[#allocation11 + $0x88] sm:$0xff]
    %v3741 = vld [vmem:[#allocation11 + $0x90] sm:$0xff]
    %v3742 = vld [vmem:[#allocation11 + $0x98] sm:$0xff]
    %v3743 = vld [vmem:[#allocation11 + $0xa0] sm:$0xff]
    %v3744 = vld [vmem:[#allocation11 + $0xa8] sm:$0xff]
    %v3745 = vld [vmem:[#allocation11 + $0xb0] sm:$0xff]
    %v3746 = vld [vmem:[#allocation11 + $0xb8] sm:$0xff]
    %v3747 = vld [vmem:[#allocation11 + $0xc0] sm:$0xff]
    %v3748 = vld [vmem:[#allocation11 + $0xc8] sm:$0xff]
    %v3749 = vld [vmem:[#allocation11 + $0xd0] sm:$0xff]
    %v3750 = vld [vmem:[#allocation11 + $0xd8] sm:$0xff]
    %v3751 = vld [vmem:[#allocation11 + $0xe0] sm:$0xff]
    %v3752 = vld [vmem:[#allocation11 + $0xe8] sm:$0xff]
    %v3753 = vld [vmem:[#allocation11 + $0xf0] sm:$0xff]
    %v3754 = vld [vmem:[#allocation11 + $0xf8] sm:$0xff]
    %v3755 = vld [vmem:[#allocation11 + $0x100] sm:$0xff]
    %v3756 = vld [vmem:[#allocation11 + $0x108] sm:$0xff]
    %v3757 = vld [vmem:[#allocation11 + $0x110] sm:$0xff]
    %v3758 = vld [vmem:[#allocation11 + $0x118] sm:$0xff]
    %v3759 = vld [vmem:[#allocation11 + $0x120] sm:$0xff]
    %v3760 = vld [vmem:[#allocation11 + $0x128] sm:$0xff]
    %v3761 = vld [vmem:[#allocation11 + $0x130] sm:$0xff]
    %v3762 = vld [vmem:[#allocation11 + $0x138] sm:$0xff]
    %v3763 = vld [vmem:[#allocation11 + $0x140] sm:$0xff]
    %v3764 = vld [vmem:[#allocation11 + $0x148] sm:$0xff]
    %v3765 = vld [vmem:[#allocation11 + $0x150] sm:$0xff]
    %v3766 = vld [vmem:[#allocation11 + $0x158] sm:$0xff]
    %v3767 = vld [vmem:[#allocation11 + $0x160] sm:$0xff]
    %v3768 = vld [vmem:[#allocation11 + $0x168] sm:$0xff]
    %v3769 = vld [vmem:[#allocation11 + $0x170] sm:$0xff]
    %v3770 = vld [vmem:[#allocation11 + $0x178] sm:$0xff]
    %v3771 = vld [vmem:[#allocation11 + $0x180] sm:$0xff]
    %v3772 = vld [vmem:[#allocation11 + $0x188] sm:$0xff]
    %v3773 = vld [vmem:[#allocation11 + $0x190] sm:$0xff]
    %v3774 = vld [vmem:[#allocation11 + $0x198] sm:$0xff]
    %v3775 = vld [vmem:[#allocation11 + $0x1a0] sm:$0xff]
    %v3776 = vld [vmem:[#allocation11 + $0x1a8] sm:$0xff]
    %v3777 = vld [vmem:[#allocation11 + $0x1b0] sm:$0xff]
    %v3778 = vld [vmem:[#allocation11 + $0x1b8] sm:$0xff]
    %v3779 = vld [vmem:[#allocation11 + $0x1c0] sm:$0xff]
    %v3780 = vld [vmem:[#allocation11 + $0x1c8] sm:$0xff]
    %v3781 = vld [vmem:[#allocation11 + $0x1d0] sm:$0xff]
    %v3782 = vld [vmem:[#allocation11 + $0x1d8] sm:$0xff]
    %v3783 = vld [vmem:[#allocation11 + $0x1e0] sm:$0xff]
    %v3784 = vld [vmem:[#allocation11 + $0x1e8] sm:$0xff]
    %v3785 = vld [vmem:[#allocation11 + $0x1f0] sm:$0xff]
    %v3786 = vld [vmem:[#allocation11 + $0x1f8] sm:$0xff]
    %3787 = vmatprep.subr.mxu0 %v3784
    %3788 = vmatpush1.msra.mxu0 %v3783
    %3789 = vmatprep.subr.mxu0 %v3780
    %3790 = vmatpush1.msra.mxu0 %v3779
    %3791 = vmatprep.subr.mxu0 %v3776
    %3792 = vmatpush1.msra.mxu0 %v3775
    %3793 = vmatprep.subr.mxu0 %v3772
    %3794 = vmatpush1.msra.mxu0 %v3771
    %3795 = vmatprep.subr.mxu0 %v3768
    %3796 = vmatpush1.msra.mxu0 %v3767
    %3797 = vmatprep.subr.mxu0 %v3764
    %3798 = vmatpush1.msra.mxu0 %v3763
    %3799 = vmatprep.subr.mxu0 %v3760
    %3800 = vmatpush1.msra.mxu0 %v3759
    %3801 = vmatprep.subr.mxu0 %v3756
    %3802 = vmatpush1.msra.mxu0 %v3755
    %3803 = vmatprep.subr.mxu0 %v3752
    %3804 = vmatpush1.msra.mxu0 %v3751
    %3805 = vmatprep.subr.mxu0 %v3748
    %3806 = vmatpush1.msra.mxu0 %v3747
    %3807 = vmatprep.subr.mxu0 %v3744
    %3808 = vmatpush1.msra.mxu0 %v3743
    %3809 = vmatprep.subr.mxu0 %v3740
    %3810 = vmatpush1.msra.mxu0 %v3739
    %3811 = vmatprep.subr.mxu0 %v3736
    %3812 = vmatpush1.msra.mxu0 %v3735
    %3813 = vmatprep.subr.mxu0 %v3732
    %3814 = vmatpush1.msra.mxu0 %v3731
    %3815 = vmatprep.subr.mxu0 %v3728
    %3816 = vmatpush1.msra.mxu0 %v3727
    %3817 = vmatprep.subr.mxu0 %v3724
    %3818 = vmatpush1.msra.mxu0 %v3723
    %3819 = vmatprep.subr.mxu0 0.0
    %3820 = vmatpush2.msra.mxu0 0.0
    %3821 = vmatprep.subr.mxu0 0.0
    %3822 = vmatpush2.msra.mxu0 0.0
    %3823 = vmatprep.subr.mxu0 0.0
    %3824 = vmatpush2.msra.mxu0 0.0
    %3825 = vmatprep.subr.mxu0 0.0
    %3826 = vmatpush2.msra.mxu0 0.0
    %3827 = vmatprep.subr.mxu0 0.0
    %3828 = vmatpush2.msra.mxu0 0.0
    %3829 = vmatprep.subr.mxu0 0.0
    %3830 = vmatpush2.msra.mxu0 0.0
    %3831 = vmatprep.subr.mxu0 0.0
    %3832 = vmatpush2.msra.mxu0 0.0
    %3833 = vmatprep.subr.mxu0 0.0
    %3834 = vmatpush2.msra.mxu0 0.0
    %3835 = vmatprep.subr.mxu0 0.0
    %3836 = vmatpush2.msra.mxu0 0.0
    %3837 = vmatprep.subr.mxu0 0.0
    %3838 = vmatpush2.msra.mxu0 0.0
    %3839 = vmatprep.subr.mxu0 0.0
    %3840 = vmatpush2.msra.mxu0 0.0
    %3841 = vmatprep.subr.mxu0 0.0
    %3842 = vmatpush2.msra.mxu0 0.0
    %3843 = vmatprep.subr.mxu0 0.0
    %3844 = vmatpush2.msra.mxu0 0.0
    %3845 = vmatprep.subr.mxu0 0.0
    %3846 = vmatpush2.msra.mxu0 0.0
    %3847 = vmatprep.subr.mxu0 0.0
    %3848 = vmatpush2.msra.mxu0 0.0
    %3849 = vmatprep.subr.mxu0 0.0
    %3850 = vmatpush2.msra.mxu0 0.0
    %3851 = vmatprep.mubr.f32.mxu0 0.0
    %3852 = vmatmul.mubr.f32.gmra.mxu0 %v3722
    %v3853 = vpop.f32.mrf.mxu0
    %v3854 = vadd.f32 %v3395, %v3853
    %v3855 = vpop.f32.mrf.mxu0
    %v3856 = vadd.f32 %v3397, %v3855
    %3857 = vdwg.mxu0
    %3858 = vmatprep.subr.mxu0 %v3786
    %3859 = vmatpush1.msra.mxu0 %v3785
    %3860 = vmatprep.subr.mxu0 %v3782
    %3861 = vmatpush1.msra.mxu0 %v3781
    %3862 = vmatprep.subr.mxu0 %v3778
    %3863 = vmatpush1.msra.mxu0 %v3777
    %3864 = vmatprep.subr.mxu0 %v3774
    %3865 = vmatpush1.msra.mxu0 %v3773
    %3866 = vmatprep.subr.mxu0 %v3770
    %3867 = vmatpush1.msra.mxu0 %v3769
    %3868 = vmatprep.subr.mxu0 %v3766
    %3869 = vmatpush1.msra.mxu0 %v3765
    %3870 = vmatprep.subr.mxu0 %v3762
    %3871 = vmatpush1.msra.mxu0 %v3761
    %3872 = vmatprep.subr.mxu0 %v3758
    %3873 = vmatpush1.msra.mxu0 %v3757
    %3874 = vmatprep.subr.mxu0 %v3754
    %3875 = vmatpush1.msra.mxu0 %v3753
    %3876 = vmatprep.subr.mxu0 %v3750
    %3877 = vmatpush1.msra.mxu0 %v3749
    %3878 = vmatprep.subr.mxu0 %v3746
    %3879 = vmatpush1.msra.mxu0 %v3745
    %3880 = vmatprep.subr.mxu0 %v3742
    %3881 = vmatpush1.msra.mxu0 %v3741
    %3882 = vmatprep.subr.mxu0 %v3738
    %3883 = vmatpush1.msra.mxu0 %v3737
    %3884 = vmatprep.subr.mxu0 %v3734
    %3885 = vmatpush1.msra.mxu0 %v3733
    %3886 = vmatprep.subr.mxu0 %v3730
    %3887 = vmatpush1.msra.mxu0 %v3729
    %3888 = vmatprep.subr.mxu0 %v3726
    %3889 = vmatpush1.msra.mxu0 %v3725
    %3890 = vmatprep.subr.mxu0 0.0
    %3891 = vmatpush2.msra.mxu0 0.0
    %3892 = vmatprep.subr.mxu0 0.0
    %3893 = vmatpush2.msra.mxu0 0.0
    %3894 = vmatprep.subr.mxu0 0.0
    %3895 = vmatpush2.msra.mxu0 0.0
    %3896 = vmatprep.subr.mxu0 0.0
    %3897 = vmatpush2.msra.mxu0 0.0
    %3898 = vmatprep.subr.mxu0 0.0
    %3899 = vmatpush2.msra.mxu0 0.0
    %3900 = vmatprep.subr.mxu0 0.0
    %3901 = vmatpush2.msra.mxu0 0.0
    %3902 = vmatprep.subr.mxu0 0.0
    %3903 = vmatpush2.msra.mxu0 0.0
    %3904 = vmatprep.subr.mxu0 0.0
    %3905 = vmatpush2.msra.mxu0 0.0
    %3906 = vmatprep.subr.mxu0 0.0
    %3907 = vmatpush2.msra.mxu0 0.0
    %3908 = vmatprep.subr.mxu0 0.0
    %3909 = vmatpush2.msra.mxu0 0.0
    %3910 = vmatprep.subr.mxu0 0.0
    %3911 = vmatpush2.msra.mxu0 0.0
    %3912 = vmatprep.subr.mxu0 0.0
    %3913 = vmatpush2.msra.mxu0 0.0
    %3914 = vmatprep.subr.mxu0 0.0
    %3915 = vmatpush2.msra.mxu0 0.0
    %3916 = vmatprep.subr.mxu0 0.0
    %3917 = vmatpush2.msra.mxu0 0.0
    %3918 = vmatprep.subr.mxu0 0.0
    %3919 = vmatpush2.msra.mxu0 0.0
    %3920 = vmatprep.subr.mxu0 0.0
    %3921 = vmatpush2.msra.mxu0 0.0
    %3922 = vmatprep.mubr.f32.mxu0 0.0
    %3923 = vmatmul.mubr.f32.gmra.mxu0 %v3722
    %v3924 = vpop.f32.mrf.mxu0
    %v3925 = vadd.f32 %v3466, %v3924
    %v3926 = vpop.f32.mrf.mxu0
    %v3927 = vadd.f32 %v3468, %v3926
    %3928 = vdwg.mxu0
    %v3929 = vadd.f32 %v3854, %v108
    %v3930 = vadd.f32 %v3856, %v112
    %v3931 = vadd.f32 %v3925, %v116
    %v3932 = vadd.f32 %v3927, %v120
    %v3933 = vxor.u32 %v3929, 2147483648
    %v3934 = vmul.f32 %v3933, 1.442695
    %v3935 = vpow.pop %v3934
    %v3936 = vadd.f32 %v3935, 1.0
    %v3937 = vrcp.pop %v3936
    %v3938 = vmul.f32 1.0, %v3937
    %v3939 = vxor.u32 %v3930, 2147483648
    %v3940 = vmul.f32 %v3939, 1.442695
    %v3941 = vpow.pop %v3940
    %v3942 = vadd.f32 %v3941, 1.0
    %v3943 = vrcp.pop %v3942
    %v3944 = vmul.f32 1.0, %v3943
    %v3945 = vtanh.pop %v3931
    %v3946 = vxor.u32 %v3932, 2147483648
    %v3947 = vmul.f32 %v3946, 1.442695
    %v3948 = vpow.pop %v3947
    %v3949 = vadd.f32 %v3948, 1.0
    %v3950 = vrcp.pop %v3949
    %v3951 = vmul.f32 1.0, %v3950
    %v3952 = vmul.f32 %v3944, %v3172
    %v3953 = vmul.f32 %v3938, %v3945
    %v3954 = vadd.f32 %v3952, %v3953
    %v3955 = vtanh.pop %v3954
    %v3956 = vmul.f32 %v3951, %v3955
    %v3957 = vld [vmem:[#allocation14] sm:$0xff]
    %v3958 = vld [vmem:[#allocation14 + $0x8] sm:$0xff]
    %v3959 = vld [vmem:[#allocation14 + $0x10] sm:$0xff]
    %v3960 = vld [vmem:[#allocation14 + $0x18] sm:$0xff]
    %v3961 = vld [vmem:[#allocation14 + $0x20] sm:$0xff]
    %v3962 = vld [vmem:[#allocation14 + $0x28] sm:$0xff]
    %v3963 = vld [vmem:[#allocation14 + $0x30] sm:$0xff]
    %v3964 = vld [vmem:[#allocation14 + $0x38] sm:$0xff]
    %v3965 = vld [vmem:[#allocation14 + $0x40] sm:$0xff]
    %v3966 = vld [vmem:[#allocation14 + $0x48] sm:$0xff]
    %v3967 = vld [vmem:[#allocation14 + $0x50] sm:$0xff]
    %v3968 = vld [vmem:[#allocation14 + $0x58] sm:$0xff]
    %v3969 = vld [vmem:[#allocation14 + $0x60] sm:$0xff]
    %v3970 = vld [vmem:[#allocation14 + $0x68] sm:$0xff]
    %v3971 = vld [vmem:[#allocation14 + $0x70] sm:$0xff]
    %v3972 = vld [vmem:[#allocation14 + $0x78] sm:$0xff]
    %3973 = vmatprep.subr.mxu0 0.0
    %3974 = vmatpush1.msra.mxu0 %v3972
    %3975 = vmatprep.subr.mxu0 0.0
    %3976 = vmatpush1.msra.mxu0 %v3971
    %3977 = vmatprep.subr.mxu0 0.0
    %3978 = vmatpush1.msra.mxu0 %v3970
    %3979 = vmatprep.subr.mxu0 0.0
    %3980 = vmatpush1.msra.mxu0 %v3969
    %3981 = vmatprep.subr.mxu0 0.0
    %3982 = vmatpush1.msra.mxu0 %v3968
    %3983 = vmatprep.subr.mxu0 0.0
    %3984 = vmatpush1.msra.mxu0 %v3967
    %3985 = vmatprep.subr.mxu0 0.0
    %3986 = vmatpush1.msra.mxu0 %v3966
    %3987 = vmatprep.subr.mxu0 0.0
    %3988 = vmatpush1.msra.mxu0 %v3965
    %3989 = vmatprep.subr.mxu0 0.0
    %3990 = vmatpush1.msra.mxu0 %v3964
    %3991 = vmatprep.subr.mxu0 0.0
    %3992 = vmatpush1.msra.mxu0 %v3963
    %3993 = vmatprep.subr.mxu0 0.0
    %3994 = vmatpush1.msra.mxu0 %v3962
    %3995 = vmatprep.subr.mxu0 0.0
    %3996 = vmatpush1.msra.mxu0 %v3961
    %3997 = vmatprep.subr.mxu0 0.0
    %3998 = vmatpush1.msra.mxu0 %v3960
    %3999 = vmatprep.subr.mxu0 0.0
    %4000 = vmatpush1.msra.mxu0 %v3959
    %4001 = vmatprep.subr.mxu0 0.0
    %4002 = vmatpush1.msra.mxu0 %v3958
    %4003 = vmatprep.subr.mxu0 0.0
    %4004 = vmatpush1.msra.mxu0 %v3957
    %4005 = vmatprep.subr.mxu0 0.0
    %4006 = vmatpush2.msra.mxu0 0.0
    %4007 = vmatprep.subr.mxu0 0.0
    %4008 = vmatpush2.msra.mxu0 0.0
    %4009 = vmatprep.subr.mxu0 0.0
    %4010 = vmatpush2.msra.mxu0 0.0
    %4011 = vmatprep.subr.mxu0 0.0
    %4012 = vmatpush2.msra.mxu0 0.0
    %4013 = vmatprep.subr.mxu0 0.0
    %4014 = vmatpush2.msra.mxu0 0.0
    %4015 = vmatprep.subr.mxu0 0.0
    %4016 = vmatpush2.msra.mxu0 0.0
    %4017 = vmatprep.subr.mxu0 0.0
    %4018 = vmatpush2.msra.mxu0 0.0
    %4019 = vmatprep.subr.mxu0 0.0
    %4020 = vmatpush2.msra.mxu0 0.0
    %4021 = vmatprep.subr.mxu0 0.0
    %4022 = vmatpush2.msra.mxu0 0.0
    %4023 = vmatprep.subr.mxu0 0.0
    %4024 = vmatpush2.msra.mxu0 0.0
    %4025 = vmatprep.subr.mxu0 0.0
    %4026 = vmatpush2.msra.mxu0 0.0
    %4027 = vmatprep.subr.mxu0 0.0
    %4028 = vmatpush2.msra.mxu0 0.0
    %4029 = vmatprep.subr.mxu0 0.0
    %4030 = vmatpush2.msra.mxu0 0.0
    %4031 = vmatprep.subr.mxu0 0.0
    %4032 = vmatpush2.msra.mxu0 0.0
    %4033 = vmatprep.subr.mxu0 0.0
    %4034 = vmatpush2.msra.mxu0 0.0
    %4035 = vmatprep.subr.mxu0 0.0
    %4036 = vmatpush2.msra.mxu0 0.0
    %4037 = vmatprep.mubr.f32.mxu0 0.0
    %4038 = vmatmul.mubr.f32.gmra.mxu0 %v3956
    %v4039 = vpop.f32.mrf.mxu0
    %v4040 = vadd.f32 %v130, %v4039
    %v4041 = vpop.f32.mrf.mxu0
    %4042 = vdwg.mxu0
    %s4043 = scalar_lea.vmem [#allocation15], 32
    %4044 = vst [vmem:[%s4043] sm:$0xff] %v4040
    %s4045 = sadd.s32 %s132, 5
    %v4046 = vld [vmem:[#allocation12] sm:$0xff]
    %v4047 = vld [vmem:[#allocation12 + $0x8] sm:$0xff]
    %v4048 = vld [vmem:[#allocation12 + $0x10] sm:$0xff]
    %v4049 = vld [vmem:[#allocation12 + $0x18] sm:$0xff]
    %v4050 = vld [vmem:[#allocation12 + $0x20] sm:$0xff]
    %v4051 = vld [vmem:[#allocation12 + $0x28] sm:$0xff]
    %v4052 = vld [vmem:[#allocation12 + $0x30] sm:$0xff]
    %v4053 = vld [vmem:[#allocation12 + $0x38] sm:$0xff]
    %v4054 = vld [vmem:[#allocation12 + $0x40] sm:$0xff]
    %v4055 = vld [vmem:[#allocation12 + $0x48] sm:$0xff]
    %v4056 = vld [vmem:[#allocation12 + $0x50] sm:$0xff]
    %v4057 = vld [vmem:[#allocation12 + $0x58] sm:$0xff]
    %v4058 = vld [vmem:[#allocation12 + $0x60] sm:$0xff]
    %v4059 = vld [vmem:[#allocation12 + $0x68] sm:$0xff]
    %v4060 = vld [vmem:[#allocation12 + $0x70] sm:$0xff]
    %v4061 = vld [vmem:[#allocation12 + $0x78] sm:$0xff]
    %v4062 = vld [vmem:[#allocation12 + $0x80] sm:$0xff]
    %v4063 = vld [vmem:[#allocation12 + $0x88] sm:$0xff]
    %v4064 = vld [vmem:[#allocation12 + $0x90] sm:$0xff]
    %v4065 = vld [vmem:[#allocation12 + $0x98] sm:$0xff]
    %v4066 = vld [vmem:[#allocation12 + $0xa0] sm:$0xff]
    %v4067 = vld [vmem:[#allocation12 + $0xa8] sm:$0xff]
    %v4068 = vld [vmem:[#allocation12 + $0xb0] sm:$0xff]
    %v4069 = vld [vmem:[#allocation12 + $0xb8] sm:$0xff]
    %v4070 = vld [vmem:[#allocation12 + $0xc0] sm:$0xff]
    %v4071 = vld [vmem:[#allocation12 + $0xc8] sm:$0xff]
    %v4072 = vld [vmem:[#allocation12 + $0xd0] sm:$0xff]
    %v4073 = vld [vmem:[#allocation12 + $0xd8] sm:$0xff]
    %v4074 = vld [vmem:[#allocation12 + $0xe0] sm:$0xff]
    %v4075 = vld [vmem:[#allocation12 + $0xe8] sm:$0xff]
    %v4076 = vld [vmem:[#allocation12 + $0xf0] sm:$0xff]
    %v4077 = vld [vmem:[#allocation12 + $0xf8] sm:$0xff]
    %v4078 = vld [vmem:[#allocation12 + $0x100] sm:$0xff]
    %v4079 = vld [vmem:[#allocation12 + $0x108] sm:$0xff]
    %v4080 = vld [vmem:[#allocation12 + $0x110] sm:$0xff]
    %v4081 = vld [vmem:[#allocation12 + $0x118] sm:$0xff]
    %v4082 = vld [vmem:[#allocation12 + $0x120] sm:$0xff]
    %v4083 = vld [vmem:[#allocation12 + $0x128] sm:$0xff]
    %v4084 = vld [vmem:[#allocation12 + $0x130] sm:$0xff]
    %v4085 = vld [vmem:[#allocation12 + $0x138] sm:$0xff]
    %v4086 = vld [vmem:[#allocation12 + $0x140] sm:$0xff]
    %v4087 = vld [vmem:[#allocation12 + $0x148] sm:$0xff]
    %v4088 = vld [vmem:[#allocation12 + $0x150] sm:$0xff]
    %v4089 = vld [vmem:[#allocation12 + $0x158] sm:$0xff]
    %v4090 = vld [vmem:[#allocation12 + $0x160] sm:$0xff]
    %v4091 = vld [vmem:[#allocation12 + $0x168] sm:$0xff]
    %v4092 = vld [vmem:[#allocation12 + $0x170] sm:$0xff]
    %v4093 = vld [vmem:[#allocation12 + $0x178] sm:$0xff]
    %v4094 = vld [vmem:[#allocation12 + $0x180] sm:$0xff]
    %v4095 = vld [vmem:[#allocation12 + $0x188] sm:$0xff]
    %v4096 = vld [vmem:[#allocation12 + $0x190] sm:$0xff]
    %v4097 = vld [vmem:[#allocation12 + $0x198] sm:$0xff]
    %v4098 = vld [vmem:[#allocation12 + $0x1a0] sm:$0xff]
    %v4099 = vld [vmem:[#allocation12 + $0x1a8] sm:$0xff]
    %v4100 = vld [vmem:[#allocation12 + $0x1b0] sm:$0xff]
    %v4101 = vld [vmem:[#allocation12 + $0x1b8] sm:$0xff]
    %v4102 = vld [vmem:[#allocation12 + $0x1c0] sm:$0xff]
    %v4103 = vld [vmem:[#allocation12 + $0x1c8] sm:$0xff]
    %v4104 = vld [vmem:[#allocation12 + $0x1d0] sm:$0xff]
    %v4105 = vld [vmem:[#allocation12 + $0x1d8] sm:$0xff]
    %v4106 = vld [vmem:[#allocation12 + $0x1e0] sm:$0xff]
    %v4107 = vld [vmem:[#allocation12 + $0x1e8] sm:$0xff]
    %v4108 = vld [vmem:[#allocation12 + $0x1f0] sm:$0xff]
    %v4109 = vld [vmem:[#allocation12 + $0x1f8] sm:$0xff]
    %4110 = vmatprep.subr.mxu0 %v4107
    %4111 = vmatpush1.msra.mxu0 %v4106
    %4112 = vmatprep.subr.mxu0 %v4103
    %4113 = vmatpush1.msra.mxu0 %v4102
    %4114 = vmatprep.subr.mxu0 %v4099
    %4115 = vmatpush1.msra.mxu0 %v4098
    %4116 = vmatprep.subr.mxu0 %v4095
    %4117 = vmatpush1.msra.mxu0 %v4094
    %4118 = vmatprep.subr.mxu0 %v4091
    %4119 = vmatpush1.msra.mxu0 %v4090
    %4120 = vmatprep.subr.mxu0 %v4087
    %4121 = vmatpush1.msra.mxu0 %v4086
    %4122 = vmatprep.subr.mxu0 %v4083
    %4123 = vmatpush1.msra.mxu0 %v4082
    %4124 = vmatprep.subr.mxu0 %v4079
    %4125 = vmatpush1.msra.mxu0 %v4078
    %4126 = vmatprep.subr.mxu0 %v4075
    %4127 = vmatpush1.msra.mxu0 %v4074
    %4128 = vmatprep.subr.mxu0 %v4071
    %4129 = vmatpush1.msra.mxu0 %v4070
    %4130 = vmatprep.subr.mxu0 %v4067
    %4131 = vmatpush1.msra.mxu0 %v4066
    %4132 = vmatprep.subr.mxu0 %v4063
    %4133 = vmatpush1.msra.mxu0 %v4062
    %4134 = vmatprep.subr.mxu0 %v4059
    %4135 = vmatpush1.msra.mxu0 %v4058
    %4136 = vmatprep.subr.mxu0 %v4055
    %4137 = vmatpush1.msra.mxu0 %v4054
    %4138 = vmatprep.subr.mxu0 %v4051
    %4139 = vmatpush1.msra.mxu0 %v4050
    %4140 = vmatprep.subr.mxu0 %v4047
    %4141 = vmatpush1.msra.mxu0 %v4046
    %4142 = vmatprep.subr.mxu0 0.0
    %4143 = vmatpush2.msra.mxu0 0.0
    %4144 = vmatprep.subr.mxu0 0.0
    %4145 = vmatpush2.msra.mxu0 0.0
    %4146 = vmatprep.subr.mxu0 0.0
    %4147 = vmatpush2.msra.mxu0 0.0
    %4148 = vmatprep.subr.mxu0 0.0
    %4149 = vmatpush2.msra.mxu0 0.0
    %4150 = vmatprep.subr.mxu0 0.0
    %4151 = vmatpush2.msra.mxu0 0.0
    %4152 = vmatprep.subr.mxu0 0.0
    %4153 = vmatpush2.msra.mxu0 0.0
    %4154 = vmatprep.subr.mxu0 0.0
    %4155 = vmatpush2.msra.mxu0 0.0
    %4156 = vmatprep.subr.mxu0 0.0
    %4157 = vmatpush2.msra.mxu0 0.0
    %4158 = vmatprep.subr.mxu0 0.0
    %4159 = vmatpush2.msra.mxu0 0.0
    %4160 = vmatprep.subr.mxu0 0.0
    %4161 = vmatpush2.msra.mxu0 0.0
    %4162 = vmatprep.subr.mxu0 0.0
    %4163 = vmatpush2.msra.mxu0 0.0
    %4164 = vmatprep.subr.mxu0 0.0
    %4165 = vmatpush2.msra.mxu0 0.0
    %4166 = vmatprep.subr.mxu0 0.0
    %4167 = vmatpush2.msra.mxu0 0.0
    %4168 = vmatprep.subr.mxu0 0.0
    %4169 = vmatpush2.msra.mxu0 0.0
    %4170 = vmatprep.subr.mxu0 0.0
    %4171 = vmatpush2.msra.mxu0 0.0
    %4172 = vmatprep.subr.mxu0 0.0
    %4173 = vmatpush2.msra.mxu0 0.0
    %4174 = vmatprep.mubr.f32.mxu0 0.0
    %4175 = vmatmul.mubr.f32.gmra.mxu0 %v3956
    %v4176 = vpop.f32.mrf.mxu0
    %v4177 = vadd.f32 0.0, %v4176
    %v4178 = vpop.f32.mrf.mxu0
    %v4179 = vadd.f32 0.0, %v4178
    %4180 = vdwg.mxu0
    %4181 = vmatprep.subr.mxu0 %v4109
    %4182 = vmatpush1.msra.mxu0 %v4108
    %4183 = vmatprep.subr.mxu0 %v4105
    %4184 = vmatpush1.msra.mxu0 %v4104
    %4185 = vmatprep.subr.mxu0 %v4101
    %4186 = vmatpush1.msra.mxu0 %v4100
    %4187 = vmatprep.subr.mxu0 %v4097
    %4188 = vmatpush1.msra.mxu0 %v4096
    %4189 = vmatprep.subr.mxu0 %v4093
    %4190 = vmatpush1.msra.mxu0 %v4092
    %4191 = vmatprep.subr.mxu0 %v4089
    %4192 = vmatpush1.msra.mxu0 %v4088
    %4193 = vmatprep.subr.mxu0 %v4085
    %4194 = vmatpush1.msra.mxu0 %v4084
    %4195 = vmatprep.subr.mxu0 %v4081
    %4196 = vmatpush1.msra.mxu0 %v4080
    %4197 = vmatprep.subr.mxu0 %v4077
    %4198 = vmatpush1.msra.mxu0 %v4076
    %4199 = vmatprep.subr.mxu0 %v4073
    %4200 = vmatpush1.msra.mxu0 %v4072
    %4201 = vmatprep.subr.mxu0 %v4069
    %4202 = vmatpush1.msra.mxu0 %v4068
    %4203 = vmatprep.subr.mxu0 %v4065
    %4204 = vmatpush1.msra.mxu0 %v4064
    %4205 = vmatprep.subr.mxu0 %v4061
    %4206 = vmatpush1.msra.mxu0 %v4060
    %4207 = vmatprep.subr.mxu0 %v4057
    %4208 = vmatpush1.msra.mxu0 %v4056
    %4209 = vmatprep.subr.mxu0 %v4053
    %4210 = vmatpush1.msra.mxu0 %v4052
    %4211 = vmatprep.subr.mxu0 %v4049
    %4212 = vmatpush1.msra.mxu0 %v4048
    %4213 = vmatprep.subr.mxu0 0.0
    %4214 = vmatpush2.msra.mxu0 0.0
    %4215 = vmatprep.subr.mxu0 0.0
    %4216 = vmatpush2.msra.mxu0 0.0
    %4217 = vmatprep.subr.mxu0 0.0
    %4218 = vmatpush2.msra.mxu0 0.0
    %4219 = vmatprep.subr.mxu0 0.0
    %4220 = vmatpush2.msra.mxu0 0.0
    %4221 = vmatprep.subr.mxu0 0.0
    %4222 = vmatpush2.msra.mxu0 0.0
    %4223 = vmatprep.subr.mxu0 0.0
    %4224 = vmatpush2.msra.mxu0 0.0
    %4225 = vmatprep.subr.mxu0 0.0
    %4226 = vmatpush2.msra.mxu0 0.0
    %4227 = vmatprep.subr.mxu0 0.0
    %4228 = vmatpush2.msra.mxu0 0.0
    %4229 = vmatprep.subr.mxu0 0.0
    %4230 = vmatpush2.msra.mxu0 0.0
    %4231 = vmatprep.subr.mxu0 0.0
    %4232 = vmatpush2.msra.mxu0 0.0
    %4233 = vmatprep.subr.mxu0 0.0
    %4234 = vmatpush2.msra.mxu0 0.0
    %4235 = vmatprep.subr.mxu0 0.0
    %4236 = vmatpush2.msra.mxu0 0.0
    %4237 = vmatprep.subr.mxu0 0.0
    %4238 = vmatpush2.msra.mxu0 0.0
    %4239 = vmatprep.subr.mxu0 0.0
    %4240 = vmatpush2.msra.mxu0 0.0
    %4241 = vmatprep.subr.mxu0 0.0
    %4242 = vmatpush2.msra.mxu0 0.0
    %4243 = vmatprep.subr.mxu0 0.0
    %4244 = vmatpush2.msra.mxu0 0.0
    %4245 = vmatprep.mubr.f32.mxu0 0.0
    %4246 = vmatmul.mubr.f32.gmra.mxu0 %v3956
    %v4247 = vpop.f32.mrf.mxu0
    %v4248 = vadd.f32 0.0, %v4247
    %v4249 = vpop.f32.mrf.mxu0
    %v4250 = vadd.f32 0.0, %v4249
    %4251 = vdwg.mxu0
    %p4252 = scmp.lt.s32.totalorder %s4045, 0
    %s4253 = ssub.s32 0, %s4045
    %s4254 = scalar_select %p4252, %s4253, %s4045
    %s4255 = sand.u32 %s4254, 1
    %s4256 = ssub.s32 0, %s4255
    %s4257 = scalar_select %p4252, %s4256, %s4255
    %p4258 = scmp.ne.s32.totalorder %s4257, 0
    %p4259 = scmp.lt.s32.totalorder %s4257, 0
    %p4260 = pnand %p4259, %p4258
    %p4261 = pneg %p4260
    %s4262 = sadd.s32 %s4257, 2
    %s4263 = scalar_select %p4261, %s4262, %s4257
    %s4264 = smul.u32 %s4263, 4
    %s4265 = smul.addr %s4264, 8
    %s4266 = scalar_lea.vmem [#allocation6], %s4265
    %v4267 = vld [vmem:[%s4266] sm:$0xff]
    %v4268 = vld [vmem:[%s4266 + $0x8] sm:$0xff]
    %v4269 = vld [vmem:[%s4266 + $0x10] sm:$0xff]
    %v4270 = vld [vmem:[%s4266 + $0x18] sm:$0xff]
    %v4271 = vld [vmem:[#allocation9] sm:$0xff]
    %v4272 = vld [vmem:[#allocation9 + $0x8] sm:$0xff]
    %v4273 = vld [vmem:[#allocation9 + $0x10] sm:$0xff]
    %v4274 = vld [vmem:[#allocation9 + $0x18] sm:$0xff]
    %v4275 = vld [vmem:[#allocation9 + $0x20] sm:$0xff]
    %v4276 = vld [vmem:[#allocation9 + $0x28] sm:$0xff]
    %v4277 = vld [vmem:[#allocation9 + $0x30] sm:$0xff]
    %v4278 = vld [vmem:[#allocation9 + $0x38] sm:$0xff]
    %v4279 = vld [vmem:[#allocation9 + $0x40] sm:$0xff]
    %v4280 = vld [vmem:[#allocation9 + $0x48] sm:$0xff]
    %v4281 = vld [vmem:[#allocation9 + $0x50] sm:$0xff]
    %v4282 = vld [vmem:[#allocation9 + $0x58] sm:$0xff]
    %v4283 = vld [vmem:[#allocation9 + $0x60] sm:$0xff]
    %v4284 = vld [vmem:[#allocation9 + $0x68] sm:$0xff]
    %v4285 = vld [vmem:[#allocation9 + $0x70] sm:$0xff]
    %v4286 = vld [vmem:[#allocation9 + $0x78] sm:$0xff]
    %v4287 = vld [vmem:[#allocation9 + $0x80] sm:$0xff]
    %v4288 = vld [vmem:[#allocation9 + $0x88] sm:$0xff]
    %v4289 = vld [vmem:[#allocation9 + $0x90] sm:$0xff]
    %v4290 = vld [vmem:[#allocation9 + $0x98] sm:$0xff]
    %v4291 = vld [vmem:[#allocation9 + $0xa0] sm:$0xff]
    %v4292 = vld [vmem:[#allocation9 + $0xa8] sm:$0xff]
    %v4293 = vld [vmem:[#allocation9 + $0xb0] sm:$0xff]
    %v4294 = vld [vmem:[#allocation9 + $0xb8] sm:$0xff]
    %v4295 = vld [vmem:[#allocation9 + $0xc0] sm:$0xff]
    %v4296 = vld [vmem:[#allocation9 + $0xc8] sm:$0xff]
    %v4297 = vld [vmem:[#allocation9 + $0xd0] sm:$0xff]
    %v4298 = vld [vmem:[#allocation9 + $0xd8] sm:$0xff]
    %v4299 = vld [vmem:[#allocation9 + $0xe0] sm:$0xff]
    %v4300 = vld [vmem:[#allocation9 + $0xe8] sm:$0xff]
    %v4301 = vld [vmem:[#allocation9 + $0xf0] sm:$0xff]
    %v4302 = vld [vmem:[#allocation9 + $0xf8] sm:$0xff]
    %v4303 = vld [vmem:[#allocation9 + $0x100] sm:$0xff]
    %v4304 = vld [vmem:[#allocation9 + $0x108] sm:$0xff]
    %v4305 = vld [vmem:[#allocation9 + $0x110] sm:$0xff]
    %v4306 = vld [vmem:[#allocation9 + $0x118] sm:$0xff]
    %v4307 = vld [vmem:[#allocation9 + $0x120] sm:$0xff]
    %v4308 = vld [vmem:[#allocation9 + $0x128] sm:$0xff]
    %v4309 = vld [vmem:[#allocation9 + $0x130] sm:$0xff]
    %v4310 = vld [vmem:[#allocation9 + $0x138] sm:$0xff]
    %v4311 = vld [vmem:[#allocation9 + $0x140] sm:$0xff]
    %v4312 = vld [vmem:[#allocation9 + $0x148] sm:$0xff]
    %v4313 = vld [vmem:[#allocation9 + $0x150] sm:$0xff]
    %v4314 = vld [vmem:[#allocation9 + $0x158] sm:$0xff]
    %v4315 = vld [vmem:[#allocation9 + $0x160] sm:$0xff]
    %v4316 = vld [vmem:[#allocation9 + $0x168] sm:$0xff]
    %v4317 = vld [vmem:[#allocation9 + $0x170] sm:$0xff]
    %v4318 = vld [vmem:[#allocation9 + $0x178] sm:$0xff]
    %v4319 = vld [vmem:[#allocation9 + $0x180] sm:$0xff]
    %v4320 = vld [vmem:[#allocation9 + $0x188] sm:$0xff]
    %v4321 = vld [vmem:[#allocation9 + $0x190] sm:$0xff]
    %v4322 = vld [vmem:[#allocation9 + $0x198] sm:$0xff]
    %v4323 = vld [vmem:[#allocation9 + $0x1a0] sm:$0xff]
    %v4324 = vld [vmem:[#allocation9 + $0x1a8] sm:$0xff]
    %v4325 = vld [vmem:[#allocation9 + $0x1b0] sm:$0xff]
    %v4326 = vld [vmem:[#allocation9 + $0x1b8] sm:$0xff]
    %v4327 = vld [vmem:[#allocation9 + $0x1c0] sm:$0xff]
    %v4328 = vld [vmem:[#allocation9 + $0x1c8] sm:$0xff]
    %v4329 = vld [vmem:[#allocation9 + $0x1d0] sm:$0xff]
    %v4330 = vld [vmem:[#allocation9 + $0x1d8] sm:$0xff]
    %v4331 = vld [vmem:[#allocation9 + $0x1e0] sm:$0xff]
    %v4332 = vld [vmem:[#allocation9 + $0x1e8] sm:$0xff]
    %v4333 = vld [vmem:[#allocation9 + $0x1f0] sm:$0xff]
    %v4334 = vld [vmem:[#allocation9 + $0x1f8] sm:$0xff]
    %4335 = vmatprep.subr.mxu0 %v4332
    %4336 = vmatpush1.msra.mxu0 %v4331
    %4337 = vmatprep.subr.mxu0 %v4328
    %4338 = vmatpush1.msra.mxu0 %v4327
    %4339 = vmatprep.subr.mxu0 %v4324
    %4340 = vmatpush1.msra.mxu0 %v4323
    %4341 = vmatprep.subr.mxu0 %v4320
    %4342 = vmatpush1.msra.mxu0 %v4319
    %4343 = vmatprep.subr.mxu0 %v4316
    %4344 = vmatpush1.msra.mxu0 %v4315
    %4345 = vmatprep.subr.mxu0 %v4312
    %4346 = vmatpush1.msra.mxu0 %v4311
    %4347 = vmatprep.subr.mxu0 %v4308
    %4348 = vmatpush1.msra.mxu0 %v4307
    %4349 = vmatprep.subr.mxu0 %v4304
    %4350 = vmatpush1.msra.mxu0 %v4303
    %4351 = vmatprep.subr.mxu0 %v4300
    %4352 = vmatpush1.msra.mxu0 %v4299
    %4353 = vmatprep.subr.mxu0 %v4296
    %4354 = vmatpush1.msra.mxu0 %v4295
    %4355 = vmatprep.subr.mxu0 %v4292
    %4356 = vmatpush1.msra.mxu0 %v4291
    %4357 = vmatprep.subr.mxu0 %v4288
    %4358 = vmatpush1.msra.mxu0 %v4287
    %4359 = vmatprep.subr.mxu0 %v4284
    %4360 = vmatpush1.msra.mxu0 %v4283
    %4361 = vmatprep.subr.mxu0 %v4280
    %4362 = vmatpush1.msra.mxu0 %v4279
    %4363 = vmatprep.subr.mxu0 %v4276
    %4364 = vmatpush1.msra.mxu0 %v4275
    %4365 = vmatprep.subr.mxu0 %v4272
    %4366 = vmatpush1.msra.mxu0 %v4271
    %4367 = vmatprep.subr.mxu0 0.0
    %4368 = vmatpush2.msra.mxu0 0.0
    %4369 = vmatprep.subr.mxu0 0.0
    %4370 = vmatpush2.msra.mxu0 0.0
    %4371 = vmatprep.subr.mxu0 0.0
    %4372 = vmatpush2.msra.mxu0 0.0
    %4373 = vmatprep.subr.mxu0 0.0
    %4374 = vmatpush2.msra.mxu0 0.0
    %4375 = vmatprep.subr.mxu0 0.0
    %4376 = vmatpush2.msra.mxu0 0.0
    %4377 = vmatprep.subr.mxu0 0.0
    %4378 = vmatpush2.msra.mxu0 0.0
    %4379 = vmatprep.subr.mxu0 0.0
    %4380 = vmatpush2.msra.mxu0 0.0
    %4381 = vmatprep.subr.mxu0 0.0
    %4382 = vmatpush2.msra.mxu0 0.0
    %4383 = vmatprep.subr.mxu0 0.0
    %4384 = vmatpush2.msra.mxu0 0.0
    %4385 = vmatprep.subr.mxu0 0.0
    %4386 = vmatpush2.msra.mxu0 0.0
    %4387 = vmatprep.subr.mxu0 0.0
    %4388 = vmatpush2.msra.mxu0 0.0
    %4389 = vmatprep.subr.mxu0 0.0
    %4390 = vmatpush2.msra.mxu0 0.0
    %4391 = vmatprep.subr.mxu0 0.0
    %4392 = vmatpush2.msra.mxu0 0.0
    %4393 = vmatprep.subr.mxu0 0.0
    %4394 = vmatpush2.msra.mxu0 0.0
    %4395 = vmatprep.subr.mxu0 0.0
    %4396 = vmatpush2.msra.mxu0 0.0
    %4397 = vmatprep.subr.mxu0 0.0
    %4398 = vmatpush2.msra.mxu0 0.0
    %4399 = vmatprep.mubr.f32.mxu0 0.0
    %4400 = vmatmul.mubr.f32.gmra.mxu0 %v3722
    %v4401 = vpop.f32.mrf.mxu0
    %v4402 = vadd.f32 0.0, %v4401
    %v4403 = vpop.f32.mrf.mxu0
    %v4404 = vadd.f32 0.0, %v4403
    %4405 = vdwg.mxu0
    %4406 = vmatprep.subr.mxu0 %v4334
    %4407 = vmatpush1.msra.mxu0 %v4333
    %4408 = vmatprep.subr.mxu0 %v4330
    %4409 = vmatpush1.msra.mxu0 %v4329
    %4410 = vmatprep.subr.mxu0 %v4326
    %4411 = vmatpush1.msra.mxu0 %v4325
    %4412 = vmatprep.subr.mxu0 %v4322
    %4413 = vmatpush1.msra.mxu0 %v4321
    %4414 = vmatprep.subr.mxu0 %v4318
    %4415 = vmatpush1.msra.mxu0 %v4317
    %4416 = vmatprep.subr.mxu0 %v4314
    %4417 = vmatpush1.msra.mxu0 %v4313
    %4418 = vmatprep.subr.mxu0 %v4310
    %4419 = vmatpush1.msra.mxu0 %v4309
    %4420 = vmatprep.subr.mxu0 %v4306
    %4421 = vmatpush1.msra.mxu0 %v4305
    %4422 = vmatprep.subr.mxu0 %v4302
    %4423 = vmatpush1.msra.mxu0 %v4301
    %4424 = vmatprep.subr.mxu0 %v4298
    %4425 = vmatpush1.msra.mxu0 %v4297
    %4426 = vmatprep.subr.mxu0 %v4294
    %4427 = vmatpush1.msra.mxu0 %v4293
    %4428 = vmatprep.subr.mxu0 %v4290
    %4429 = vmatpush1.msra.mxu0 %v4289
    %4430 = vmatprep.subr.mxu0 %v4286
    %4431 = vmatpush1.msra.mxu0 %v4285
    %4432 = vmatprep.subr.mxu0 %v4282
    %4433 = vmatpush1.msra.mxu0 %v4281
    %4434 = vmatprep.subr.mxu0 %v4278
    %4435 = vmatpush1.msra.mxu0 %v4277
    %4436 = vmatprep.subr.mxu0 %v4274
    %4437 = vmatpush1.msra.mxu0 %v4273
    %4438 = vmatprep.subr.mxu0 0.0
    %4439 = vmatpush2.msra.mxu0 0.0
    %4440 = vmatprep.subr.mxu0 0.0
    %4441 = vmatpush2.msra.mxu0 0.0
    %4442 = vmatprep.subr.mxu0 0.0
    %4443 = vmatpush2.msra.mxu0 0.0
    %4444 = vmatprep.subr.mxu0 0.0
    %4445 = vmatpush2.msra.mxu0 0.0
    %4446 = vmatprep.subr.mxu0 0.0
    %4447 = vmatpush2.msra.mxu0 0.0
    %4448 = vmatprep.subr.mxu0 0.0
    %4449 = vmatpush2.msra.mxu0 0.0
    %4450 = vmatprep.subr.mxu0 0.0
    %4451 = vmatpush2.msra.mxu0 0.0
    %4452 = vmatprep.subr.mxu0 0.0
    %4453 = vmatpush2.msra.mxu0 0.0
    %4454 = vmatprep.subr.mxu0 0.0
    %4455 = vmatpush2.msra.mxu0 0.0
    %4456 = vmatprep.subr.mxu0 0.0
    %4457 = vmatpush2.msra.mxu0 0.0
    %4458 = vmatprep.subr.mxu0 0.0
    %4459 = vmatpush2.msra.mxu0 0.0
    %4460 = vmatprep.subr.mxu0 0.0
    %4461 = vmatpush2.msra.mxu0 0.0
    %4462 = vmatprep.subr.mxu0 0.0
    %4463 = vmatpush2.msra.mxu0 0.0
    %4464 = vmatprep.subr.mxu0 0.0
    %4465 = vmatpush2.msra.mxu0 0.0
    %4466 = vmatprep.subr.mxu0 0.0
    %4467 = vmatpush2.msra.mxu0 0.0
    %4468 = vmatprep.subr.mxu0 0.0
    %4469 = vmatpush2.msra.mxu0 0.0
    %4470 = vmatprep.mubr.f32.mxu0 0.0
    %4471 = vmatmul.mubr.f32.gmra.mxu0 %v3722
    %v4472 = vpop.f32.mrf.mxu0
    %v4473 = vadd.f32 0.0, %v4472
    %v4474 = vpop.f32.mrf.mxu0
    %v4475 = vadd.f32 0.0, %v4474
    %4476 = vdwg.mxu0
    %v4477 = vadd.f32 %v4267, %v4402
    %v4478 = vadd.f32 %v4268, %v4404
    %v4479 = vadd.f32 %v4269, %v4473
    %v4480 = vadd.f32 %v4270, %v4475
    %v4481 = vxor.u32 %v4477, 2147483648
    %v4482 = vmul.f32 %v4481, 1.442695
    %v4483 = vpow.pop %v4482
    %v4484 = vadd.f32 %v4483, 1.0
    %v4485 = vrcp.pop %v4484
    %v4486 = vmul.f32 1.0, %v4485
    %v4487 = vxor.u32 %v4478, 2147483648
    %v4488 = vmul.f32 %v4487, 1.442695
    %v4489 = vpow.pop %v4488
    %v4490 = vadd.f32 %v4489, 1.0
    %v4491 = vrcp.pop %v4490
    %v4492 = vmul.f32 1.0, %v4491
    %v4493 = vtanh.pop %v4479
    %v4494 = vxor.u32 %v4480, 2147483648
    %v4495 = vmul.f32 %v4494, 1.442695
    %v4496 = vpow.pop %v4495
    %v4497 = vadd.f32 %v4496, 1.0
    %v4498 = vrcp.pop %v4497
    %v4499 = vmul.f32 1.0, %v4498
    %v4500 = vmul.f32 %v4492, %v3720
    %v4501 = vmul.f32 %v4486, %v4493
    %v4502 = vadd.f32 %v4500, %v4501
    %v4503 = vtanh.pop %v4502
    %v4504 = vmul.f32 %v4499, %v4503
    %v4505 = vld [vmem:[#allocation11] sm:$0xff]
    %v4506 = vld [vmem:[#allocation11 + $0x8] sm:$0xff]
    %v4507 = vld [vmem:[#allocation11 + $0x10] sm:$0xff]
    %v4508 = vld [vmem:[#allocation11 + $0x18] sm:$0xff]
    %v4509 = vld [vmem:[#allocation11 + $0x20] sm:$0xff]
    %v4510 = vld [vmem:[#allocation11 + $0x28] sm:$0xff]
    %v4511 = vld [vmem:[#allocation11 + $0x30] sm:$0xff]
    %v4512 = vld [vmem:[#allocation11 + $0x38] sm:$0xff]
    %v4513 = vld [vmem:[#allocation11 + $0x40] sm:$0xff]
    %v4514 = vld [vmem:[#allocation11 + $0x48] sm:$0xff]
    %v4515 = vld [vmem:[#allocation11 + $0x50] sm:$0xff]
    %v4516 = vld [vmem:[#allocation11 + $0x58] sm:$0xff]
    %v4517 = vld [vmem:[#allocation11 + $0x60] sm:$0xff]
    %v4518 = vld [vmem:[#allocation11 + $0x68] sm:$0xff]
    %v4519 = vld [vmem:[#allocation11 + $0x70] sm:$0xff]
    %v4520 = vld [vmem:[#allocation11 + $0x78] sm:$0xff]
    %v4521 = vld [vmem:[#allocation11 + $0x80] sm:$0xff]
    %v4522 = vld [vmem:[#allocation11 + $0x88] sm:$0xff]
    %v4523 = vld [vmem:[#allocation11 + $0x90] sm:$0xff]
    %v4524 = vld [vmem:[#allocation11 + $0x98] sm:$0xff]
    %v4525 = vld [vmem:[#allocation11 + $0xa0] sm:$0xff]
    %v4526 = vld [vmem:[#allocation11 + $0xa8] sm:$0xff]
    %v4527 = vld [vmem:[#allocation11 + $0xb0] sm:$0xff]
    %v4528 = vld [vmem:[#allocation11 + $0xb8] sm:$0xff]
    %v4529 = vld [vmem:[#allocation11 + $0xc0] sm:$0xff]
    %v4530 = vld [vmem:[#allocation11 + $0xc8] sm:$0xff]
    %v4531 = vld [vmem:[#allocation11 + $0xd0] sm:$0xff]
    %v4532 = vld [vmem:[#allocation11 + $0xd8] sm:$0xff]
    %v4533 = vld [vmem:[#allocation11 + $0xe0] sm:$0xff]
    %v4534 = vld [vmem:[#allocation11 + $0xe8] sm:$0xff]
    %v4535 = vld [vmem:[#allocation11 + $0xf0] sm:$0xff]
    %v4536 = vld [vmem:[#allocation11 + $0xf8] sm:$0xff]
    %v4537 = vld [vmem:[#allocation11 + $0x100] sm:$0xff]
    %v4538 = vld [vmem:[#allocation11 + $0x108] sm:$0xff]
    %v4539 = vld [vmem:[#allocation11 + $0x110] sm:$0xff]
    %v4540 = vld [vmem:[#allocation11 + $0x118] sm:$0xff]
    %v4541 = vld [vmem:[#allocation11 + $0x120] sm:$0xff]
    %v4542 = vld [vmem:[#allocation11 + $0x128] sm:$0xff]
    %v4543 = vld [vmem:[#allocation11 + $0x130] sm:$0xff]
    %v4544 = vld [vmem:[#allocation11 + $0x138] sm:$0xff]
    %v4545 = vld [vmem:[#allocation11 + $0x140] sm:$0xff]
    %v4546 = vld [vmem:[#allocation11 + $0x148] sm:$0xff]
    %v4547 = vld [vmem:[#allocation11 + $0x150] sm:$0xff]
    %v4548 = vld [vmem:[#allocation11 + $0x158] sm:$0xff]
    %v4549 = vld [vmem:[#allocation11 + $0x160] sm:$0xff]
    %v4550 = vld [vmem:[#allocation11 + $0x168] sm:$0xff]
    %v4551 = vld [vmem:[#allocation11 + $0x170] sm:$0xff]
    %v4552 = vld [vmem:[#allocation11 + $0x178] sm:$0xff]
    %v4553 = vld [vmem:[#allocation11 + $0x180] sm:$0xff]
    %v4554 = vld [vmem:[#allocation11 + $0x188] sm:$0xff]
    %v4555 = vld [vmem:[#allocation11 + $0x190] sm:$0xff]
    %v4556 = vld [vmem:[#allocation11 + $0x198] sm:$0xff]
    %v4557 = vld [vmem:[#allocation11 + $0x1a0] sm:$0xff]
    %v4558 = vld [vmem:[#allocation11 + $0x1a8] sm:$0xff]
    %v4559 = vld [vmem:[#allocation11 + $0x1b0] sm:$0xff]
    %v4560 = vld [vmem:[#allocation11 + $0x1b8] sm:$0xff]
    %v4561 = vld [vmem:[#allocation11 + $0x1c0] sm:$0xff]
    %v4562 = vld [vmem:[#allocation11 + $0x1c8] sm:$0xff]
    %v4563 = vld [vmem:[#allocation11 + $0x1d0] sm:$0xff]
    %v4564 = vld [vmem:[#allocation11 + $0x1d8] sm:$0xff]
    %v4565 = vld [vmem:[#allocation11 + $0x1e0] sm:$0xff]
    %v4566 = vld [vmem:[#allocation11 + $0x1e8] sm:$0xff]
    %v4567 = vld [vmem:[#allocation11 + $0x1f0] sm:$0xff]
    %v4568 = vld [vmem:[#allocation11 + $0x1f8] sm:$0xff]
    %4569 = vmatprep.subr.mxu0 %v4566
    %4570 = vmatpush1.msra.mxu0 %v4565
    %4571 = vmatprep.subr.mxu0 %v4562
    %4572 = vmatpush1.msra.mxu0 %v4561
    %4573 = vmatprep.subr.mxu0 %v4558
    %4574 = vmatpush1.msra.mxu0 %v4557
    %4575 = vmatprep.subr.mxu0 %v4554
    %4576 = vmatpush1.msra.mxu0 %v4553
    %4577 = vmatprep.subr.mxu0 %v4550
    %4578 = vmatpush1.msra.mxu0 %v4549
    %4579 = vmatprep.subr.mxu0 %v4546
    %4580 = vmatpush1.msra.mxu0 %v4545
    %4581 = vmatprep.subr.mxu0 %v4542
    %4582 = vmatpush1.msra.mxu0 %v4541
    %4583 = vmatprep.subr.mxu0 %v4538
    %4584 = vmatpush1.msra.mxu0 %v4537
    %4585 = vmatprep.subr.mxu0 %v4534
    %4586 = vmatpush1.msra.mxu0 %v4533
    %4587 = vmatprep.subr.mxu0 %v4530
    %4588 = vmatpush1.msra.mxu0 %v4529
    %4589 = vmatprep.subr.mxu0 %v4526
    %4590 = vmatpush1.msra.mxu0 %v4525
    %4591 = vmatprep.subr.mxu0 %v4522
    %4592 = vmatpush1.msra.mxu0 %v4521
    %4593 = vmatprep.subr.mxu0 %v4518
    %4594 = vmatpush1.msra.mxu0 %v4517
    %4595 = vmatprep.subr.mxu0 %v4514
    %4596 = vmatpush1.msra.mxu0 %v4513
    %4597 = vmatprep.subr.mxu0 %v4510
    %4598 = vmatpush1.msra.mxu0 %v4509
    %4599 = vmatprep.subr.mxu0 %v4506
    %4600 = vmatpush1.msra.mxu0 %v4505
    %4601 = vmatprep.subr.mxu0 0.0
    %4602 = vmatpush2.msra.mxu0 0.0
    %4603 = vmatprep.subr.mxu0 0.0
    %4604 = vmatpush2.msra.mxu0 0.0
    %4605 = vmatprep.subr.mxu0 0.0
    %4606 = vmatpush2.msra.mxu0 0.0
    %4607 = vmatprep.subr.mxu0 0.0
    %4608 = vmatpush2.msra.mxu0 0.0
    %4609 = vmatprep.subr.mxu0 0.0
    %4610 = vmatpush2.msra.mxu0 0.0
    %4611 = vmatprep.subr.mxu0 0.0
    %4612 = vmatpush2.msra.mxu0 0.0
    %4613 = vmatprep.subr.mxu0 0.0
    %4614 = vmatpush2.msra.mxu0 0.0
    %4615 = vmatprep.subr.mxu0 0.0
    %4616 = vmatpush2.msra.mxu0 0.0
    %4617 = vmatprep.subr.mxu0 0.0
    %4618 = vmatpush2.msra.mxu0 0.0
    %4619 = vmatprep.subr.mxu0 0.0
    %4620 = vmatpush2.msra.mxu0 0.0
    %4621 = vmatprep.subr.mxu0 0.0
    %4622 = vmatpush2.msra.mxu0 0.0
    %4623 = vmatprep.subr.mxu0 0.0
    %4624 = vmatpush2.msra.mxu0 0.0
    %4625 = vmatprep.subr.mxu0 0.0
    %4626 = vmatpush2.msra.mxu0 0.0
    %4627 = vmatprep.subr.mxu0 0.0
    %4628 = vmatpush2.msra.mxu0 0.0
    %4629 = vmatprep.subr.mxu0 0.0
    %4630 = vmatpush2.msra.mxu0 0.0
    %4631 = vmatprep.subr.mxu0 0.0
    %4632 = vmatpush2.msra.mxu0 0.0
    %4633 = vmatprep.mubr.f32.mxu0 0.0
    %4634 = vmatmul.mubr.f32.gmra.mxu0 %v4504
    %v4635 = vpop.f32.mrf.mxu0
    %v4636 = vadd.f32 %v4177, %v4635
    %v4637 = vpop.f32.mrf.mxu0
    %v4638 = vadd.f32 %v4179, %v4637
    %4639 = vdwg.mxu0
    %4640 = vmatprep.subr.mxu0 %v4568
    %4641 = vmatpush1.msra.mxu0 %v4567
    %4642 = vmatprep.subr.mxu0 %v4564
    %4643 = vmatpush1.msra.mxu0 %v4563
    %4644 = vmatprep.subr.mxu0 %v4560
    %4645 = vmatpush1.msra.mxu0 %v4559
    %4646 = vmatprep.subr.mxu0 %v4556
    %4647 = vmatpush1.msra.mxu0 %v4555
    %4648 = vmatprep.subr.mxu0 %v4552
    %4649 = vmatpush1.msra.mxu0 %v4551
    %4650 = vmatprep.subr.mxu0 %v4548
    %4651 = vmatpush1.msra.mxu0 %v4547
    %4652 = vmatprep.subr.mxu0 %v4544
    %4653 = vmatpush1.msra.mxu0 %v4543
    %4654 = vmatprep.subr.mxu0 %v4540
    %4655 = vmatpush1.msra.mxu0 %v4539
    %4656 = vmatprep.subr.mxu0 %v4536
    %4657 = vmatpush1.msra.mxu0 %v4535
    %4658 = vmatprep.subr.mxu0 %v4532
    %4659 = vmatpush1.msra.mxu0 %v4531
    %4660 = vmatprep.subr.mxu0 %v4528
    %4661 = vmatpush1.msra.mxu0 %v4527
    %4662 = vmatprep.subr.mxu0 %v4524
    %4663 = vmatpush1.msra.mxu0 %v4523
    %4664 = vmatprep.subr.mxu0 %v4520
    %4665 = vmatpush1.msra.mxu0 %v4519
    %4666 = vmatprep.subr.mxu0 %v4516
    %4667 = vmatpush1.msra.mxu0 %v4515
    %4668 = vmatprep.subr.mxu0 %v4512
    %4669 = vmatpush1.msra.mxu0 %v4511
    %4670 = vmatprep.subr.mxu0 %v4508
    %4671 = vmatpush1.msra.mxu0 %v4507
    %4672 = vmatprep.subr.mxu0 0.0
    %4673 = vmatpush2.msra.mxu0 0.0
    %4674 = vmatprep.subr.mxu0 0.0
    %4675 = vmatpush2.msra.mxu0 0.0
    %4676 = vmatprep.subr.mxu0 0.0
    %4677 = vmatpush2.msra.mxu0 0.0
    %4678 = vmatprep.subr.mxu0 0.0
    %4679 = vmatpush2.msra.mxu0 0.0
    %4680 = vmatprep.subr.mxu0 0.0
    %4681 = vmatpush2.msra.mxu0 0.0
    %4682 = vmatprep.subr.mxu0 0.0
    %4683 = vmatpush2.msra.mxu0 0.0
    %4684 = vmatprep.subr.mxu0 0.0
    %4685 = vmatpush2.msra.mxu0 0.0
    %4686 = vmatprep.subr.mxu0 0.0
    %4687 = vmatpush2.msra.mxu0 0.0
    %4688 = vmatprep.subr.mxu0 0.0
    %4689 = vmatpush2.msra.mxu0 0.0
    %4690 = vmatprep.subr.mxu0 0.0
    %4691 = vmatpush2.msra.mxu0 0.0
    %4692 = vmatprep.subr.mxu0 0.0
    %4693 = vmatpush2.msra.mxu0 0.0
    %4694 = vmatprep.subr.mxu0 0.0
    %4695 = vmatpush2.msra.mxu0 0.0
    %4696 = vmatprep.subr.mxu0 0.0
    %4697 = vmatpush2.msra.mxu0 0.0
    %4698 = vmatprep.subr.mxu0 0.0
    %4699 = vmatpush2.msra.mxu0 0.0
    %4700 = vmatprep.subr.mxu0 0.0
    %4701 = vmatpush2.msra.mxu0 0.0
    %4702 = vmatprep.subr.mxu0 0.0
    %4703 = vmatpush2.msra.mxu0 0.0
    %4704 = vmatprep.mubr.f32.mxu0 0.0
    %4705 = vmatmul.mubr.f32.gmra.mxu0 %v4504
    %v4706 = vpop.f32.mrf.mxu0
    %v4707 = vadd.f32 %v4248, %v4706
    %v4708 = vpop.f32.mrf.mxu0
    %v4709 = vadd.f32 %v4250, %v4708
    %4710 = vdwg.mxu0
    %v4711 = vadd.f32 %v4636, %v108
    %v4712 = vadd.f32 %v4638, %v112
    %v4713 = vadd.f32 %v4707, %v116
    %v4714 = vadd.f32 %v4709, %v120
    %v4715 = vxor.u32 %v4711, 2147483648
    %v4716 = vmul.f32 %v4715, 1.442695
    %v4717 = vpow.pop %v4716
    %v4718 = vadd.f32 %v4717, 1.0
    %v4719 = vrcp.pop %v4718
    %v4720 = vmul.f32 1.0, %v4719
    %v4721 = vxor.u32 %v4712, 2147483648
    %v4722 = vmul.f32 %v4721, 1.442695
    %v4723 = vpow.pop %v4722
    %v4724 = vadd.f32 %v4723, 1.0
    %v4725 = vrcp.pop %v4724
    %v4726 = vmul.f32 1.0, %v4725
    %v4727 = vtanh.pop %v4713
    %v4728 = vxor.u32 %v4714, 2147483648
    %v4729 = vmul.f32 %v4728, 1.442695
    %v4730 = vpow.pop %v4729
    %v4731 = vadd.f32 %v4730, 1.0
    %v4732 = vrcp.pop %v4731
    %v4733 = vmul.f32 1.0, %v4732
    %v4734 = vmul.f32 %v4726, %v3954
    %v4735 = vmul.f32 %v4720, %v4727
    %v4736 = vadd.f32 %v4734, %v4735
    %v4737 = vtanh.pop %v4736
    %v4738 = vmul.f32 %v4733, %v4737
    %v4739 = vld [vmem:[#allocation14] sm:$0xff]
    %v4740 = vld [vmem:[#allocation14 + $0x8] sm:$0xff]
    %v4741 = vld [vmem:[#allocation14 + $0x10] sm:$0xff]
    %v4742 = vld [vmem:[#allocation14 + $0x18] sm:$0xff]
    %v4743 = vld [vmem:[#allocation14 + $0x20] sm:$0xff]
    %v4744 = vld [vmem:[#allocation14 + $0x28] sm:$0xff]
    %v4745 = vld [vmem:[#allocation14 + $0x30] sm:$0xff]
    %v4746 = vld [vmem:[#allocation14 + $0x38] sm:$0xff]
    %v4747 = vld [vmem:[#allocation14 + $0x40] sm:$0xff]
    %v4748 = vld [vmem:[#allocation14 + $0x48] sm:$0xff]
    %v4749 = vld [vmem:[#allocation14 + $0x50] sm:$0xff]
    %v4750 = vld [vmem:[#allocation14 + $0x58] sm:$0xff]
    %v4751 = vld [vmem:[#allocation14 + $0x60] sm:$0xff]
    %v4752 = vld [vmem:[#allocation14 + $0x68] sm:$0xff]
    %v4753 = vld [vmem:[#allocation14 + $0x70] sm:$0xff]
    %v4754 = vld [vmem:[#allocation14 + $0x78] sm:$0xff]
    %4755 = vmatprep.subr.mxu0 0.0
    %4756 = vmatpush1.msra.mxu0 %v4754
    %4757 = vmatprep.subr.mxu0 0.0
    %4758 = vmatpush1.msra.mxu0 %v4753
    %4759 = vmatprep.subr.mxu0 0.0
    %4760 = vmatpush1.msra.mxu0 %v4752
    %4761 = vmatprep.subr.mxu0 0.0
    %4762 = vmatpush1.msra.mxu0 %v4751
    %4763 = vmatprep.subr.mxu0 0.0
    %4764 = vmatpush1.msra.mxu0 %v4750
    %4765 = vmatprep.subr.mxu0 0.0
    %4766 = vmatpush1.msra.mxu0 %v4749
    %4767 = vmatprep.subr.mxu0 0.0
    %4768 = vmatpush1.msra.mxu0 %v4748
    %4769 = vmatprep.subr.mxu0 0.0
    %4770 = vmatpush1.msra.mxu0 %v4747
    %4771 = vmatprep.subr.mxu0 0.0
    %4772 = vmatpush1.msra.mxu0 %v4746
    %4773 = vmatprep.subr.mxu0 0.0
    %4774 = vmatpush1.msra.mxu0 %v4745
    %4775 = vmatprep.subr.mxu0 0.0
    %4776 = vmatpush1.msra.mxu0 %v4744
    %4777 = vmatprep.subr.mxu0 0.0
    %4778 = vmatpush1.msra.mxu0 %v4743
    %4779 = vmatprep.subr.mxu0 0.0
    %4780 = vmatpush1.msra.mxu0 %v4742
    %4781 = vmatprep.subr.mxu0 0.0
    %4782 = vmatpush1.msra.mxu0 %v4741
    %4783 = vmatprep.subr.mxu0 0.0
    %4784 = vmatpush1.msra.mxu0 %v4740
    %4785 = vmatprep.subr.mxu0 0.0
    %4786 = vmatpush1.msra.mxu0 %v4739
    %4787 = vmatprep.subr.mxu0 0.0
    %4788 = vmatpush2.msra.mxu0 0.0
    %4789 = vmatprep.subr.mxu0 0.0
    %4790 = vmatpush2.msra.mxu0 0.0
    %4791 = vmatprep.subr.mxu0 0.0
    %4792 = vmatpush2.msra.mxu0 0.0
    %4793 = vmatprep.subr.mxu0 0.0
    %4794 = vmatpush2.msra.mxu0 0.0
    %4795 = vmatprep.subr.mxu0 0.0
    %4796 = vmatpush2.msra.mxu0 0.0
    %4797 = vmatprep.subr.mxu0 0.0
    %4798 = vmatpush2.msra.mxu0 0.0
    %4799 = vmatprep.subr.mxu0 0.0
    %4800 = vmatpush2.msra.mxu0 0.0
    %4801 = vmatprep.subr.mxu0 0.0
    %4802 = vmatpush2.msra.mxu0 0.0
    %4803 = vmatprep.subr.mxu0 0.0
    %4804 = vmatpush2.msra.mxu0 0.0
    %4805 = vmatprep.subr.mxu0 0.0
    %4806 = vmatpush2.msra.mxu0 0.0
    %4807 = vmatprep.subr.mxu0 0.0
    %4808 = vmatpush2.msra.mxu0 0.0
    %4809 = vmatprep.subr.mxu0 0.0
    %4810 = vmatpush2.msra.mxu0 0.0
    %4811 = vmatprep.subr.mxu0 0.0
    %4812 = vmatpush2.msra.mxu0 0.0
    %4813 = vmatprep.subr.mxu0 0.0
    %4814 = vmatpush2.msra.mxu0 0.0
    %4815 = vmatprep.subr.mxu0 0.0
    %4816 = vmatpush2.msra.mxu0 0.0
    %4817 = vmatprep.subr.mxu0 0.0
    %4818 = vmatpush2.msra.mxu0 0.0
    %4819 = vmatprep.mubr.f32.mxu0 0.0
    %4820 = vmatmul.mubr.f32.gmra.mxu0 %v4738
    %v4821 = vpop.f32.mrf.mxu0
    %v4822 = vadd.f32 %v130, %v4821
    %v4823 = vpop.f32.mrf.mxu0
    %4824 = vdwg.mxu0
    %s4825 = scalar_lea.vmem [#allocation15], 40
    %4826 = vst [vmem:[%s4825] sm:$0xff] %v4822
    %s4827 = sadd.s32 %s132, 6
    %v4828 = vld [vmem:[#allocation12] sm:$0xff]
    %v4829 = vld [vmem:[#allocation12 + $0x8] sm:$0xff]
    %v4830 = vld [vmem:[#allocation12 + $0x10] sm:$0xff]
    %v4831 = vld [vmem:[#allocation12 + $0x18] sm:$0xff]
    %v4832 = vld [vmem:[#allocation12 + $0x20] sm:$0xff]
    %v4833 = vld [vmem:[#allocation12 + $0x28] sm:$0xff]
    %v4834 = vld [vmem:[#allocation12 + $0x30] sm:$0xff]
    %v4835 = vld [vmem:[#allocation12 + $0x38] sm:$0xff]
    %v4836 = vld [vmem:[#allocation12 + $0x40] sm:$0xff]
    %v4837 = vld [vmem:[#allocation12 + $0x48] sm:$0xff]
    %v4838 = vld [vmem:[#allocation12 + $0x50] sm:$0xff]
    %v4839 = vld [vmem:[#allocation12 + $0x58] sm:$0xff]
    %v4840 = vld [vmem:[#allocation12 + $0x60] sm:$0xff]
    %v4841 = vld [vmem:[#allocation12 + $0x68] sm:$0xff]
    %v4842 = vld [vmem:[#allocation12 + $0x70] sm:$0xff]
    %v4843 = vld [vmem:[#allocation12 + $0x78] sm:$0xff]
    %v4844 = vld [vmem:[#allocation12 + $0x80] sm:$0xff]
    %v4845 = vld [vmem:[#allocation12 + $0x88] sm:$0xff]
    %v4846 = vld [vmem:[#allocation12 + $0x90] sm:$0xff]
    %v4847 = vld [vmem:[#allocation12 + $0x98] sm:$0xff]
    %v4848 = vld [vmem:[#allocation12 + $0xa0] sm:$0xff]
    %v4849 = vld [vmem:[#allocation12 + $0xa8] sm:$0xff]
    %v4850 = vld [vmem:[#allocation12 + $0xb0] sm:$0xff]
    %v4851 = vld [vmem:[#allocation12 + $0xb8] sm:$0xff]
    %v4852 = vld [vmem:[#allocation12 + $0xc0] sm:$0xff]
    %v4853 = vld [vmem:[#allocation12 + $0xc8] sm:$0xff]
    %v4854 = vld [vmem:[#allocation12 + $0xd0] sm:$0xff]
    %v4855 = vld [vmem:[#allocation12 + $0xd8] sm:$0xff]
    %v4856 = vld [vmem:[#allocation12 + $0xe0] sm:$0xff]
    %v4857 = vld [vmem:[#allocation12 + $0xe8] sm:$0xff]
    %v4858 = vld [vmem:[#allocation12 + $0xf0] sm:$0xff]
    %v4859 = vld [vmem:[#allocation12 + $0xf8] sm:$0xff]
    %v4860 = vld [vmem:[#allocation12 + $0x100] sm:$0xff]
    %v4861 = vld [vmem:[#allocation12 + $0x108] sm:$0xff]
    %v4862 = vld [vmem:[#allocation12 + $0x110] sm:$0xff]
    %v4863 = vld [vmem:[#allocation12 + $0x118] sm:$0xff]
    %v4864 = vld [vmem:[#allocation12 + $0x120] sm:$0xff]
    %v4865 = vld [vmem:[#allocation12 + $0x128] sm:$0xff]
    %v4866 = vld [vmem:[#allocation12 + $0x130] sm:$0xff]
    %v4867 = vld [vmem:[#allocation12 + $0x138] sm:$0xff]
    %v4868 = vld [vmem:[#allocation12 + $0x140] sm:$0xff]
    %v4869 = vld [vmem:[#allocation12 + $0x148] sm:$0xff]
    %v4870 = vld [vmem:[#allocation12 + $0x150] sm:$0xff]
    %v4871 = vld [vmem:[#allocation12 + $0x158] sm:$0xff]
    %v4872 = vld [vmem:[#allocation12 + $0x160] sm:$0xff]
    %v4873 = vld [vmem:[#allocation12 + $0x168] sm:$0xff]
    %v4874 = vld [vmem:[#allocation12 + $0x170] sm:$0xff]
    %v4875 = vld [vmem:[#allocation12 + $0x178] sm:$0xff]
    %v4876 = vld [vmem:[#allocation12 + $0x180] sm:$0xff]
    %v4877 = vld [vmem:[#allocation12 + $0x188] sm:$0xff]
    %v4878 = vld [vmem:[#allocation12 + $0x190] sm:$0xff]
    %v4879 = vld [vmem:[#allocation12 + $0x198] sm:$0xff]
    %v4880 = vld [vmem:[#allocation12 + $0x1a0] sm:$0xff]
    %v4881 = vld [vmem:[#allocation12 + $0x1a8] sm:$0xff]
    %v4882 = vld [vmem:[#allocation12 + $0x1b0] sm:$0xff]
    %v4883 = vld [vmem:[#allocation12 + $0x1b8] sm:$0xff]
    %v4884 = vld [vmem:[#allocation12 + $0x1c0] sm:$0xff]
    %v4885 = vld [vmem:[#allocation12 + $0x1c8] sm:$0xff]
    %v4886 = vld [vmem:[#allocation12 + $0x1d0] sm:$0xff]
    %v4887 = vld [vmem:[#allocation12 + $0x1d8] sm:$0xff]
    %v4888 = vld [vmem:[#allocation12 + $0x1e0] sm:$0xff]
    %v4889 = vld [vmem:[#allocation12 + $0x1e8] sm:$0xff]
    %v4890 = vld [vmem:[#allocation12 + $0x1f0] sm:$0xff]
    %v4891 = vld [vmem:[#allocation12 + $0x1f8] sm:$0xff]
    %4892 = vmatprep.subr.mxu0 %v4889
    %4893 = vmatpush1.msra.mxu0 %v4888
    %4894 = vmatprep.subr.mxu0 %v4885
    %4895 = vmatpush1.msra.mxu0 %v4884
    %4896 = vmatprep.subr.mxu0 %v4881
    %4897 = vmatpush1.msra.mxu0 %v4880
    %4898 = vmatprep.subr.mxu0 %v4877
    %4899 = vmatpush1.msra.mxu0 %v4876
    %4900 = vmatprep.subr.mxu0 %v4873
    %4901 = vmatpush1.msra.mxu0 %v4872
    %4902 = vmatprep.subr.mxu0 %v4869
    %4903 = vmatpush1.msra.mxu0 %v4868
    %4904 = vmatprep.subr.mxu0 %v4865
    %4905 = vmatpush1.msra.mxu0 %v4864
    %4906 = vmatprep.subr.mxu0 %v4861
    %4907 = vmatpush1.msra.mxu0 %v4860
    %4908 = vmatprep.subr.mxu0 %v4857
    %4909 = vmatpush1.msra.mxu0 %v4856
    %4910 = vmatprep.subr.mxu0 %v4853
    %4911 = vmatpush1.msra.mxu0 %v4852
    %4912 = vmatprep.subr.mxu0 %v4849
    %4913 = vmatpush1.msra.mxu0 %v4848
    %4914 = vmatprep.subr.mxu0 %v4845
    %4915 = vmatpush1.msra.mxu0 %v4844
    %4916 = vmatprep.subr.mxu0 %v4841
    %4917 = vmatpush1.msra.mxu0 %v4840
    %4918 = vmatprep.subr.mxu0 %v4837
    %4919 = vmatpush1.msra.mxu0 %v4836
    %4920 = vmatprep.subr.mxu0 %v4833
    %4921 = vmatpush1.msra.mxu0 %v4832
    %4922 = vmatprep.subr.mxu0 %v4829
    %4923 = vmatpush1.msra.mxu0 %v4828
    %4924 = vmatprep.subr.mxu0 0.0
    %4925 = vmatpush2.msra.mxu0 0.0
    %4926 = vmatprep.subr.mxu0 0.0
    %4927 = vmatpush2.msra.mxu0 0.0
    %4928 = vmatprep.subr.mxu0 0.0
    %4929 = vmatpush2.msra.mxu0 0.0
    %4930 = vmatprep.subr.mxu0 0.0
    %4931 = vmatpush2.msra.mxu0 0.0
    %4932 = vmatprep.subr.mxu0 0.0
    %4933 = vmatpush2.msra.mxu0 0.0
    %4934 = vmatprep.subr.mxu0 0.0
    %4935 = vmatpush2.msra.mxu0 0.0
    %4936 = vmatprep.subr.mxu0 0.0
    %4937 = vmatpush2.msra.mxu0 0.0
    %4938 = vmatprep.subr.mxu0 0.0
    %4939 = vmatpush2.msra.mxu0 0.0
    %4940 = vmatprep.subr.mxu0 0.0
    %4941 = vmatpush2.msra.mxu0 0.0
    %4942 = vmatprep.subr.mxu0 0.0
    %4943 = vmatpush2.msra.mxu0 0.0
    %4944 = vmatprep.subr.mxu0 0.0
    %4945 = vmatpush2.msra.mxu0 0.0
    %4946 = vmatprep.subr.mxu0 0.0
    %4947 = vmatpush2.msra.mxu0 0.0
    %4948 = vmatprep.subr.mxu0 0.0
    %4949 = vmatpush2.msra.mxu0 0.0
    %4950 = vmatprep.subr.mxu0 0.0
    %4951 = vmatpush2.msra.mxu0 0.0
    %4952 = vmatprep.subr.mxu0 0.0
    %4953 = vmatpush2.msra.mxu0 0.0
    %4954 = vmatprep.subr.mxu0 0.0
    %4955 = vmatpush2.msra.mxu0 0.0
    %4956 = vmatprep.mubr.f32.mxu0 0.0
    %4957 = vmatmul.mubr.f32.gmra.mxu0 %v4738
    %v4958 = vpop.f32.mrf.mxu0
    %v4959 = vadd.f32 0.0, %v4958
    %v4960 = vpop.f32.mrf.mxu0
    %v4961 = vadd.f32 0.0, %v4960
    %4962 = vdwg.mxu0
    %4963 = vmatprep.subr.mxu0 %v4891
    %4964 = vmatpush1.msra.mxu0 %v4890
    %4965 = vmatprep.subr.mxu0 %v4887
    %4966 = vmatpush1.msra.mxu0 %v4886
    %4967 = vmatprep.subr.mxu0 %v4883
    %4968 = vmatpush1.msra.mxu0 %v4882
    %4969 = vmatprep.subr.mxu0 %v4879
    %4970 = vmatpush1.msra.mxu0 %v4878
    %4971 = vmatprep.subr.mxu0 %v4875
    %4972 = vmatpush1.msra.mxu0 %v4874
    %4973 = vmatprep.subr.mxu0 %v4871
    %4974 = vmatpush1.msra.mxu0 %v4870
    %4975 = vmatprep.subr.mxu0 %v4867
    %4976 = vmatpush1.msra.mxu0 %v4866
    %4977 = vmatprep.subr.mxu0 %v4863
    %4978 = vmatpush1.msra.mxu0 %v4862
    %4979 = vmatprep.subr.mxu0 %v4859
    %4980 = vmatpush1.msra.mxu0 %v4858
    %4981 = vmatprep.subr.mxu0 %v4855
    %4982 = vmatpush1.msra.mxu0 %v4854
    %4983 = vmatprep.subr.mxu0 %v4851
    %4984 = vmatpush1.msra.mxu0 %v4850
    %4985 = vmatprep.subr.mxu0 %v4847
    %4986 = vmatpush1.msra.mxu0 %v4846
    %4987 = vmatprep.subr.mxu0 %v4843
    %4988 = vmatpush1.msra.mxu0 %v4842
    %4989 = vmatprep.subr.mxu0 %v4839
    %4990 = vmatpush1.msra.mxu0 %v4838
    %4991 = vmatprep.subr.mxu0 %v4835
    %4992 = vmatpush1.msra.mxu0 %v4834
    %4993 = vmatprep.subr.mxu0 %v4831
    %4994 = vmatpush1.msra.mxu0 %v4830
    %4995 = vmatprep.subr.mxu0 0.0
    %4996 = vmatpush2.msra.mxu0 0.0
    %4997 = vmatprep.subr.mxu0 0.0
    %4998 = vmatpush2.msra.mxu0 0.0
    %4999 = vmatprep.subr.mxu0 0.0
    %5000 = vmatpush2.msra.mxu0 0.0
    %5001 = vmatprep.subr.mxu0 0.0
    %5002 = vmatpush2.msra.mxu0 0.0
    %5003 = vmatprep.subr.mxu0 0.0
    %5004 = vmatpush2.msra.mxu0 0.0
    %5005 = vmatprep.subr.mxu0 0.0
    %5006 = vmatpush2.msra.mxu0 0.0
    %5007 = vmatprep.subr.mxu0 0.0
    %5008 = vmatpush2.msra.mxu0 0.0
    %5009 = vmatprep.subr.mxu0 0.0
    %5010 = vmatpush2.msra.mxu0 0.0
    %5011 = vmatprep.subr.mxu0 0.0
    %5012 = vmatpush2.msra.mxu0 0.0
    %5013 = vmatprep.subr.mxu0 0.0
    %5014 = vmatpush2.msra.mxu0 0.0
    %5015 = vmatprep.subr.mxu0 0.0
    %5016 = vmatpush2.msra.mxu0 0.0
    %5017 = vmatprep.subr.mxu0 0.0
    %5018 = vmatpush2.msra.mxu0 0.0
    %5019 = vmatprep.subr.mxu0 0.0
    %5020 = vmatpush2.msra.mxu0 0.0
    %5021 = vmatprep.subr.mxu0 0.0
    %5022 = vmatpush2.msra.mxu0 0.0
    %5023 = vmatprep.subr.mxu0 0.0
    %5024 = vmatpush2.msra.mxu0 0.0
    %5025 = vmatprep.subr.mxu0 0.0
    %5026 = vmatpush2.msra.mxu0 0.0
    %5027 = vmatprep.mubr.f32.mxu0 0.0
    %5028 = vmatmul.mubr.f32.gmra.mxu0 %v4738
    %v5029 = vpop.f32.mrf.mxu0
    %v5030 = vadd.f32 0.0, %v5029
    %v5031 = vpop.f32.mrf.mxu0
    %v5032 = vadd.f32 0.0, %v5031
    %5033 = vdwg.mxu0
    %p5034 = scmp.lt.s32.totalorder %s4827, 0
    %s5035 = ssub.s32 0, %s4827
    %s5036 = scalar_select %p5034, %s5035, %s4827
    %s5037 = sand.u32 %s5036, 1
    %s5038 = ssub.s32 0, %s5037
    %s5039 = scalar_select %p5034, %s5038, %s5037
    %p5040 = scmp.ne.s32.totalorder %s5039, 0
    %p5041 = scmp.lt.s32.totalorder %s5039, 0
    %p5042 = pnand %p5041, %p5040
    %p5043 = pneg %p5042
    %s5044 = sadd.s32 %s5039, 2
    %s5045 = scalar_select %p5043, %s5044, %s5039
    %s5046 = smul.u32 %s5045, 4
    %s5047 = smul.addr %s5046, 8
    %s5048 = scalar_lea.vmem [#allocation6], %s5047
    %v5049 = vld [vmem:[%s5048] sm:$0xff]
    %v5050 = vld [vmem:[%s5048 + $0x8] sm:$0xff]
    %v5051 = vld [vmem:[%s5048 + $0x10] sm:$0xff]
    %v5052 = vld [vmem:[%s5048 + $0x18] sm:$0xff]
    %v5053 = vld [vmem:[#allocation9] sm:$0xff]
    %v5054 = vld [vmem:[#allocation9 + $0x8] sm:$0xff]
    %v5055 = vld [vmem:[#allocation9 + $0x10] sm:$0xff]
    %v5056 = vld [vmem:[#allocation9 + $0x18] sm:$0xff]
    %v5057 = vld [vmem:[#allocation9 + $0x20] sm:$0xff]
    %v5058 = vld [vmem:[#allocation9 + $0x28] sm:$0xff]
    %v5059 = vld [vmem:[#allocation9 + $0x30] sm:$0xff]
    %v5060 = vld [vmem:[#allocation9 + $0x38] sm:$0xff]
    %v5061 = vld [vmem:[#allocation9 + $0x40] sm:$0xff]
    %v5062 = vld [vmem:[#allocation9 + $0x48] sm:$0xff]
    %v5063 = vld [vmem:[#allocation9 + $0x50] sm:$0xff]
    %v5064 = vld [vmem:[#allocation9 + $0x58] sm:$0xff]
    %v5065 = vld [vmem:[#allocation9 + $0x60] sm:$0xff]
    %v5066 = vld [vmem:[#allocation9 + $0x68] sm:$0xff]
    %v5067 = vld [vmem:[#allocation9 + $0x70] sm:$0xff]
    %v5068 = vld [vmem:[#allocation9 + $0x78] sm:$0xff]
    %v5069 = vld [vmem:[#allocation9 + $0x80] sm:$0xff]
    %v5070 = vld [vmem:[#allocation9 + $0x88] sm:$0xff]
    %v5071 = vld [vmem:[#allocation9 + $0x90] sm:$0xff]
    %v5072 = vld [vmem:[#allocation9 + $0x98] sm:$0xff]
    %v5073 = vld [vmem:[#allocation9 + $0xa0] sm:$0xff]
    %v5074 = vld [vmem:[#allocation9 + $0xa8] sm:$0xff]
    %v5075 = vld [vmem:[#allocation9 + $0xb0] sm:$0xff]
    %v5076 = vld [vmem:[#allocation9 + $0xb8] sm:$0xff]
    %v5077 = vld [vmem:[#allocation9 + $0xc0] sm:$0xff]
    %v5078 = vld [vmem:[#allocation9 + $0xc8] sm:$0xff]
    %v5079 = vld [vmem:[#allocation9 + $0xd0] sm:$0xff]
    %v5080 = vld [vmem:[#allocation9 + $0xd8] sm:$0xff]
    %v5081 = vld [vmem:[#allocation9 + $0xe0] sm:$0xff]
    %v5082 = vld [vmem:[#allocation9 + $0xe8] sm:$0xff]
    %v5083 = vld [vmem:[#allocation9 + $0xf0] sm:$0xff]
    %v5084 = vld [vmem:[#allocation9 + $0xf8] sm:$0xff]
    %v5085 = vld [vmem:[#allocation9 + $0x100] sm:$0xff]
    %v5086 = vld [vmem:[#allocation9 + $0x108] sm:$0xff]
    %v5087 = vld [vmem:[#allocation9 + $0x110] sm:$0xff]
    %v5088 = vld [vmem:[#allocation9 + $0x118] sm:$0xff]
    %v5089 = vld [vmem:[#allocation9 + $0x120] sm:$0xff]
    %v5090 = vld [vmem:[#allocation9 + $0x128] sm:$0xff]
    %v5091 = vld [vmem:[#allocation9 + $0x130] sm:$0xff]
    %v5092 = vld [vmem:[#allocation9 + $0x138] sm:$0xff]
    %v5093 = vld [vmem:[#allocation9 + $0x140] sm:$0xff]
    %v5094 = vld [vmem:[#allocation9 + $0x148] sm:$0xff]
    %v5095 = vld [vmem:[#allocation9 + $0x150] sm:$0xff]
    %v5096 = vld [vmem:[#allocation9 + $0x158] sm:$0xff]
    %v5097 = vld [vmem:[#allocation9 + $0x160] sm:$0xff]
    %v5098 = vld [vmem:[#allocation9 + $0x168] sm:$0xff]
    %v5099 = vld [vmem:[#allocation9 + $0x170] sm:$0xff]
    %v5100 = vld [vmem:[#allocation9 + $0x178] sm:$0xff]
    %v5101 = vld [vmem:[#allocation9 + $0x180] sm:$0xff]
    %v5102 = vld [vmem:[#allocation9 + $0x188] sm:$0xff]
    %v5103 = vld [vmem:[#allocation9 + $0x190] sm:$0xff]
    %v5104 = vld [vmem:[#allocation9 + $0x198] sm:$0xff]
    %v5105 = vld [vmem:[#allocation9 + $0x1a0] sm:$0xff]
    %v5106 = vld [vmem:[#allocation9 + $0x1a8] sm:$0xff]
    %v5107 = vld [vmem:[#allocation9 + $0x1b0] sm:$0xff]
    %v5108 = vld [vmem:[#allocation9 + $0x1b8] sm:$0xff]
    %v5109 = vld [vmem:[#allocation9 + $0x1c0] sm:$0xff]
    %v5110 = vld [vmem:[#allocation9 + $0x1c8] sm:$0xff]
    %v5111 = vld [vmem:[#allocation9 + $0x1d0] sm:$0xff]
    %v5112 = vld [vmem:[#allocation9 + $0x1d8] sm:$0xff]
    %v5113 = vld [vmem:[#allocation9 + $0x1e0] sm:$0xff]
    %v5114 = vld [vmem:[#allocation9 + $0x1e8] sm:$0xff]
    %v5115 = vld [vmem:[#allocation9 + $0x1f0] sm:$0xff]
    %v5116 = vld [vmem:[#allocation9 + $0x1f8] sm:$0xff]
    %5117 = vmatprep.subr.mxu0 %v5114
    %5118 = vmatpush1.msra.mxu0 %v5113
    %5119 = vmatprep.subr.mxu0 %v5110
    %5120 = vmatpush1.msra.mxu0 %v5109
    %5121 = vmatprep.subr.mxu0 %v5106
    %5122 = vmatpush1.msra.mxu0 %v5105
    %5123 = vmatprep.subr.mxu0 %v5102
    %5124 = vmatpush1.msra.mxu0 %v5101
    %5125 = vmatprep.subr.mxu0 %v5098
    %5126 = vmatpush1.msra.mxu0 %v5097
    %5127 = vmatprep.subr.mxu0 %v5094
    %5128 = vmatpush1.msra.mxu0 %v5093
    %5129 = vmatprep.subr.mxu0 %v5090
    %5130 = vmatpush1.msra.mxu0 %v5089
    %5131 = vmatprep.subr.mxu0 %v5086
    %5132 = vmatpush1.msra.mxu0 %v5085
    %5133 = vmatprep.subr.mxu0 %v5082
    %5134 = vmatpush1.msra.mxu0 %v5081
    %5135 = vmatprep.subr.mxu0 %v5078
    %5136 = vmatpush1.msra.mxu0 %v5077
    %5137 = vmatprep.subr.mxu0 %v5074
    %5138 = vmatpush1.msra.mxu0 %v5073
    %5139 = vmatprep.subr.mxu0 %v5070
    %5140 = vmatpush1.msra.mxu0 %v5069
    %5141 = vmatprep.subr.mxu0 %v5066
    %5142 = vmatpush1.msra.mxu0 %v5065
    %5143 = vmatprep.subr.mxu0 %v5062
    %5144 = vmatpush1.msra.mxu0 %v5061
    %5145 = vmatprep.subr.mxu0 %v5058
    %5146 = vmatpush1.msra.mxu0 %v5057
    %5147 = vmatprep.subr.mxu0 %v5054
    %5148 = vmatpush1.msra.mxu0 %v5053
    %5149 = vmatprep.subr.mxu0 0.0
    %5150 = vmatpush2.msra.mxu0 0.0
    %5151 = vmatprep.subr.mxu0 0.0
    %5152 = vmatpush2.msra.mxu0 0.0
    %5153 = vmatprep.subr.mxu0 0.0
    %5154 = vmatpush2.msra.mxu0 0.0
    %5155 = vmatprep.subr.mxu0 0.0
    %5156 = vmatpush2.msra.mxu0 0.0
    %5157 = vmatprep.subr.mxu0 0.0
    %5158 = vmatpush2.msra.mxu0 0.0
    %5159 = vmatprep.subr.mxu0 0.0
    %5160 = vmatpush2.msra.mxu0 0.0
    %5161 = vmatprep.subr.mxu0 0.0
    %5162 = vmatpush2.msra.mxu0 0.0
    %5163 = vmatprep.subr.mxu0 0.0
    %5164 = vmatpush2.msra.mxu0 0.0
    %5165 = vmatprep.subr.mxu0 0.0
    %5166 = vmatpush2.msra.mxu0 0.0
    %5167 = vmatprep.subr.mxu0 0.0
    %5168 = vmatpush2.msra.mxu0 0.0
    %5169 = vmatprep.subr.mxu0 0.0
    %5170 = vmatpush2.msra.mxu0 0.0
    %5171 = vmatprep.subr.mxu0 0.0
    %5172 = vmatpush2.msra.mxu0 0.0
    %5173 = vmatprep.subr.mxu0 0.0
    %5174 = vmatpush2.msra.mxu0 0.0
    %5175 = vmatprep.subr.mxu0 0.0
    %5176 = vmatpush2.msra.mxu0 0.0
    %5177 = vmatprep.subr.mxu0 0.0
    %5178 = vmatpush2.msra.mxu0 0.0
    %5179 = vmatprep.subr.mxu0 0.0
    %5180 = vmatpush2.msra.mxu0 0.0
    %5181 = vmatprep.mubr.f32.mxu0 0.0
    %5182 = vmatmul.mubr.f32.gmra.mxu0 %v4504
    %v5183 = vpop.f32.mrf.mxu0
    %v5184 = vadd.f32 0.0, %v5183
    %v5185 = vpop.f32.mrf.mxu0
    %v5186 = vadd.f32 0.0, %v5185
    %5187 = vdwg.mxu0
    %5188 = vmatprep.subr.mxu0 %v5116
    %5189 = vmatpush1.msra.mxu0 %v5115
    %5190 = vmatprep.subr.mxu0 %v5112
    %5191 = vmatpush1.msra.mxu0 %v5111
    %5192 = vmatprep.subr.mxu0 %v5108
    %5193 = vmatpush1.msra.mxu0 %v5107
    %5194 = vmatprep.subr.mxu0 %v5104
    %5195 = vmatpush1.msra.mxu0 %v5103
    %5196 = vmatprep.subr.mxu0 %v5100
    %5197 = vmatpush1.msra.mxu0 %v5099
    %5198 = vmatprep.subr.mxu0 %v5096
    %5199 = vmatpush1.msra.mxu0 %v5095
    %5200 = vmatprep.subr.mxu0 %v5092
    %5201 = vmatpush1.msra.mxu0 %v5091
    %5202 = vmatprep.subr.mxu0 %v5088
    %5203 = vmatpush1.msra.mxu0 %v5087
    %5204 = vmatprep.subr.mxu0 %v5084
    %5205 = vmatpush1.msra.mxu0 %v5083
    %5206 = vmatprep.subr.mxu0 %v5080
    %5207 = vmatpush1.msra.mxu0 %v5079
    %5208 = vmatprep.subr.mxu0 %v5076
    %5209 = vmatpush1.msra.mxu0 %v5075
    %5210 = vmatprep.subr.mxu0 %v5072
    %5211 = vmatpush1.msra.mxu0 %v5071
    %5212 = vmatprep.subr.mxu0 %v5068
    %5213 = vmatpush1.msra.mxu0 %v5067
    %5214 = vmatprep.subr.mxu0 %v5064
    %5215 = vmatpush1.msra.mxu0 %v5063
    %5216 = vmatprep.subr.mxu0 %v5060
    %5217 = vmatpush1.msra.mxu0 %v5059
    %5218 = vmatprep.subr.mxu0 %v5056
    %5219 = vmatpush1.msra.mxu0 %v5055
    %5220 = vmatprep.subr.mxu0 0.0
    %5221 = vmatpush2.msra.mxu0 0.0
    %5222 = vmatprep.subr.mxu0 0.0
    %5223 = vmatpush2.msra.mxu0 0.0
    %5224 = vmatprep.subr.mxu0 0.0
    %5225 = vmatpush2.msra.mxu0 0.0
    %5226 = vmatprep.subr.mxu0 0.0
    %5227 = vmatpush2.msra.mxu0 0.0
    %5228 = vmatprep.subr.mxu0 0.0
    %5229 = vmatpush2.msra.mxu0 0.0
    %5230 = vmatprep.subr.mxu0 0.0
    %5231 = vmatpush2.msra.mxu0 0.0
    %5232 = vmatprep.subr.mxu0 0.0
    %5233 = vmatpush2.msra.mxu0 0.0
    %5234 = vmatprep.subr.mxu0 0.0
    %5235 = vmatpush2.msra.mxu0 0.0
    %5236 = vmatprep.subr.mxu0 0.0
    %5237 = vmatpush2.msra.mxu0 0.0
    %5238 = vmatprep.subr.mxu0 0.0
    %5239 = vmatpush2.msra.mxu0 0.0
    %5240 = vmatprep.subr.mxu0 0.0
    %5241 = vmatpush2.msra.mxu0 0.0
    %5242 = vmatprep.subr.mxu0 0.0
    %5243 = vmatpush2.msra.mxu0 0.0
    %5244 = vmatprep.subr.mxu0 0.0
    %5245 = vmatpush2.msra.mxu0 0.0
    %5246 = vmatprep.subr.mxu0 0.0
    %5247 = vmatpush2.msra.mxu0 0.0
    %5248 = vmatprep.subr.mxu0 0.0
    %5249 = vmatpush2.msra.mxu0 0.0
    %5250 = vmatprep.subr.mxu0 0.0
    %5251 = vmatpush2.msra.mxu0 0.0
    %5252 = vmatprep.mubr.f32.mxu0 0.0
    %5253 = vmatmul.mubr.f32.gmra.mxu0 %v4504
    %v5254 = vpop.f32.mrf.mxu0
    %v5255 = vadd.f32 0.0, %v5254
    %v5256 = vpop.f32.mrf.mxu0
    %v5257 = vadd.f32 0.0, %v5256
    %5258 = vdwg.mxu0
    %v5259 = vadd.f32 %v5049, %v5184
    %v5260 = vadd.f32 %v5050, %v5186
    %v5261 = vadd.f32 %v5051, %v5255
    %v5262 = vadd.f32 %v5052, %v5257
    %v5263 = vxor.u32 %v5259, 2147483648
    %v5264 = vmul.f32 %v5263, 1.442695
    %v5265 = vpow.pop %v5264
    %v5266 = vadd.f32 %v5265, 1.0
    %v5267 = vrcp.pop %v5266
    %v5268 = vmul.f32 1.0, %v5267
    %v5269 = vxor.u32 %v5260, 2147483648
    %v5270 = vmul.f32 %v5269, 1.442695
    %v5271 = vpow.pop %v5270
    %v5272 = vadd.f32 %v5271, 1.0
    %v5273 = vrcp.pop %v5272
    %v5274 = vmul.f32 1.0, %v5273
    %v5275 = vtanh.pop %v5261
    %v5276 = vxor.u32 %v5262, 2147483648
    %v5277 = vmul.f32 %v5276, 1.442695
    %v5278 = vpow.pop %v5277
    %v5279 = vadd.f32 %v5278, 1.0
    %v5280 = vrcp.pop %v5279
    %v5281 = vmul.f32 1.0, %v5280
    %v5282 = vmul.f32 %v5274, %v4502
    %v5283 = vmul.f32 %v5268, %v5275
    %v5284 = vadd.f32 %v5282, %v5283
    %v5285 = vtanh.pop %v5284
    %v5286 = vmul.f32 %v5281, %v5285
    %v5287 = vld [vmem:[#allocation11] sm:$0xff]
    %v5288 = vld [vmem:[#allocation11 + $0x8] sm:$0xff]
    %v5289 = vld [vmem:[#allocation11 + $0x10] sm:$0xff]
    %v5290 = vld [vmem:[#allocation11 + $0x18] sm:$0xff]
    %v5291 = vld [vmem:[#allocation11 + $0x20] sm:$0xff]
    %v5292 = vld [vmem:[#allocation11 + $0x28] sm:$0xff]
    %v5293 = vld [vmem:[#allocation11 + $0x30] sm:$0xff]
    %v5294 = vld [vmem:[#allocation11 + $0x38] sm:$0xff]
    %v5295 = vld [vmem:[#allocation11 + $0x40] sm:$0xff]
    %v5296 = vld [vmem:[#allocation11 + $0x48] sm:$0xff]
    %v5297 = vld [vmem:[#allocation11 + $0x50] sm:$0xff]
    %v5298 = vld [vmem:[#allocation11 + $0x58] sm:$0xff]
    %v5299 = vld [vmem:[#allocation11 + $0x60] sm:$0xff]
    %v5300 = vld [vmem:[#allocation11 + $0x68] sm:$0xff]
    %v5301 = vld [vmem:[#allocation11 + $0x70] sm:$0xff]
    %v5302 = vld [vmem:[#allocation11 + $0x78] sm:$0xff]
    %v5303 = vld [vmem:[#allocation11 + $0x80] sm:$0xff]
    %v5304 = vld [vmem:[#allocation11 + $0x88] sm:$0xff]
    %v5305 = vld [vmem:[#allocation11 + $0x90] sm:$0xff]
    %v5306 = vld [vmem:[#allocation11 + $0x98] sm:$0xff]
    %v5307 = vld [vmem:[#allocation11 + $0xa0] sm:$0xff]
    %v5308 = vld [vmem:[#allocation11 + $0xa8] sm:$0xff]
    %v5309 = vld [vmem:[#allocation11 + $0xb0] sm:$0xff]
    %v5310 = vld [vmem:[#allocation11 + $0xb8] sm:$0xff]
    %v5311 = vld [vmem:[#allocation11 + $0xc0] sm:$0xff]
    %v5312 = vld [vmem:[#allocation11 + $0xc8] sm:$0xff]
    %v5313 = vld [vmem:[#allocation11 + $0xd0] sm:$0xff]
    %v5314 = vld [vmem:[#allocation11 + $0xd8] sm:$0xff]
    %v5315 = vld [vmem:[#allocation11 + $0xe0] sm:$0xff]
    %v5316 = vld [vmem:[#allocation11 + $0xe8] sm:$0xff]
    %v5317 = vld [vmem:[#allocation11 + $0xf0] sm:$0xff]
    %v5318 = vld [vmem:[#allocation11 + $0xf8] sm:$0xff]
    %v5319 = vld [vmem:[#allocation11 + $0x100] sm:$0xff]
    %v5320 = vld [vmem:[#allocation11 + $0x108] sm:$0xff]
    %v5321 = vld [vmem:[#allocation11 + $0x110] sm:$0xff]
    %v5322 = vld [vmem:[#allocation11 + $0x118] sm:$0xff]
    %v5323 = vld [vmem:[#allocation11 + $0x120] sm:$0xff]
    %v5324 = vld [vmem:[#allocation11 + $0x128] sm:$0xff]
    %v5325 = vld [vmem:[#allocation11 + $0x130] sm:$0xff]
    %v5326 = vld [vmem:[#allocation11 + $0x138] sm:$0xff]
    %v5327 = vld [vmem:[#allocation11 + $0x140] sm:$0xff]
    %v5328 = vld [vmem:[#allocation11 + $0x148] sm:$0xff]
    %v5329 = vld [vmem:[#allocation11 + $0x150] sm:$0xff]
    %v5330 = vld [vmem:[#allocation11 + $0x158] sm:$0xff]
    %v5331 = vld [vmem:[#allocation11 + $0x160] sm:$0xff]
    %v5332 = vld [vmem:[#allocation11 + $0x168] sm:$0xff]
    %v5333 = vld [vmem:[#allocation11 + $0x170] sm:$0xff]
    %v5334 = vld [vmem:[#allocation11 + $0x178] sm:$0xff]
    %v5335 = vld [vmem:[#allocation11 + $0x180] sm:$0xff]
    %v5336 = vld [vmem:[#allocation11 + $0x188] sm:$0xff]
    %v5337 = vld [vmem:[#allocation11 + $0x190] sm:$0xff]
    %v5338 = vld [vmem:[#allocation11 + $0x198] sm:$0xff]
    %v5339 = vld [vmem:[#allocation11 + $0x1a0] sm:$0xff]
    %v5340 = vld [vmem:[#allocation11 + $0x1a8] sm:$0xff]
    %v5341 = vld [vmem:[#allocation11 + $0x1b0] sm:$0xff]
    %v5342 = vld [vmem:[#allocation11 + $0x1b8] sm:$0xff]
    %v5343 = vld [vmem:[#allocation11 + $0x1c0] sm:$0xff]
    %v5344 = vld [vmem:[#allocation11 + $0x1c8] sm:$0xff]
    %v5345 = vld [vmem:[#allocation11 + $0x1d0] sm:$0xff]
    %v5346 = vld [vmem:[#allocation11 + $0x1d8] sm:$0xff]
    %v5347 = vld [vmem:[#allocation11 + $0x1e0] sm:$0xff]
    %v5348 = vld [vmem:[#allocation11 + $0x1e8] sm:$0xff]
    %v5349 = vld [vmem:[#allocation11 + $0x1f0] sm:$0xff]
    %v5350 = vld [vmem:[#allocation11 + $0x1f8] sm:$0xff]
    %5351 = vmatprep.subr.mxu0 %v5348
    %5352 = vmatpush1.msra.mxu0 %v5347
    %5353 = vmatprep.subr.mxu0 %v5344
    %5354 = vmatpush1.msra.mxu0 %v5343
    %5355 = vmatprep.subr.mxu0 %v5340
    %5356 = vmatpush1.msra.mxu0 %v5339
    %5357 = vmatprep.subr.mxu0 %v5336
    %5358 = vmatpush1.msra.mxu0 %v5335
    %5359 = vmatprep.subr.mxu0 %v5332
    %5360 = vmatpush1.msra.mxu0 %v5331
    %5361 = vmatprep.subr.mxu0 %v5328
    %5362 = vmatpush1.msra.mxu0 %v5327
    %5363 = vmatprep.subr.mxu0 %v5324
    %5364 = vmatpush1.msra.mxu0 %v5323
    %5365 = vmatprep.subr.mxu0 %v5320
    %5366 = vmatpush1.msra.mxu0 %v5319
    %5367 = vmatprep.subr.mxu0 %v5316
    %5368 = vmatpush1.msra.mxu0 %v5315
    %5369 = vmatprep.subr.mxu0 %v5312
    %5370 = vmatpush1.msra.mxu0 %v5311
    %5371 = vmatprep.subr.mxu0 %v5308
    %5372 = vmatpush1.msra.mxu0 %v5307
    %5373 = vmatprep.subr.mxu0 %v5304
    %5374 = vmatpush1.msra.mxu0 %v5303
    %5375 = vmatprep.subr.mxu0 %v5300
    %5376 = vmatpush1.msra.mxu0 %v5299
    %5377 = vmatprep.subr.mxu0 %v5296
    %5378 = vmatpush1.msra.mxu0 %v5295
    %5379 = vmatprep.subr.mxu0 %v5292
    %5380 = vmatpush1.msra.mxu0 %v5291
    %5381 = vmatprep.subr.mxu0 %v5288
    %5382 = vmatpush1.msra.mxu0 %v5287
    %5383 = vmatprep.subr.mxu0 0.0
    %5384 = vmatpush2.msra.mxu0 0.0
    %5385 = vmatprep.subr.mxu0 0.0
    %5386 = vmatpush2.msra.mxu0 0.0
    %5387 = vmatprep.subr.mxu0 0.0
    %5388 = vmatpush2.msra.mxu0 0.0
    %5389 = vmatprep.subr.mxu0 0.0
    %5390 = vmatpush2.msra.mxu0 0.0
    %5391 = vmatprep.subr.mxu0 0.0
    %5392 = vmatpush2.msra.mxu0 0.0
    %5393 = vmatprep.subr.mxu0 0.0
    %5394 = vmatpush2.msra.mxu0 0.0
    %5395 = vmatprep.subr.mxu0 0.0
    %5396 = vmatpush2.msra.mxu0 0.0
    %5397 = vmatprep.subr.mxu0 0.0
    %5398 = vmatpush2.msra.mxu0 0.0
    %5399 = vmatprep.subr.mxu0 0.0
    %5400 = vmatpush2.msra.mxu0 0.0
    %5401 = vmatprep.subr.mxu0 0.0
    %5402 = vmatpush2.msra.mxu0 0.0
    %5403 = vmatprep.subr.mxu0 0.0
    %5404 = vmatpush2.msra.mxu0 0.0
    %5405 = vmatprep.subr.mxu0 0.0
    %5406 = vmatpush2.msra.mxu0 0.0
    %5407 = vmatprep.subr.mxu0 0.0
    %5408 = vmatpush2.msra.mxu0 0.0
    %5409 = vmatprep.subr.mxu0 0.0
    %5410 = vmatpush2.msra.mxu0 0.0
    %5411 = vmatprep.subr.mxu0 0.0
    %5412 = vmatpush2.msra.mxu0 0.0
    %5413 = vmatprep.subr.mxu0 0.0
    %5414 = vmatpush2.msra.mxu0 0.0
    %5415 = vmatprep.mubr.f32.mxu0 0.0
    %5416 = vmatmul.mubr.f32.gmra.mxu0 %v5286
    %v5417 = vpop.f32.mrf.mxu0
    %v5418 = vadd.f32 %v4959, %v5417
    %v5419 = vpop.f32.mrf.mxu0
    %v5420 = vadd.f32 %v4961, %v5419
    %5421 = vdwg.mxu0
    %5422 = vmatprep.subr.mxu0 %v5350
    %5423 = vmatpush1.msra.mxu0 %v5349
    %5424 = vmatprep.subr.mxu0 %v5346
    %5425 = vmatpush1.msra.mxu0 %v5345
    %5426 = vmatprep.subr.mxu0 %v5342
    %5427 = vmatpush1.msra.mxu0 %v5341
    %5428 = vmatprep.subr.mxu0 %v5338
    %5429 = vmatpush1.msra.mxu0 %v5337
    %5430 = vmatprep.subr.mxu0 %v5334
    %5431 = vmatpush1.msra.mxu0 %v5333
    %5432 = vmatprep.subr.mxu0 %v5330
    %5433 = vmatpush1.msra.mxu0 %v5329
    %5434 = vmatprep.subr.mxu0 %v5326
    %5435 = vmatpush1.msra.mxu0 %v5325
    %5436 = vmatprep.subr.mxu0 %v5322
    %5437 = vmatpush1.msra.mxu0 %v5321
    %5438 = vmatprep.subr.mxu0 %v5318
    %5439 = vmatpush1.msra.mxu0 %v5317
    %5440 = vmatprep.subr.mxu0 %v5314
    %5441 = vmatpush1.msra.mxu0 %v5313
    %5442 = vmatprep.subr.mxu0 %v5310
    %5443 = vmatpush1.msra.mxu0 %v5309
    %5444 = vmatprep.subr.mxu0 %v5306
    %5445 = vmatpush1.msra.mxu0 %v5305
    %5446 = vmatprep.subr.mxu0 %v5302
    %5447 = vmatpush1.msra.mxu0 %v5301
    %5448 = vmatprep.subr.mxu0 %v5298
    %5449 = vmatpush1.msra.mxu0 %v5297
    %5450 = vmatprep.subr.mxu0 %v5294
    %5451 = vmatpush1.msra.mxu0 %v5293
    %5452 = vmatprep.subr.mxu0 %v5290
    %5453 = vmatpush1.msra.mxu0 %v5289
    %5454 = vmatprep.subr.mxu0 0.0
    %5455 = vmatpush2.msra.mxu0 0.0
    %5456 = vmatprep.subr.mxu0 0.0
    %5457 = vmatpush2.msra.mxu0 0.0
    %5458 = vmatprep.subr.mxu0 0.0
    %5459 = vmatpush2.msra.mxu0 0.0
    %5460 = vmatprep.subr.mxu0 0.0
    %5461 = vmatpush2.msra.mxu0 0.0
    %5462 = vmatprep.subr.mxu0 0.0
    %5463 = vmatpush2.msra.mxu0 0.0
    %5464 = vmatprep.subr.mxu0 0.0
    %5465 = vmatpush2.msra.mxu0 0.0
    %5466 = vmatprep.subr.mxu0 0.0
    %5467 = vmatpush2.msra.mxu0 0.0
    %5468 = vmatprep.subr.mxu0 0.0
    %5469 = vmatpush2.msra.mxu0 0.0
    %5470 = vmatprep.subr.mxu0 0.0
    %5471 = vmatpush2.msra.mxu0 0.0
    %5472 = vmatprep.subr.mxu0 0.0
    %5473 = vmatpush2.msra.mxu0 0.0
    %5474 = vmatprep.subr.mxu0 0.0
    %5475 = vmatpush2.msra.mxu0 0.0
    %5476 = vmatprep.subr.mxu0 0.0
    %5477 = vmatpush2.msra.mxu0 0.0
    %5478 = vmatprep.subr.mxu0 0.0
    %5479 = vmatpush2.msra.mxu0 0.0
    %5480 = vmatprep.subr.mxu0 0.0
    %5481 = vmatpush2.msra.mxu0 0.0
    %5482 = vmatprep.subr.mxu0 0.0
    %5483 = vmatpush2.msra.mxu0 0.0
    %5484 = vmatprep.subr.mxu0 0.0
    %5485 = vmatpush2.msra.mxu0 0.0
    %5486 = vmatprep.mubr.f32.mxu0 0.0
    %5487 = vmatmul.mubr.f32.gmra.mxu0 %v5286
    %v5488 = vpop.f32.mrf.mxu0
    %v5489 = vadd.f32 %v5030, %v5488
    %v5490 = vpop.f32.mrf.mxu0
    %v5491 = vadd.f32 %v5032, %v5490
    %5492 = vdwg.mxu0
    %v5493 = vadd.f32 %v5418, %v108
    %v5494 = vadd.f32 %v5420, %v112
    %v5495 = vadd.f32 %v5489, %v116
    %v5496 = vadd.f32 %v5491, %v120
    %v5497 = vxor.u32 %v5493, 2147483648
    %v5498 = vmul.f32 %v5497, 1.442695
    %v5499 = vpow.pop %v5498
    %v5500 = vadd.f32 %v5499, 1.0
    %v5501 = vrcp.pop %v5500
    %v5502 = vmul.f32 1.0, %v5501
    %v5503 = vxor.u32 %v5494, 2147483648
    %v5504 = vmul.f32 %v5503, 1.442695
    %v5505 = vpow.pop %v5504
    %v5506 = vadd.f32 %v5505, 1.0
    %v5507 = vrcp.pop %v5506
    %v5508 = vmul.f32 1.0, %v5507
    %v5509 = vtanh.pop %v5495
    %v5510 = vxor.u32 %v5496, 2147483648
    %v5511 = vmul.f32 %v5510, 1.442695
    %v5512 = vpow.pop %v5511
    %v5513 = vadd.f32 %v5512, 1.0
    %v5514 = vrcp.pop %v5513
    %v5515 = vmul.f32 1.0, %v5514
    %v5516 = vmul.f32 %v5508, %v4736
    %v5517 = vmul.f32 %v5502, %v5509
    %v5518 = vadd.f32 %v5516, %v5517
    %v5519 = vtanh.pop %v5518
    %v5520 = vmul.f32 %v5515, %v5519
    %v5521 = vld [vmem:[#allocation14] sm:$0xff]
    %v5522 = vld [vmem:[#allocation14 + $0x8] sm:$0xff]
    %v5523 = vld [vmem:[#allocation14 + $0x10] sm:$0xff]
    %v5524 = vld [vmem:[#allocation14 + $0x18] sm:$0xff]
    %v5525 = vld [vmem:[#allocation14 + $0x20] sm:$0xff]
    %v5526 = vld [vmem:[#allocation14 + $0x28] sm:$0xff]
    %v5527 = vld [vmem:[#allocation14 + $0x30] sm:$0xff]
    %v5528 = vld [vmem:[#allocation14 + $0x38] sm:$0xff]
    %v5529 = vld [vmem:[#allocation14 + $0x40] sm:$0xff]
    %v5530 = vld [vmem:[#allocation14 + $0x48] sm:$0xff]
    %v5531 = vld [vmem:[#allocation14 + $0x50] sm:$0xff]
    %v5532 = vld [vmem:[#allocation14 + $0x58] sm:$0xff]
    %v5533 = vld [vmem:[#allocation14 + $0x60] sm:$0xff]
    %v5534 = vld [vmem:[#allocation14 + $0x68] sm:$0xff]
    %v5535 = vld [vmem:[#allocation14 + $0x70] sm:$0xff]
    %v5536 = vld [vmem:[#allocation14 + $0x78] sm:$0xff]
    %5537 = vmatprep.subr.mxu0 0.0
    %5538 = vmatpush1.msra.mxu0 %v5536
    %5539 = vmatprep.subr.mxu0 0.0
    %5540 = vmatpush1.msra.mxu0 %v5535
    %5541 = vmatprep.subr.mxu0 0.0
    %5542 = vmatpush1.msra.mxu0 %v5534
    %5543 = vmatprep.subr.mxu0 0.0
    %5544 = vmatpush1.msra.mxu0 %v5533
    %5545 = vmatprep.subr.mxu0 0.0
    %5546 = vmatpush1.msra.mxu0 %v5532
    %5547 = vmatprep.subr.mxu0 0.0
    %5548 = vmatpush1.msra.mxu0 %v5531
    %5549 = vmatprep.subr.mxu0 0.0
    %5550 = vmatpush1.msra.mxu0 %v5530
    %5551 = vmatprep.subr.mxu0 0.0
    %5552 = vmatpush1.msra.mxu0 %v5529
    %5553 = vmatprep.subr.mxu0 0.0
    %5554 = vmatpush1.msra.mxu0 %v5528
    %5555 = vmatprep.subr.mxu0 0.0
    %5556 = vmatpush1.msra.mxu0 %v5527
    %5557 = vmatprep.subr.mxu0 0.0
    %5558 = vmatpush1.msra.mxu0 %v5526
    %5559 = vmatprep.subr.mxu0 0.0
    %5560 = vmatpush1.msra.mxu0 %v5525
    %5561 = vmatprep.subr.mxu0 0.0
    %5562 = vmatpush1.msra.mxu0 %v5524
    %5563 = vmatprep.subr.mxu0 0.0
    %5564 = vmatpush1.msra.mxu0 %v5523
    %5565 = vmatprep.subr.mxu0 0.0
    %5566 = vmatpush1.msra.mxu0 %v5522
    %5567 = vmatprep.subr.mxu0 0.0
    %5568 = vmatpush1.msra.mxu0 %v5521
    %5569 = vmatprep.subr.mxu0 0.0
    %5570 = vmatpush2.msra.mxu0 0.0
    %5571 = vmatprep.subr.mxu0 0.0
    %5572 = vmatpush2.msra.mxu0 0.0
    %5573 = vmatprep.subr.mxu0 0.0
    %5574 = vmatpush2.msra.mxu0 0.0
    %5575 = vmatprep.subr.mxu0 0.0
    %5576 = vmatpush2.msra.mxu0 0.0
    %5577 = vmatprep.subr.mxu0 0.0
    %5578 = vmatpush2.msra.mxu0 0.0
    %5579 = vmatprep.subr.mxu0 0.0
    %5580 = vmatpush2.msra.mxu0 0.0
    %5581 = vmatprep.subr.mxu0 0.0
    %5582 = vmatpush2.msra.mxu0 0.0
    %5583 = vmatprep.subr.mxu0 0.0
    %5584 = vmatpush2.msra.mxu0 0.0
    %5585 = vmatprep.subr.mxu0 0.0
    %5586 = vmatpush2.msra.mxu0 0.0
    %5587 = vmatprep.subr.mxu0 0.0
    %5588 = vmatpush2.msra.mxu0 0.0
    %5589 = vmatprep.subr.mxu0 0.0
    %5590 = vmatpush2.msra.mxu0 0.0
    %5591 = vmatprep.subr.mxu0 0.0
    %5592 = vmatpush2.msra.mxu0 0.0
    %5593 = vmatprep.subr.mxu0 0.0
    %5594 = vmatpush2.msra.mxu0 0.0
    %5595 = vmatprep.subr.mxu0 0.0
    %5596 = vmatpush2.msra.mxu0 0.0
    %5597 = vmatprep.subr.mxu0 0.0
    %5598 = vmatpush2.msra.mxu0 0.0
    %5599 = vmatprep.subr.mxu0 0.0
    %5600 = vmatpush2.msra.mxu0 0.0
    %5601 = vmatprep.mubr.f32.mxu0 0.0
    %5602 = vmatmul.mubr.f32.gmra.mxu0 %v5520
    %v5603 = vpop.f32.mrf.mxu0
    %v5604 = vadd.f32 %v130, %v5603
    %v5605 = vpop.f32.mrf.mxu0
    %5606 = vdwg.mxu0
    %s5607 = scalar_lea.vmem [#allocation15], 48
    %5608 = vst [vmem:[%s5607] sm:$0xff] %v5604
    %s5609 = sadd.s32 %s132, 7
    %v5610 = vld [vmem:[#allocation12] sm:$0xff]
    %v5611 = vld [vmem:[#allocation12 + $0x8] sm:$0xff]
    %v5612 = vld [vmem:[#allocation12 + $0x10] sm:$0xff]
    %v5613 = vld [vmem:[#allocation12 + $0x18] sm:$0xff]
    %v5614 = vld [vmem:[#allocation12 + $0x20] sm:$0xff]
    %v5615 = vld [vmem:[#allocation12 + $0x28] sm:$0xff]
    %v5616 = vld [vmem:[#allocation12 + $0x30] sm:$0xff]
    %v5617 = vld [vmem:[#allocation12 + $0x38] sm:$0xff]
    %v5618 = vld [vmem:[#allocation12 + $0x40] sm:$0xff]
    %v5619 = vld [vmem:[#allocation12 + $0x48] sm:$0xff]
    %v5620 = vld [vmem:[#allocation12 + $0x50] sm:$0xff]
    %v5621 = vld [vmem:[#allocation12 + $0x58] sm:$0xff]
    %v5622 = vld [vmem:[#allocation12 + $0x60] sm:$0xff]
    %v5623 = vld [vmem:[#allocation12 + $0x68] sm:$0xff]
    %v5624 = vld [vmem:[#allocation12 + $0x70] sm:$0xff]
    %v5625 = vld [vmem:[#allocation12 + $0x78] sm:$0xff]
    %v5626 = vld [vmem:[#allocation12 + $0x80] sm:$0xff]
    %v5627 = vld [vmem:[#allocation12 + $0x88] sm:$0xff]
    %v5628 = vld [vmem:[#allocation12 + $0x90] sm:$0xff]
    %v5629 = vld [vmem:[#allocation12 + $0x98] sm:$0xff]
    %v5630 = vld [vmem:[#allocation12 + $0xa0] sm:$0xff]
    %v5631 = vld [vmem:[#allocation12 + $0xa8] sm:$0xff]
    %v5632 = vld [vmem:[#allocation12 + $0xb0] sm:$0xff]
    %v5633 = vld [vmem:[#allocation12 + $0xb8] sm:$0xff]
    %v5634 = vld [vmem:[#allocation12 + $0xc0] sm:$0xff]
    %v5635 = vld [vmem:[#allocation12 + $0xc8] sm:$0xff]
    %v5636 = vld [vmem:[#allocation12 + $0xd0] sm:$0xff]
    %v5637 = vld [vmem:[#allocation12 + $0xd8] sm:$0xff]
    %v5638 = vld [vmem:[#allocation12 + $0xe0] sm:$0xff]
    %v5639 = vld [vmem:[#allocation12 + $0xe8] sm:$0xff]
    %v5640 = vld [vmem:[#allocation12 + $0xf0] sm:$0xff]
    %v5641 = vld [vmem:[#allocation12 + $0xf8] sm:$0xff]
    %v5642 = vld [vmem:[#allocation12 + $0x100] sm:$0xff]
    %v5643 = vld [vmem:[#allocation12 + $0x108] sm:$0xff]
    %v5644 = vld [vmem:[#allocation12 + $0x110] sm:$0xff]
    %v5645 = vld [vmem:[#allocation12 + $0x118] sm:$0xff]
    %v5646 = vld [vmem:[#allocation12 + $0x120] sm:$0xff]
    %v5647 = vld [vmem:[#allocation12 + $0x128] sm:$0xff]
    %v5648 = vld [vmem:[#allocation12 + $0x130] sm:$0xff]
    %v5649 = vld [vmem:[#allocation12 + $0x138] sm:$0xff]
    %v5650 = vld [vmem:[#allocation12 + $0x140] sm:$0xff]
    %v5651 = vld [vmem:[#allocation12 + $0x148] sm:$0xff]
    %v5652 = vld [vmem:[#allocation12 + $0x150] sm:$0xff]
    %v5653 = vld [vmem:[#allocation12 + $0x158] sm:$0xff]
    %v5654 = vld [vmem:[#allocation12 + $0x160] sm:$0xff]
    %v5655 = vld [vmem:[#allocation12 + $0x168] sm:$0xff]
    %v5656 = vld [vmem:[#allocation12 + $0x170] sm:$0xff]
    %v5657 = vld [vmem:[#allocation12 + $0x178] sm:$0xff]
    %v5658 = vld [vmem:[#allocation12 + $0x180] sm:$0xff]
    %v5659 = vld [vmem:[#allocation12 + $0x188] sm:$0xff]
    %v5660 = vld [vmem:[#allocation12 + $0x190] sm:$0xff]
    %v5661 = vld [vmem:[#allocation12 + $0x198] sm:$0xff]
    %v5662 = vld [vmem:[#allocation12 + $0x1a0] sm:$0xff]
    %v5663 = vld [vmem:[#allocation12 + $0x1a8] sm:$0xff]
    %v5664 = vld [vmem:[#allocation12 + $0x1b0] sm:$0xff]
    %v5665 = vld [vmem:[#allocation12 + $0x1b8] sm:$0xff]
    %v5666 = vld [vmem:[#allocation12 + $0x1c0] sm:$0xff]
    %v5667 = vld [vmem:[#allocation12 + $0x1c8] sm:$0xff]
    %v5668 = vld [vmem:[#allocation12 + $0x1d0] sm:$0xff]
    %v5669 = vld [vmem:[#allocation12 + $0x1d8] sm:$0xff]
    %v5670 = vld [vmem:[#allocation12 + $0x1e0] sm:$0xff]
    %v5671 = vld [vmem:[#allocation12 + $0x1e8] sm:$0xff]
    %v5672 = vld [vmem:[#allocation12 + $0x1f0] sm:$0xff]
    %v5673 = vld [vmem:[#allocation12 + $0x1f8] sm:$0xff]
    %5674 = vmatprep.subr.mxu0 %v5671
    %5675 = vmatpush1.msra.mxu0 %v5670
    %5676 = vmatprep.subr.mxu0 %v5667
    %5677 = vmatpush1.msra.mxu0 %v5666
    %5678 = vmatprep.subr.mxu0 %v5663
    %5679 = vmatpush1.msra.mxu0 %v5662
    %5680 = vmatprep.subr.mxu0 %v5659
    %5681 = vmatpush1.msra.mxu0 %v5658
    %5682 = vmatprep.subr.mxu0 %v5655
    %5683 = vmatpush1.msra.mxu0 %v5654
    %5684 = vmatprep.subr.mxu0 %v5651
    %5685 = vmatpush1.msra.mxu0 %v5650
    %5686 = vmatprep.subr.mxu0 %v5647
    %5687 = vmatpush1.msra.mxu0 %v5646
    %5688 = vmatprep.subr.mxu0 %v5643
    %5689 = vmatpush1.msra.mxu0 %v5642
    %5690 = vmatprep.subr.mxu0 %v5639
    %5691 = vmatpush1.msra.mxu0 %v5638
    %5692 = vmatprep.subr.mxu0 %v5635
    %5693 = vmatpush1.msra.mxu0 %v5634
    %5694 = vmatprep.subr.mxu0 %v5631
    %5695 = vmatpush1.msra.mxu0 %v5630
    %5696 = vmatprep.subr.mxu0 %v5627
    %5697 = vmatpush1.msra.mxu0 %v5626
    %5698 = vmatprep.subr.mxu0 %v5623
    %5699 = vmatpush1.msra.mxu0 %v5622
    %5700 = vmatprep.subr.mxu0 %v5619
    %5701 = vmatpush1.msra.mxu0 %v5618
    %5702 = vmatprep.subr.mxu0 %v5615
    %5703 = vmatpush1.msra.mxu0 %v5614
    %5704 = vmatprep.subr.mxu0 %v5611
    %5705 = vmatpush1.msra.mxu0 %v5610
    %5706 = vmatprep.subr.mxu0 0.0
    %5707 = vmatpush2.msra.mxu0 0.0
    %5708 = vmatprep.subr.mxu0 0.0
    %5709 = vmatpush2.msra.mxu0 0.0
    %5710 = vmatprep.subr.mxu0 0.0
    %5711 = vmatpush2.msra.mxu0 0.0
    %5712 = vmatprep.subr.mxu0 0.0
    %5713 = vmatpush2.msra.mxu0 0.0
    %5714 = vmatprep.subr.mxu0 0.0
    %5715 = vmatpush2.msra.mxu0 0.0
    %5716 = vmatprep.subr.mxu0 0.0
    %5717 = vmatpush2.msra.mxu0 0.0
    %5718 = vmatprep.subr.mxu0 0.0
    %5719 = vmatpush2.msra.mxu0 0.0
    %5720 = vmatprep.subr.mxu0 0.0
    %5721 = vmatpush2.msra.mxu0 0.0
    %5722 = vmatprep.subr.mxu0 0.0
    %5723 = vmatpush2.msra.mxu0 0.0
    %5724 = vmatprep.subr.mxu0 0.0
    %5725 = vmatpush2.msra.mxu0 0.0
    %5726 = vmatprep.subr.mxu0 0.0
    %5727 = vmatpush2.msra.mxu0 0.0
    %5728 = vmatprep.subr.mxu0 0.0
    %5729 = vmatpush2.msra.mxu0 0.0
    %5730 = vmatprep.subr.mxu0 0.0
    %5731 = vmatpush2.msra.mxu0 0.0
    %5732 = vmatprep.subr.mxu0 0.0
    %5733 = vmatpush2.msra.mxu0 0.0
    %5734 = vmatprep.subr.mxu0 0.0
    %5735 = vmatpush2.msra.mxu0 0.0
    %5736 = vmatprep.subr.mxu0 0.0
    %5737 = vmatpush2.msra.mxu0 0.0
    %5738 = vmatprep.mubr.f32.mxu0 0.0
    %5739 = vmatmul.mubr.f32.gmra.mxu0 %v5520
    %v5740 = vpop.f32.mrf.mxu0
    %v5741 = vadd.f32 0.0, %v5740
    %v5742 = vpop.f32.mrf.mxu0
    %v5743 = vadd.f32 0.0, %v5742
    %5744 = vdwg.mxu0
    %5745 = vmatprep.subr.mxu0 %v5673
    %5746 = vmatpush1.msra.mxu0 %v5672
    %5747 = vmatprep.subr.mxu0 %v5669
    %5748 = vmatpush1.msra.mxu0 %v5668
    %5749 = vmatprep.subr.mxu0 %v5665
    %5750 = vmatpush1.msra.mxu0 %v5664
    %5751 = vmatprep.subr.mxu0 %v5661
    %5752 = vmatpush1.msra.mxu0 %v5660
    %5753 = vmatprep.subr.mxu0 %v5657
    %5754 = vmatpush1.msra.mxu0 %v5656
    %5755 = vmatprep.subr.mxu0 %v5653
    %5756 = vmatpush1.msra.mxu0 %v5652
    %5757 = vmatprep.subr.mxu0 %v5649
    %5758 = vmatpush1.msra.mxu0 %v5648
    %5759 = vmatprep.subr.mxu0 %v5645
    %5760 = vmatpush1.msra.mxu0 %v5644
    %5761 = vmatprep.subr.mxu0 %v5641
    %5762 = vmatpush1.msra.mxu0 %v5640
    %5763 = vmatprep.subr.mxu0 %v5637
    %5764 = vmatpush1.msra.mxu0 %v5636
    %5765 = vmatprep.subr.mxu0 %v5633
    %5766 = vmatpush1.msra.mxu0 %v5632
    %5767 = vmatprep.subr.mxu0 %v5629
    %5768 = vmatpush1.msra.mxu0 %v5628
    %5769 = vmatprep.subr.mxu0 %v5625
    %5770 = vmatpush1.msra.mxu0 %v5624
    %5771 = vmatprep.subr.mxu0 %v5621
    %5772 = vmatpush1.msra.mxu0 %v5620
    %5773 = vmatprep.subr.mxu0 %v5617
    %5774 = vmatpush1.msra.mxu0 %v5616
    %5775 = vmatprep.subr.mxu0 %v5613
    %5776 = vmatpush1.msra.mxu0 %v5612
    %5777 = vmatprep.subr.mxu0 0.0
    %5778 = vmatpush2.msra.mxu0 0.0
    %5779 = vmatprep.subr.mxu0 0.0
    %5780 = vmatpush2.msra.mxu0 0.0
    %5781 = vmatprep.subr.mxu0 0.0
    %5782 = vmatpush2.msra.mxu0 0.0
    %5783 = vmatprep.subr.mxu0 0.0
    %5784 = vmatpush2.msra.mxu0 0.0
    %5785 = vmatprep.subr.mxu0 0.0
    %5786 = vmatpush2.msra.mxu0 0.0
    %5787 = vmatprep.subr.mxu0 0.0
    %5788 = vmatpush2.msra.mxu0 0.0
    %5789 = vmatprep.subr.mxu0 0.0
    %5790 = vmatpush2.msra.mxu0 0.0
    %5791 = vmatprep.subr.mxu0 0.0
    %5792 = vmatpush2.msra.mxu0 0.0
    %5793 = vmatprep.subr.mxu0 0.0
    %5794 = vmatpush2.msra.mxu0 0.0
    %5795 = vmatprep.subr.mxu0 0.0
    %5796 = vmatpush2.msra.mxu0 0.0
    %5797 = vmatprep.subr.mxu0 0.0
    %5798 = vmatpush2.msra.mxu0 0.0
    %5799 = vmatprep.subr.mxu0 0.0
    %5800 = vmatpush2.msra.mxu0 0.0
    %5801 = vmatprep.subr.mxu0 0.0
    %5802 = vmatpush2.msra.mxu0 0.0
    %5803 = vmatprep.subr.mxu0 0.0
    %5804 = vmatpush2.msra.mxu0 0.0
    %5805 = vmatprep.subr.mxu0 0.0
    %5806 = vmatpush2.msra.mxu0 0.0
    %5807 = vmatprep.subr.mxu0 0.0
    %5808 = vmatpush2.msra.mxu0 0.0
    %5809 = vmatprep.mubr.f32.mxu0 0.0
    %5810 = vmatmul.mubr.f32.gmra.mxu0 %v5520
    %v5811 = vpop.f32.mrf.mxu0
    %v5812 = vadd.f32 0.0, %v5811
    %v5813 = vpop.f32.mrf.mxu0
    %v5814 = vadd.f32 0.0, %v5813
    %5815 = vdwg.mxu0
    %p5816 = scmp.lt.s32.totalorder %s5609, 0
    %s5817 = ssub.s32 0, %s5609
    %s5818 = scalar_select %p5816, %s5817, %s5609
    %s5819 = sand.u32 %s5818, 1
    %s5820 = ssub.s32 0, %s5819
    %s5821 = scalar_select %p5816, %s5820, %s5819
    %p5822 = scmp.ne.s32.totalorder %s5821, 0
    %p5823 = scmp.lt.s32.totalorder %s5821, 0
    %p5824 = pnand %p5823, %p5822
    %p5825 = pneg %p5824
    %s5826 = sadd.s32 %s5821, 2
    %s5827 = scalar_select %p5825, %s5826, %s5821
    %s5828 = smul.u32 %s5827, 4
    %s5829 = smul.addr %s5828, 8
    %s5830 = scalar_lea.vmem [#allocation6], %s5829
    %v5831 = vld [vmem:[%s5830] sm:$0xff]
    %v5832 = vld [vmem:[%s5830 + $0x8] sm:$0xff]
    %v5833 = vld [vmem:[%s5830 + $0x10] sm:$0xff]
    %v5834 = vld [vmem:[%s5830 + $0x18] sm:$0xff]
    %v5835 = vld [vmem:[#allocation9] sm:$0xff]
    %v5836 = vld [vmem:[#allocation9 + $0x8] sm:$0xff]
    %v5837 = vld [vmem:[#allocation9 + $0x10] sm:$0xff]
    %v5838 = vld [vmem:[#allocation9 + $0x18] sm:$0xff]
    %v5839 = vld [vmem:[#allocation9 + $0x20] sm:$0xff]
    %v5840 = vld [vmem:[#allocation9 + $0x28] sm:$0xff]
    %v5841 = vld [vmem:[#allocation9 + $0x30] sm:$0xff]
    %v5842 = vld [vmem:[#allocation9 + $0x38] sm:$0xff]
    %v5843 = vld [vmem:[#allocation9 + $0x40] sm:$0xff]
    %v5844 = vld [vmem:[#allocation9 + $0x48] sm:$0xff]
    %v5845 = vld [vmem:[#allocation9 + $0x50] sm:$0xff]
    %v5846 = vld [vmem:[#allocation9 + $0x58] sm:$0xff]
    %v5847 = vld [vmem:[#allocation9 + $0x60] sm:$0xff]
    %v5848 = vld [vmem:[#allocation9 + $0x68] sm:$0xff]
    %v5849 = vld [vmem:[#allocation9 + $0x70] sm:$0xff]
    %v5850 = vld [vmem:[#allocation9 + $0x78] sm:$0xff]
    %v5851 = vld [vmem:[#allocation9 + $0x80] sm:$0xff]
    %v5852 = vld [vmem:[#allocation9 + $0x88] sm:$0xff]
    %v5853 = vld [vmem:[#allocation9 + $0x90] sm:$0xff]
    %v5854 = vld [vmem:[#allocation9 + $0x98] sm:$0xff]
    %v5855 = vld [vmem:[#allocation9 + $0xa0] sm:$0xff]
    %v5856 = vld [vmem:[#allocation9 + $0xa8] sm:$0xff]
    %v5857 = vld [vmem:[#allocation9 + $0xb0] sm:$0xff]
    %v5858 = vld [vmem:[#allocation9 + $0xb8] sm:$0xff]
    %v5859 = vld [vmem:[#allocation9 + $0xc0] sm:$0xff]
    %v5860 = vld [vmem:[#allocation9 + $0xc8] sm:$0xff]
    %v5861 = vld [vmem:[#allocation9 + $0xd0] sm:$0xff]
    %v5862 = vld [vmem:[#allocation9 + $0xd8] sm:$0xff]
    %v5863 = vld [vmem:[#allocation9 + $0xe0] sm:$0xff]
    %v5864 = vld [vmem:[#allocation9 + $0xe8] sm:$0xff]
    %v5865 = vld [vmem:[#allocation9 + $0xf0] sm:$0xff]
    %v5866 = vld [vmem:[#allocation9 + $0xf8] sm:$0xff]
    %v5867 = vld [vmem:[#allocation9 + $0x100] sm:$0xff]
    %v5868 = vld [vmem:[#allocation9 + $0x108] sm:$0xff]
    %v5869 = vld [vmem:[#allocation9 + $0x110] sm:$0xff]
    %v5870 = vld [vmem:[#allocation9 + $0x118] sm:$0xff]
    %v5871 = vld [vmem:[#allocation9 + $0x120] sm:$0xff]
    %v5872 = vld [vmem:[#allocation9 + $0x128] sm:$0xff]
    %v5873 = vld [vmem:[#allocation9 + $0x130] sm:$0xff]
    %v5874 = vld [vmem:[#allocation9 + $0x138] sm:$0xff]
    %v5875 = vld [vmem:[#allocation9 + $0x140] sm:$0xff]
    %v5876 = vld [vmem:[#allocation9 + $0x148] sm:$0xff]
    %v5877 = vld [vmem:[#allocation9 + $0x150] sm:$0xff]
    %v5878 = vld [vmem:[#allocation9 + $0x158] sm:$0xff]
    %v5879 = vld [vmem:[#allocation9 + $0x160] sm:$0xff]
    %v5880 = vld [vmem:[#allocation9 + $0x168] sm:$0xff]
    %v5881 = vld [vmem:[#allocation9 + $0x170] sm:$0xff]
    %v5882 = vld [vmem:[#allocation9 + $0x178] sm:$0xff]
    %v5883 = vld [vmem:[#allocation9 + $0x180] sm:$0xff]
    %v5884 = vld [vmem:[#allocation9 + $0x188] sm:$0xff]
    %v5885 = vld [vmem:[#allocation9 + $0x190] sm:$0xff]
    %v5886 = vld [vmem:[#allocation9 + $0x198] sm:$0xff]
    %v5887 = vld [vmem:[#allocation9 + $0x1a0] sm:$0xff]
    %v5888 = vld [vmem:[#allocation9 + $0x1a8] sm:$0xff]
    %v5889 = vld [vmem:[#allocation9 + $0x1b0] sm:$0xff]
    %v5890 = vld [vmem:[#allocation9 + $0x1b8] sm:$0xff]
    %v5891 = vld [vmem:[#allocation9 + $0x1c0] sm:$0xff]
    %v5892 = vld [vmem:[#allocation9 + $0x1c8] sm:$0xff]
    %v5893 = vld [vmem:[#allocation9 + $0x1d0] sm:$0xff]
    %v5894 = vld [vmem:[#allocation9 + $0x1d8] sm:$0xff]
    %v5895 = vld [vmem:[#allocation9 + $0x1e0] sm:$0xff]
    %v5896 = vld [vmem:[#allocation9 + $0x1e8] sm:$0xff]
    %v5897 = vld [vmem:[#allocation9 + $0x1f0] sm:$0xff]
    %v5898 = vld [vmem:[#allocation9 + $0x1f8] sm:$0xff]
    %5899 = vmatprep.subr.mxu0 %v5896
    %5900 = vmatpush1.msra.mxu0 %v5895
    %5901 = vmatprep.subr.mxu0 %v5892
    %5902 = vmatpush1.msra.mxu0 %v5891
    %5903 = vmatprep.subr.mxu0 %v5888
    %5904 = vmatpush1.msra.mxu0 %v5887
    %5905 = vmatprep.subr.mxu0 %v5884
    %5906 = vmatpush1.msra.mxu0 %v5883
    %5907 = vmatprep.subr.mxu0 %v5880
    %5908 = vmatpush1.msra.mxu0 %v5879
    %5909 = vmatprep.subr.mxu0 %v5876
    %5910 = vmatpush1.msra.mxu0 %v5875
    %5911 = vmatprep.subr.mxu0 %v5872
    %5912 = vmatpush1.msra.mxu0 %v5871
    %5913 = vmatprep.subr.mxu0 %v5868
    %5914 = vmatpush1.msra.mxu0 %v5867
    %5915 = vmatprep.subr.mxu0 %v5864
    %5916 = vmatpush1.msra.mxu0 %v5863
    %5917 = vmatprep.subr.mxu0 %v5860
    %5918 = vmatpush1.msra.mxu0 %v5859
    %5919 = vmatprep.subr.mxu0 %v5856
    %5920 = vmatpush1.msra.mxu0 %v5855
    %5921 = vmatprep.subr.mxu0 %v5852
    %5922 = vmatpush1.msra.mxu0 %v5851
    %5923 = vmatprep.subr.mxu0 %v5848
    %5924 = vmatpush1.msra.mxu0 %v5847
    %5925 = vmatprep.subr.mxu0 %v5844
    %5926 = vmatpush1.msra.mxu0 %v5843
    %5927 = vmatprep.subr.mxu0 %v5840
    %5928 = vmatpush1.msra.mxu0 %v5839
    %5929 = vmatprep.subr.mxu0 %v5836
    %5930 = vmatpush1.msra.mxu0 %v5835
    %5931 = vmatprep.subr.mxu0 0.0
    %5932 = vmatpush2.msra.mxu0 0.0
    %5933 = vmatprep.subr.mxu0 0.0
    %5934 = vmatpush2.msra.mxu0 0.0
    %5935 = vmatprep.subr.mxu0 0.0
    %5936 = vmatpush2.msra.mxu0 0.0
    %5937 = vmatprep.subr.mxu0 0.0
    %5938 = vmatpush2.msra.mxu0 0.0
    %5939 = vmatprep.subr.mxu0 0.0
    %5940 = vmatpush2.msra.mxu0 0.0
    %5941 = vmatprep.subr.mxu0 0.0
    %5942 = vmatpush2.msra.mxu0 0.0
    %5943 = vmatprep.subr.mxu0 0.0
    %5944 = vmatpush2.msra.mxu0 0.0
    %5945 = vmatprep.subr.mxu0 0.0
    %5946 = vmatpush2.msra.mxu0 0.0
    %5947 = vmatprep.subr.mxu0 0.0
    %5948 = vmatpush2.msra.mxu0 0.0
    %5949 = vmatprep.subr.mxu0 0.0
    %5950 = vmatpush2.msra.mxu0 0.0
    %5951 = vmatprep.subr.mxu0 0.0
    %5952 = vmatpush2.msra.mxu0 0.0
    %5953 = vmatprep.subr.mxu0 0.0
    %5954 = vmatpush2.msra.mxu0 0.0
    %5955 = vmatprep.subr.mxu0 0.0
    %5956 = vmatpush2.msra.mxu0 0.0
    %5957 = vmatprep.subr.mxu0 0.0
    %5958 = vmatpush2.msra.mxu0 0.0
    %5959 = vmatprep.subr.mxu0 0.0
    %5960 = vmatpush2.msra.mxu0 0.0
    %5961 = vmatprep.subr.mxu0 0.0
    %5962 = vmatpush2.msra.mxu0 0.0
    %5963 = vmatprep.mubr.f32.mxu0 0.0
    %5964 = vmatmul.mubr.f32.gmra.mxu0 %v5286
    %v5965 = vpop.f32.mrf.mxu0
    %v5966 = vadd.f32 0.0, %v5965
    %v5967 = vpop.f32.mrf.mxu0
    %v5968 = vadd.f32 0.0, %v5967
    %5969 = vdwg.mxu0
    %5970 = vmatprep.subr.mxu0 %v5898
    %5971 = vmatpush1.msra.mxu0 %v5897
    %5972 = vmatprep.subr.mxu0 %v5894
    %5973 = vmatpush1.msra.mxu0 %v5893
    %5974 = vmatprep.subr.mxu0 %v5890
    %5975 = vmatpush1.msra.mxu0 %v5889
    %5976 = vmatprep.subr.mxu0 %v5886
    %5977 = vmatpush1.msra.mxu0 %v5885
    %5978 = vmatprep.subr.mxu0 %v5882
    %5979 = vmatpush1.msra.mxu0 %v5881
    %5980 = vmatprep.subr.mxu0 %v5878
    %5981 = vmatpush1.msra.mxu0 %v5877
    %5982 = vmatprep.subr.mxu0 %v5874
    %5983 = vmatpush1.msra.mxu0 %v5873
    %5984 = vmatprep.subr.mxu0 %v5870
    %5985 = vmatpush1.msra.mxu0 %v5869
    %5986 = vmatprep.subr.mxu0 %v5866
    %5987 = vmatpush1.msra.mxu0 %v5865
    %5988 = vmatprep.subr.mxu0 %v5862
    %5989 = vmatpush1.msra.mxu0 %v5861
    %5990 = vmatprep.subr.mxu0 %v5858
    %5991 = vmatpush1.msra.mxu0 %v5857
    %5992 = vmatprep.subr.mxu0 %v5854
    %5993 = vmatpush1.msra.mxu0 %v5853
    %5994 = vmatprep.subr.mxu0 %v5850
    %5995 = vmatpush1.msra.mxu0 %v5849
    %5996 = vmatprep.subr.mxu0 %v5846
    %5997 = vmatpush1.msra.mxu0 %v5845
    %5998 = vmatprep.subr.mxu0 %v5842
    %5999 = vmatpush1.msra.mxu0 %v5841
    %6000 = vmatprep.subr.mxu0 %v5838
    %6001 = vmatpush1.msra.mxu0 %v5837
    %6002 = vmatprep.subr.mxu0 0.0
    %6003 = vmatpush2.msra.mxu0 0.0
    %6004 = vmatprep.subr.mxu0 0.0
    %6005 = vmatpush2.msra.mxu0 0.0
    %6006 = vmatprep.subr.mxu0 0.0
    %6007 = vmatpush2.msra.mxu0 0.0
    %6008 = vmatprep.subr.mxu0 0.0
    %6009 = vmatpush2.msra.mxu0 0.0
    %6010 = vmatprep.subr.mxu0 0.0
    %6011 = vmatpush2.msra.mxu0 0.0
    %6012 = vmatprep.subr.mxu0 0.0
    %6013 = vmatpush2.msra.mxu0 0.0
    %6014 = vmatprep.subr.mxu0 0.0
    %6015 = vmatpush2.msra.mxu0 0.0
    %6016 = vmatprep.subr.mxu0 0.0
    %6017 = vmatpush2.msra.mxu0 0.0
    %6018 = vmatprep.subr.mxu0 0.0
    %6019 = vmatpush2.msra.mxu0 0.0
    %6020 = vmatprep.subr.mxu0 0.0
    %6021 = vmatpush2.msra.mxu0 0.0
    %6022 = vmatprep.subr.mxu0 0.0
    %6023 = vmatpush2.msra.mxu0 0.0
    %6024 = vmatprep.subr.mxu0 0.0
    %6025 = vmatpush2.msra.mxu0 0.0
    %6026 = vmatprep.subr.mxu0 0.0
    %6027 = vmatpush2.msra.mxu0 0.0
    %6028 = vmatprep.subr.mxu0 0.0
    %6029 = vmatpush2.msra.mxu0 0.0
    %6030 = vmatprep.subr.mxu0 0.0
    %6031 = vmatpush2.msra.mxu0 0.0
    %6032 = vmatprep.subr.mxu0 0.0
    %6033 = vmatpush2.msra.mxu0 0.0
    %6034 = vmatprep.mubr.f32.mxu0 0.0
    %6035 = vmatmul.mubr.f32.gmra.mxu0 %v5286
    %v6036 = vpop.f32.mrf.mxu0
    %v6037 = vadd.f32 0.0, %v6036
    %v6038 = vpop.f32.mrf.mxu0
    %v6039 = vadd.f32 0.0, %v6038
    %6040 = vdwg.mxu0
    %v6041 = vadd.f32 %v5831, %v5966
    %v6042 = vadd.f32 %v5832, %v5968
    %v6043 = vadd.f32 %v5833, %v6037
    %v6044 = vadd.f32 %v5834, %v6039
    %v6045 = vxor.u32 %v6041, 2147483648
    %v6046 = vmul.f32 %v6045, 1.442695
    %v6047 = vpow.pop %v6046
    %v6048 = vadd.f32 %v6047, 1.0
    %v6049 = vrcp.pop %v6048
    %v6050 = vmul.f32 1.0, %v6049
    %v6051 = vxor.u32 %v6042, 2147483648
    %v6052 = vmul.f32 %v6051, 1.442695
    %v6053 = vpow.pop %v6052
    %v6054 = vadd.f32 %v6053, 1.0
    %v6055 = vrcp.pop %v6054
    %v6056 = vmul.f32 1.0, %v6055
    %v6057 = vtanh.pop %v6043
    %v6058 = vxor.u32 %v6044, 2147483648
    %v6059 = vmul.f32 %v6058, 1.442695
    %v6060 = vpow.pop %v6059
    %v6061 = vadd.f32 %v6060, 1.0
    %v6062 = vrcp.pop %v6061
    %v6063 = vmul.f32 1.0, %v6062
    %v6064 = vmul.f32 %v6056, %v5284
    %v6065 = vmul.f32 %v6050, %v6057
    %v6066 = vadd.f32 %v6064, %v6065
    %v6067 = vtanh.pop %v6066
    %v6068 = vmul.f32 %v6063, %v6067
    %v6069 = vld [vmem:[#allocation11] sm:$0xff]
    %v6070 = vld [vmem:[#allocation11 + $0x8] sm:$0xff]
    %v6071 = vld [vmem:[#allocation11 + $0x10] sm:$0xff]
    %v6072 = vld [vmem:[#allocation11 + $0x18] sm:$0xff]
    %v6073 = vld [vmem:[#allocation11 + $0x20] sm:$0xff]
    %v6074 = vld [vmem:[#allocation11 + $0x28] sm:$0xff]
    %v6075 = vld [vmem:[#allocation11 + $0x30] sm:$0xff]
    %v6076 = vld [vmem:[#allocation11 + $0x38] sm:$0xff]
    %v6077 = vld [vmem:[#allocation11 + $0x40] sm:$0xff]
    %v6078 = vld [vmem:[#allocation11 + $0x48] sm:$0xff]
    %v6079 = vld [vmem:[#allocation11 + $0x50] sm:$0xff]
    %v6080 = vld [vmem:[#allocation11 + $0x58] sm:$0xff]
    %v6081 = vld [vmem:[#allocation11 + $0x60] sm:$0xff]
    %v6082 = vld [vmem:[#allocation11 + $0x68] sm:$0xff]
    %v6083 = vld [vmem:[#allocation11 + $0x70] sm:$0xff]
    %v6084 = vld [vmem:[#allocation11 + $0x78] sm:$0xff]
    %v6085 = vld [vmem:[#allocation11 + $0x80] sm:$0xff]
    %v6086 = vld [vmem:[#allocation11 + $0x88] sm:$0xff]
    %v6087 = vld [vmem:[#allocation11 + $0x90] sm:$0xff]
    %v6088 = vld [vmem:[#allocation11 + $0x98] sm:$0xff]
    %v6089 = vld [vmem:[#allocation11 + $0xa0] sm:$0xff]
    %v6090 = vld [vmem:[#allocation11 + $0xa8] sm:$0xff]
    %v6091 = vld [vmem:[#allocation11 + $0xb0] sm:$0xff]
    %v6092 = vld [vmem:[#allocation11 + $0xb8] sm:$0xff]
    %v6093 = vld [vmem:[#allocation11 + $0xc0] sm:$0xff]
    %v6094 = vld [vmem:[#allocation11 + $0xc8] sm:$0xff]
    %v6095 = vld [vmem:[#allocation11 + $0xd0] sm:$0xff]
    %v6096 = vld [vmem:[#allocation11 + $0xd8] sm:$0xff]
    %v6097 = vld [vmem:[#allocation11 + $0xe0] sm:$0xff]
    %v6098 = vld [vmem:[#allocation11 + $0xe8] sm:$0xff]
    %v6099 = vld [vmem:[#allocation11 + $0xf0] sm:$0xff]
    %v6100 = vld [vmem:[#allocation11 + $0xf8] sm:$0xff]
    %v6101 = vld [vmem:[#allocation11 + $0x100] sm:$0xff]
    %v6102 = vld [vmem:[#allocation11 + $0x108] sm:$0xff]
    %v6103 = vld [vmem:[#allocation11 + $0x110] sm:$0xff]
    %v6104 = vld [vmem:[#allocation11 + $0x118] sm:$0xff]
    %v6105 = vld [vmem:[#allocation11 + $0x120] sm:$0xff]
    %v6106 = vld [vmem:[#allocation11 + $0x128] sm:$0xff]
    %v6107 = vld [vmem:[#allocation11 + $0x130] sm:$0xff]
    %v6108 = vld [vmem:[#allocation11 + $0x138] sm:$0xff]
    %v6109 = vld [vmem:[#allocation11 + $0x140] sm:$0xff]
    %v6110 = vld [vmem:[#allocation11 + $0x148] sm:$0xff]
    %v6111 = vld [vmem:[#allocation11 + $0x150] sm:$0xff]
    %v6112 = vld [vmem:[#allocation11 + $0x158] sm:$0xff]
    %v6113 = vld [vmem:[#allocation11 + $0x160] sm:$0xff]
    %v6114 = vld [vmem:[#allocation11 + $0x168] sm:$0xff]
    %v6115 = vld [vmem:[#allocation11 + $0x170] sm:$0xff]
    %v6116 = vld [vmem:[#allocation11 + $0x178] sm:$0xff]
    %v6117 = vld [vmem:[#allocation11 + $0x180] sm:$0xff]
    %v6118 = vld [vmem:[#allocation11 + $0x188] sm:$0xff]
    %v6119 = vld [vmem:[#allocation11 + $0x190] sm:$0xff]
    %v6120 = vld [vmem:[#allocation11 + $0x198] sm:$0xff]
    %v6121 = vld [vmem:[#allocation11 + $0x1a0] sm:$0xff]
    %v6122 = vld [vmem:[#allocation11 + $0x1a8] sm:$0xff]
    %v6123 = vld [vmem:[#allocation11 + $0x1b0] sm:$0xff]
    %v6124 = vld [vmem:[#allocation11 + $0x1b8] sm:$0xff]
    %v6125 = vld [vmem:[#allocation11 + $0x1c0] sm:$0xff]
    %v6126 = vld [vmem:[#allocation11 + $0x1c8] sm:$0xff]
    %v6127 = vld [vmem:[#allocation11 + $0x1d0] sm:$0xff]
    %v6128 = vld [vmem:[#allocation11 + $0x1d8] sm:$0xff]
    %v6129 = vld [vmem:[#allocation11 + $0x1e0] sm:$0xff]
    %v6130 = vld [vmem:[#allocation11 + $0x1e8] sm:$0xff]
    %v6131 = vld [vmem:[#allocation11 + $0x1f0] sm:$0xff]
    %v6132 = vld [vmem:[#allocation11 + $0x1f8] sm:$0xff]
    %6133 = vmatprep.subr.mxu0 %v6130
    %6134 = vmatpush1.msra.mxu0 %v6129
    %6135 = vmatprep.subr.mxu0 %v6126
    %6136 = vmatpush1.msra.mxu0 %v6125
    %6137 = vmatprep.subr.mxu0 %v6122
    %6138 = vmatpush1.msra.mxu0 %v6121
    %6139 = vmatprep.subr.mxu0 %v6118
    %6140 = vmatpush1.msra.mxu0 %v6117
    %6141 = vmatprep.subr.mxu0 %v6114
    %6142 = vmatpush1.msra.mxu0 %v6113
    %6143 = vmatprep.subr.mxu0 %v6110
    %6144 = vmatpush1.msra.mxu0 %v6109
    %6145 = vmatprep.subr.mxu0 %v6106
    %6146 = vmatpush1.msra.mxu0 %v6105
    %6147 = vmatprep.subr.mxu0 %v6102
    %6148 = vmatpush1.msra.mxu0 %v6101
    %6149 = vmatprep.subr.mxu0 %v6098
    %6150 = vmatpush1.msra.mxu0 %v6097
    %6151 = vmatprep.subr.mxu0 %v6094
    %6152 = vmatpush1.msra.mxu0 %v6093
    %6153 = vmatprep.subr.mxu0 %v6090
    %6154 = vmatpush1.msra.mxu0 %v6089
    %6155 = vmatprep.subr.mxu0 %v6086
    %6156 = vmatpush1.msra.mxu0 %v6085
    %6157 = vmatprep.subr.mxu0 %v6082
    %6158 = vmatpush1.msra.mxu0 %v6081
    %6159 = vmatprep.subr.mxu0 %v6078
    %6160 = vmatpush1.msra.mxu0 %v6077
    %6161 = vmatprep.subr.mxu0 %v6074
    %6162 = vmatpush1.msra.mxu0 %v6073
    %6163 = vmatprep.subr.mxu0 %v6070
    %6164 = vmatpush1.msra.mxu0 %v6069
    %6165 = vmatprep.subr.mxu0 0.0
    %6166 = vmatpush2.msra.mxu0 0.0
    %6167 = vmatprep.subr.mxu0 0.0
    %6168 = vmatpush2.msra.mxu0 0.0
    %6169 = vmatprep.subr.mxu0 0.0
    %6170 = vmatpush2.msra.mxu0 0.0
    %6171 = vmatprep.subr.mxu0 0.0
    %6172 = vmatpush2.msra.mxu0 0.0
    %6173 = vmatprep.subr.mxu0 0.0
    %6174 = vmatpush2.msra.mxu0 0.0
    %6175 = vmatprep.subr.mxu0 0.0
    %6176 = vmatpush2.msra.mxu0 0.0
    %6177 = vmatprep.subr.mxu0 0.0
    %6178 = vmatpush2.msra.mxu0 0.0
    %6179 = vmatprep.subr.mxu0 0.0
    %6180 = vmatpush2.msra.mxu0 0.0
    %6181 = vmatprep.subr.mxu0 0.0
    %6182 = vmatpush2.msra.mxu0 0.0
    %6183 = vmatprep.subr.mxu0 0.0
    %6184 = vmatpush2.msra.mxu0 0.0
    %6185 = vmatprep.subr.mxu0 0.0
    %6186 = vmatpush2.msra.mxu0 0.0
    %6187 = vmatprep.subr.mxu0 0.0
    %6188 = vmatpush2.msra.mxu0 0.0
    %6189 = vmatprep.subr.mxu0 0.0
    %6190 = vmatpush2.msra.mxu0 0.0
    %6191 = vmatprep.subr.mxu0 0.0
    %6192 = vmatpush2.msra.mxu0 0.0
    %6193 = vmatprep.subr.mxu0 0.0
    %6194 = vmatpush2.msra.mxu0 0.0
    %6195 = vmatprep.subr.mxu0 0.0
    %6196 = vmatpush2.msra.mxu0 0.0
    %6197 = vmatprep.mubr.f32.mxu0 0.0
    %6198 = vmatmul.mubr.f32.gmra.mxu0 %v6068
    %v6199 = vpop.f32.mrf.mxu0
    %v6200 = vadd.f32 %v5741, %v6199
    %v6201 = vpop.f32.mrf.mxu0
    %v6202 = vadd.f32 %v5743, %v6201
    %6203 = vdwg.mxu0
    %6204 = vmatprep.subr.mxu0 %v6132
    %6205 = vmatpush1.msra.mxu0 %v6131
    %6206 = vmatprep.subr.mxu0 %v6128
    %6207 = vmatpush1.msra.mxu0 %v6127
    %6208 = vmatprep.subr.mxu0 %v6124
    %6209 = vmatpush1.msra.mxu0 %v6123
    %6210 = vmatprep.subr.mxu0 %v6120
    %6211 = vmatpush1.msra.mxu0 %v6119
    %6212 = vmatprep.subr.mxu0 %v6116
    %6213 = vmatpush1.msra.mxu0 %v6115
    %6214 = vmatprep.subr.mxu0 %v6112
    %6215 = vmatpush1.msra.mxu0 %v6111
    %6216 = vmatprep.subr.mxu0 %v6108
    %6217 = vmatpush1.msra.mxu0 %v6107
    %6218 = vmatprep.subr.mxu0 %v6104
    %6219 = vmatpush1.msra.mxu0 %v6103
    %6220 = vmatprep.subr.mxu0 %v6100
    %6221 = vmatpush1.msra.mxu0 %v6099
    %6222 = vmatprep.subr.mxu0 %v6096
    %6223 = vmatpush1.msra.mxu0 %v6095
    %6224 = vmatprep.subr.mxu0 %v6092
    %6225 = vmatpush1.msra.mxu0 %v6091
    %6226 = vmatprep.subr.mxu0 %v6088
    %6227 = vmatpush1.msra.mxu0 %v6087
    %6228 = vmatprep.subr.mxu0 %v6084
    %6229 = vmatpush1.msra.mxu0 %v6083
    %6230 = vmatprep.subr.mxu0 %v6080
    %6231 = vmatpush1.msra.mxu0 %v6079
    %6232 = vmatprep.subr.mxu0 %v6076
    %6233 = vmatpush1.msra.mxu0 %v6075
    %6234 = vmatprep.subr.mxu0 %v6072
    %6235 = vmatpush1.msra.mxu0 %v6071
    %6236 = vmatprep.subr.mxu0 0.0
    %6237 = vmatpush2.msra.mxu0 0.0
    %6238 = vmatprep.subr.mxu0 0.0
    %6239 = vmatpush2.msra.mxu0 0.0
    %6240 = vmatprep.subr.mxu0 0.0
    %6241 = vmatpush2.msra.mxu0 0.0
    %6242 = vmatprep.subr.mxu0 0.0
    %6243 = vmatpush2.msra.mxu0 0.0
    %6244 = vmatprep.subr.mxu0 0.0
    %6245 = vmatpush2.msra.mxu0 0.0
    %6246 = vmatprep.subr.mxu0 0.0
    %6247 = vmatpush2.msra.mxu0 0.0
    %6248 = vmatprep.subr.mxu0 0.0
    %6249 = vmatpush2.msra.mxu0 0.0
    %6250 = vmatprep.subr.mxu0 0.0
    %6251 = vmatpush2.msra.mxu0 0.0
    %6252 = vmatprep.subr.mxu0 0.0
    %6253 = vmatpush2.msra.mxu0 0.0
    %6254 = vmatprep.subr.mxu0 0.0
    %6255 = vmatpush2.msra.mxu0 0.0
    %6256 = vmatprep.subr.mxu0 0.0
    %6257 = vmatpush2.msra.mxu0 0.0
    %6258 = vmatprep.subr.mxu0 0.0
    %6259 = vmatpush2.msra.mxu0 0.0
    %6260 = vmatprep.subr.mxu0 0.0
    %6261 = vmatpush2.msra.mxu0 0.0
    %6262 = vmatprep.subr.mxu0 0.0
    %6263 = vmatpush2.msra.mxu0 0.0
    %6264 = vmatprep.subr.mxu0 0.0
    %6265 = vmatpush2.msra.mxu0 0.0
    %6266 = vmatprep.subr.mxu0 0.0
    %6267 = vmatpush2.msra.mxu0 0.0
    %6268 = vmatprep.mubr.f32.mxu0 0.0
    %6269 = vmatmul.mubr.f32.gmra.mxu0 %v6068
    %v6270 = vpop.f32.mrf.mxu0
    %v6271 = vadd.f32 %v5812, %v6270
    %v6272 = vpop.f32.mrf.mxu0
    %v6273 = vadd.f32 %v5814, %v6272
    %6274 = vdwg.mxu0
    %v6275 = vadd.f32 %v6200, %v108
    %v6276 = vadd.f32 %v6202, %v112
    %v6277 = vadd.f32 %v6271, %v116
    %v6278 = vadd.f32 %v6273, %v120
    %v6279 = vxor.u32 %v6275, 2147483648
    %v6280 = vmul.f32 %v6279, 1.442695
    %v6281 = vpow.pop %v6280
    %v6282 = vadd.f32 %v6281, 1.0
    %v6283 = vrcp.pop %v6282
    %v6284 = vmul.f32 1.0, %v6283
    %v6285 = vxor.u32 %v6276, 2147483648
    %v6286 = vmul.f32 %v6285, 1.442695
    %v6287 = vpow.pop %v6286
    %v6288 = vadd.f32 %v6287, 1.0
    %v6289 = vrcp.pop %v6288
    %v6290 = vmul.f32 1.0, %v6289
    %v6291 = vtanh.pop %v6277
    %v6292 = vxor.u32 %v6278, 2147483648
    %v6293 = vmul.f32 %v6292, 1.442695
    %v6294 = vpow.pop %v6293
    %v6295 = vadd.f32 %v6294, 1.0
    %v6296 = vrcp.pop %v6295
    %v6297 = vmul.f32 1.0, %v6296
    %v6298 = vmul.f32 %v6290, %v5518
    %v6299 = vmul.f32 %v6284, %v6291
    %v6300 = vadd.f32 %v6298, %v6299
    %v6301 = vtanh.pop %v6300
    %v6302 = vmul.f32 %v6297, %v6301
    %v6303 = vld [vmem:[#allocation14] sm:$0xff]
    %v6304 = vld [vmem:[#allocation14 + $0x8] sm:$0xff]
    %v6305 = vld [vmem:[#allocation14 + $0x10] sm:$0xff]
    %v6306 = vld [vmem:[#allocation14 + $0x18] sm:$0xff]
    %v6307 = vld [vmem:[#allocation14 + $0x20] sm:$0xff]
    %v6308 = vld [vmem:[#allocation14 + $0x28] sm:$0xff]
    %v6309 = vld [vmem:[#allocation14 + $0x30] sm:$0xff]
    %v6310 = vld [vmem:[#allocation14 + $0x38] sm:$0xff]
    %v6311 = vld [vmem:[#allocation14 + $0x40] sm:$0xff]
    %v6312 = vld [vmem:[#allocation14 + $0x48] sm:$0xff]
    %v6313 = vld [vmem:[#allocation14 + $0x50] sm:$0xff]
    %v6314 = vld [vmem:[#allocation14 + $0x58] sm:$0xff]
    %v6315 = vld [vmem:[#allocation14 + $0x60] sm:$0xff]
    %v6316 = vld [vmem:[#allocation14 + $0x68] sm:$0xff]
    %v6317 = vld [vmem:[#allocation14 + $0x70] sm:$0xff]
    %v6318 = vld [vmem:[#allocation14 + $0x78] sm:$0xff]
    %6319 = vmatprep.subr.mxu0 0.0
    %6320 = vmatpush1.msra.mxu0 %v6318
    %6321 = vmatprep.subr.mxu0 0.0
    %6322 = vmatpush1.msra.mxu0 %v6317
    %6323 = vmatprep.subr.mxu0 0.0
    %6324 = vmatpush1.msra.mxu0 %v6316
    %6325 = vmatprep.subr.mxu0 0.0
    %6326 = vmatpush1.msra.mxu0 %v6315
    %6327 = vmatprep.subr.mxu0 0.0
    %6328 = vmatpush1.msra.mxu0 %v6314
    %6329 = vmatprep.subr.mxu0 0.0
    %6330 = vmatpush1.msra.mxu0 %v6313
    %6331 = vmatprep.subr.mxu0 0.0
    %6332 = vmatpush1.msra.mxu0 %v6312
    %6333 = vmatprep.subr.mxu0 0.0
    %6334 = vmatpush1.msra.mxu0 %v6311
    %6335 = vmatprep.subr.mxu0 0.0
    %6336 = vmatpush1.msra.mxu0 %v6310
    %6337 = vmatprep.subr.mxu0 0.0
    %6338 = vmatpush1.msra.mxu0 %v6309
    %6339 = vmatprep.subr.mxu0 0.0
    %6340 = vmatpush1.msra.mxu0 %v6308
    %6341 = vmatprep.subr.mxu0 0.0
    %6342 = vmatpush1.msra.mxu0 %v6307
    %6343 = vmatprep.subr.mxu0 0.0
    %6344 = vmatpush1.msra.mxu0 %v6306
    %6345 = vmatprep.subr.mxu0 0.0
    %6346 = vmatpush1.msra.mxu0 %v6305
    %6347 = vmatprep.subr.mxu0 0.0
    %6348 = vmatpush1.msra.mxu0 %v6304
    %6349 = vmatprep.subr.mxu0 0.0
    %6350 = vmatpush1.msra.mxu0 %v6303
    %6351 = vmatprep.subr.mxu0 0.0
    %6352 = vmatpush2.msra.mxu0 0.0
    %6353 = vmatprep.subr.mxu0 0.0
    %6354 = vmatpush2.msra.mxu0 0.0
    %6355 = vmatprep.subr.mxu0 0.0
    %6356 = vmatpush2.msra.mxu0 0.0
    %6357 = vmatprep.subr.mxu0 0.0
    %6358 = vmatpush2.msra.mxu0 0.0
    %6359 = vmatprep.subr.mxu0 0.0
    %6360 = vmatpush2.msra.mxu0 0.0
    %6361 = vmatprep.subr.mxu0 0.0
    %6362 = vmatpush2.msra.mxu0 0.0
    %6363 = vmatprep.subr.mxu0 0.0
    %6364 = vmatpush2.msra.mxu0 0.0
    %6365 = vmatprep.subr.mxu0 0.0
    %6366 = vmatpush2.msra.mxu0 0.0
    %6367 = vmatprep.subr.mxu0 0.0
    %6368 = vmatpush2.msra.mxu0 0.0
    %6369 = vmatprep.subr.mxu0 0.0
    %6370 = vmatpush2.msra.mxu0 0.0
    %6371 = vmatprep.subr.mxu0 0.0
    %6372 = vmatpush2.msra.mxu0 0.0
    %6373 = vmatprep.subr.mxu0 0.0
    %6374 = vmatpush2.msra.mxu0 0.0
    %6375 = vmatprep.subr.mxu0 0.0
    %6376 = vmatpush2.msra.mxu0 0.0
    %6377 = vmatprep.subr.mxu0 0.0
    %6378 = vmatpush2.msra.mxu0 0.0
    %6379 = vmatprep.subr.mxu0 0.0
    %6380 = vmatpush2.msra.mxu0 0.0
    %6381 = vmatprep.subr.mxu0 0.0
    %6382 = vmatpush2.msra.mxu0 0.0
    %6383 = vmatprep.mubr.f32.mxu0 0.0
    %6384 = vmatmul.mubr.f32.gmra.mxu0 %v6302
    %v6385 = vpop.f32.mrf.mxu0
    %v6386 = vadd.f32 %v130, %v6385
    %v6387 = vpop.f32.mrf.mxu0
    %6388 = vdwg.mxu0
    %s6389 = scalar_lea.vmem [#allocation15], 56
    %6390 = vst [vmem:[%s6389] sm:$0xff] %v6386
    %6391 = vst [vmem:[#allocation2] sm:$0xff] %v6068
    %6392 = vst [vmem:[#allocation3] sm:$0xff] %v6066
    %6393 = vst [vmem:[#allocation4] sm:$0xff] %v6302
    %6394 = vst [vmem:[#allocation5] sm:$0xff] %v6300
    // Predicated region
    $region54: #{tpu_custom_call.1} parent=1 // pred_check
      _
    $region55: #{tpu_custom_call.1} parent=1 // pred_check_branch
      %6396 = sbr.rel (0) target = $region57
    $region56: #{tpu_custom_call.1} parent=1 // pred_region
      %s6398 = ssub.s32 1024, 1024
      %6399 = vsyncadd [#allocation8], %s6398
      %s6400 = sshll.u32 [#allocation15], 4
      %s6401 = int_to_ptr.vmem [resolvable:$true] %s6400
      %6406 = dma.vmem_to_hbm [thread:$0]  %s6401, 1024, %s7, [#allocation8], 128, 128, 8
    $region57: #{tpu_custom_call.1} parent=1 // pred_fallthru
      _
    // Predicated region
    $region58: #{tpu_custom_call.1} parent=1 // pred_check
      _
    $region59: #{tpu_custom_call.1} parent=1 // pred_check_branch
      %6408 = sbr.rel (0) target = $region61
    $region60: #{tpu_custom_call.1} parent=1 // pred_region
      %6409 = dma.done [#allocation8], 1024
    $region61: #{tpu_custom_call.1} parent=1 // pred_fallthru
      _
    %6410 = vsyncpa [#allocation7], 1
    %6411 = vsyncpa [#allocation10], 1
    %6412 = vsyncpa [#allocation13], 1
    %6413 = vsyncpa [#allocation8], 1

</llo_original>
